<compile_context>
chip_gen: v5e
topology: v5e:2x2
jax: 0.10.0
libtpu: 0.0.40
codegen_flags: <defaults>
</compile_context>

<pallas_src>
import jax
import jax.numpy as jnp
from jax.experimental import pallas as pl
from jax.experimental.pallas import tpu as pltpu

EPS = 1e-5  # PyTorch BatchNorm2d default eps


def _make_kernel(n, hh, ww, c_in, c_mid, c_out):
    """Builds the fused residual-block kernel for static shapes."""
    m = n * hh * ww
    inv_m = 1.0 / m

    def kernel(x_ref, w1_ref, w2_ref, w3_ref, w4_ref, b3_ref, b4_ref,
               g1_ref, be1_ref, g2_ref, be2_ref, g3_ref, be3_ref,
               o_ref, pad1_ref, pad2_ref):

        def bn_relu(v, g_ref, be_ref):
            # Training-mode BatchNorm: biased batch stats over (N,H,W) per
            # channel, computed in ONE pass (sum and sum-of-squares), all f32.
            mean = jnp.sum(v, axis=0, keepdims=True) * inv_m
            mean_sq = jnp.sum(v * v, axis=0, keepdims=True) * inv_m
            var = mean_sq - mean * mean
            y = (v - mean) * jax.lax.rsqrt(var + EPS) * g_ref[...] + be_ref[...]
            return jnp.maximum(y, 0.0)  # ReLU

        def conv3x3(act, pad_ref, w_ref, c):
            # act: (M, c).  Zero-pad spatially in a VMEM scratch, gather the
            # nine shifted taps in-kernel, and issue ONE (M, 9c) @ (9c, c_out)
            # MXU matmul (instead of 9 tiny per-tap matmuls / HBM im2col).
            # Only the 1-pixel halo really needs zeroing; zeroing the whole
            # scratch is cheap and simpler.
            pad_ref[...] = jnp.zeros(pad_ref.shape, jnp.float32)
            pad_ref[:, 1:hh + 1, 1:ww + 1, :] = act.reshape(n, hh, ww, c)
            taps = [
                pad_ref[:, ky:ky + hh, kx:kx + ww, :].reshape(m, c)
                for ky in range(3)
                for kx in range(3)
            ]
            patches = jnp.concatenate(taps, axis=-1)          # (M, 9c)
            return jnp.dot(patches, w_ref[...],
                           preferred_element_type=jnp.float32)

        x = x_ref[...]                                        # (M, C_in)
        h0 = bn_relu(x, g1_ref, be1_ref)                      # BN1 + ReLU
        # conv1 bias dropped: cancels exactly in BN2's mean subtraction.
        h1 = conv3x3(h0, pad1_ref, w1_ref, c_in)              # (M, C_mid)
        h2 = bn_relu(h1, g2_ref, be2_ref)                     # BN2 + ReLU
        # conv2 bias dropped: cancels exactly in BN3's mean subtraction.
        h3 = conv3x3(h2, pad2_ref, w2_ref, c_mid)             # (M, C_mid)
        h4 = bn_relu(h3, g3_ref, be3_ref)                     # BN3 + ReLU

        # Final 1x1 conv of the residual branch, fused 1x1-conv shortcut, add.
        out = jnp.dot(h4, w3_ref[...],
                      preferred_element_type=jnp.float32) + b3_ref[...]
        res = jnp.dot(x, w4_ref[...],
                      preferred_element_type=jnp.float32) + b4_ref[...]
        o_ref[...] = out + res

    return kernel


def _full_spec(shape):
    zeros = (0,) * len(shape)
    return pl.BlockSpec(shape, lambda: zeros)


@jax.jit
def residual_block_forward(x_nchw, params):
    """Pallas equivalent of residual_block.forward (stride=1). NCHW in/out."""
    n, c_in, hh, ww = x_nchw.shape
    w1, w2, w3, w4 = params["w1"], params["w2"], params["w3"], params["w4"]
    c_mid = w1.shape[0]
    c_out = w3.shape[0]
    m = n * hh * ww

    # NCHW -> NHWC -> flattened channels-last (M, C) slab.
    x2d = jnp.transpose(x_nchw, (0, 2, 3, 1)).astype(jnp.float32).reshape(m, c_in)
    # 3x3 OIHW -> (ky, kx, C_in, C_out') -> (9*C_in, C_out'): one fused matmul.
    w1f = jnp.transpose(w1, (2, 3, 1, 0)).reshape(9 * c_in, c_mid).astype(jnp.float32)
    w2f = jnp.transpose(w2, (2, 3, 1, 0)).reshape(9 * c_mid, c_mid).astype(jnp.float32)
    # 1x1 convs -> plain (C_in', C_out) matmuls.
    w3f = jnp.transpose(w3.reshape(c_out, c_mid), (1, 0)).astype(jnp.float32)
    w4f = jnp.transpose(w4.reshape(c_out, c_in), (1, 0)).astype(jnp.float32)
    b3 = params["b3"].reshape(1, c_out).astype(jnp.float32)
    b4 = params["b4"].reshape(1, c_out).astype(jnp.float32)
    g1 = params["g1"].reshape(1, c_in).astype(jnp.float32)
    be1 = params["be1"].reshape(1, c_in).astype(jnp.float32)
    g2 = params["g2"].reshape(1, c_mid).astype(jnp.float32)
    be2 = params["be2"].reshape(1, c_mid).astype(jnp.float32)
    g3 = params["g3"].reshape(1, c_mid).astype(jnp.float32)
    be3 = params["be3"].reshape(1, c_mid).astype(jnp.float32)

    kernel = _make_kernel(n, hh, ww, c_in, c_mid, c_out)

    flops = (2 * m * (9 * c_in * c_mid + 9 * c_mid * c_mid
                      + c_mid * c_out + c_in * c_out)
             + 12 * m * (c_in + 2 * c_mid) + 4 * m * c_out)
    bytes_accessed = 4 * (m * c_in + m * c_out
                          + 9 * c_in * c_mid + 9 * c_mid * c_mid
                          + c_mid * c_out + c_in * c_out
                          + 2 * c_out + 2 * c_in + 4 * c_mid)

    out2d = pl.pallas_call(
        kernel,
        out_shape=jax.ShapeDtypeStruct((m, c_out), jnp.float32),
        in_specs=[
            _full_spec((m, c_in)),
            _full_spec((9 * c_in, c_mid)),
            _full_spec((9 * c_mid, c_mid)),
            _full_spec((c_mid, c_out)),
            _full_spec((c_in, c_out)),
            _full_spec((1, c_out)), _full_spec((1, c_out)),
            _full_spec((1, c_in)), _full_spec((1, c_in)),
            _full_spec((1, c_mid)), _full_spec((1, c_mid)),
            _full_spec((1, c_mid)), _full_spec((1, c_mid)),
        ],
        out_specs=_full_spec((m, c_out)),
        scratch_shapes=[
            pltpu.VMEM((n, hh + 2, ww + 2, c_in), jnp.float32),   # conv1 halo pad
            pltpu.VMEM((n, hh + 2, ww + 2, c_mid), jnp.float32),  # conv2 halo pad
        ],
        compiler_params=pltpu.CompilerParams(vmem_limit_bytes=32 * 1024 * 1024),
        cost_estimate=pl.CostEstimate(flops=flops,
                                      transcendentals=c_in + 2 * c_mid,
                                      bytes_accessed=bytes_accessed),
    )(x2d, w1f, w2f, w3f, w4f, b3, b4, g1, be1, g2, be2, g3, be3)

    return jnp.transpose(out2d.reshape(n, hh, ww, c_out), (0, 3, 1, 2))


def _reference(x_nchw, params):
    """Plain-JAX reference with the exact module semantics (biases included)."""
    x = jnp.transpose(x_nchw, (0, 2, 3, 1)).astype(jnp.float32)

    def bn_relu(v, g, be):
        mean = jnp.mean(v, axis=(0, 1, 2), keepdims=True)
        var = jnp.mean((v - mean) ** 2, axis=(0, 1, 2), keepdims=True)
        return jnp.maximum((v - mean) * jax.lax.rsqrt(var + EPS) * g + be, 0.0)

    def conv(v, w_oihw, b, padding):
        w_hwio = jnp.transpose(w_oihw, (2, 3, 1, 0))
        return jax.lax.conv_general_dilated(
            v, w_hwio, window_strides=(1, 1), padding=padding,
            dimension_numbers=("NHWC", "HWIO", "NHWC")) + b

    h = bn_relu(x, params["g1"], params["be1"])
    h = conv(h, params["w1"], params["b1"], "SAME")
    h = bn_relu(h, params["g2"], params["be2"])
    h = conv(h, params["w2"], params["b2"], "SAME")
    h = bn_relu(h, params["g3"], params["be3"])
    out = conv(h, params["w3"], params["b3"], "VALID")   # 1x1
    res = conv(x, params["w4"], params["b4"], "VALID")   # 1x1 shortcut on raw x
    return jnp.transpose(out + res, (0, 3, 1, 2))


if __name__ == "__main__":
    N, C_IN, C_OUT, H, W = 2, 4, 16, 16, 16
    C_MID = C_OUT // 4  # = 4

    key = jax.random.PRNGKey(0)
    ks = jax.random.split(key, 15)

    def uconv(k, shape, fan_in):
        bound = 1.0 / (fan_in ** 0.5)
        return jax.random.uniform(k, shape, jnp.float32, -bound, bound)

    x = jax.random.normal(ks[0], (N, C_IN, H, W), jnp.float32)
    params = dict(
        g1=1.0 + 0.1 * jax.random.normal(ks[1], (C_IN,), jnp.float32),
        be1=0.1 * jax.random.normal(ks[2], (C_IN,), jnp.float32),
        w1=uconv(ks[3], (C_MID, C_IN, 3, 3), C_IN * 9),
        b1=uconv(ks[4], (C_MID,), C_IN * 9),
        g2=1.0 + 0.1 * jax.random.normal(ks[5], (C_MID,), jnp.float32),
        be2=0.1 * jax.random.normal(ks[6], (C_MID,), jnp.float32),
        w2=uconv(ks[7], (C_MID, C_MID, 3, 3), C_MID * 9),
        b2=uconv(ks[8], (C_MID,), C_MID * 9),
        g3=1.0 + 0.1 * jax.random.normal(ks[9], (C_MID,), jnp.float32),
        be3=0.1 * jax.random.normal(ks[10], (C_MID,), jnp.float32),
        w3=uconv(ks[11], (C_OUT, C_MID, 1, 1), C_MID),
        b3=uconv(ks[12], (C_OUT,), C_MID),
        w4=uconv(ks[13], (C_OUT, C_IN, 1, 1), C_IN),
        b4=uconv(ks[14], (C_OUT,), C_IN),
    )

    out = jax.block_until_ready(residual_block_forward(x, params))
    ref = _reference(x, params)

    assert out.shape == (N, C_OUT, H, W), out.shape
    max_err = float(jnp.max(jnp.abs(out - ref)))
    assert max_err < 1e-3, f"max abs error too large: {max_err}"
    print("KERNEL_OK")
</pallas_src>

<mosaic_0001>
module attributes {stable_mosaic.version = 11 : i64} {
  func.func @kernel(%arg0: memref<512x4xf32, #tpu.memory_space<vmem>>, %arg1: memref<36x4xf32, #tpu.memory_space<vmem>>, %arg2: memref<36x4xf32, #tpu.memory_space<vmem>>, %arg3: memref<4x16xf32, #tpu.memory_space<vmem>>, %arg4: memref<4x16xf32, #tpu.memory_space<vmem>>, %arg5: memref<1x16xf32, #tpu.memory_space<vmem>>, %arg6: memref<1x16xf32, #tpu.memory_space<vmem>>, %arg7: memref<1x4xf32, #tpu.memory_space<vmem>>, %arg8: memref<1x4xf32, #tpu.memory_space<vmem>>, %arg9: memref<1x4xf32, #tpu.memory_space<vmem>>, %arg10: memref<1x4xf32, #tpu.memory_space<vmem>>, %arg11: memref<1x4xf32, #tpu.memory_space<vmem>>, %arg12: memref<1x4xf32, #tpu.memory_space<vmem>>, %arg13: memref<512x16xf32, #tpu.memory_space<vmem>>, %arg14: memref<2x18x18x4xf32, #tpu.memory_space<vmem>>, %arg15: memref<2x18x18x4xf32, #tpu.memory_space<vmem>>) attributes {dimension_semantics = [], scalar_prefetch = 0 : i64, scratch_operands = 2 : i64, tpu.core_type = #tpu.core_type<tc>} {
    %c0 = arith.constant 0 : index
    %c0_0 = arith.constant 0 : index
    %0 = vector.load %arg0[%c0, %c0_0] : memref<512x4xf32, #tpu.memory_space<vmem>>, vector<512x4xf32>
    %cst = arith.constant dense<0.000000e+00> : vector<4xf32>
    %1 = vector.multi_reduction <add>, %0, %cst [0] : vector<512x4xf32> to vector<4xf32>
    %2 = vector.shape_cast %1 : vector<4xf32> to vector<1x4xf32>
    %cst_1 = arith.constant 0.001953125 : f32
    %3 = vector.broadcast %cst_1 : f32 to vector<1x4xf32>
    %4 = arith.mulf %2, %3 : vector<1x4xf32>
    %5 = arith.mulf %0, %0 : vector<512x4xf32>
    %cst_2 = arith.constant dense<0.000000e+00> : vector<4xf32>
    %6 = vector.multi_reduction <add>, %5, %cst_2 [0] : vector<512x4xf32> to vector<4xf32>
    %7 = vector.shape_cast %6 : vector<4xf32> to vector<1x4xf32>
    %cst_3 = arith.constant 0.001953125 : f32
    %8 = vector.broadcast %cst_3 : f32 to vector<1x4xf32>
    %9 = arith.mulf %7, %8 : vector<1x4xf32>
    %10 = arith.mulf %4, %4 : vector<1x4xf32>
    %11 = arith.subf %9, %10 : vector<1x4xf32>
    %12 = vector.broadcast %4 : vector<1x4xf32> to vector<512x4xf32>
    %13 = arith.subf %0, %12 : vector<512x4xf32>
    %cst_4 = arith.constant 9.99999974E-6 : f32
    %14 = vector.broadcast %cst_4 : f32 to vector<1x4xf32>
    %15 = arith.addf %11, %14 : vector<1x4xf32>
    %16 = math.rsqrt %15 : vector<1x4xf32>
    %17 = vector.broadcast %16 : vector<1x4xf32> to vector<512x4xf32>
    %18 = arith.mulf %13, %17 : vector<512x4xf32>
    %c0_5 = arith.constant 0 : index
    %c0_6 = arith.constant 0 : index
    %19 = vector.load %arg7[%c0_5, %c0_6] : memref<1x4xf32, #tpu.memory_space<vmem>>, vector<1x4xf32>
    %20 = vector.broadcast %19 : vector<1x4xf32> to vector<512x4xf32>
    %21 = arith.mulf %18, %20 : vector<512x4xf32>
    %c0_7 = arith.constant 0 : index
    %c0_8 = arith.constant 0 : index
    %22 = vector.load %arg8[%c0_7, %c0_8] : memref<1x4xf32, #tpu.memory_space<vmem>>, vector<1x4xf32>
    %23 = vector.broadcast %22 : vector<1x4xf32> to vector<512x4xf32>
    %24 = arith.addf %21, %23 : vector<512x4xf32>
    %cst_9 = arith.constant 0.000000e+00 : f32
    %25 = vector.broadcast %cst_9 : f32 to vector<512x4xf32>
    %26 = arith.maximumf %24, %25 : vector<512x4xf32>
    %cst_10 = arith.constant 0.000000e+00 : f32
    %27 = vector.broadcast %cst_10 : f32 to vector<2x18x18x4xf32>
    %c0_11 = arith.constant 0 : index
    %c0_12 = arith.constant 0 : index
    %c0_13 = arith.constant 0 : index
    %c0_14 = arith.constant 0 : index
    %28 = vector.load %arg14[%c0_11, %c0_12, %c0_13, %c0_14] : memref<2x18x18x4xf32, #tpu.memory_space<vmem>>, vector<2x18x18x4xf32>
    tpu.vector_store %arg14[%c0_11, %c0_12, %c0_13, %c0_14], %27 {strides = array<i32>} : memref<2x18x18x4xf32, #tpu.memory_space<vmem>>, vector<2x18x18x4xf32>,
    %29 = vector.shape_cast %26 : vector<512x4xf32> to vector<2x16x16x4xf32>
    %c0_15 = arith.constant 0 : index
    %c1 = arith.constant 1 : index
    %c1_16 = arith.constant 1 : index
    %c0_17 = arith.constant 0 : index
    %30 = vector.load %arg14[%c0_15, %c1, %c1_16, %c0_17] : memref<2x18x18x4xf32, #tpu.memory_space<vmem>>, vector<2x16x16x4xf32>
    tpu.vector_store %arg14[%c0_15, %c1, %c1_16, %c0_17], %29 {strides = array<i32>} : memref<2x18x18x4xf32, #tpu.memory_space<vmem>>, vector<2x16x16x4xf32>,
    %c0_18 = arith.constant 0 : index
    %c0_19 = arith.constant 0 : index
    %c0_20 = arith.constant 0 : index
    %c0_21 = arith.constant 0 : index
    %31 = vector.load %arg14[%c0_18, %c0_19, %c0_20, %c0_21] : memref<2x18x18x4xf32, #tpu.memory_space<vmem>>, vector<2x16x16x4xf32>
    %32 = vector.shape_cast %31 : vector<2x16x16x4xf32> to vector<512x4xf32>
    %c0_22 = arith.constant 0 : index
    %c0_23 = arith.constant 0 : index
    %c1_24 = arith.constant 1 : index
    %c0_25 = arith.constant 0 : index
    %33 = vector.load %arg14[%c0_22, %c0_23, %c1_24, %c0_25] : memref<2x18x18x4xf32, #tpu.memory_space<vmem>>, vector<2x16x16x4xf32>
    %34 = vector.shape_cast %33 : vector<2x16x16x4xf32> to vector<512x4xf32>
    %c0_26 = arith.constant 0 : index
    %c0_27 = arith.constant 0 : index
    %c2 = arith.constant 2 : index
    %c0_28 = arith.constant 0 : index
    %35 = vector.load %arg14[%c0_26, %c0_27, %c2, %c0_28] : memref<2x18x18x4xf32, #tpu.memory_space<vmem>>, vector<2x16x16x4xf32>
    %36 = vector.shape_cast %35 : vector<2x16x16x4xf32> to vector<512x4xf32>
    %c0_29 = arith.constant 0 : index
    %c1_30 = arith.constant 1 : index
    %c0_31 = arith.constant 0 : index
    %c0_32 = arith.constant 0 : index
    %37 = vector.load %arg14[%c0_29, %c1_30, %c0_31, %c0_32] : memref<2x18x18x4xf32, #tpu.memory_space<vmem>>, vector<2x16x16x4xf32>
    %38 = vector.shape_cast %37 : vector<2x16x16x4xf32> to vector<512x4xf32>
    %c0_33 = arith.constant 0 : index
    %c1_34 = arith.constant 1 : index
    %c1_35 = arith.constant 1 : index
    %c0_36 = arith.constant 0 : index
    %39 = vector.load %arg14[%c0_33, %c1_34, %c1_35, %c0_36] : memref<2x18x18x4xf32, #tpu.memory_space<vmem>>, vector<2x16x16x4xf32>
    %40 = vector.shape_cast %39 : vector<2x16x16x4xf32> to vector<512x4xf32>
    %c0_37 = arith.constant 0 : index
    %c1_38 = arith.constant 1 : index
    %c2_39 = arith.constant 2 : index
    %c0_40 = arith.constant 0 : index
    %41 = vector.load %arg14[%c0_37, %c1_38, %c2_39, %c0_40] : memref<2x18x18x4xf32, #tpu.memory_space<vmem>>, vector<2x16x16x4xf32>
    %42 = vector.shape_cast %41 : vector<2x16x16x4xf32> to vector<512x4xf32>
    %c0_41 = arith.constant 0 : index
    %c2_42 = arith.constant 2 : index
    %c0_43 = arith.constant 0 : index
    %c0_44 = arith.constant 0 : index
    %43 = vector.load %arg14[%c0_41, %c2_42, %c0_43, %c0_44] : memref<2x18x18x4xf32, #tpu.memory_space<vmem>>, vector<2x16x16x4xf32>
    %44 = vector.shape_cast %43 : vector<2x16x16x4xf32> to vector<512x4xf32>
    %c0_45 = arith.constant 0 : index
    %c2_46 = arith.constant 2 : index
    %c1_47 = arith.constant 1 : index
    %c0_48 = arith.constant 0 : index
    %45 = vector.load %arg14[%c0_45, %c2_46, %c1_47, %c0_48] : memref<2x18x18x4xf32, #tpu.memory_space<vmem>>, vector<2x16x16x4xf32>
    %46 = vector.shape_cast %45 : vector<2x16x16x4xf32> to vector<512x4xf32>
    %c0_49 = arith.constant 0 : index
    %c2_50 = arith.constant 2 : index
    %c2_51 = arith.constant 2 : index
    %c0_52 = arith.constant 0 : index
    %47 = vector.load %arg14[%c0_49, %c2_50, %c2_51, %c0_52] : memref<2x18x18x4xf32, #tpu.memory_space<vmem>>, vector<2x16x16x4xf32>
    %48 = vector.shape_cast %47 : vector<2x16x16x4xf32> to vector<512x4xf32>
    %49 = tpu.concatenate %32, %34, %36, %38, %40, %42, %44, %46, %48 in 1 : vector<512x4xf32>, vector<512x4xf32>, vector<512x4xf32>, vector<512x4xf32>, vector<512x4xf32>, vector<512x4xf32>, vector<512x4xf32>, vector<512x4xf32>, vector<512x4xf32> -> vector<512x36xf32>
    %c0_53 = arith.constant 0 : index
    %c0_54 = arith.constant 0 : index
    %50 = vector.load %arg1[%c0_53, %c0_54] : memref<36x4xf32, #tpu.memory_space<vmem>>, vector<36x4xf32>
    %cst_55 = arith.constant dense<0.000000e+00> : vector<512x4xf32>
    %51 = tpu.matmul %49, %50, %cst_55 {dimension_numbers = #tpu.dot_dimension_numbers<[1], [0], [0], [1], [0, 0, 1, 1], [], []>} : vector<512x36xf32>, vector<36x4xf32>, vector<512x4xf32> -> vector<512x4xf32>
    %cst_56 = arith.constant dense<0.000000e+00> : vector<4xf32>
    %52 = vector.multi_reduction <add>, %51, %cst_56 [0] : vector<512x4xf32> to vector<4xf32>
    %53 = vector.shape_cast %52 : vector<4xf32> to vector<1x4xf32>
    %cst_57 = arith.constant 0.001953125 : f32
    %54 = vector.broadcast %cst_57 : f32 to vector<1x4xf32>
    %55 = arith.mulf %53, %54 : vector<1x4xf32>
    %56 = arith.mulf %51, %51 : vector<512x4xf32>
    %cst_58 = arith.constant dense<0.000000e+00> : vector<4xf32>
    %57 = vector.multi_reduction <add>, %56, %cst_58 [0] : vector<512x4xf32> to vector<4xf32>
    %58 = vector.shape_cast %57 : vector<4xf32> to vector<1x4xf32>
    %cst_59 = arith.constant 0.001953125 : f32
    %59 = vector.broadcast %cst_59 : f32 to vector<1x4xf32>
    %60 = arith.mulf %58, %59 : vector<1x4xf32>
    %61 = arith.mulf %55, %55 : vector<1x4xf32>
    %62 = arith.subf %60, %61 : vector<1x4xf32>
    %63 = vector.broadcast %55 : vector<1x4xf32> to vector<512x4xf32>
    %64 = arith.subf %51, %63 : vector<512x4xf32>
    %cst_60 = arith.constant 9.99999974E-6 : f32
    %65 = vector.broadcast %cst_60 : f32 to vector<1x4xf32>
    %66 = arith.addf %62, %65 : vector<1x4xf32>
    %67 = math.rsqrt %66 : vector<1x4xf32>
    %68 = vector.broadcast %67 : vector<1x4xf32> to vector<512x4xf32>
    %69 = arith.mulf %64, %68 : vector<512x4xf32>
    %c0_61 = arith.constant 0 : index
    %c0_62 = arith.constant 0 : index
    %70 = vector.load %arg9[%c0_61, %c0_62] : memref<1x4xf32, #tpu.memory_space<vmem>>, vector<1x4xf32>
    %71 = vector.broadcast %70 : vector<1x4xf32> to vector<512x4xf32>
    %72 = arith.mulf %69, %71 : vector<512x4xf32>
    %c0_63 = arith.constant 0 : index
    %c0_64 = arith.constant 0 : index
    %73 = vector.load %arg10[%c0_63, %c0_64] : memref<1x4xf32, #tpu.memory_space<vmem>>, vector<1x4xf32>
    %74 = vector.broadcast %73 : vector<1x4xf32> to vector<512x4xf32>
    %75 = arith.addf %72, %74 : vector<512x4xf32>
    %cst_65 = arith.constant 0.000000e+00 : f32
    %76 = vector.broadcast %cst_65 : f32 to vector<512x4xf32>
    %77 = arith.maximumf %75, %76 : vector<512x4xf32>
    %cst_66 = arith.constant 0.000000e+00 : f32
    %78 = vector.broadcast %cst_66 : f32 to vector<2x18x18x4xf32>
    %c0_67 = arith.constant 0 : index
    %c0_68 = arith.constant 0 : index
    %c0_69 = arith.constant 0 : index
    %c0_70 = arith.constant 0 : index
    %79 = vector.load %arg15[%c0_67, %c0_68, %c0_69, %c0_70] : memref<2x18x18x4xf32, #tpu.memory_space<vmem>>, vector<2x18x18x4xf32>
    tpu.vector_store %arg15[%c0_67, %c0_68, %c0_69, %c0_70], %78 {strides = array<i32>} : memref<2x18x18x4xf32, #tpu.memory_space<vmem>>, vector<2x18x18x4xf32>,
    %80 = vector.shape_cast %77 : vector<512x4xf32> to vector<2x16x16x4xf32>
    %c0_71 = arith.constant 0 : index
    %c1_72 = arith.constant 1 : index
    %c1_73 = arith.constant 1 : index
    %c0_74 = arith.constant 0 : index
    %81 = vector.load %arg15[%c0_71, %c1_72, %c1_73, %c0_74] : memref<2x18x18x4xf32, #tpu.memory_space<vmem>>, vector<2x16x16x4xf32>
    tpu.vector_store %arg15[%c0_71, %c1_72, %c1_73, %c0_74], %80 {strides = array<i32>} : memref<2x18x18x4xf32, #tpu.memory_space<vmem>>, vector<2x16x16x4xf32>,
    %c0_75 = arith.constant 0 : index
    %c0_76 = arith.constant 0 : index
    %c0_77 = arith.constant 0 : index
    %c0_78 = arith.constant 0 : index
    %82 = vector.load %arg15[%c0_75, %c0_76, %c0_77, %c0_78] : memref<2x18x18x4xf32, #tpu.memory_space<vmem>>, vector<2x16x16x4xf32>
    %83 = vector.shape_cast %82 : vector<2x16x16x4xf32> to vector<512x4xf32>
    %c0_79 = arith.constant 0 : index
    %c0_80 = arith.constant 0 : index
    %c1_81 = arith.constant 1 : index
    %c0_82 = arith.constant 0 : index
    %84 = vector.load %arg15[%c0_79, %c0_80, %c1_81, %c0_82] : memref<2x18x18x4xf32, #tpu.memory_space<vmem>>, vector<2x16x16x4xf32>
    %85 = vector.shape_cast %84 : vector<2x16x16x4xf32> to vector<512x4xf32>
    %c0_83 = arith.constant 0 : index
    %c0_84 = arith.constant 0 : index
    %c2_85 = arith.constant 2 : index
    %c0_86 = arith.constant 0 : index
    %86 = vector.load %arg15[%c0_83, %c0_84, %c2_85, %c0_86] : memref<2x18x18x4xf32, #tpu.memory_space<vmem>>, vector<2x16x16x4xf32>
    %87 = vector.shape_cast %86 : vector<2x16x16x4xf32> to vector<512x4xf32>
    %c0_87 = arith.constant 0 : index
    %c1_88 = arith.constant 1 : index
    %c0_89 = arith.constant 0 : index
    %c0_90 = arith.constant 0 : index
    %88 = vector.load %arg15[%c0_87, %c1_88, %c0_89, %c0_90] : memref<2x18x18x4xf32, #tpu.memory_space<vmem>>, vector<2x16x16x4xf32>
    %89 = vector.shape_cast %88 : vector<2x16x16x4xf32> to vector<512x4xf32>
    %c0_91 = arith.constant 0 : index
    %c1_92 = arith.constant 1 : index
    %c1_93 = arith.constant 1 : index
    %c0_94 = arith.constant 0 : index
    %90 = vector.load %arg15[%c0_91, %c1_92, %c1_93, %c0_94] : memref<2x18x18x4xf32, #tpu.memory_space<vmem>>, vector<2x16x16x4xf32>
    %91 = vector.shape_cast %90 : vector<2x16x16x4xf32> to vector<512x4xf32>
    %c0_95 = arith.constant 0 : index
    %c1_96 = arith.constant 1 : index
    %c2_97 = arith.constant 2 : index
    %c0_98 = arith.constant 0 : index
    %92 = vector.load %arg15[%c0_95, %c1_96, %c2_97, %c0_98] : memref<2x18x18x4xf32, #tpu.memory_space<vmem>>, vector<2x16x16x4xf32>
    %93 = vector.shape_cast %92 : vector<2x16x16x4xf32> to vector<512x4xf32>
    %c0_99 = arith.constant 0 : index
    %c2_100 = arith.constant 2 : index
    %c0_101 = arith.constant 0 : index
    %c0_102 = arith.constant 0 : index
    %94 = vector.load %arg15[%c0_99, %c2_100, %c0_101, %c0_102] : memref<2x18x18x4xf32, #tpu.memory_space<vmem>>, vector<2x16x16x4xf32>
    %95 = vector.shape_cast %94 : vector<2x16x16x4xf32> to vector<512x4xf32>
    %c0_103 = arith.constant 0 : index
    %c2_104 = arith.constant 2 : index
    %c1_105 = arith.constant 1 : index
    %c0_106 = arith.constant 0 : index
    %96 = vector.load %arg15[%c0_103, %c2_104, %c1_105, %c0_106] : memref<2x18x18x4xf32, #tpu.memory_space<vmem>>, vector<2x16x16x4xf32>
    %97 = vector.shape_cast %96 : vector<2x16x16x4xf32> to vector<512x4xf32>
    %c0_107 = arith.constant 0 : index
    %c2_108 = arith.constant 2 : index
    %c2_109 = arith.constant 2 : index
    %c0_110 = arith.constant 0 : index
    %98 = vector.load %arg15[%c0_107, %c2_108, %c2_109, %c0_110] : memref<2x18x18x4xf32, #tpu.memory_space<vmem>>, vector<2x16x16x4xf32>
    %99 = vector.shape_cast %98 : vector<2x16x16x4xf32> to vector<512x4xf32>
    %100 = tpu.concatenate %83, %85, %87, %89, %91, %93, %95, %97, %99 in 1 : vector<512x4xf32>, vector<512x4xf32>, vector<512x4xf32>, vector<512x4xf32>, vector<512x4xf32>, vector<512x4xf32>, vector<512x4xf32>, vector<512x4xf32>, vector<512x4xf32> -> vector<512x36xf32>
    %c0_111 = arith.constant 0 : index
    %c0_112 = arith.constant 0 : index
    %101 = vector.load %arg2[%c0_111, %c0_112] : memref<36x4xf32, #tpu.memory_space<vmem>>, vector<36x4xf32>
    %cst_113 = arith.constant dense<0.000000e+00> : vector<512x4xf32>
    %102 = tpu.matmul %100, %101, %cst_113 {dimension_numbers = #tpu.dot_dimension_numbers<[1], [0], [0], [1], [0, 0, 1, 1], [], []>} : vector<512x36xf32>, vector<36x4xf32>, vector<512x4xf32> -> vector<512x4xf32>
    %cst_114 = arith.constant dense<0.000000e+00> : vector<4xf32>
    %103 = vector.multi_reduction <add>, %102, %cst_114 [0] : vector<512x4xf32> to vector<4xf32>
    %104 = vector.shape_cast %103 : vector<4xf32> to vector<1x4xf32>
    %cst_115 = arith.constant 0.001953125 : f32
    %105 = vector.broadcast %cst_115 : f32 to vector<1x4xf32>
    %106 = arith.mulf %104, %105 : vector<1x4xf32>
    %107 = arith.mulf %102, %102 : vector<512x4xf32>
    %cst_116 = arith.constant dense<0.000000e+00> : vector<4xf32>
    %108 = vector.multi_reduction <add>, %107, %cst_116 [0] : vector<512x4xf32> to vector<4xf32>
    %109 = vector.shape_cast %108 : vector<4xf32> to vector<1x4xf32>
    %cst_117 = arith.constant 0.001953125 : f32
    %110 = vector.broadcast %cst_117 : f32 to vector<1x4xf32>
    %111 = arith.mulf %109, %110 : vector<1x4xf32>
    %112 = arith.mulf %106, %106 : vector<1x4xf32>
    %113 = arith.subf %111, %112 : vector<1x4xf32>
    %114 = vector.broadcast %106 : vector<1x4xf32> to vector<512x4xf32>
    %115 = arith.subf %102, %114 : vector<512x4xf32>
    %cst_118 = arith.constant 9.99999974E-6 : f32
    %116 = vector.broadcast %cst_118 : f32 to vector<1x4xf32>
    %117 = arith.addf %113, %116 : vector<1x4xf32>
    %118 = math.rsqrt %117 : vector<1x4xf32>
    %119 = vector.broadcast %118 : vector<1x4xf32> to vector<512x4xf32>
    %120 = arith.mulf %115, %119 : vector<512x4xf32>
    %c0_119 = arith.constant 0 : index
    %c0_120 = arith.constant 0 : index
    %121 = vector.load %arg11[%c0_119, %c0_120] : memref<1x4xf32, #tpu.memory_space<vmem>>, vector<1x4xf32>
    %122 = vector.broadcast %121 : vector<1x4xf32> to vector<512x4xf32>
    %123 = arith.mulf %120, %122 : vector<512x4xf32>
    %c0_121 = arith.constant 0 : index
    %c0_122 = arith.constant 0 : index
    %124 = vector.load %arg12[%c0_121, %c0_122] : memref<1x4xf32, #tpu.memory_space<vmem>>, vector<1x4xf32>
    %125 = vector.broadcast %124 : vector<1x4xf32> to vector<512x4xf32>
    %126 = arith.addf %123, %125 : vector<512x4xf32>
    %cst_123 = arith.constant 0.000000e+00 : f32
    %127 = vector.broadcast %cst_123 : f32 to vector<512x4xf32>
    %128 = arith.maximumf %126, %127 : vector<512x4xf32>
    %c0_124 = arith.constant 0 : index
    %c0_125 = arith.constant 0 : index
    %129 = vector.load %arg3[%c0_124, %c0_125] : memref<4x16xf32, #tpu.memory_space<vmem>>, vector<4x16xf32>
    %cst_126 = arith.constant dense<0.000000e+00> : vector<512x16xf32>
    %130 = tpu.matmul %128, %129, %cst_126 {dimension_numbers = #tpu.dot_dimension_numbers<[1], [0], [0], [1], [0, 0, 1, 1], [], []>} : vector<512x4xf32>, vector<4x16xf32>, vector<512x16xf32> -> vector<512x16xf32>
    %c0_127 = arith.constant 0 : index
    %c0_128 = arith.constant 0 : index
    %131 = vector.load %arg5[%c0_127, %c0_128] : memref<1x16xf32, #tpu.memory_space<vmem>>, vector<1x16xf32>
    %132 = vector.broadcast %131 : vector<1x16xf32> to vector<512x16xf32>
    %133 = arith.addf %130, %132 : vector<512x16xf32>
    %c0_129 = arith.constant 0 : index
    %c0_130 = arith.constant 0 : index
    %134 = vector.load %arg4[%c0_129, %c0_130] : memref<4x16xf32, #tpu.memory_space<vmem>>, vector<4x16xf32>
    %cst_131 = arith.constant dense<0.000000e+00> : vector<512x16xf32>
    %135 = tpu.matmul %0, %134, %cst_131 {dimension_numbers = #tpu.dot_dimension_numbers<[1], [0], [0], [1], [0, 0, 1, 1], [], []>} : vector<512x4xf32>, vector<4x16xf32>, vector<512x16xf32> -> vector<512x16xf32>
    %c0_132 = arith.constant 0 : index
    %c0_133 = arith.constant 0 : index
    %136 = vector.load %arg6[%c0_132, %c0_133] : memref<1x16xf32, #tpu.memory_space<vmem>>, vector<1x16xf32>
    %137 = vector.broadcast %136 : vector<1x16xf32> to vector<512x16xf32>
    %138 = arith.addf %135, %137 : vector<512x16xf32>
    %139 = arith.addf %133, %138 : vector<512x16xf32>
    %c0_134 = arith.constant 0 : index
    %c0_135 = arith.constant 0 : index
    %140 = vector.load %arg13[%c0_134, %c0_135] : memref<512x16xf32, #tpu.memory_space<vmem>>, vector<512x16xf32>
    tpu.vector_store %arg13[%c0_134, %c0_135], %139 {strides = array<i32>} : memref<512x16xf32, #tpu.memory_space<vmem>>, vector<512x16xf32>,
    return
  }
}

</mosaic_0001>

<llo_original>
// kernel: residual_block_forward.1
$region0: #{residual_block_forward.1}
  #allocation0 [shape = 'u32[]', space=smem, size = 0x4, offset = 0x4, fixed_abs, tag = 'smem constant byte address 0x4 - core index']
  #allocation1 [shape = 'u32[72,128]{1,0:T(1,128)}', space=vmem, size = 0x9000, scoped, tag = 'internal scratch']
  #allocation2 [shape = 'f32[2,18,18,4]{3,2,1,0:T(8,128)}', space=vmem, size = 0x6c000, scoped, tag = 'scratch operand']
  #allocation3 [shape = 'f32[2,18,18,4]{3,2,1,0:T(8,128)}', space=vmem, size = 0x6c000, scoped, tag = 'scratch operand']
  %s0 = inlined_call_operand.vmem [shape: f32[512,4], index: 0, kind: input, shape index: {}]
  %s1 = inlined_call_operand.vmem [shape: f32[36,4], index: 1, kind: input, shape index: {}]
  %s2 = inlined_call_operand.vmem [shape: f32[36,4], index: 2, kind: input, shape index: {}]
  %s3 = inlined_call_operand.vmem [shape: f32[4,16], index: 3, kind: input, shape index: {}]
  %s4 = inlined_call_operand.vmem [shape: f32[4,16], index: 4, kind: input, shape index: {}]
  %s5 = inlined_call_operand.vmem [shape: f32[1,16], index: 5, kind: input, shape index: {}]
  %s6 = inlined_call_operand.vmem [shape: f32[1,16], index: 6, kind: input, shape index: {}]
  %s7 = inlined_call_operand.vmem [shape: f32[1,4], index: 7, kind: input, shape index: {}]
  %s8 = inlined_call_operand.vmem [shape: f32[1,4], index: 8, kind: input, shape index: {}]
  %s9 = inlined_call_operand.vmem [shape: f32[1,4], index: 9, kind: input, shape index: {}]
  %s10 = inlined_call_operand.vmem [shape: f32[1,4], index: 10, kind: input, shape index: {}]
  %s11 = inlined_call_operand.vmem [shape: f32[1,4], index: 11, kind: input, shape index: {}]
  %s12 = inlined_call_operand.vmem [shape: f32[1,4], index: 12, kind: input, shape index: {}]
  %s13 = inlined_call_operand.vmem [shape: f32[512,16], index: 13, kind: output, shape index: {}]
  %s14 = sld [smem:[#allocation0]]
  $region62: #{residual_block_forward.1} parent=0
    _
  %s16 = ssub.s32 1, %s14
  %s17 = scalar_select 0, %s16, %s14
  // Predicated region
  $region2: #{residual_block_forward.1} parent=0 // pred_check
    _
  $region3: #{residual_block_forward.1} parent=0 // pred_check_branch
    %19 = sbr.rel (0) target = $region5
  $region4: #{residual_block_forward.1} parent=0 // pred_region
    _
  $region5: #{residual_block_forward.1} parent=0 // pred_fallthru
    _
  // Predicated region
  $region6: #{residual_block_forward.1} parent=0 // pred_check
    _
  $region7: #{residual_block_forward.1} parent=0 // pred_check_branch
    %21 = sbr.rel (0) target = $region9
  $region8: #{residual_block_forward.1} parent=0 // pred_region
    _
  $region9: #{residual_block_forward.1} parent=0 // pred_fallthru
    _
  // Predicated region
  $region10: #{residual_block_forward.1} parent=0 // pred_check
    _
  $region11: #{residual_block_forward.1} parent=0 // pred_check_branch
    %23 = sbr.rel (0) target = $region13
  $region12: #{residual_block_forward.1} parent=0 // pred_region
    _
  $region13: #{residual_block_forward.1} parent=0 // pred_fallthru
    _
  // Predicated region
  $region14: #{residual_block_forward.1} parent=0 // pred_check
    _
  $region15: #{residual_block_forward.1} parent=0 // pred_check_branch
    %25 = sbr.rel (0) target = $region17
  $region16: #{residual_block_forward.1} parent=0 // pred_region
    _
  $region17: #{residual_block_forward.1} parent=0 // pred_fallthru
    _
  // Predicated region
  $region18: #{residual_block_forward.1} parent=0 // pred_check
    _
  $region19: #{residual_block_forward.1} parent=0 // pred_check_branch
    %27 = sbr.rel (0) target = $region21
  $region20: #{residual_block_forward.1} parent=0 // pred_region
    _
  $region21: #{residual_block_forward.1} parent=0 // pred_fallthru
    _
  // Predicated region
  $region22: #{residual_block_forward.1} parent=0 // pred_check
    _
  $region23: #{residual_block_forward.1} parent=0 // pred_check_branch
    %29 = sbr.rel (0) target = $region25
  $region24: #{residual_block_forward.1} parent=0 // pred_region
    _
  $region25: #{residual_block_forward.1} parent=0 // pred_fallthru
    _
  // Predicated region
  $region26: #{residual_block_forward.1} parent=0 // pred_check
    _
  $region27: #{residual_block_forward.1} parent=0 // pred_check_branch
    %31 = sbr.rel (0) target = $region29
  $region28: #{residual_block_forward.1} parent=0 // pred_region
    _
  $region29: #{residual_block_forward.1} parent=0 // pred_fallthru
    _
  // Predicated region
  $region30: #{residual_block_forward.1} parent=0 // pred_check
    _
  $region31: #{residual_block_forward.1} parent=0 // pred_check_branch
    %33 = sbr.rel (0) target = $region33
  $region32: #{residual_block_forward.1} parent=0 // pred_region
    _
  $region33: #{residual_block_forward.1} parent=0 // pred_fallthru
    _
  // Predicated region
  $region34: #{residual_block_forward.1} parent=0 // pred_check
    _
  $region35: #{residual_block_forward.1} parent=0 // pred_check_branch
    %35 = sbr.rel (0) target = $region37
  $region36: #{residual_block_forward.1} parent=0 // pred_region
    _
  $region37: #{residual_block_forward.1} parent=0 // pred_fallthru
    _
  // Predicated region
  $region38: #{residual_block_forward.1} parent=0 // pred_check
    _
  $region39: #{residual_block_forward.1} parent=0 // pred_check_branch
    %37 = sbr.rel (0) target = $region41
  $region40: #{residual_block_forward.1} parent=0 // pred_region
    _
  $region41: #{residual_block_forward.1} parent=0 // pred_fallthru
    _
  // Predicated region
  $region42: #{residual_block_forward.1} parent=0 // pred_check
    _
  $region43: #{residual_block_forward.1} parent=0 // pred_check_branch
    %39 = sbr.rel (0) target = $region45
  $region44: #{residual_block_forward.1} parent=0 // pred_region
    _
  $region45: #{residual_block_forward.1} parent=0 // pred_fallthru
    _
  // Predicated region
  $region46: #{residual_block_forward.1} parent=0 // pred_check
    _
  $region47: #{residual_block_forward.1} parent=0 // pred_check_branch
    %41 = sbr.rel (0) target = $region49
  $region48: #{residual_block_forward.1} parent=0 // pred_region
    _
  $region49: #{residual_block_forward.1} parent=0 // pred_fallthru
    _
  // Predicated region
  $region50: #{residual_block_forward.1} parent=0 // pred_check
    _
  $region51: #{residual_block_forward.1} parent=0 // pred_check_branch
    %43 = sbr.rel (0) target = $region53
  $region52: #{residual_block_forward.1} parent=0 // pred_region
    _
  $region53: #{residual_block_forward.1} parent=0 // pred_fallthru
    _
  %v44 = vld [vmem:[%s0] sm:$0xff]
  %v45 = vld [vmem:[%s0 + $0x8] sm:$0xff]
  %v46 = vld [vmem:[%s0 + $0x10] sm:$0xff]
  %v47 = vld [vmem:[%s0 + $0x18] sm:$0xff]
  %v48 = vld [vmem:[%s0 + $0x20] sm:$0xff]
  %v49 = vld [vmem:[%s0 + $0x28] sm:$0xff]
  %v50 = vld [vmem:[%s0 + $0x30] sm:$0xff]
  %v51 = vld [vmem:[%s0 + $0x38] sm:$0xff]
  %v52 = vld [vmem:[%s0 + $0x40] sm:$0xff]
  %v53 = vld [vmem:[%s0 + $0x48] sm:$0xff]
  %v54 = vld [vmem:[%s0 + $0x50] sm:$0xff]
  %v55 = vld [vmem:[%s0 + $0x58] sm:$0xff]
  %v56 = vld [vmem:[%s0 + $0x60] sm:$0xff]
  %v57 = vld [vmem:[%s0 + $0x68] sm:$0xff]
  %v58 = vld [vmem:[%s0 + $0x70] sm:$0xff]
  %v59 = vld [vmem:[%s0 + $0x78] sm:$0xff]
  %v60 = vld [vmem:[%s0 + $0x80] sm:$0xff]
  %v61 = vld [vmem:[%s0 + $0x88] sm:$0xff]
  %v62 = vld [vmem:[%s0 + $0x90] sm:$0xff]
  %v63 = vld [vmem:[%s0 + $0x98] sm:$0xff]
  %v64 = vld [vmem:[%s0 + $0xa0] sm:$0xff]
  %v65 = vld [vmem:[%s0 + $0xa8] sm:$0xff]
  %v66 = vld [vmem:[%s0 + $0xb0] sm:$0xff]
  %v67 = vld [vmem:[%s0 + $0xb8] sm:$0xff]
  %v68 = vld [vmem:[%s0 + $0xc0] sm:$0xff]
  %v69 = vld [vmem:[%s0 + $0xc8] sm:$0xff]
  %v70 = vld [vmem:[%s0 + $0xd0] sm:$0xff]
  %v71 = vld [vmem:[%s0 + $0xd8] sm:$0xff]
  %v72 = vld [vmem:[%s0 + $0xe0] sm:$0xff]
  %v73 = vld [vmem:[%s0 + $0xe8] sm:$0xff]
  %v74 = vld [vmem:[%s0 + $0xf0] sm:$0xff]
  %v75 = vld [vmem:[%s0 + $0xf8] sm:$0xff]
  %v76 = vld [vmem:[%s0 + $0x100] sm:$0xff]
  %v77 = vld [vmem:[%s0 + $0x108] sm:$0xff]
  %v78 = vld [vmem:[%s0 + $0x110] sm:$0xff]
  %v79 = vld [vmem:[%s0 + $0x118] sm:$0xff]
  %v80 = vld [vmem:[%s0 + $0x120] sm:$0xff]
  %v81 = vld [vmem:[%s0 + $0x128] sm:$0xff]
  %v82 = vld [vmem:[%s0 + $0x130] sm:$0xff]
  %v83 = vld [vmem:[%s0 + $0x138] sm:$0xff]
  %v84 = vld [vmem:[%s0 + $0x140] sm:$0xff]
  %v85 = vld [vmem:[%s0 + $0x148] sm:$0xff]
  %v86 = vld [vmem:[%s0 + $0x150] sm:$0xff]
  %v87 = vld [vmem:[%s0 + $0x158] sm:$0xff]
  %v88 = vld [vmem:[%s0 + $0x160] sm:$0xff]
  %v89 = vld [vmem:[%s0 + $0x168] sm:$0xff]
  %v90 = vld [vmem:[%s0 + $0x170] sm:$0xff]
  %v91 = vld [vmem:[%s0 + $0x178] sm:$0xff]
  %v92 = vld [vmem:[%s0 + $0x180] sm:$0xff]
  %v93 = vld [vmem:[%s0 + $0x188] sm:$0xff]
  %v94 = vld [vmem:[%s0 + $0x190] sm:$0xff]
  %v95 = vld [vmem:[%s0 + $0x198] sm:$0xff]
  %v96 = vld [vmem:[%s0 + $0x1a0] sm:$0xff]
  %v97 = vld [vmem:[%s0 + $0x1a8] sm:$0xff]
  %v98 = vld [vmem:[%s0 + $0x1b0] sm:$0xff]
  %v99 = vld [vmem:[%s0 + $0x1b8] sm:$0xff]
  %v100 = vld [vmem:[%s0 + $0x1c0] sm:$0xff]
  %v101 = vld [vmem:[%s0 + $0x1c8] sm:$0xff]
  %v102 = vld [vmem:[%s0 + $0x1d0] sm:$0xff]
  %v103 = vld [vmem:[%s0 + $0x1d8] sm:$0xff]
  %v104 = vld [vmem:[%s0 + $0x1e0] sm:$0xff]
  %v105 = vld [vmem:[%s0 + $0x1e8] sm:$0xff]
  %v106 = vld [vmem:[%s0 + $0x1f0] sm:$0xff]
  %v107 = vld [vmem:[%s0 + $0x1f8] sm:$0xff]
  %vm108 = vcmask 31744
  %v109 = vsel %vm108, %v44, 0.0
  %v110 = vsel %vm108, %v45, 0.0
  %v111 = vadd.f32 %v109, %v110
  %v112 = vsel %vm108, %v46, 0.0
  %v113 = vadd.f32 %v111, %v112
  %v114 = vsel %vm108, %v47, 0.0
  %v115 = vadd.f32 %v113, %v114
  %v116 = vsel %vm108, %v48, 0.0
  %v117 = vadd.f32 %v115, %v116
  %v118 = vsel %vm108, %v49, 0.0
  %v119 = vadd.f32 %v117, %v118
  %v120 = vsel %vm108, %v50, 0.0
  %v121 = vadd.f32 %v119, %v120
  %v122 = vsel %vm108, %v51, 0.0
  %v123 = vadd.f32 %v121, %v122
  %v124 = vsel %vm108, %v52, 0.0
  %v125 = vadd.f32 %v123, %v124
  %v126 = vsel %vm108, %v53, 0.0
  %v127 = vadd.f32 %v125, %v126
  %v128 = vsel %vm108, %v54, 0.0
  %v129 = vadd.f32 %v127, %v128
  %v130 = vsel %vm108, %v55, 0.0
  %v131 = vadd.f32 %v129, %v130
  %v132 = vsel %vm108, %v56, 0.0
  %v133 = vadd.f32 %v131, %v132
  %v134 = vsel %vm108, %v57, 0.0
  %v135 = vadd.f32 %v133, %v134
  %v136 = vsel %vm108, %v58, 0.0
  %v137 = vadd.f32 %v135, %v136
  %v138 = vsel %vm108, %v59, 0.0
  %v139 = vadd.f32 %v137, %v138
  %v140 = vsel %vm108, %v60, 0.0
  %v141 = vadd.f32 %v139, %v140
  %v142 = vsel %vm108, %v61, 0.0
  %v143 = vadd.f32 %v141, %v142
  %v144 = vsel %vm108, %v62, 0.0
  %v145 = vadd.f32 %v143, %v144
  %v146 = vsel %vm108, %v63, 0.0
  %v147 = vadd.f32 %v145, %v146
  %v148 = vsel %vm108, %v64, 0.0
  %v149 = vadd.f32 %v147, %v148
  %v150 = vsel %vm108, %v65, 0.0
  %v151 = vadd.f32 %v149, %v150
  %v152 = vsel %vm108, %v66, 0.0
  %v153 = vadd.f32 %v151, %v152
  %v154 = vsel %vm108, %v67, 0.0
  %v155 = vadd.f32 %v153, %v154
  %v156 = vsel %vm108, %v68, 0.0
  %v157 = vadd.f32 %v155, %v156
  %v158 = vsel %vm108, %v69, 0.0
  %v159 = vadd.f32 %v157, %v158
  %v160 = vsel %vm108, %v70, 0.0
  %v161 = vadd.f32 %v159, %v160
  %v162 = vsel %vm108, %v71, 0.0
  %v163 = vadd.f32 %v161, %v162
  %v164 = vsel %vm108, %v72, 0.0
  %v165 = vadd.f32 %v163, %v164
  %v166 = vsel %vm108, %v73, 0.0
  %v167 = vadd.f32 %v165, %v166
  %v168 = vsel %vm108, %v74, 0.0
  %v169 = vadd.f32 %v167, %v168
  %v170 = vsel %vm108, %v75, 0.0
  %v171 = vadd.f32 %v169, %v170
  %v172 = vsel %vm108, %v76, 0.0
  %v173 = vadd.f32 %v171, %v172
  %v174 = vsel %vm108, %v77, 0.0
  %v175 = vadd.f32 %v173, %v174
  %v176 = vsel %vm108, %v78, 0.0
  %v177 = vadd.f32 %v175, %v176
  %v178 = vsel %vm108, %v79, 0.0
  %v179 = vadd.f32 %v177, %v178
  %v180 = vsel %vm108, %v80, 0.0
  %v181 = vadd.f32 %v179, %v180
  %v182 = vsel %vm108, %v81, 0.0
  %v183 = vadd.f32 %v181, %v182
  %v184 = vsel %vm108, %v82, 0.0
  %v185 = vadd.f32 %v183, %v184
  %v186 = vsel %vm108, %v83, 0.0
  %v187 = vadd.f32 %v185, %v186
  %v188 = vsel %vm108, %v84, 0.0
  %v189 = vadd.f32 %v187, %v188
  %v190 = vsel %vm108, %v85, 0.0
  %v191 = vadd.f32 %v189, %v190
  %v192 = vsel %vm108, %v86, 0.0
  %v193 = vadd.f32 %v191, %v192
  %v194 = vsel %vm108, %v87, 0.0
  %v195 = vadd.f32 %v193, %v194
  %v196 = vsel %vm108, %v88, 0.0
  %v197 = vadd.f32 %v195, %v196
  %v198 = vsel %vm108, %v89, 0.0
  %v199 = vadd.f32 %v197, %v198
  %v200 = vsel %vm108, %v90, 0.0
  %v201 = vadd.f32 %v199, %v200
  %v202 = vsel %vm108, %v91, 0.0
  %v203 = vadd.f32 %v201, %v202
  %v204 = vsel %vm108, %v92, 0.0
  %v205 = vadd.f32 %v203, %v204
  %v206 = vsel %vm108, %v93, 0.0
  %v207 = vadd.f32 %v205, %v206
  %v208 = vsel %vm108, %v94, 0.0
  %v209 = vadd.f32 %v207, %v208
  %v210 = vsel %vm108, %v95, 0.0
  %v211 = vadd.f32 %v209, %v210
  %v212 = vsel %vm108, %v96, 0.0
  %v213 = vadd.f32 %v211, %v212
  %v214 = vsel %vm108, %v97, 0.0
  %v215 = vadd.f32 %v213, %v214
  %v216 = vsel %vm108, %v98, 0.0
  %v217 = vadd.f32 %v215, %v216
  %v218 = vsel %vm108, %v99, 0.0
  %v219 = vadd.f32 %v217, %v218
  %v220 = vsel %vm108, %v100, 0.0
  %v221 = vadd.f32 %v219, %v220
  %v222 = vsel %vm108, %v101, 0.0
  %v223 = vadd.f32 %v221, %v222
  %v224 = vsel %vm108, %v102, 0.0
  %v225 = vadd.f32 %v223, %v224
  %v226 = vsel %vm108, %v103, 0.0
  %v227 = vadd.f32 %v225, %v226
  %v228 = vsel %vm108, %v104, 0.0
  %v229 = vadd.f32 %v227, %v228
  %v230 = vsel %vm108, %v105, 0.0
  %v231 = vadd.f32 %v229, %v230
  %v232 = vsel %vm108, %v106, 0.0
  %v233 = vadd.f32 %v231, %v232
  %v234 = vsel %vm108, %v107, 0.0
  %v235 = vadd.f32 %v233, %v234
  %v236 = vrot.slane %v235, 4
  %v237 = vadd.f32 %v235, %v236
  %v238 = vrot.slane %v237, 2
  %v239 = vadd.f32 %v237, %v238
  %v240 = vrot.slane %v239, 1
  %v241 = vadd.f32 %v239, %v240
  %v242 = vmul.f32 %v241, 0.001953125
  %v243 = vmul.f32 %v44, %v44
  %v244 = vmul.f32 %v45, %v45
  %v245 = vmul.f32 %v46, %v46
  %v246 = vmul.f32 %v47, %v47
  %v247 = vmul.f32 %v48, %v48
  %v248 = vmul.f32 %v49, %v49
  %v249 = vmul.f32 %v50, %v50
  %v250 = vmul.f32 %v51, %v51
  %v251 = vmul.f32 %v52, %v52
  %v252 = vmul.f32 %v53, %v53
  %v253 = vmul.f32 %v54, %v54
  %v254 = vmul.f32 %v55, %v55
  %v255 = vmul.f32 %v56, %v56
  %v256 = vmul.f32 %v57, %v57
  %v257 = vmul.f32 %v58, %v58
  %v258 = vmul.f32 %v59, %v59
  %v259 = vmul.f32 %v60, %v60
  %v260 = vmul.f32 %v61, %v61
  %v261 = vmul.f32 %v62, %v62
  %v262 = vmul.f32 %v63, %v63
  %v263 = vmul.f32 %v64, %v64
  %v264 = vmul.f32 %v65, %v65
  %v265 = vmul.f32 %v66, %v66
  %v266 = vmul.f32 %v67, %v67
  %v267 = vmul.f32 %v68, %v68
  %v268 = vmul.f32 %v69, %v69
  %v269 = vmul.f32 %v70, %v70
  %v270 = vmul.f32 %v71, %v71
  %v271 = vmul.f32 %v72, %v72
  %v272 = vmul.f32 %v73, %v73
  %v273 = vmul.f32 %v74, %v74
  %v274 = vmul.f32 %v75, %v75
  %v275 = vmul.f32 %v76, %v76
  %v276 = vmul.f32 %v77, %v77
  %v277 = vmul.f32 %v78, %v78
  %v278 = vmul.f32 %v79, %v79
  %v279 = vmul.f32 %v80, %v80
  %v280 = vmul.f32 %v81, %v81
  %v281 = vmul.f32 %v82, %v82
  %v282 = vmul.f32 %v83, %v83
  %v283 = vmul.f32 %v84, %v84
  %v284 = vmul.f32 %v85, %v85
  %v285 = vmul.f32 %v86, %v86
  %v286 = vmul.f32 %v87, %v87
  %v287 = vmul.f32 %v88, %v88
  %v288 = vmul.f32 %v89, %v89
  %v289 = vmul.f32 %v90, %v90
  %v290 = vmul.f32 %v91, %v91
  %v291 = vmul.f32 %v92, %v92
  %v292 = vmul.f32 %v93, %v93
  %v293 = vmul.f32 %v94, %v94
  %v294 = vmul.f32 %v95, %v95
  %v295 = vmul.f32 %v96, %v96
  %v296 = vmul.f32 %v97, %v97
  %v297 = vmul.f32 %v98, %v98
  %v298 = vmul.f32 %v99, %v99
  %v299 = vmul.f32 %v100, %v100
  %v300 = vmul.f32 %v101, %v101
  %v301 = vmul.f32 %v102, %v102
  %v302 = vmul.f32 %v103, %v103
  %v303 = vmul.f32 %v104, %v104
  %v304 = vmul.f32 %v105, %v105
  %v305 = vmul.f32 %v106, %v106
  %v306 = vmul.f32 %v107, %v107
  %v307 = vsel %vm108, %v243, 0.0
  %v308 = vsel %vm108, %v244, 0.0
  %v309 = vadd.f32 %v307, %v308
  %v310 = vsel %vm108, %v245, 0.0
  %v311 = vadd.f32 %v309, %v310
  %v312 = vsel %vm108, %v246, 0.0
  %v313 = vadd.f32 %v311, %v312
  %v314 = vsel %vm108, %v247, 0.0
  %v315 = vadd.f32 %v313, %v314
  %v316 = vsel %vm108, %v248, 0.0
  %v317 = vadd.f32 %v315, %v316
  %v318 = vsel %vm108, %v249, 0.0
  %v319 = vadd.f32 %v317, %v318
  %v320 = vsel %vm108, %v250, 0.0
  %v321 = vadd.f32 %v319, %v320
  %v322 = vsel %vm108, %v251, 0.0
  %v323 = vadd.f32 %v321, %v322
  %v324 = vsel %vm108, %v252, 0.0
  %v325 = vadd.f32 %v323, %v324
  %v326 = vsel %vm108, %v253, 0.0
  %v327 = vadd.f32 %v325, %v326
  %v328 = vsel %vm108, %v254, 0.0
  %v329 = vadd.f32 %v327, %v328
  %v330 = vsel %vm108, %v255, 0.0
  %v331 = vadd.f32 %v329, %v330
  %v332 = vsel %vm108, %v256, 0.0
  %v333 = vadd.f32 %v331, %v332
  %v334 = vsel %vm108, %v257, 0.0
  %v335 = vadd.f32 %v333, %v334
  %v336 = vsel %vm108, %v258, 0.0
  %v337 = vadd.f32 %v335, %v336
  %v338 = vsel %vm108, %v259, 0.0
  %v339 = vadd.f32 %v337, %v338
  %v340 = vsel %vm108, %v260, 0.0
  %v341 = vadd.f32 %v339, %v340
  %v342 = vsel %vm108, %v261, 0.0
  %v343 = vadd.f32 %v341, %v342
  %v344 = vsel %vm108, %v262, 0.0
  %v345 = vadd.f32 %v343, %v344
  %v346 = vsel %vm108, %v263, 0.0
  %v347 = vadd.f32 %v345, %v346
  %v348 = vsel %vm108, %v264, 0.0
  %v349 = vadd.f32 %v347, %v348
  %v350 = vsel %vm108, %v265, 0.0
  %v351 = vadd.f32 %v349, %v350
  %v352 = vsel %vm108, %v266, 0.0
  %v353 = vadd.f32 %v351, %v352
  %v354 = vsel %vm108, %v267, 0.0
  %v355 = vadd.f32 %v353, %v354
  %v356 = vsel %vm108, %v268, 0.0
  %v357 = vadd.f32 %v355, %v356
  %v358 = vsel %vm108, %v269, 0.0
  %v359 = vadd.f32 %v357, %v358
  %v360 = vsel %vm108, %v270, 0.0
  %v361 = vadd.f32 %v359, %v360
  %v362 = vsel %vm108, %v271, 0.0
  %v363 = vadd.f32 %v361, %v362
  %v364 = vsel %vm108, %v272, 0.0
  %v365 = vadd.f32 %v363, %v364
  %v366 = vsel %vm108, %v273, 0.0
  %v367 = vadd.f32 %v365, %v366
  %v368 = vsel %vm108, %v274, 0.0
  %v369 = vadd.f32 %v367, %v368
  %v370 = vsel %vm108, %v275, 0.0
  %v371 = vadd.f32 %v369, %v370
  %v372 = vsel %vm108, %v276, 0.0
  %v373 = vadd.f32 %v371, %v372
  %v374 = vsel %vm108, %v277, 0.0
  %v375 = vadd.f32 %v373, %v374
  %v376 = vsel %vm108, %v278, 0.0
  %v377 = vadd.f32 %v375, %v376
  %v378 = vsel %vm108, %v279, 0.0
  %v379 = vadd.f32 %v377, %v378
  %v380 = vsel %vm108, %v280, 0.0
  %v381 = vadd.f32 %v379, %v380
  %v382 = vsel %vm108, %v281, 0.0
  %v383 = vadd.f32 %v381, %v382
  %v384 = vsel %vm108, %v282, 0.0
  %v385 = vadd.f32 %v383, %v384
  %v386 = vsel %vm108, %v283, 0.0
  %v387 = vadd.f32 %v385, %v386
  %v388 = vsel %vm108, %v284, 0.0
  %v389 = vadd.f32 %v387, %v388
  %v390 = vsel %vm108, %v285, 0.0
  %v391 = vadd.f32 %v389, %v390
  %v392 = vsel %vm108, %v286, 0.0
  %v393 = vadd.f32 %v391, %v392
  %v394 = vsel %vm108, %v287, 0.0
  %v395 = vadd.f32 %v393, %v394
  %v396 = vsel %vm108, %v288, 0.0
  %v397 = vadd.f32 %v395, %v396
  %v398 = vsel %vm108, %v289, 0.0
  %v399 = vadd.f32 %v397, %v398
  %v400 = vsel %vm108, %v290, 0.0
  %v401 = vadd.f32 %v399, %v400
  %v402 = vsel %vm108, %v291, 0.0
  %v403 = vadd.f32 %v401, %v402
  %v404 = vsel %vm108, %v292, 0.0
  %v405 = vadd.f32 %v403, %v404
  %v406 = vsel %vm108, %v293, 0.0
  %v407 = vadd.f32 %v405, %v406
  %v408 = vsel %vm108, %v294, 0.0
  %v409 = vadd.f32 %v407, %v408
  %v410 = vsel %vm108, %v295, 0.0
  %v411 = vadd.f32 %v409, %v410
  %v412 = vsel %vm108, %v296, 0.0
  %v413 = vadd.f32 %v411, %v412
  %v414 = vsel %vm108, %v297, 0.0
  %v415 = vadd.f32 %v413, %v414
  %v416 = vsel %vm108, %v298, 0.0
  %v417 = vadd.f32 %v415, %v416
  %v418 = vsel %vm108, %v299, 0.0
  %v419 = vadd.f32 %v417, %v418
  %v420 = vsel %vm108, %v300, 0.0
  %v421 = vadd.f32 %v419, %v420
  %v422 = vsel %vm108, %v301, 0.0
  %v423 = vadd.f32 %v421, %v422
  %v424 = vsel %vm108, %v302, 0.0
  %v425 = vadd.f32 %v423, %v424
  %v426 = vsel %vm108, %v303, 0.0
  %v427 = vadd.f32 %v425, %v426
  %v428 = vsel %vm108, %v304, 0.0
  %v429 = vadd.f32 %v427, %v428
  %v430 = vsel %vm108, %v305, 0.0
  %v431 = vadd.f32 %v429, %v430
  %v432 = vsel %vm108, %v306, 0.0
  %v433 = vadd.f32 %v431, %v432
  %v434 = vrot.slane %v433, 4
  %v435 = vadd.f32 %v433, %v434
  %v436 = vrot.slane %v435, 2
  %v437 = vadd.f32 %v435, %v436
  %v438 = vrot.slane %v437, 1
  %v439 = vadd.f32 %v437, %v438
  %v440 = vmul.f32 %v439, 0.001953125
  %v441 = vmul.f32 %v242, %v242
  %v442 = vsub.f32 %v440, %v441
  %v443 = vsub.f32 %v44, %v242
  %v444 = vsub.f32 %v45, %v242
  %v445 = vsub.f32 %v46, %v242
  %v446 = vsub.f32 %v47, %v242
  %v447 = vsub.f32 %v48, %v242
  %v448 = vsub.f32 %v49, %v242
  %v449 = vsub.f32 %v50, %v242
  %v450 = vsub.f32 %v51, %v242
  %v451 = vsub.f32 %v52, %v242
  %v452 = vsub.f32 %v53, %v242
  %v453 = vsub.f32 %v54, %v242
  %v454 = vsub.f32 %v55, %v242
  %v455 = vsub.f32 %v56, %v242
  %v456 = vsub.f32 %v57, %v242
  %v457 = vsub.f32 %v58, %v242
  %v458 = vsub.f32 %v59, %v242
  %v459 = vsub.f32 %v60, %v242
  %v460 = vsub.f32 %v61, %v242
  %v461 = vsub.f32 %v62, %v242
  %v462 = vsub.f32 %v63, %v242
  %v463 = vsub.f32 %v64, %v242
  %v464 = vsub.f32 %v65, %v242
  %v465 = vsub.f32 %v66, %v242
  %v466 = vsub.f32 %v67, %v242
  %v467 = vsub.f32 %v68, %v242
  %v468 = vsub.f32 %v69, %v242
  %v469 = vsub.f32 %v70, %v242
  %v470 = vsub.f32 %v71, %v242
  %v471 = vsub.f32 %v72, %v242
  %v472 = vsub.f32 %v73, %v242
  %v473 = vsub.f32 %v74, %v242
  %v474 = vsub.f32 %v75, %v242
  %v475 = vsub.f32 %v76, %v242
  %v476 = vsub.f32 %v77, %v242
  %v477 = vsub.f32 %v78, %v242
  %v478 = vsub.f32 %v79, %v242
  %v479 = vsub.f32 %v80, %v242
  %v480 = vsub.f32 %v81, %v242
  %v481 = vsub.f32 %v82, %v242
  %v482 = vsub.f32 %v83, %v242
  %v483 = vsub.f32 %v84, %v242
  %v484 = vsub.f32 %v85, %v242
  %v485 = vsub.f32 %v86, %v242
  %v486 = vsub.f32 %v87, %v242
  %v487 = vsub.f32 %v88, %v242
  %v488 = vsub.f32 %v89, %v242
  %v489 = vsub.f32 %v90, %v242
  %v490 = vsub.f32 %v91, %v242
  %v491 = vsub.f32 %v92, %v242
  %v492 = vsub.f32 %v93, %v242
  %v493 = vsub.f32 %v94, %v242
  %v494 = vsub.f32 %v95, %v242
  %v495 = vsub.f32 %v96, %v242
  %v496 = vsub.f32 %v97, %v242
  %v497 = vsub.f32 %v98, %v242
  %v498 = vsub.f32 %v99, %v242
  %v499 = vsub.f32 %v100, %v242
  %v500 = vsub.f32 %v101, %v242
  %v501 = vsub.f32 %v102, %v242
  %v502 = vsub.f32 %v103, %v242
  %v503 = vsub.f32 %v104, %v242
  %v504 = vsub.f32 %v105, %v242
  %v505 = vsub.f32 %v106, %v242
  %v506 = vsub.f32 %v107, %v242
  %v507 = vadd.f32 %v442, 1e-05
  %v508 = vrsqrt.pop %v507
  %v509 = vmul.f32 %v508, %v507
  %v510 = vmul.f32 %v509, %v508
  %v511 = vmul.f32 0.5, %v510
  %v512 = vsub.f32 1.5, %v511
  %v513 = vmul.f32 %v508, %v512
  %vm514 = vweird.f32 %v507
  %vm515 = vweird.f32 %v508
  %vm516 = vmor %vm514, %vm515
  %v517 = vsel %vm516, %v508, %v513
  %v518 = vmul.f32 %v443, %v517
  %v519 = vmul.f32 %v444, %v517
  %v520 = vmul.f32 %v445, %v517
  %v521 = vmul.f32 %v446, %v517
  %v522 = vmul.f32 %v447, %v517
  %v523 = vmul.f32 %v448, %v517
  %v524 = vmul.f32 %v449, %v517
  %v525 = vmul.f32 %v450, %v517
  %v526 = vmul.f32 %v451, %v517
  %v527 = vmul.f32 %v452, %v517
  %v528 = vmul.f32 %v453, %v517
  %v529 = vmul.f32 %v454, %v517
  %v530 = vmul.f32 %v455, %v517
  %v531 = vmul.f32 %v456, %v517
  %v532 = vmul.f32 %v457, %v517
  %v533 = vmul.f32 %v458, %v517
  %v534 = vmul.f32 %v459, %v517
  %v535 = vmul.f32 %v460, %v517
  %v536 = vmul.f32 %v461, %v517
  %v537 = vmul.f32 %v462, %v517
  %v538 = vmul.f32 %v463, %v517
  %v539 = vmul.f32 %v464, %v517
  %v540 = vmul.f32 %v465, %v517
  %v541 = vmul.f32 %v466, %v517
  %v542 = vmul.f32 %v467, %v517
  %v543 = vmul.f32 %v468, %v517
  %v544 = vmul.f32 %v469, %v517
  %v545 = vmul.f32 %v470, %v517
  %v546 = vmul.f32 %v471, %v517
  %v547 = vmul.f32 %v472, %v517
  %v548 = vmul.f32 %v473, %v517
  %v549 = vmul.f32 %v474, %v517
  %v550 = vmul.f32 %v475, %v517
  %v551 = vmul.f32 %v476, %v517
  %v552 = vmul.f32 %v477, %v517
  %v553 = vmul.f32 %v478, %v517
  %v554 = vmul.f32 %v479, %v517
  %v555 = vmul.f32 %v480, %v517
  %v556 = vmul.f32 %v481, %v517
  %v557 = vmul.f32 %v482, %v517
  %v558 = vmul.f32 %v483, %v517
  %v559 = vmul.f32 %v484, %v517
  %v560 = vmul.f32 %v485, %v517
  %v561 = vmul.f32 %v486, %v517
  %v562 = vmul.f32 %v487, %v517
  %v563 = vmul.f32 %v488, %v517
  %v564 = vmul.f32 %v489, %v517
  %v565 = vmul.f32 %v490, %v517
  %v566 = vmul.f32 %v491, %v517
  %v567 = vmul.f32 %v492, %v517
  %v568 = vmul.f32 %v493, %v517
  %v569 = vmul.f32 %v494, %v517
  %v570 = vmul.f32 %v495, %v517
  %v571 = vmul.f32 %v496, %v517
  %v572 = vmul.f32 %v497, %v517
  %v573 = vmul.f32 %v498, %v517
  %v574 = vmul.f32 %v499, %v517
  %v575 = vmul.f32 %v500, %v517
  %v576 = vmul.f32 %v501, %v517
  %v577 = vmul.f32 %v502, %v517
  %v578 = vmul.f32 %v503, %v517
  %v579 = vmul.f32 %v504, %v517
  %v580 = vmul.f32 %v505, %v517
  %v581 = vmul.f32 %v506, %v517
  %v582 = vld [vmem:[%s7] sm:$0x1]
  %v584 = vperm.slane %v582, 0
  %v586 = vmul.f32 %v518, %v584
  %v587 = vmul.f32 %v519, %v584
  %v588 = vmul.f32 %v520, %v584
  %v589 = vmul.f32 %v521, %v584
  %v590 = vmul.f32 %v522, %v584
  %v591 = vmul.f32 %v523, %v584
  %v592 = vmul.f32 %v524, %v584
  %v593 = vmul.f32 %v525, %v584
  %v594 = vmul.f32 %v526, %v584
  %v595 = vmul.f32 %v527, %v584
  %v596 = vmul.f32 %v528, %v584
  %v597 = vmul.f32 %v529, %v584
  %v598 = vmul.f32 %v530, %v584
  %v599 = vmul.f32 %v531, %v584
  %v600 = vmul.f32 %v532, %v584
  %v601 = vmul.f32 %v533, %v584
  %v602 = vmul.f32 %v534, %v584
  %v603 = vmul.f32 %v535, %v584
  %v604 = vmul.f32 %v536, %v584
  %v605 = vmul.f32 %v537, %v584
  %v606 = vmul.f32 %v538, %v584
  %v607 = vmul.f32 %v539, %v584
  %v608 = vmul.f32 %v540, %v584
  %v609 = vmul.f32 %v541, %v584
  %v610 = vmul.f32 %v542, %v584
  %v611 = vmul.f32 %v543, %v584
  %v612 = vmul.f32 %v544, %v584
  %v613 = vmul.f32 %v545, %v584
  %v614 = vmul.f32 %v546, %v584
  %v615 = vmul.f32 %v547, %v584
  %v616 = vmul.f32 %v548, %v584
  %v617 = vmul.f32 %v549, %v584
  %v618 = vmul.f32 %v550, %v584
  %v619 = vmul.f32 %v551, %v584
  %v620 = vmul.f32 %v552, %v584
  %v621 = vmul.f32 %v553, %v584
  %v622 = vmul.f32 %v554, %v584
  %v623 = vmul.f32 %v555, %v584
  %v624 = vmul.f32 %v556, %v584
  %v625 = vmul.f32 %v557, %v584
  %v626 = vmul.f32 %v558, %v584
  %v627 = vmul.f32 %v559, %v584
  %v628 = vmul.f32 %v560, %v584
  %v629 = vmul.f32 %v561, %v584
  %v630 = vmul.f32 %v562, %v584
  %v631 = vmul.f32 %v563, %v584
  %v632 = vmul.f32 %v564, %v584
  %v633 = vmul.f32 %v565, %v584
  %v634 = vmul.f32 %v566, %v584
  %v635 = vmul.f32 %v567, %v584
  %v636 = vmul.f32 %v568, %v584
  %v637 = vmul.f32 %v569, %v584
  %v638 = vmul.f32 %v570, %v584
  %v639 = vmul.f32 %v571, %v584
  %v640 = vmul.f32 %v572, %v584
  %v641 = vmul.f32 %v573, %v584
  %v642 = vmul.f32 %v574, %v584
  %v643 = vmul.f32 %v575, %v584
  %v644 = vmul.f32 %v576, %v584
  %v645 = vmul.f32 %v577, %v584
  %v646 = vmul.f32 %v578, %v584
  %v647 = vmul.f32 %v579, %v584
  %v648 = vmul.f32 %v580, %v584
  %v649 = vmul.f32 %v581, %v584
  %v650 = vld [vmem:[%s8] sm:$0x1]
  %v652 = vperm.slane %v650, 0
  %v654 = vadd.f32 %v586, %v652
  %v655 = vadd.f32 %v587, %v652
  %v656 = vadd.f32 %v588, %v652
  %v657 = vadd.f32 %v589, %v652
  %v658 = vadd.f32 %v590, %v652
  %v659 = vadd.f32 %v591, %v652
  %v660 = vadd.f32 %v592, %v652
  %v661 = vadd.f32 %v593, %v652
  %v662 = vadd.f32 %v594, %v652
  %v663 = vadd.f32 %v595, %v652
  %v664 = vadd.f32 %v596, %v652
  %v665 = vadd.f32 %v597, %v652
  %v666 = vadd.f32 %v598, %v652
  %v667 = vadd.f32 %v599, %v652
  %v668 = vadd.f32 %v600, %v652
  %v669 = vadd.f32 %v601, %v652
  %v670 = vadd.f32 %v602, %v652
  %v671 = vadd.f32 %v603, %v652
  %v672 = vadd.f32 %v604, %v652
  %v673 = vadd.f32 %v605, %v652
  %v674 = vadd.f32 %v606, %v652
  %v675 = vadd.f32 %v607, %v652
  %v676 = vadd.f32 %v608, %v652
  %v677 = vadd.f32 %v609, %v652
  %v678 = vadd.f32 %v610, %v652
  %v679 = vadd.f32 %v611, %v652
  %v680 = vadd.f32 %v612, %v652
  %v681 = vadd.f32 %v613, %v652
  %v682 = vadd.f32 %v614, %v652
  %v683 = vadd.f32 %v615, %v652
  %v684 = vadd.f32 %v616, %v652
  %v685 = vadd.f32 %v617, %v652
  %v686 = vadd.f32 %v618, %v652
  %v687 = vadd.f32 %v619, %v652
  %v688 = vadd.f32 %v620, %v652
  %v689 = vadd.f32 %v621, %v652
  %v690 = vadd.f32 %v622, %v652
  %v691 = vadd.f32 %v623, %v652
  %v692 = vadd.f32 %v624, %v652
  %v693 = vadd.f32 %v625, %v652
  %v694 = vadd.f32 %v626, %v652
  %v695 = vadd.f32 %v627, %v652
  %v696 = vadd.f32 %v628, %v652
  %v697 = vadd.f32 %v629, %v652
  %v698 = vadd.f32 %v630, %v652
  %v699 = vadd.f32 %v631, %v652
  %v700 = vadd.f32 %v632, %v652
  %v701 = vadd.f32 %v633, %v652
  %v702 = vadd.f32 %v634, %v652
  %v703 = vadd.f32 %v635, %v652
  %v704 = vadd.f32 %v636, %v652
  %v705 = vadd.f32 %v637, %v652
  %v706 = vadd.f32 %v638, %v652
  %v707 = vadd.f32 %v639, %v652
  %v708 = vadd.f32 %v640, %v652
  %v709 = vadd.f32 %v641, %v652
  %v710 = vadd.f32 %v642, %v652
  %v711 = vadd.f32 %v643, %v652
  %v712 = vadd.f32 %v644, %v652
  %v713 = vadd.f32 %v645, %v652
  %v714 = vadd.f32 %v646, %v652
  %v715 = vadd.f32 %v647, %v652
  %v716 = vadd.f32 %v648, %v652
  %v717 = vadd.f32 %v649, %v652
  %v718 = vmax.f32 %v654, 0.0
  %v719 = vmax.f32 %v655, 0.0
  %v720 = vmax.f32 %v656, 0.0
  %v721 = vmax.f32 %v657, 0.0
  %v722 = vmax.f32 %v658, 0.0
  %v723 = vmax.f32 %v659, 0.0
  %v724 = vmax.f32 %v660, 0.0
  %v725 = vmax.f32 %v661, 0.0
  %v726 = vmax.f32 %v662, 0.0
  %v727 = vmax.f32 %v663, 0.0
  %v728 = vmax.f32 %v664, 0.0
  %v729 = vmax.f32 %v665, 0.0
  %v730 = vmax.f32 %v666, 0.0
  %v731 = vmax.f32 %v667, 0.0
  %v732 = vmax.f32 %v668, 0.0
  %v733 = vmax.f32 %v669, 0.0
  %v734 = vmax.f32 %v670, 0.0
  %v735 = vmax.f32 %v671, 0.0
  %v736 = vmax.f32 %v672, 0.0
  %v737 = vmax.f32 %v673, 0.0
  %v738 = vmax.f32 %v674, 0.0
  %v739 = vmax.f32 %v675, 0.0
  %v740 = vmax.f32 %v676, 0.0
  %v741 = vmax.f32 %v677, 0.0
  %v742 = vmax.f32 %v678, 0.0
  %v743 = vmax.f32 %v679, 0.0
  %v744 = vmax.f32 %v680, 0.0
  %v745 = vmax.f32 %v681, 0.0
  %v746 = vmax.f32 %v682, 0.0
  %v747 = vmax.f32 %v683, 0.0
  %v748 = vmax.f32 %v684, 0.0
  %v749 = vmax.f32 %v685, 0.0
  %v750 = vmax.f32 %v686, 0.0
  %v751 = vmax.f32 %v687, 0.0
  %v752 = vmax.f32 %v688, 0.0
  %v753 = vmax.f32 %v689, 0.0
  %v754 = vmax.f32 %v690, 0.0
  %v755 = vmax.f32 %v691, 0.0
  %v756 = vmax.f32 %v692, 0.0
  %v757 = vmax.f32 %v693, 0.0
  %v758 = vmax.f32 %v694, 0.0
  %v759 = vmax.f32 %v695, 0.0
  %v760 = vmax.f32 %v696, 0.0
  %v761 = vmax.f32 %v697, 0.0
  %v762 = vmax.f32 %v698, 0.0
  %v763 = vmax.f32 %v699, 0.0
  %v764 = vmax.f32 %v700, 0.0
  %v765 = vmax.f32 %v701, 0.0
  %v766 = vmax.f32 %v702, 0.0
  %v767 = vmax.f32 %v703, 0.0
  %v768 = vmax.f32 %v704, 0.0
  %v769 = vmax.f32 %v705, 0.0
  %v770 = vmax.f32 %v706, 0.0
  %v771 = vmax.f32 %v707, 0.0
  %v772 = vmax.f32 %v708, 0.0
  %v773 = vmax.f32 %v709, 0.0
  %v774 = vmax.f32 %v710, 0.0
  %v775 = vmax.f32 %v711, 0.0
  %v776 = vmax.f32 %v712, 0.0
  %v777 = vmax.f32 %v713, 0.0
  %v778 = vmax.f32 %v714, 0.0
  %v779 = vmax.f32 %v715, 0.0
  %v780 = vmax.f32 %v716, 0.0
  %v781 = vmax.f32 %v717, 0.0
  %782 = vst.msk [vmem:[#allocation2] sm:$0xff] %vm108, 0.0
  %783 = vst.msk [vmem:[#allocation2 + $0x8] sm:$0xff] %vm108, 0.0
  %vm784 = vcmask 25600
  %785 = vst.msk [vmem:[#allocation2 + $0x10] sm:$0x3] %vm784, 0.0
  %786 = vst.msk [vmem:[#allocation2 + $0x18] sm:$0xff] %vm108, 0.0
  %787 = vst.msk [vmem:[#allocation2 + $0x20] sm:$0xff] %vm108, 0.0
  %788 = vst.msk [vmem:[#allocation2 + $0x28] sm:$0x3] %vm784, 0.0
  %789 = vst.msk [vmem:[#allocation2 + $0x30] sm:$0xff] %vm108, 0.0
  %790 = vst.msk [vmem:[#allocation2 + $0x38] sm:$0xff] %vm108, 0.0
  %791 = vst.msk [vmem:[#allocation2 + $0x40] sm:$0x3] %vm784, 0.0
  %792 = vst.msk [vmem:[#allocation2 + $0x48] sm:$0xff] %vm108, 0.0
  %793 = vst.msk [vmem:[#allocation2 + $0x50] sm:$0xff] %vm108, 0.0
  %794 = vst.msk [vmem:[#allocation2 + $0x58] sm:$0x3] %vm784, 0.0
  %795 = vst.msk [vmem:[#allocation2 + $0x60] sm:$0xff] %vm108, 0.0
  %796 = vst.msk [vmem:[#allocation2 + $0x68] sm:$0xff] %vm108, 0.0
  %797 = vst.msk [vmem:[#allocation2 + $0x70] sm:$0x3] %vm784, 0.0
  %798 = vst.msk [vmem:[#allocation2 + $0x78] sm:$0xff] %vm108, 0.0
  %799 = vst.msk [vmem:[#allocation2 + $0x80] sm:$0xff] %vm108, 0.0
  %800 = vst.msk [vmem:[#allocation2 + $0x88] sm:$0x3] %vm784, 0.0
  %801 = vst.msk [vmem:[#allocation2 + $0x90] sm:$0xff] %vm108, 0.0
  %802 = vst.msk [vmem:[#allocation2 + $0x98] sm:$0xff] %vm108, 0.0
  %803 = vst.msk [vmem:[#allocation2 + $0xa0] sm:$0x3] %vm784, 0.0
  %804 = vst.msk [vmem:[#allocation2 + $0xa8] sm:$0xff] %vm108, 0.0
  %805 = vst.msk [vmem:[#allocation2 + $0xb0] sm:$0xff] %vm108, 0.0
  %806 = vst.msk [vmem:[#allocation2 + $0xb8] sm:$0x3] %vm784, 0.0
  %807 = vst.msk [vmem:[#allocation2 + $0xc0] sm:$0xff] %vm108, 0.0
  %808 = vst.msk [vmem:[#allocation2 + $0xc8] sm:$0xff] %vm108, 0.0
  %809 = vst.msk [vmem:[#allocation2 + $0xd0] sm:$0x3] %vm784, 0.0
  %810 = vst.msk [vmem:[#allocation2 + $0xd8] sm:$0xff] %vm108, 0.0
  %811 = vst.msk [vmem:[#allocation2 + $0xe0] sm:$0xff] %vm108, 0.0
  %812 = vst.msk [vmem:[#allocation2 + $0xe8] sm:$0x3] %vm784, 0.0
  %813 = vst.msk [vmem:[#allocation2 + $0xf0] sm:$0xff] %vm108, 0.0
  %814 = vst.msk [vmem:[#allocation2 + $0xf8] sm:$0xff] %vm108, 0.0
  %815 = vst.msk [vmem:[#allocation2 + $0x100] sm:$0x3] %vm784, 0.0
  %816 = vst.msk [vmem:[#allocation2 + $0x108] sm:$0xff] %vm108, 0.0
  %817 = vst.msk [vmem:[#allocation2 + $0x110] sm:$0xff] %vm108, 0.0
  %818 = vst.msk [vmem:[#allocation2 + $0x118] sm:$0x3] %vm784, 0.0
  %819 = vst.msk [vmem:[#allocation2 + $0x120] sm:$0xff] %vm108, 0.0
  %820 = vst.msk [vmem:[#allocation2 + $0x128] sm:$0xff] %vm108, 0.0
  %821 = vst.msk [vmem:[#allocation2 + $0x130] sm:$0x3] %vm784, 0.0
  %822 = vst.msk [vmem:[#allocation2 + $0x138] sm:$0xff] %vm108, 0.0
  %823 = vst.msk [vmem:[#allocation2 + $0x140] sm:$0xff] %vm108, 0.0
  %824 = vst.msk [vmem:[#allocation2 + $0x148] sm:$0x3] %vm784, 0.0
  %825 = vst.msk [vmem:[#allocation2 + $0x150] sm:$0xff] %vm108, 0.0
  %826 = vst.msk [vmem:[#allocation2 + $0x158] sm:$0xff] %vm108, 0.0
  %827 = vst.msk [vmem:[#allocation2 + $0x160] sm:$0x3] %vm784, 0.0
  %828 = vst.msk [vmem:[#allocation2 + $0x168] sm:$0xff] %vm108, 0.0
  %829 = vst.msk [vmem:[#allocation2 + $0x170] sm:$0xff] %vm108, 0.0
  %830 = vst.msk [vmem:[#allocation2 + $0x178] sm:$0x3] %vm784, 0.0
  %831 = vst.msk [vmem:[#allocation2 + $0x180] sm:$0xff] %vm108, 0.0
  %832 = vst.msk [vmem:[#allocation2 + $0x188] sm:$0xff] %vm108, 0.0
  %833 = vst.msk [vmem:[#allocation2 + $0x190] sm:$0x3] %vm784, 0.0
  %834 = vst.msk [vmem:[#allocation2 + $0x198] sm:$0xff] %vm108, 0.0
  %835 = vst.msk [vmem:[#allocation2 + $0x1a0] sm:$0xff] %vm108, 0.0
  %836 = vst.msk [vmem:[#allocation2 + $0x1a8] sm:$0x3] %vm784, 0.0
  %837 = vst.msk [vmem:[#allocation2 + $0x1b0] sm:$0xff] %vm108, 0.0
  %838 = vst.msk [vmem:[#allocation2 + $0x1b8] sm:$0xff] %vm108, 0.0
  %839 = vst.msk [vmem:[#allocation2 + $0x1c0] sm:$0x3] %vm784, 0.0
  %840 = vst.msk [vmem:[#allocation2 + $0x1c8] sm:$0xff] %vm108, 0.0
  %841 = vst.msk [vmem:[#allocation2 + $0x1d0] sm:$0xff] %vm108, 0.0
  %842 = vst.msk [vmem:[#allocation2 + $0x1d8] sm:$0x3] %vm784, 0.0
  %843 = vst.msk [vmem:[#allocation2 + $0x1e0] sm:$0xff] %vm108, 0.0
  %844 = vst.msk [vmem:[#allocation2 + $0x1e8] sm:$0xff] %vm108, 0.0
  %845 = vst.msk [vmem:[#allocation2 + $0x1f0] sm:$0x3] %vm784, 0.0
  %846 = vst.msk [vmem:[#allocation2 + $0x1f8] sm:$0xff] %vm108, 0.0
  %847 = vst.msk [vmem:[#allocation2 + $0x200] sm:$0xff] %vm108, 0.0
  %848 = vst.msk [vmem:[#allocation2 + $0x208] sm:$0x3] %vm784, 0.0
  %849 = vst.msk [vmem:[#allocation2 + $0x210] sm:$0xff] %vm108, 0.0
  %850 = vst.msk [vmem:[#allocation2 + $0x218] sm:$0xff] %vm108, 0.0
  %851 = vst.msk [vmem:[#allocation2 + $0x220] sm:$0x3] %vm784, 0.0
  %852 = vst.msk [vmem:[#allocation2 + $0x228] sm:$0xff] %vm108, 0.0
  %853 = vst.msk [vmem:[#allocation2 + $0x230] sm:$0xff] %vm108, 0.0
  %854 = vst.msk [vmem:[#allocation2 + $0x238] sm:$0x3] %vm784, 0.0
  %855 = vst.msk [vmem:[#allocation2 + $0x240] sm:$0xff] %vm108, 0.0
  %856 = vst.msk [vmem:[#allocation2 + $0x248] sm:$0xff] %vm108, 0.0
  %857 = vst.msk [vmem:[#allocation2 + $0x250] sm:$0x3] %vm784, 0.0
  %858 = vst.msk [vmem:[#allocation2 + $0x258] sm:$0xff] %vm108, 0.0
  %859 = vst.msk [vmem:[#allocation2 + $0x260] sm:$0xff] %vm108, 0.0
  %860 = vst.msk [vmem:[#allocation2 + $0x268] sm:$0x3] %vm784, 0.0
  %861 = vst.msk [vmem:[#allocation2 + $0x270] sm:$0xff] %vm108, 0.0
  %862 = vst.msk [vmem:[#allocation2 + $0x278] sm:$0xff] %vm108, 0.0
  %863 = vst.msk [vmem:[#allocation2 + $0x280] sm:$0x3] %vm784, 0.0
  %864 = vst.msk [vmem:[#allocation2 + $0x288] sm:$0xff] %vm108, 0.0
  %865 = vst.msk [vmem:[#allocation2 + $0x290] sm:$0xff] %vm108, 0.0
  %866 = vst.msk [vmem:[#allocation2 + $0x298] sm:$0x3] %vm784, 0.0
  %867 = vst.msk [vmem:[#allocation2 + $0x2a0] sm:$0xff] %vm108, 0.0
  %868 = vst.msk [vmem:[#allocation2 + $0x2a8] sm:$0xff] %vm108, 0.0
  %869 = vst.msk [vmem:[#allocation2 + $0x2b0] sm:$0x3] %vm784, 0.0
  %870 = vst.msk [vmem:[#allocation2 + $0x2b8] sm:$0xff] %vm108, 0.0
  %871 = vst.msk [vmem:[#allocation2 + $0x2c0] sm:$0xff] %vm108, 0.0
  %872 = vst.msk [vmem:[#allocation2 + $0x2c8] sm:$0x3] %vm784, 0.0
  %873 = vst.msk [vmem:[#allocation2 + $0x2d0] sm:$0xff] %vm108, 0.0
  %874 = vst.msk [vmem:[#allocation2 + $0x2d8] sm:$0xff] %vm108, 0.0
  %875 = vst.msk [vmem:[#allocation2 + $0x2e0] sm:$0x3] %vm784, 0.0
  %876 = vst.msk [vmem:[#allocation2 + $0x2e8] sm:$0xff] %vm108, 0.0
  %877 = vst.msk [vmem:[#allocation2 + $0x2f0] sm:$0xff] %vm108, 0.0
  %878 = vst.msk [vmem:[#allocation2 + $0x2f8] sm:$0x3] %vm784, 0.0
  %879 = vst.msk [vmem:[#allocation2 + $0x300] sm:$0xff] %vm108, 0.0
  %880 = vst.msk [vmem:[#allocation2 + $0x308] sm:$0xff] %vm108, 0.0
  %881 = vst.msk [vmem:[#allocation2 + $0x310] sm:$0x3] %vm784, 0.0
  %882 = vst.msk [vmem:[#allocation2 + $0x318] sm:$0xff] %vm108, 0.0
  %883 = vst.msk [vmem:[#allocation2 + $0x320] sm:$0xff] %vm108, 0.0
  %884 = vst.msk [vmem:[#allocation2 + $0x328] sm:$0x3] %vm784, 0.0
  %885 = vst.msk [vmem:[#allocation2 + $0x330] sm:$0xff] %vm108, 0.0
  %886 = vst.msk [vmem:[#allocation2 + $0x338] sm:$0xff] %vm108, 0.0
  %887 = vst.msk [vmem:[#allocation2 + $0x340] sm:$0x3] %vm784, 0.0
  %888 = vst.msk [vmem:[#allocation2 + $0x348] sm:$0xff] %vm108, 0.0
  %889 = vst.msk [vmem:[#allocation2 + $0x350] sm:$0xff] %vm108, 0.0
  %890 = vst.msk [vmem:[#allocation2 + $0x358] sm:$0x3] %vm784, 0.0
  %s891 = scalar_lea.vmem [#allocation2], 24
  %892 = vst.msk [vmem:[%s891 + $0x1] sm:$0xff] %vm108, %v718
  %893 = vst.msk [vmem:[%s891 + $0x9] sm:$0xff] %vm108, %v719
  %894 = vst.msk [vmem:[%s891 + $0x19] sm:$0xff] %vm108, %v720
  %895 = vst.msk [vmem:[%s891 + $0x21] sm:$0xff] %vm108, %v721
  %896 = vst.msk [vmem:[%s891 + $0x31] sm:$0xff] %vm108, %v722
  %897 = vst.msk [vmem:[%s891 + $0x39] sm:$0xff] %vm108, %v723
  %898 = vst.msk [vmem:[%s891 + $0x49] sm:$0xff] %vm108, %v724
  %899 = vst.msk [vmem:[%s891 + $0x51] sm:$0xff] %vm108, %v725
  %900 = vst.msk [vmem:[%s891 + $0x61] sm:$0xff] %vm108, %v726
  %901 = vst.msk [vmem:[%s891 + $0x69] sm:$0xff] %vm108, %v727
  %902 = vst.msk [vmem:[%s891 + $0x79] sm:$0xff] %vm108, %v728
  %903 = vst.msk [vmem:[%s891 + $0x81] sm:$0xff] %vm108, %v729
  %904 = vst.msk [vmem:[%s891 + $0x91] sm:$0xff] %vm108, %v730
  %905 = vst.msk [vmem:[%s891 + $0x99] sm:$0xff] %vm108, %v731
  %906 = vst.msk [vmem:[%s891 + $0xa9] sm:$0xff] %vm108, %v732
  %907 = vst.msk [vmem:[%s891 + $0xb1] sm:$0xff] %vm108, %v733
  %908 = vst.msk [vmem:[%s891 + $0xc1] sm:$0xff] %vm108, %v734
  %909 = vst.msk [vmem:[%s891 + $0xc9] sm:$0xff] %vm108, %v735
  %910 = vst.msk [vmem:[%s891 + $0xd9] sm:$0xff] %vm108, %v736
  %911 = vst.msk [vmem:[%s891 + $0xe1] sm:$0xff] %vm108, %v737
  %912 = vst.msk [vmem:[%s891 + $0xf1] sm:$0xff] %vm108, %v738
  %913 = vst.msk [vmem:[%s891 + $0xf9] sm:$0xff] %vm108, %v739
  %914 = vst.msk [vmem:[%s891 + $0x109] sm:$0xff] %vm108, %v740
  %915 = vst.msk [vmem:[%s891 + $0x111] sm:$0xff] %vm108, %v741
  %916 = vst.msk [vmem:[%s891 + $0x121] sm:$0xff] %vm108, %v742
  %917 = vst.msk [vmem:[%s891 + $0x129] sm:$0xff] %vm108, %v743
  %918 = vst.msk [vmem:[%s891 + $0x139] sm:$0xff] %vm108, %v744
  %919 = vst.msk [vmem:[%s891 + $0x141] sm:$0xff] %vm108, %v745
  %920 = vst.msk [vmem:[%s891 + $0x151] sm:$0xff] %vm108, %v746
  %921 = vst.msk [vmem:[%s891 + $0x159] sm:$0xff] %vm108, %v747
  %922 = vst.msk [vmem:[%s891 + $0x169] sm:$0xff] %vm108, %v748
  %923 = vst.msk [vmem:[%s891 + $0x171] sm:$0xff] %vm108, %v749
  %924 = vst.msk [vmem:[%s891 + $0x1b1] sm:$0xff] %vm108, %v750
  %925 = vst.msk [vmem:[%s891 + $0x1b9] sm:$0xff] %vm108, %v751
  %926 = vst.msk [vmem:[%s891 + $0x1c9] sm:$0xff] %vm108, %v752
  %927 = vst.msk [vmem:[%s891 + $0x1d1] sm:$0xff] %vm108, %v753
  %928 = vst.msk [vmem:[%s891 + $0x1e1] sm:$0xff] %vm108, %v754
  %929 = vst.msk [vmem:[%s891 + $0x1e9] sm:$0xff] %vm108, %v755
  %930 = vst.msk [vmem:[%s891 + $0x1f9] sm:$0xff] %vm108, %v756
  %931 = vst.msk [vmem:[%s891 + $0x201] sm:$0xff] %vm108, %v757
  %932 = vst.msk [vmem:[%s891 + $0x211] sm:$0xff] %vm108, %v758
  %933 = vst.msk [vmem:[%s891 + $0x219] sm:$0xff] %vm108, %v759
  %934 = vst.msk [vmem:[%s891 + $0x229] sm:$0xff] %vm108, %v760
  %935 = vst.msk [vmem:[%s891 + $0x231] sm:$0xff] %vm108, %v761
  %936 = vst.msk [vmem:[%s891 + $0x241] sm:$0xff] %vm108, %v762
  %937 = vst.msk [vmem:[%s891 + $0x249] sm:$0xff] %vm108, %v763
  %938 = vst.msk [vmem:[%s891 + $0x259] sm:$0xff] %vm108, %v764
  %939 = vst.msk [vmem:[%s891 + $0x261] sm:$0xff] %vm108, %v765
  %940 = vst.msk [vmem:[%s891 + $0x271] sm:$0xff] %vm108, %v766
  %941 = vst.msk [vmem:[%s891 + $0x279] sm:$0xff] %vm108, %v767
  %942 = vst.msk [vmem:[%s891 + $0x289] sm:$0xff] %vm108, %v768
  %943 = vst.msk [vmem:[%s891 + $0x291] sm:$0xff] %vm108, %v769
  %944 = vst.msk [vmem:[%s891 + $0x2a1] sm:$0xff] %vm108, %v770
  %945 = vst.msk [vmem:[%s891 + $0x2a9] sm:$0xff] %vm108, %v771
  %946 = vst.msk [vmem:[%s891 + $0x2b9] sm:$0xff] %vm108, %v772
  %947 = vst.msk [vmem:[%s891 + $0x2c1] sm:$0xff] %vm108, %v773
  %948 = vst.msk [vmem:[%s891 + $0x2d1] sm:$0xff] %vm108, %v774
  %949 = vst.msk [vmem:[%s891 + $0x2d9] sm:$0xff] %vm108, %v775
  %950 = vst.msk [vmem:[%s891 + $0x2e9] sm:$0xff] %vm108, %v776
  %951 = vst.msk [vmem:[%s891 + $0x2f1] sm:$0xff] %vm108, %v777
  %952 = vst.msk [vmem:[%s891 + $0x301] sm:$0xff] %vm108, %v778
  %953 = vst.msk [vmem:[%s891 + $0x309] sm:$0xff] %vm108, %v779
  %954 = vst.msk [vmem:[%s891 + $0x319] sm:$0xff] %vm108, %v780
  %955 = vst.msk [vmem:[%s891 + $0x321] sm:$0xff] %vm108, %v781
  %v956 = vld [vmem:[#allocation2] sm:$0xff]
  %v957 = vld [vmem:[#allocation2 + $0x8] sm:$0xff]
  %v958 = vld [vmem:[#allocation2 + $0x18] sm:$0xff]
  %v959 = vld [vmem:[#allocation2 + $0x20] sm:$0xff]
  %v960 = vld [vmem:[#allocation2 + $0x30] sm:$0xff]
  %v961 = vld [vmem:[#allocation2 + $0x38] sm:$0xff]
  %v962 = vld [vmem:[#allocation2 + $0x48] sm:$0xff]
  %v963 = vld [vmem:[#allocation2 + $0x50] sm:$0xff]
  %v964 = vld [vmem:[#allocation2 + $0x60] sm:$0xff]
  %v965 = vld [vmem:[#allocation2 + $0x68] sm:$0xff]
  %v966 = vld [vmem:[#allocation2 + $0x78] sm:$0xff]
  %v967 = vld [vmem:[#allocation2 + $0x80] sm:$0xff]
  %v968 = vld [vmem:[#allocation2 + $0x90] sm:$0xff]
  %v969 = vld [vmem:[#allocation2 + $0x98] sm:$0xff]
  %v970 = vld [vmem:[#allocation2 + $0xa8] sm:$0xff]
  %v971 = vld [vmem:[#allocation2 + $0xb0] sm:$0xff]
  %v972 = vld [vmem:[#allocation2 + $0xc0] sm:$0xff]
  %v973 = vld [vmem:[#allocation2 + $0xc8] sm:$0xff]
  %v974 = vld [vmem:[#allocation2 + $0xd8] sm:$0xff]
  %v975 = vld [vmem:[#allocation2 + $0xe0] sm:$0xff]
  %v976 = vld [vmem:[#allocation2 + $0xf0] sm:$0xff]
  %v977 = vld [vmem:[#allocation2 + $0xf8] sm:$0xff]
  %v978 = vld [vmem:[#allocation2 + $0x108] sm:$0xff]
  %v979 = vld [vmem:[#allocation2 + $0x110] sm:$0xff]
  %v980 = vld [vmem:[#allocation2 + $0x120] sm:$0xff]
  %v981 = vld [vmem:[#allocation2 + $0x128] sm:$0xff]
  %v982 = vld [vmem:[#allocation2 + $0x138] sm:$0xff]
  %v983 = vld [vmem:[#allocation2 + $0x140] sm:$0xff]
  %v984 = vld [vmem:[#allocation2 + $0x150] sm:$0xff]
  %v985 = vld [vmem:[#allocation2 + $0x158] sm:$0xff]
  %v986 = vld [vmem:[#allocation2 + $0x168] sm:$0xff]
  %v987 = vld [vmem:[#allocation2 + $0x170] sm:$0xff]
  %v988 = vld [vmem:[#allocation2 + $0x1b0] sm:$0xff]
  %v989 = vld [vmem:[#allocation2 + $0x1b8] sm:$0xff]
  %v990 = vld [vmem:[#allocation2 + $0x1c8] sm:$0xff]
  %v991 = vld [vmem:[#allocation2 + $0x1d0] sm:$0xff]
  %v992 = vld [vmem:[#allocation2 + $0x1e0] sm:$0xff]
  %v993 = vld [vmem:[#allocation2 + $0x1e8] sm:$0xff]
  %v994 = vld [vmem:[#allocation2 + $0x1f8] sm:$0xff]
  %v995 = vld [vmem:[#allocation2 + $0x200] sm:$0xff]
  %v996 = vld [vmem:[#allocation2 + $0x210] sm:$0xff]
  %v997 = vld [vmem:[#allocation2 + $0x218] sm:$0xff]
  %v998 = vld [vmem:[#allocation2 + $0x228] sm:$0xff]
  %v999 = vld [vmem:[#allocation2 + $0x230] sm:$0xff]
  %v1000 = vld [vmem:[#allocation2 + $0x240] sm:$0xff]
  %v1001 = vld [vmem:[#allocation2 + $0x248] sm:$0xff]
  %v1002 = vld [vmem:[#allocation2 + $0x258] sm:$0xff]
  %v1003 = vld [vmem:[#allocation2 + $0x260] sm:$0xff]
  %v1004 = vld [vmem:[#allocation2 + $0x270] sm:$0xff]
  %v1005 = vld [vmem:[#allocation2 + $0x278] sm:$0xff]
  %v1006 = vld [vmem:[#allocation2 + $0x288] sm:$0xff]
  %v1007 = vld [vmem:[#allocation2 + $0x290] sm:$0xff]
  %v1008 = vld [vmem:[#allocation2 + $0x2a0] sm:$0xff]
  %v1009 = vld [vmem:[#allocation2 + $0x2a8] sm:$0xff]
  %v1010 = vld [vmem:[#allocation2 + $0x2b8] sm:$0xff]
  %v1011 = vld [vmem:[#allocation2 + $0x2c0] sm:$0xff]
  %v1012 = vld [vmem:[#allocation2 + $0x2d0] sm:$0xff]
  %v1013 = vld [vmem:[#allocation2 + $0x2d8] sm:$0xff]
  %v1014 = vld [vmem:[#allocation2 + $0x2e8] sm:$0xff]
  %v1015 = vld [vmem:[#allocation2 + $0x2f0] sm:$0xff]
  %v1016 = vld [vmem:[#allocation2 + $0x300] sm:$0xff]
  %v1017 = vld [vmem:[#allocation2 + $0x308] sm:$0xff]
  %v1018 = vld [vmem:[#allocation2 + $0x318] sm:$0xff]
  %v1019 = vld [vmem:[#allocation2 + $0x320] sm:$0xff]
  %v1020 = vld [vmem:[#allocation2 + $0x1] sm:$0xff]
  %v1021 = vld [vmem:[#allocation2 + $0x9] sm:$0xff]
  %v1022 = vld [vmem:[#allocation2 + $0x19] sm:$0xff]
  %v1023 = vld [vmem:[#allocation2 + $0x21] sm:$0xff]
  %v1024 = vld [vmem:[#allocation2 + $0x31] sm:$0xff]
  %v1025 = vld [vmem:[#allocation2 + $0x39] sm:$0xff]
  %v1026 = vld [vmem:[#allocation2 + $0x49] sm:$0xff]
  %v1027 = vld [vmem:[#allocation2 + $0x51] sm:$0xff]
  %v1028 = vld [vmem:[#allocation2 + $0x61] sm:$0xff]
  %v1029 = vld [vmem:[#allocation2 + $0x69] sm:$0xff]
  %v1030 = vld [vmem:[#allocation2 + $0x79] sm:$0xff]
  %v1031 = vld [vmem:[#allocation2 + $0x81] sm:$0xff]
  %v1032 = vld [vmem:[#allocation2 + $0x91] sm:$0xff]
  %v1033 = vld [vmem:[#allocation2 + $0x99] sm:$0xff]
  %v1034 = vld [vmem:[#allocation2 + $0xa9] sm:$0xff]
  %v1035 = vld [vmem:[#allocation2 + $0xb1] sm:$0xff]
  %v1036 = vld [vmem:[#allocation2 + $0xc1] sm:$0xff]
  %v1037 = vld [vmem:[#allocation2 + $0xc9] sm:$0xff]
  %v1038 = vld [vmem:[#allocation2 + $0xd9] sm:$0xff]
  %v1039 = vld [vmem:[#allocation2 + $0xe1] sm:$0xff]
  %v1040 = vld [vmem:[#allocation2 + $0xf1] sm:$0xff]
  %v1041 = vld [vmem:[#allocation2 + $0xf9] sm:$0xff]
  %v1042 = vld [vmem:[#allocation2 + $0x109] sm:$0xff]
  %v1043 = vld [vmem:[#allocation2 + $0x111] sm:$0xff]
  %v1044 = vld [vmem:[#allocation2 + $0x121] sm:$0xff]
  %v1045 = vld [vmem:[#allocation2 + $0x129] sm:$0xff]
  %v1046 = vld [vmem:[#allocation2 + $0x139] sm:$0xff]
  %v1047 = vld [vmem:[#allocation2 + $0x141] sm:$0xff]
  %v1048 = vld [vmem:[#allocation2 + $0x151] sm:$0xff]
  %v1049 = vld [vmem:[#allocation2 + $0x159] sm:$0xff]
  %v1050 = vld [vmem:[#allocation2 + $0x169] sm:$0xff]
  %v1051 = vld [vmem:[#allocation2 + $0x171] sm:$0xff]
  %v1052 = vld [vmem:[#allocation2 + $0x1b1] sm:$0xff]
  %v1053 = vld [vmem:[#allocation2 + $0x1b9] sm:$0xff]
  %v1054 = vld [vmem:[#allocation2 + $0x1c9] sm:$0xff]
  %v1055 = vld [vmem:[#allocation2 + $0x1d1] sm:$0xff]
  %v1056 = vld [vmem:[#allocation2 + $0x1e1] sm:$0xff]
  %v1057 = vld [vmem:[#allocation2 + $0x1e9] sm:$0xff]
  %v1058 = vld [vmem:[#allocation2 + $0x1f9] sm:$0xff]
  %v1059 = vld [vmem:[#allocation2 + $0x201] sm:$0xff]
  %v1060 = vld [vmem:[#allocation2 + $0x211] sm:$0xff]
  %v1061 = vld [vmem:[#allocation2 + $0x219] sm:$0xff]
  %v1062 = vld [vmem:[#allocation2 + $0x229] sm:$0xff]
  %v1063 = vld [vmem:[#allocation2 + $0x231] sm:$0xff]
  %v1064 = vld [vmem:[#allocation2 + $0x241] sm:$0xff]
  %v1065 = vld [vmem:[#allocation2 + $0x249] sm:$0xff]
  %v1066 = vld [vmem:[#allocation2 + $0x259] sm:$0xff]
  %v1067 = vld [vmem:[#allocation2 + $0x261] sm:$0xff]
  %v1068 = vld [vmem:[#allocation2 + $0x271] sm:$0xff]
  %v1069 = vld [vmem:[#allocation2 + $0x279] sm:$0xff]
  %v1070 = vld [vmem:[#allocation2 + $0x289] sm:$0xff]
  %v1071 = vld [vmem:[#allocation2 + $0x291] sm:$0xff]
  %v1072 = vld [vmem:[#allocation2 + $0x2a1] sm:$0xff]
  %v1073 = vld [vmem:[#allocation2 + $0x2a9] sm:$0xff]
  %v1074 = vld [vmem:[#allocation2 + $0x2b9] sm:$0xff]
  %v1075 = vld [vmem:[#allocation2 + $0x2c1] sm:$0xff]
  %v1076 = vld [vmem:[#allocation2 + $0x2d1] sm:$0xff]
  %v1077 = vld [vmem:[#allocation2 + $0x2d9] sm:$0xff]
  %v1078 = vld [vmem:[#allocation2 + $0x2e9] sm:$0xff]
  %v1079 = vld [vmem:[#allocation2 + $0x2f1] sm:$0xff]
  %v1080 = vld [vmem:[#allocation2 + $0x301] sm:$0xff]
  %v1081 = vld [vmem:[#allocation2 + $0x309] sm:$0xff]
  %v1082 = vld [vmem:[#allocation2 + $0x319] sm:$0xff]
  %v1083 = vld [vmem:[#allocation2 + $0x321] sm:$0xff]
  %v1084 = vld [vmem:[#allocation2 + $0x2] sm:$0xff]
  %v1085 = vld [vmem:[#allocation2 + $0xa] sm:$0xff]
  %v1086 = vld [vmem:[#allocation2 + $0x1a] sm:$0xff]
  %v1087 = vld [vmem:[#allocation2 + $0x22] sm:$0xff]
  %v1088 = vld [vmem:[#allocation2 + $0x32] sm:$0xff]
  %v1089 = vld [vmem:[#allocation2 + $0x3a] sm:$0xff]
  %v1090 = vld [vmem:[#allocation2 + $0x4a] sm:$0xff]
  %v1091 = vld [vmem:[#allocation2 + $0x52] sm:$0xff]
  %v1092 = vld [vmem:[#allocation2 + $0x62] sm:$0xff]
  %v1093 = vld [vmem:[#allocation2 + $0x6a] sm:$0xff]
  %v1094 = vld [vmem:[#allocation2 + $0x7a] sm:$0xff]
  %v1095 = vld [vmem:[#allocation2 + $0x82] sm:$0xff]
  %v1096 = vld [vmem:[#allocation2 + $0x92] sm:$0xff]
  %v1097 = vld [vmem:[#allocation2 + $0x9a] sm:$0xff]
  %v1098 = vld [vmem:[#allocation2 + $0xaa] sm:$0xff]
  %v1099 = vld [vmem:[#allocation2 + $0xb2] sm:$0xff]
  %v1100 = vld [vmem:[#allocation2 + $0xc2] sm:$0xff]
  %v1101 = vld [vmem:[#allocation2 + $0xca] sm:$0xff]
  %v1102 = vld [vmem:[#allocation2 + $0xda] sm:$0xff]
  %v1103 = vld [vmem:[#allocation2 + $0xe2] sm:$0xff]
  %v1104 = vld [vmem:[#allocation2 + $0xf2] sm:$0xff]
  %v1105 = vld [vmem:[#allocation2 + $0xfa] sm:$0xff]
  %v1106 = vld [vmem:[#allocation2 + $0x10a] sm:$0xff]
  %v1107 = vld [vmem:[#allocation2 + $0x112] sm:$0xff]
  %v1108 = vld [vmem:[#allocation2 + $0x122] sm:$0xff]
  %v1109 = vld [vmem:[#allocation2 + $0x12a] sm:$0xff]
  %v1110 = vld [vmem:[#allocation2 + $0x13a] sm:$0xff]
  %v1111 = vld [vmem:[#allocation2 + $0x142] sm:$0xff]
  %v1112 = vld [vmem:[#allocation2 + $0x152] sm:$0xff]
  %v1113 = vld [vmem:[#allocation2 + $0x15a] sm:$0xff]
  %v1114 = vld [vmem:[#allocation2 + $0x16a] sm:$0xff]
  %v1115 = vld [vmem:[#allocation2 + $0x172] sm:$0xff]
  %v1116 = vld [vmem:[#allocation2 + $0x1b2] sm:$0xff]
  %v1117 = vld [vmem:[#allocation2 + $0x1ba] sm:$0xff]
  %v1118 = vld [vmem:[#allocation2 + $0x1ca] sm:$0xff]
  %v1119 = vld [vmem:[#allocation2 + $0x1d2] sm:$0xff]
  %v1120 = vld [vmem:[#allocation2 + $0x1e2] sm:$0xff]
  %v1121 = vld [vmem:[#allocation2 + $0x1ea] sm:$0xff]
  %v1122 = vld [vmem:[#allocation2 + $0x1fa] sm:$0xff]
  %v1123 = vld [vmem:[#allocation2 + $0x202] sm:$0xff]
  %v1124 = vld [vmem:[#allocation2 + $0x212] sm:$0xff]
  %v1125 = vld [vmem:[#allocation2 + $0x21a] sm:$0xff]
  %v1126 = vld [vmem:[#allocation2 + $0x22a] sm:$0xff]
  %v1127 = vld [vmem:[#allocation2 + $0x232] sm:$0xff]
  %v1128 = vld [vmem:[#allocation2 + $0x242] sm:$0xff]
  %v1129 = vld [vmem:[#allocation2 + $0x24a] sm:$0xff]
  %v1130 = vld [vmem:[#allocation2 + $0x25a] sm:$0xff]
  %v1131 = vld [vmem:[#allocation2 + $0x262] sm:$0xff]
  %v1132 = vld [vmem:[#allocation2 + $0x272] sm:$0xff]
  %v1133 = vld [vmem:[#allocation2 + $0x27a] sm:$0xff]
  %v1134 = vld [vmem:[#allocation2 + $0x28a] sm:$0xff]
  %v1135 = vld [vmem:[#allocation2 + $0x292] sm:$0xff]
  %v1136 = vld [vmem:[#allocation2 + $0x2a2] sm:$0xff]
  %v1137 = vld [vmem:[#allocation2 + $0x2aa] sm:$0xff]
  %v1138 = vld [vmem:[#allocation2 + $0x2ba] sm:$0xff]
  %v1139 = vld [vmem:[#allocation2 + $0x2c2] sm:$0xff]
  %v1140 = vld [vmem:[#allocation2 + $0x2d2] sm:$0xff]
  %v1141 = vld [vmem:[#allocation2 + $0x2da] sm:$0xff]
  %v1142 = vld [vmem:[#allocation2 + $0x2ea] sm:$0xff]
  %v1143 = vld [vmem:[#allocation2 + $0x2f2] sm:$0xff]
  %v1144 = vld [vmem:[#allocation2 + $0x302] sm:$0xff]
  %v1145 = vld [vmem:[#allocation2 + $0x30a] sm:$0xff]
  %v1146 = vld [vmem:[#allocation2 + $0x31a] sm:$0xff]
  %v1147 = vld [vmem:[#allocation2 + $0x322] sm:$0xff]
  %v1148 = vld [vmem:[%s891] sm:$0xff]
  %v1149 = vld [vmem:[%s891 + $0x8] sm:$0xff]
  %v1150 = vld [vmem:[%s891 + $0x18] sm:$0xff]
  %v1151 = vld [vmem:[%s891 + $0x20] sm:$0xff]
  %v1152 = vld [vmem:[%s891 + $0x30] sm:$0xff]
  %v1153 = vld [vmem:[%s891 + $0x38] sm:$0xff]
  %v1154 = vld [vmem:[%s891 + $0x48] sm:$0xff]
  %v1155 = vld [vmem:[%s891 + $0x50] sm:$0xff]
  %v1156 = vld [vmem:[%s891 + $0x60] sm:$0xff]
  %v1157 = vld [vmem:[%s891 + $0x68] sm:$0xff]
  %v1158 = vld [vmem:[%s891 + $0x78] sm:$0xff]
  %v1159 = vld [vmem:[%s891 + $0x80] sm:$0xff]
  %v1160 = vld [vmem:[%s891 + $0x90] sm:$0xff]
  %v1161 = vld [vmem:[%s891 + $0x98] sm:$0xff]
  %v1162 = vld [vmem:[%s891 + $0xa8] sm:$0xff]
  %v1163 = vld [vmem:[%s891 + $0xb0] sm:$0xff]
  %v1164 = vld [vmem:[%s891 + $0xc0] sm:$0xff]
  %v1165 = vld [vmem:[%s891 + $0xc8] sm:$0xff]
  %v1166 = vld [vmem:[%s891 + $0xd8] sm:$0xff]
  %v1167 = vld [vmem:[%s891 + $0xe0] sm:$0xff]
  %v1168 = vld [vmem:[%s891 + $0xf0] sm:$0xff]
  %v1169 = vld [vmem:[%s891 + $0xf8] sm:$0xff]
  %v1170 = vld [vmem:[%s891 + $0x108] sm:$0xff]
  %v1171 = vld [vmem:[%s891 + $0x110] sm:$0xff]
  %v1172 = vld [vmem:[%s891 + $0x120] sm:$0xff]
  %v1173 = vld [vmem:[%s891 + $0x128] sm:$0xff]
  %v1174 = vld [vmem:[%s891 + $0x138] sm:$0xff]
  %v1175 = vld [vmem:[%s891 + $0x140] sm:$0xff]
  %v1176 = vld [vmem:[%s891 + $0x150] sm:$0xff]
  %v1177 = vld [vmem:[%s891 + $0x158] sm:$0xff]
  %v1178 = vld [vmem:[%s891 + $0x168] sm:$0xff]
  %v1179 = vld [vmem:[%s891 + $0x170] sm:$0xff]
  %v1180 = vld [vmem:[%s891 + $0x1b0] sm:$0xff]
  %v1181 = vld [vmem:[%s891 + $0x1b8] sm:$0xff]
  %v1182 = vld [vmem:[%s891 + $0x1c8] sm:$0xff]
  %v1183 = vld [vmem:[%s891 + $0x1d0] sm:$0xff]
  %v1184 = vld [vmem:[%s891 + $0x1e0] sm:$0xff]
  %v1185 = vld [vmem:[%s891 + $0x1e8] sm:$0xff]
  %v1186 = vld [vmem:[%s891 + $0x1f8] sm:$0xff]
  %v1187 = vld [vmem:[%s891 + $0x200] sm:$0xff]
  %v1188 = vld [vmem:[%s891 + $0x210] sm:$0xff]
  %v1189 = vld [vmem:[%s891 + $0x218] sm:$0xff]
  %v1190 = vld [vmem:[%s891 + $0x228] sm:$0xff]
  %v1191 = vld [vmem:[%s891 + $0x230] sm:$0xff]
  %v1192 = vld [vmem:[%s891 + $0x240] sm:$0xff]
  %v1193 = vld [vmem:[%s891 + $0x248] sm:$0xff]
  %v1194 = vld [vmem:[%s891 + $0x258] sm:$0xff]
  %v1195 = vld [vmem:[%s891 + $0x260] sm:$0xff]
  %v1196 = vld [vmem:[%s891 + $0x270] sm:$0xff]
  %v1197 = vld [vmem:[%s891 + $0x278] sm:$0xff]
  %v1198 = vld [vmem:[%s891 + $0x288] sm:$0xff]
  %v1199 = vld [vmem:[%s891 + $0x290] sm:$0xff]
  %v1200 = vld [vmem:[%s891 + $0x2a0] sm:$0xff]
  %v1201 = vld [vmem:[%s891 + $0x2a8] sm:$0xff]
  %v1202 = vld [vmem:[%s891 + $0x2b8] sm:$0xff]
  %v1203 = vld [vmem:[%s891 + $0x2c0] sm:$0xff]
  %v1204 = vld [vmem:[%s891 + $0x2d0] sm:$0xff]
  %v1205 = vld [vmem:[%s891 + $0x2d8] sm:$0xff]
  %v1206 = vld [vmem:[%s891 + $0x2e8] sm:$0xff]
  %v1207 = vld [vmem:[%s891 + $0x2f0] sm:$0xff]
  %v1208 = vld [vmem:[%s891 + $0x300] sm:$0xff]
  %v1209 = vld [vmem:[%s891 + $0x308] sm:$0xff]
  %v1210 = vld [vmem:[%s891 + $0x318] sm:$0xff]
  %v1211 = vld [vmem:[%s891 + $0x320] sm:$0xff]
  %v1212 = vld [vmem:[%s891 + $0x1] sm:$0xff]
  %v1213 = vld [vmem:[%s891 + $0x9] sm:$0xff]
  %v1214 = vld [vmem:[%s891 + $0x19] sm:$0xff]
  %v1215 = vld [vmem:[%s891 + $0x21] sm:$0xff]
  %v1216 = vld [vmem:[%s891 + $0x31] sm:$0xff]
  %v1217 = vld [vmem:[%s891 + $0x39] sm:$0xff]
  %v1218 = vld [vmem:[%s891 + $0x49] sm:$0xff]
  %v1219 = vld [vmem:[%s891 + $0x51] sm:$0xff]
  %v1220 = vld [vmem:[%s891 + $0x61] sm:$0xff]
  %v1221 = vld [vmem:[%s891 + $0x69] sm:$0xff]
  %v1222 = vld [vmem:[%s891 + $0x79] sm:$0xff]
  %v1223 = vld [vmem:[%s891 + $0x81] sm:$0xff]
  %v1224 = vld [vmem:[%s891 + $0x91] sm:$0xff]
  %v1225 = vld [vmem:[%s891 + $0x99] sm:$0xff]
  %v1226 = vld [vmem:[%s891 + $0xa9] sm:$0xff]
  %v1227 = vld [vmem:[%s891 + $0xb1] sm:$0xff]
  %v1228 = vld [vmem:[%s891 + $0xc1] sm:$0xff]
  %v1229 = vld [vmem:[%s891 + $0xc9] sm:$0xff]
  %v1230 = vld [vmem:[%s891 + $0xd9] sm:$0xff]
  %v1231 = vld [vmem:[%s891 + $0xe1] sm:$0xff]
  %v1232 = vld [vmem:[%s891 + $0xf1] sm:$0xff]
  %v1233 = vld [vmem:[%s891 + $0xf9] sm:$0xff]
  %v1234 = vld [vmem:[%s891 + $0x109] sm:$0xff]
  %v1235 = vld [vmem:[%s891 + $0x111] sm:$0xff]
  %v1236 = vld [vmem:[%s891 + $0x121] sm:$0xff]
  %v1237 = vld [vmem:[%s891 + $0x129] sm:$0xff]
  %v1238 = vld [vmem:[%s891 + $0x139] sm:$0xff]
  %v1239 = vld [vmem:[%s891 + $0x141] sm:$0xff]
  %v1240 = vld [vmem:[%s891 + $0x151] sm:$0xff]
  %v1241 = vld [vmem:[%s891 + $0x159] sm:$0xff]
  %v1242 = vld [vmem:[%s891 + $0x169] sm:$0xff]
  %v1243 = vld [vmem:[%s891 + $0x171] sm:$0xff]
  %v1244 = vld [vmem:[%s891 + $0x1b1] sm:$0xff]
  %v1245 = vld [vmem:[%s891 + $0x1b9] sm:$0xff]
  %v1246 = vld [vmem:[%s891 + $0x1c9] sm:$0xff]
  %v1247 = vld [vmem:[%s891 + $0x1d1] sm:$0xff]
  %v1248 = vld [vmem:[%s891 + $0x1e1] sm:$0xff]
  %v1249 = vld [vmem:[%s891 + $0x1e9] sm:$0xff]
  %v1250 = vld [vmem:[%s891 + $0x1f9] sm:$0xff]
  %v1251 = vld [vmem:[%s891 + $0x201] sm:$0xff]
  %v1252 = vld [vmem:[%s891 + $0x211] sm:$0xff]
  %v1253 = vld [vmem:[%s891 + $0x219] sm:$0xff]
  %v1254 = vld [vmem:[%s891 + $0x229] sm:$0xff]
  %v1255 = vld [vmem:[%s891 + $0x231] sm:$0xff]
  %v1256 = vld [vmem:[%s891 + $0x241] sm:$0xff]
  %v1257 = vld [vmem:[%s891 + $0x249] sm:$0xff]
  %v1258 = vld [vmem:[%s891 + $0x259] sm:$0xff]
  %v1259 = vld [vmem:[%s891 + $0x261] sm:$0xff]
  %v1260 = vld [vmem:[%s891 + $0x271] sm:$0xff]
  %v1261 = vld [vmem:[%s891 + $0x279] sm:$0xff]
  %v1262 = vld [vmem:[%s891 + $0x289] sm:$0xff]
  %v1263 = vld [vmem:[%s891 + $0x291] sm:$0xff]
  %v1264 = vld [vmem:[%s891 + $0x2a1] sm:$0xff]
  %v1265 = vld [vmem:[%s891 + $0x2a9] sm:$0xff]
  %v1266 = vld [vmem:[%s891 + $0x2b9] sm:$0xff]
  %v1267 = vld [vmem:[%s891 + $0x2c1] sm:$0xff]
  %v1268 = vld [vmem:[%s891 + $0x2d1] sm:$0xff]
  %v1269 = vld [vmem:[%s891 + $0x2d9] sm:$0xff]
  %v1270 = vld [vmem:[%s891 + $0x2e9] sm:$0xff]
  %v1271 = vld [vmem:[%s891 + $0x2f1] sm:$0xff]
  %v1272 = vld [vmem:[%s891 + $0x301] sm:$0xff]
  %v1273 = vld [vmem:[%s891 + $0x309] sm:$0xff]
  %v1274 = vld [vmem:[%s891 + $0x319] sm:$0xff]
  %v1275 = vld [vmem:[%s891 + $0x321] sm:$0xff]
  %v1276 = vld [vmem:[%s891 + $0x2] sm:$0xff]
  %v1277 = vld [vmem:[%s891 + $0xa] sm:$0xff]
  %v1278 = vld [vmem:[%s891 + $0x1a] sm:$0xff]
  %v1279 = vld [vmem:[%s891 + $0x22] sm:$0xff]
  %v1280 = vld [vmem:[%s891 + $0x32] sm:$0xff]
  %v1281 = vld [vmem:[%s891 + $0x3a] sm:$0xff]
  %v1282 = vld [vmem:[%s891 + $0x4a] sm:$0xff]
  %v1283 = vld [vmem:[%s891 + $0x52] sm:$0xff]
  %v1284 = vld [vmem:[%s891 + $0x62] sm:$0xff]
  %v1285 = vld [vmem:[%s891 + $0x6a] sm:$0xff]
  %v1286 = vld [vmem:[%s891 + $0x7a] sm:$0xff]
  %v1287 = vld [vmem:[%s891 + $0x82] sm:$0xff]
  %v1288 = vld [vmem:[%s891 + $0x92] sm:$0xff]
  %v1289 = vld [vmem:[%s891 + $0x9a] sm:$0xff]
  %v1290 = vld [vmem:[%s891 + $0xaa] sm:$0xff]
  %v1291 = vld [vmem:[%s891 + $0xb2] sm:$0xff]
  %v1292 = vld [vmem:[%s891 + $0xc2] sm:$0xff]
  %v1293 = vld [vmem:[%s891 + $0xca] sm:$0xff]
  %v1294 = vld [vmem:[%s891 + $0xda] sm:$0xff]
  %v1295 = vld [vmem:[%s891 + $0xe2] sm:$0xff]
  %v1296 = vld [vmem:[%s891 + $0xf2] sm:$0xff]
  %v1297 = vld [vmem:[%s891 + $0xfa] sm:$0xff]
  %v1298 = vld [vmem:[%s891 + $0x10a] sm:$0xff]
  %v1299 = vld [vmem:[%s891 + $0x112] sm:$0xff]
  %v1300 = vld [vmem:[%s891 + $0x122] sm:$0xff]
  %v1301 = vld [vmem:[%s891 + $0x12a] sm:$0xff]
  %v1302 = vld [vmem:[%s891 + $0x13a] sm:$0xff]
  %v1303 = vld [vmem:[%s891 + $0x142] sm:$0xff]
  %v1304 = vld [vmem:[%s891 + $0x152] sm:$0xff]
  %v1305 = vld [vmem:[%s891 + $0x15a] sm:$0xff]
  %v1306 = vld [vmem:[%s891 + $0x16a] sm:$0xff]
  %v1307 = vld [vmem:[%s891 + $0x172] sm:$0xff]
  %v1308 = vld [vmem:[%s891 + $0x1b2] sm:$0xff]
  %v1309 = vld [vmem:[%s891 + $0x1ba] sm:$0xff]
  %v1310 = vld [vmem:[%s891 + $0x1ca] sm:$0xff]
  %v1311 = vld [vmem:[%s891 + $0x1d2] sm:$0xff]
  %v1312 = vld [vmem:[%s891 + $0x1e2] sm:$0xff]
  %v1313 = vld [vmem:[%s891 + $0x1ea] sm:$0xff]
  %v1314 = vld [vmem:[%s891 + $0x1fa] sm:$0xff]
  %v1315 = vld [vmem:[%s891 + $0x202] sm:$0xff]
  %v1316 = vld [vmem:[%s891 + $0x212] sm:$0xff]
  %v1317 = vld [vmem:[%s891 + $0x21a] sm:$0xff]
  %v1318 = vld [vmem:[%s891 + $0x22a] sm:$0xff]
  %v1319 = vld [vmem:[%s891 + $0x232] sm:$0xff]
  %v1320 = vld [vmem:[%s891 + $0x242] sm:$0xff]
  %v1321 = vld [vmem:[%s891 + $0x24a] sm:$0xff]
  %v1322 = vld [vmem:[%s891 + $0x25a] sm:$0xff]
  %v1323 = vld [vmem:[%s891 + $0x262] sm:$0xff]
  %v1324 = vld [vmem:[%s891 + $0x272] sm:$0xff]
  %v1325 = vld [vmem:[%s891 + $0x27a] sm:$0xff]
  %v1326 = vld [vmem:[%s891 + $0x28a] sm:$0xff]
  %v1327 = vld [vmem:[%s891 + $0x292] sm:$0xff]
  %v1328 = vld [vmem:[%s891 + $0x2a2] sm:$0xff]
  %v1329 = vld [vmem:[%s891 + $0x2aa] sm:$0xff]
  %v1330 = vld [vmem:[%s891 + $0x2ba] sm:$0xff]
  %v1331 = vld [vmem:[%s891 + $0x2c2] sm:$0xff]
  %v1332 = vld [vmem:[%s891 + $0x2d2] sm:$0xff]
  %v1333 = vld [vmem:[%s891 + $0x2da] sm:$0xff]
  %v1334 = vld [vmem:[%s891 + $0x2ea] sm:$0xff]
  %v1335 = vld [vmem:[%s891 + $0x2f2] sm:$0xff]
  %v1336 = vld [vmem:[%s891 + $0x302] sm:$0xff]
  %v1337 = vld [vmem:[%s891 + $0x30a] sm:$0xff]
  %v1338 = vld [vmem:[%s891 + $0x31a] sm:$0xff]
  %v1339 = vld [vmem:[%s891 + $0x322] sm:$0xff]
  %s1340 = scalar_lea.vmem [#allocation2], 48
  %v1341 = vld [vmem:[%s1340] sm:$0xff]
  %v1342 = vld [vmem:[%s1340 + $0x8] sm:$0xff]
  %v1343 = vld [vmem:[%s1340 + $0x18] sm:$0xff]
  %v1344 = vld [vmem:[%s1340 + $0x20] sm:$0xff]
  %v1345 = vld [vmem:[%s1340 + $0x30] sm:$0xff]
  %v1346 = vld [vmem:[%s1340 + $0x38] sm:$0xff]
  %v1347 = vld [vmem:[%s1340 + $0x48] sm:$0xff]
  %v1348 = vld [vmem:[%s1340 + $0x50] sm:$0xff]
  %v1349 = vld [vmem:[%s1340 + $0x60] sm:$0xff]
  %v1350 = vld [vmem:[%s1340 + $0x68] sm:$0xff]
  %v1351 = vld [vmem:[%s1340 + $0x78] sm:$0xff]
  %v1352 = vld [vmem:[%s1340 + $0x80] sm:$0xff]
  %v1353 = vld [vmem:[%s1340 + $0x90] sm:$0xff]
  %v1354 = vld [vmem:[%s1340 + $0x98] sm:$0xff]
  %v1355 = vld [vmem:[%s1340 + $0xa8] sm:$0xff]
  %v1356 = vld [vmem:[%s1340 + $0xb0] sm:$0xff]
  %v1357 = vld [vmem:[%s1340 + $0xc0] sm:$0xff]
  %v1358 = vld [vmem:[%s1340 + $0xc8] sm:$0xff]
  %v1359 = vld [vmem:[%s1340 + $0xd8] sm:$0xff]
  %v1360 = vld [vmem:[%s1340 + $0xe0] sm:$0xff]
  %v1361 = vld [vmem:[%s1340 + $0xf0] sm:$0xff]
  %v1362 = vld [vmem:[%s1340 + $0xf8] sm:$0xff]
  %v1363 = vld [vmem:[%s1340 + $0x108] sm:$0xff]
  %v1364 = vld [vmem:[%s1340 + $0x110] sm:$0xff]
  %v1365 = vld [vmem:[%s1340 + $0x120] sm:$0xff]
  %v1366 = vld [vmem:[%s1340 + $0x128] sm:$0xff]
  %v1367 = vld [vmem:[%s1340 + $0x138] sm:$0xff]
  %v1368 = vld [vmem:[%s1340 + $0x140] sm:$0xff]
  %v1369 = vld [vmem:[%s1340 + $0x150] sm:$0xff]
  %v1370 = vld [vmem:[%s1340 + $0x158] sm:$0xff]
  %v1371 = vld [vmem:[%s1340 + $0x168] sm:$0xff]
  %v1372 = vld [vmem:[%s1340 + $0x170] sm:$0xff]
  %v1373 = vld [vmem:[%s1340 + $0x1b0] sm:$0xff]
  %v1374 = vld [vmem:[%s1340 + $0x1b8] sm:$0xff]
  %v1375 = vld [vmem:[%s1340 + $0x1c8] sm:$0xff]
  %v1376 = vld [vmem:[%s1340 + $0x1d0] sm:$0xff]
  %v1377 = vld [vmem:[%s1340 + $0x1e0] sm:$0xff]
  %v1378 = vld [vmem:[%s1340 + $0x1e8] sm:$0xff]
  %v1379 = vld [vmem:[%s1340 + $0x1f8] sm:$0xff]
  %v1380 = vld [vmem:[%s1340 + $0x200] sm:$0xff]
  %v1381 = vld [vmem:[%s1340 + $0x210] sm:$0xff]
  %v1382 = vld [vmem:[%s1340 + $0x218] sm:$0xff]
  %v1383 = vld [vmem:[%s1340 + $0x228] sm:$0xff]
  %v1384 = vld [vmem:[%s1340 + $0x230] sm:$0xff]
  %v1385 = vld [vmem:[%s1340 + $0x240] sm:$0xff]
  %v1386 = vld [vmem:[%s1340 + $0x248] sm:$0xff]
  %v1387 = vld [vmem:[%s1340 + $0x258] sm:$0xff]
  %v1388 = vld [vmem:[%s1340 + $0x260] sm:$0xff]
  %v1389 = vld [vmem:[%s1340 + $0x270] sm:$0xff]
  %v1390 = vld [vmem:[%s1340 + $0x278] sm:$0xff]
  %v1391 = vld [vmem:[%s1340 + $0x288] sm:$0xff]
  %v1392 = vld [vmem:[%s1340 + $0x290] sm:$0xff]
  %v1393 = vld [vmem:[%s1340 + $0x2a0] sm:$0xff]
  %v1394 = vld [vmem:[%s1340 + $0x2a8] sm:$0xff]
  %v1395 = vld [vmem:[%s1340 + $0x2b8] sm:$0xff]
  %v1396 = vld [vmem:[%s1340 + $0x2c0] sm:$0xff]
  %v1397 = vld [vmem:[%s1340 + $0x2d0] sm:$0xff]
  %v1398 = vld [vmem:[%s1340 + $0x2d8] sm:$0xff]
  %v1399 = vld [vmem:[%s1340 + $0x2e8] sm:$0xff]
  %v1400 = vld [vmem:[%s1340 + $0x2f0] sm:$0xff]
  %v1401 = vld [vmem:[%s1340 + $0x300] sm:$0xff]
  %v1402 = vld [vmem:[%s1340 + $0x308] sm:$0xff]
  %v1403 = vld [vmem:[%s1340 + $0x318] sm:$0xff]
  %v1404 = vld [vmem:[%s1340 + $0x320] sm:$0xff]
  %v1405 = vld [vmem:[%s1340 + $0x1] sm:$0xff]
  %v1406 = vld [vmem:[%s1340 + $0x9] sm:$0xff]
  %v1407 = vld [vmem:[%s1340 + $0x19] sm:$0xff]
  %v1408 = vld [vmem:[%s1340 + $0x21] sm:$0xff]
  %v1409 = vld [vmem:[%s1340 + $0x31] sm:$0xff]
  %v1410 = vld [vmem:[%s1340 + $0x39] sm:$0xff]
  %v1411 = vld [vmem:[%s1340 + $0x49] sm:$0xff]
  %v1412 = vld [vmem:[%s1340 + $0x51] sm:$0xff]
  %v1413 = vld [vmem:[%s1340 + $0x61] sm:$0xff]
  %v1414 = vld [vmem:[%s1340 + $0x69] sm:$0xff]
  %v1415 = vld [vmem:[%s1340 + $0x79] sm:$0xff]
  %v1416 = vld [vmem:[%s1340 + $0x81] sm:$0xff]
  %v1417 = vld [vmem:[%s1340 + $0x91] sm:$0xff]
  %v1418 = vld [vmem:[%s1340 + $0x99] sm:$0xff]
  %v1419 = vld [vmem:[%s1340 + $0xa9] sm:$0xff]
  %v1420 = vld [vmem:[%s1340 + $0xb1] sm:$0xff]
  %v1421 = vld [vmem:[%s1340 + $0xc1] sm:$0xff]
  %v1422 = vld [vmem:[%s1340 + $0xc9] sm:$0xff]
  %v1423 = vld [vmem:[%s1340 + $0xd9] sm:$0xff]
  %v1424 = vld [vmem:[%s1340 + $0xe1] sm:$0xff]
  %v1425 = vld [vmem:[%s1340 + $0xf1] sm:$0xff]
  %v1426 = vld [vmem:[%s1340 + $0xf9] sm:$0xff]
  %v1427 = vld [vmem:[%s1340 + $0x109] sm:$0xff]
  %v1428 = vld [vmem:[%s1340 + $0x111] sm:$0xff]
  %v1429 = vld [vmem:[%s1340 + $0x121] sm:$0xff]
  %v1430 = vld [vmem:[%s1340 + $0x129] sm:$0xff]
  %v1431 = vld [vmem:[%s1340 + $0x139] sm:$0xff]
  %v1432 = vld [vmem:[%s1340 + $0x141] sm:$0xff]
  %v1433 = vld [vmem:[%s1340 + $0x151] sm:$0xff]
  %v1434 = vld [vmem:[%s1340 + $0x159] sm:$0xff]
  %v1435 = vld [vmem:[%s1340 + $0x169] sm:$0xff]
  %v1436 = vld [vmem:[%s1340 + $0x171] sm:$0xff]
  %v1437 = vld [vmem:[%s1340 + $0x1b1] sm:$0xff]
  %v1438 = vld [vmem:[%s1340 + $0x1b9] sm:$0xff]
  %v1439 = vld [vmem:[%s1340 + $0x1c9] sm:$0xff]
  %v1440 = vld [vmem:[%s1340 + $0x1d1] sm:$0xff]
  %v1441 = vld [vmem:[%s1340 + $0x1e1] sm:$0xff]
  %v1442 = vld [vmem:[%s1340 + $0x1e9] sm:$0xff]
  %v1443 = vld [vmem:[%s1340 + $0x1f9] sm:$0xff]
  %v1444 = vld [vmem:[%s1340 + $0x201] sm:$0xff]
  %v1445 = vld [vmem:[%s1340 + $0x211] sm:$0xff]
  %v1446 = vld [vmem:[%s1340 + $0x219] sm:$0xff]
  %v1447 = vld [vmem:[%s1340 + $0x229] sm:$0xff]
  %v1448 = vld [vmem:[%s1340 + $0x231] sm:$0xff]
  %v1449 = vld [vmem:[%s1340 + $0x241] sm:$0xff]
  %v1450 = vld [vmem:[%s1340 + $0x249] sm:$0xff]
  %v1451 = vld [vmem:[%s1340 + $0x259] sm:$0xff]
  %v1452 = vld [vmem:[%s1340 + $0x261] sm:$0xff]
  %v1453 = vld [vmem:[%s1340 + $0x271] sm:$0xff]
  %v1454 = vld [vmem:[%s1340 + $0x279] sm:$0xff]
  %v1455 = vld [vmem:[%s1340 + $0x289] sm:$0xff]
  %v1456 = vld [vmem:[%s1340 + $0x291] sm:$0xff]
  %v1457 = vld [vmem:[%s1340 + $0x2a1] sm:$0xff]
  %v1458 = vld [vmem:[%s1340 + $0x2a9] sm:$0xff]
  %v1459 = vld [vmem:[%s1340 + $0x2b9] sm:$0xff]
  %v1460 = vld [vmem:[%s1340 + $0x2c1] sm:$0xff]
  %v1461 = vld [vmem:[%s1340 + $0x2d1] sm:$0xff]
  %v1462 = vld [vmem:[%s1340 + $0x2d9] sm:$0xff]
  %v1463 = vld [vmem:[%s1340 + $0x2e9] sm:$0xff]
  %v1464 = vld [vmem:[%s1340 + $0x2f1] sm:$0xff]
  %v1465 = vld [vmem:[%s1340 + $0x301] sm:$0xff]
  %v1466 = vld [vmem:[%s1340 + $0x309] sm:$0xff]
  %v1467 = vld [vmem:[%s1340 + $0x319] sm:$0xff]
  %v1468 = vld [vmem:[%s1340 + $0x321] sm:$0xff]
  %v1469 = vld [vmem:[%s1340 + $0x2] sm:$0xff]
  %v1470 = vld [vmem:[%s1340 + $0xa] sm:$0xff]
  %v1471 = vld [vmem:[%s1340 + $0x1a] sm:$0xff]
  %v1472 = vld [vmem:[%s1340 + $0x22] sm:$0xff]
  %v1473 = vld [vmem:[%s1340 + $0x32] sm:$0xff]
  %v1474 = vld [vmem:[%s1340 + $0x3a] sm:$0xff]
  %v1475 = vld [vmem:[%s1340 + $0x4a] sm:$0xff]
  %v1476 = vld [vmem:[%s1340 + $0x52] sm:$0xff]
  %v1477 = vld [vmem:[%s1340 + $0x62] sm:$0xff]
  %v1478 = vld [vmem:[%s1340 + $0x6a] sm:$0xff]
  %v1479 = vld [vmem:[%s1340 + $0x7a] sm:$0xff]
  %v1480 = vld [vmem:[%s1340 + $0x82] sm:$0xff]
  %v1481 = vld [vmem:[%s1340 + $0x92] sm:$0xff]
  %v1482 = vld [vmem:[%s1340 + $0x9a] sm:$0xff]
  %v1483 = vld [vmem:[%s1340 + $0xaa] sm:$0xff]
  %v1484 = vld [vmem:[%s1340 + $0xb2] sm:$0xff]
  %v1485 = vld [vmem:[%s1340 + $0xc2] sm:$0xff]
  %v1486 = vld [vmem:[%s1340 + $0xca] sm:$0xff]
  %v1487 = vld [vmem:[%s1340 + $0xda] sm:$0xff]
  %v1488 = vld [vmem:[%s1340 + $0xe2] sm:$0xff]
  %v1489 = vld [vmem:[%s1340 + $0xf2] sm:$0xff]
  %v1490 = vld [vmem:[%s1340 + $0xfa] sm:$0xff]
  %v1491 = vld [vmem:[%s1340 + $0x10a] sm:$0xff]
  %v1492 = vld [vmem:[%s1340 + $0x112] sm:$0xff]
  %v1493 = vld [vmem:[%s1340 + $0x122] sm:$0xff]
  %v1494 = vld [vmem:[%s1340 + $0x12a] sm:$0xff]
  %v1495 = vld [vmem:[%s1340 + $0x13a] sm:$0xff]
  %v1496 = vld [vmem:[%s1340 + $0x142] sm:$0xff]
  %v1497 = vld [vmem:[%s1340 + $0x152] sm:$0xff]
  %v1498 = vld [vmem:[%s1340 + $0x15a] sm:$0xff]
  %v1499 = vld [vmem:[%s1340 + $0x16a] sm:$0xff]
  %v1500 = vld [vmem:[%s1340 + $0x172] sm:$0xff]
  %v1501 = vld [vmem:[%s1340 + $0x1b2] sm:$0xff]
  %v1502 = vld [vmem:[%s1340 + $0x1ba] sm:$0xff]
  %v1503 = vld [vmem:[%s1340 + $0x1ca] sm:$0xff]
  %v1504 = vld [vmem:[%s1340 + $0x1d2] sm:$0xff]
  %v1505 = vld [vmem:[%s1340 + $0x1e2] sm:$0xff]
  %v1506 = vld [vmem:[%s1340 + $0x1ea] sm:$0xff]
  %v1507 = vld [vmem:[%s1340 + $0x1fa] sm:$0xff]
  %v1508 = vld [vmem:[%s1340 + $0x202] sm:$0xff]
  %v1509 = vld [vmem:[%s1340 + $0x212] sm:$0xff]
  %v1510 = vld [vmem:[%s1340 + $0x21a] sm:$0xff]
  %v1511 = vld [vmem:[%s1340 + $0x22a] sm:$0xff]
  %v1512 = vld [vmem:[%s1340 + $0x232] sm:$0xff]
  %v1513 = vld [vmem:[%s1340 + $0x242] sm:$0xff]
  %v1514 = vld [vmem:[%s1340 + $0x24a] sm:$0xff]
  %v1515 = vld [vmem:[%s1340 + $0x25a] sm:$0xff]
  %v1516 = vld [vmem:[%s1340 + $0x262] sm:$0xff]
  %v1517 = vld [vmem:[%s1340 + $0x272] sm:$0xff]
  %v1518 = vld [vmem:[%s1340 + $0x27a] sm:$0xff]
  %v1519 = vld [vmem:[%s1340 + $0x28a] sm:$0xff]
  %v1520 = vld [vmem:[%s1340 + $0x292] sm:$0xff]
  %v1521 = vld [vmem:[%s1340 + $0x2a2] sm:$0xff]
  %v1522 = vld [vmem:[%s1340 + $0x2aa] sm:$0xff]
  %v1523 = vld [vmem:[%s1340 + $0x2ba] sm:$0xff]
  %v1524 = vld [vmem:[%s1340 + $0x2c2] sm:$0xff]
  %v1525 = vld [vmem:[%s1340 + $0x2d2] sm:$0xff]
  %v1526 = vld [vmem:[%s1340 + $0x2da] sm:$0xff]
  %v1527 = vld [vmem:[%s1340 + $0x2ea] sm:$0xff]
  %v1528 = vld [vmem:[%s1340 + $0x2f2] sm:$0xff]
  %v1529 = vld [vmem:[%s1340 + $0x302] sm:$0xff]
  %v1530 = vld [vmem:[%s1340 + $0x30a] sm:$0xff]
  %v1531 = vld [vmem:[%s1340 + $0x31a] sm:$0xff]
  %v1532 = vld [vmem:[%s1340 + $0x322] sm:$0xff]
  %1597 = vrot.lane.b32.xlu0 %v1020, 4
  %v1598 = vpop.permute.xlu0 %1597
  %1599 = vrot.lane.b32.xlu0 %v1021, 4
  %v1600 = vpop.permute.xlu0 %1599
  %1601 = vrot.lane.b32.xlu0 %v1022, 4
  %v1602 = vpop.permute.xlu0 %1601
  %1603 = vrot.lane.b32.xlu0 %v1023, 4
  %v1604 = vpop.permute.xlu0 %1603
  %1605 = vrot.lane.b32.xlu0 %v1024, 4
  %v1606 = vpop.permute.xlu0 %1605
  %1607 = vrot.lane.b32.xlu0 %v1025, 4
  %v1608 = vpop.permute.xlu0 %1607
  %1609 = vrot.lane.b32.xlu0 %v1026, 4
  %v1610 = vpop.permute.xlu0 %1609
  %1611 = vrot.lane.b32.xlu0 %v1027, 4
  %v1612 = vpop.permute.xlu0 %1611
  %1613 = vrot.lane.b32.xlu0 %v1028, 4
  %v1614 = vpop.permute.xlu0 %1613
  %1615 = vrot.lane.b32.xlu0 %v1029, 4
  %v1616 = vpop.permute.xlu0 %1615
  %1617 = vrot.lane.b32.xlu0 %v1030, 4
  %v1618 = vpop.permute.xlu0 %1617
  %1619 = vrot.lane.b32.xlu0 %v1031, 4
  %v1620 = vpop.permute.xlu0 %1619
  %1621 = vrot.lane.b32.xlu0 %v1032, 4
  %v1622 = vpop.permute.xlu0 %1621
  %1623 = vrot.lane.b32.xlu0 %v1033, 4
  %v1624 = vpop.permute.xlu0 %1623
  %1625 = vrot.lane.b32.xlu0 %v1034, 4
  %v1626 = vpop.permute.xlu0 %1625
  %1627 = vrot.lane.b32.xlu0 %v1035, 4
  %v1628 = vpop.permute.xlu0 %1627
  %1629 = vrot.lane.b32.xlu0 %v1036, 4
  %v1630 = vpop.permute.xlu0 %1629
  %1631 = vrot.lane.b32.xlu0 %v1037, 4
  %v1632 = vpop.permute.xlu0 %1631
  %1633 = vrot.lane.b32.xlu0 %v1038, 4
  %v1634 = vpop.permute.xlu0 %1633
  %1635 = vrot.lane.b32.xlu0 %v1039, 4
  %v1636 = vpop.permute.xlu0 %1635
  %1637 = vrot.lane.b32.xlu0 %v1040, 4
  %v1638 = vpop.permute.xlu0 %1637
  %1639 = vrot.lane.b32.xlu0 %v1041, 4
  %v1640 = vpop.permute.xlu0 %1639
  %1641 = vrot.lane.b32.xlu0 %v1042, 4
  %v1642 = vpop.permute.xlu0 %1641
  %1643 = vrot.lane.b32.xlu0 %v1043, 4
  %v1644 = vpop.permute.xlu0 %1643
  %1645 = vrot.lane.b32.xlu0 %v1044, 4
  %v1646 = vpop.permute.xlu0 %1645
  %1647 = vrot.lane.b32.xlu0 %v1045, 4
  %v1648 = vpop.permute.xlu0 %1647
  %1649 = vrot.lane.b32.xlu0 %v1046, 4
  %v1650 = vpop.permute.xlu0 %1649
  %1651 = vrot.lane.b32.xlu0 %v1047, 4
  %v1652 = vpop.permute.xlu0 %1651
  %1653 = vrot.lane.b32.xlu0 %v1048, 4
  %v1654 = vpop.permute.xlu0 %1653
  %1655 = vrot.lane.b32.xlu0 %v1049, 4
  %v1656 = vpop.permute.xlu0 %1655
  %1657 = vrot.lane.b32.xlu0 %v1050, 4
  %v1658 = vpop.permute.xlu0 %1657
  %1659 = vrot.lane.b32.xlu0 %v1051, 4
  %v1660 = vpop.permute.xlu0 %1659
  %1661 = vrot.lane.b32.xlu0 %v1052, 4
  %v1662 = vpop.permute.xlu0 %1661
  %1663 = vrot.lane.b32.xlu0 %v1053, 4
  %v1664 = vpop.permute.xlu0 %1663
  %1665 = vrot.lane.b32.xlu0 %v1054, 4
  %v1666 = vpop.permute.xlu0 %1665
  %1667 = vrot.lane.b32.xlu0 %v1055, 4
  %v1668 = vpop.permute.xlu0 %1667
  %1669 = vrot.lane.b32.xlu0 %v1056, 4
  %v1670 = vpop.permute.xlu0 %1669
  %1671 = vrot.lane.b32.xlu0 %v1057, 4
  %v1672 = vpop.permute.xlu0 %1671
  %1673 = vrot.lane.b32.xlu0 %v1058, 4
  %v1674 = vpop.permute.xlu0 %1673
  %1675 = vrot.lane.b32.xlu0 %v1059, 4
  %v1676 = vpop.permute.xlu0 %1675
  %1677 = vrot.lane.b32.xlu0 %v1060, 4
  %v1678 = vpop.permute.xlu0 %1677
  %1679 = vrot.lane.b32.xlu0 %v1061, 4
  %v1680 = vpop.permute.xlu0 %1679
  %1681 = vrot.lane.b32.xlu0 %v1062, 4
  %v1682 = vpop.permute.xlu0 %1681
  %1683 = vrot.lane.b32.xlu0 %v1063, 4
  %v1684 = vpop.permute.xlu0 %1683
  %1685 = vrot.lane.b32.xlu0 %v1064, 4
  %v1686 = vpop.permute.xlu0 %1685
  %1687 = vrot.lane.b32.xlu0 %v1065, 4
  %v1688 = vpop.permute.xlu0 %1687
  %1689 = vrot.lane.b32.xlu0 %v1066, 4
  %v1690 = vpop.permute.xlu0 %1689
  %1691 = vrot.lane.b32.xlu0 %v1067, 4
  %v1692 = vpop.permute.xlu0 %1691
  %1693 = vrot.lane.b32.xlu0 %v1068, 4
  %v1694 = vpop.permute.xlu0 %1693
  %1695 = vrot.lane.b32.xlu0 %v1069, 4
  %v1696 = vpop.permute.xlu0 %1695
  %1697 = vrot.lane.b32.xlu0 %v1070, 4
  %v1698 = vpop.permute.xlu0 %1697
  %1699 = vrot.lane.b32.xlu0 %v1071, 4
  %v1700 = vpop.permute.xlu0 %1699
  %1701 = vrot.lane.b32.xlu0 %v1072, 4
  %v1702 = vpop.permute.xlu0 %1701
  %1703 = vrot.lane.b32.xlu0 %v1073, 4
  %v1704 = vpop.permute.xlu0 %1703
  %1705 = vrot.lane.b32.xlu0 %v1074, 4
  %v1706 = vpop.permute.xlu0 %1705
  %1707 = vrot.lane.b32.xlu0 %v1075, 4
  %v1708 = vpop.permute.xlu0 %1707
  %1709 = vrot.lane.b32.xlu0 %v1076, 4
  %v1710 = vpop.permute.xlu0 %1709
  %1711 = vrot.lane.b32.xlu0 %v1077, 4
  %v1712 = vpop.permute.xlu0 %1711
  %1713 = vrot.lane.b32.xlu0 %v1078, 4
  %v1714 = vpop.permute.xlu0 %1713
  %1715 = vrot.lane.b32.xlu0 %v1079, 4
  %v1716 = vpop.permute.xlu0 %1715
  %1717 = vrot.lane.b32.xlu0 %v1080, 4
  %v1718 = vpop.permute.xlu0 %1717
  %1719 = vrot.lane.b32.xlu0 %v1081, 4
  %v1720 = vpop.permute.xlu0 %1719
  %1721 = vrot.lane.b32.xlu0 %v1082, 4
  %v1722 = vpop.permute.xlu0 %1721
  %1723 = vrot.lane.b32.xlu0 %v1083, 4
  %v1724 = vpop.permute.xlu0 %1723
  %1853 = vrot.lane.b32.xlu0 %v1084, 8
  %v1854 = vpop.permute.xlu0 %1853
  %1855 = vrot.lane.b32.xlu0 %v1085, 8
  %v1856 = vpop.permute.xlu0 %1855
  %1857 = vrot.lane.b32.xlu0 %v1086, 8
  %v1858 = vpop.permute.xlu0 %1857
  %1859 = vrot.lane.b32.xlu0 %v1087, 8
  %v1860 = vpop.permute.xlu0 %1859
  %1861 = vrot.lane.b32.xlu0 %v1088, 8
  %v1862 = vpop.permute.xlu0 %1861
  %1863 = vrot.lane.b32.xlu0 %v1089, 8
  %v1864 = vpop.permute.xlu0 %1863
  %1865 = vrot.lane.b32.xlu0 %v1090, 8
  %v1866 = vpop.permute.xlu0 %1865
  %1867 = vrot.lane.b32.xlu0 %v1091, 8
  %v1868 = vpop.permute.xlu0 %1867
  %1869 = vrot.lane.b32.xlu0 %v1092, 8
  %v1870 = vpop.permute.xlu0 %1869
  %1871 = vrot.lane.b32.xlu0 %v1093, 8
  %v1872 = vpop.permute.xlu0 %1871
  %1873 = vrot.lane.b32.xlu0 %v1094, 8
  %v1874 = vpop.permute.xlu0 %1873
  %1875 = vrot.lane.b32.xlu0 %v1095, 8
  %v1876 = vpop.permute.xlu0 %1875
  %1877 = vrot.lane.b32.xlu0 %v1096, 8
  %v1878 = vpop.permute.xlu0 %1877
  %1879 = vrot.lane.b32.xlu0 %v1097, 8
  %v1880 = vpop.permute.xlu0 %1879
  %1881 = vrot.lane.b32.xlu0 %v1098, 8
  %v1882 = vpop.permute.xlu0 %1881
  %1883 = vrot.lane.b32.xlu0 %v1099, 8
  %v1884 = vpop.permute.xlu0 %1883
  %1885 = vrot.lane.b32.xlu0 %v1100, 8
  %v1886 = vpop.permute.xlu0 %1885
  %1887 = vrot.lane.b32.xlu0 %v1101, 8
  %v1888 = vpop.permute.xlu0 %1887
  %1889 = vrot.lane.b32.xlu0 %v1102, 8
  %v1890 = vpop.permute.xlu0 %1889
  %1891 = vrot.lane.b32.xlu0 %v1103, 8
  %v1892 = vpop.permute.xlu0 %1891
  %1893 = vrot.lane.b32.xlu0 %v1104, 8
  %v1894 = vpop.permute.xlu0 %1893
  %1895 = vrot.lane.b32.xlu0 %v1105, 8
  %v1896 = vpop.permute.xlu0 %1895
  %1897 = vrot.lane.b32.xlu0 %v1106, 8
  %v1898 = vpop.permute.xlu0 %1897
  %1899 = vrot.lane.b32.xlu0 %v1107, 8
  %v1900 = vpop.permute.xlu0 %1899
  %1901 = vrot.lane.b32.xlu0 %v1108, 8
  %v1902 = vpop.permute.xlu0 %1901
  %1903 = vrot.lane.b32.xlu0 %v1109, 8
  %v1904 = vpop.permute.xlu0 %1903
  %1905 = vrot.lane.b32.xlu0 %v1110, 8
  %v1906 = vpop.permute.xlu0 %1905
  %1907 = vrot.lane.b32.xlu0 %v1111, 8
  %v1908 = vpop.permute.xlu0 %1907
  %1909 = vrot.lane.b32.xlu0 %v1112, 8
  %v1910 = vpop.permute.xlu0 %1909
  %1911 = vrot.lane.b32.xlu0 %v1113, 8
  %v1912 = vpop.permute.xlu0 %1911
  %1913 = vrot.lane.b32.xlu0 %v1114, 8
  %v1914 = vpop.permute.xlu0 %1913
  %1915 = vrot.lane.b32.xlu0 %v1115, 8
  %v1916 = vpop.permute.xlu0 %1915
  %1917 = vrot.lane.b32.xlu0 %v1116, 8
  %v1918 = vpop.permute.xlu0 %1917
  %1919 = vrot.lane.b32.xlu0 %v1117, 8
  %v1920 = vpop.permute.xlu0 %1919
  %1921 = vrot.lane.b32.xlu0 %v1118, 8
  %v1922 = vpop.permute.xlu0 %1921
  %1923 = vrot.lane.b32.xlu0 %v1119, 8
  %v1924 = vpop.permute.xlu0 %1923
  %1925 = vrot.lane.b32.xlu0 %v1120, 8
  %v1926 = vpop.permute.xlu0 %1925
  %1927 = vrot.lane.b32.xlu0 %v1121, 8
  %v1928 = vpop.permute.xlu0 %1927
  %1929 = vrot.lane.b32.xlu0 %v1122, 8
  %v1930 = vpop.permute.xlu0 %1929
  %1931 = vrot.lane.b32.xlu0 %v1123, 8
  %v1932 = vpop.permute.xlu0 %1931
  %1933 = vrot.lane.b32.xlu0 %v1124, 8
  %v1934 = vpop.permute.xlu0 %1933
  %1935 = vrot.lane.b32.xlu0 %v1125, 8
  %v1936 = vpop.permute.xlu0 %1935
  %1937 = vrot.lane.b32.xlu0 %v1126, 8
  %v1938 = vpop.permute.xlu0 %1937
  %1939 = vrot.lane.b32.xlu0 %v1127, 8
  %v1940 = vpop.permute.xlu0 %1939
  %1941 = vrot.lane.b32.xlu0 %v1128, 8
  %v1942 = vpop.permute.xlu0 %1941
  %1943 = vrot.lane.b32.xlu0 %v1129, 8
  %v1944 = vpop.permute.xlu0 %1943
  %1945 = vrot.lane.b32.xlu0 %v1130, 8
  %v1946 = vpop.permute.xlu0 %1945
  %1947 = vrot.lane.b32.xlu0 %v1131, 8
  %v1948 = vpop.permute.xlu0 %1947
  %1949 = vrot.lane.b32.xlu0 %v1132, 8
  %v1950 = vpop.permute.xlu0 %1949
  %1951 = vrot.lane.b32.xlu0 %v1133, 8
  %v1952 = vpop.permute.xlu0 %1951
  %1953 = vrot.lane.b32.xlu0 %v1134, 8
  %v1954 = vpop.permute.xlu0 %1953
  %1955 = vrot.lane.b32.xlu0 %v1135, 8
  %v1956 = vpop.permute.xlu0 %1955
  %1957 = vrot.lane.b32.xlu0 %v1136, 8
  %v1958 = vpop.permute.xlu0 %1957
  %1959 = vrot.lane.b32.xlu0 %v1137, 8
  %v1960 = vpop.permute.xlu0 %1959
  %1961 = vrot.lane.b32.xlu0 %v1138, 8
  %v1962 = vpop.permute.xlu0 %1961
  %1963 = vrot.lane.b32.xlu0 %v1139, 8
  %v1964 = vpop.permute.xlu0 %1963
  %1965 = vrot.lane.b32.xlu0 %v1140, 8
  %v1966 = vpop.permute.xlu0 %1965
  %1967 = vrot.lane.b32.xlu0 %v1141, 8
  %v1968 = vpop.permute.xlu0 %1967
  %1969 = vrot.lane.b32.xlu0 %v1142, 8
  %v1970 = vpop.permute.xlu0 %1969
  %1971 = vrot.lane.b32.xlu0 %v1143, 8
  %v1972 = vpop.permute.xlu0 %1971
  %1973 = vrot.lane.b32.xlu0 %v1144, 8
  %v1974 = vpop.permute.xlu0 %1973
  %1975 = vrot.lane.b32.xlu0 %v1145, 8
  %v1976 = vpop.permute.xlu0 %1975
  %1977 = vrot.lane.b32.xlu0 %v1146, 8
  %v1978 = vpop.permute.xlu0 %1977
  %1979 = vrot.lane.b32.xlu0 %v1147, 8
  %v1980 = vpop.permute.xlu0 %1979
  %2109 = vrot.lane.b32.xlu0 %v1148, 12
  %v2110 = vpop.permute.xlu0 %2109
  %2111 = vrot.lane.b32.xlu0 %v1149, 12
  %v2112 = vpop.permute.xlu0 %2111
  %2113 = vrot.lane.b32.xlu0 %v1150, 12
  %v2114 = vpop.permute.xlu0 %2113
  %2115 = vrot.lane.b32.xlu0 %v1151, 12
  %v2116 = vpop.permute.xlu0 %2115
  %2117 = vrot.lane.b32.xlu0 %v1152, 12
  %v2118 = vpop.permute.xlu0 %2117
  %2119 = vrot.lane.b32.xlu0 %v1153, 12
  %v2120 = vpop.permute.xlu0 %2119
  %2121 = vrot.lane.b32.xlu0 %v1154, 12
  %v2122 = vpop.permute.xlu0 %2121
  %2123 = vrot.lane.b32.xlu0 %v1155, 12
  %v2124 = vpop.permute.xlu0 %2123
  %2125 = vrot.lane.b32.xlu0 %v1156, 12
  %v2126 = vpop.permute.xlu0 %2125
  %2127 = vrot.lane.b32.xlu0 %v1157, 12
  %v2128 = vpop.permute.xlu0 %2127
  %2129 = vrot.lane.b32.xlu0 %v1158, 12
  %v2130 = vpop.permute.xlu0 %2129
  %2131 = vrot.lane.b32.xlu0 %v1159, 12
  %v2132 = vpop.permute.xlu0 %2131
  %2133 = vrot.lane.b32.xlu0 %v1160, 12
  %v2134 = vpop.permute.xlu0 %2133
  %2135 = vrot.lane.b32.xlu0 %v1161, 12
  %v2136 = vpop.permute.xlu0 %2135
  %2137 = vrot.lane.b32.xlu0 %v1162, 12
  %v2138 = vpop.permute.xlu0 %2137
  %2139 = vrot.lane.b32.xlu0 %v1163, 12
  %v2140 = vpop.permute.xlu0 %2139
  %2141 = vrot.lane.b32.xlu0 %v1164, 12
  %v2142 = vpop.permute.xlu0 %2141
  %2143 = vrot.lane.b32.xlu0 %v1165, 12
  %v2144 = vpop.permute.xlu0 %2143
  %2145 = vrot.lane.b32.xlu0 %v1166, 12
  %v2146 = vpop.permute.xlu0 %2145
  %2147 = vrot.lane.b32.xlu0 %v1167, 12
  %v2148 = vpop.permute.xlu0 %2147
  %2149 = vrot.lane.b32.xlu0 %v1168, 12
  %v2150 = vpop.permute.xlu0 %2149
  %2151 = vrot.lane.b32.xlu0 %v1169, 12
  %v2152 = vpop.permute.xlu0 %2151
  %2153 = vrot.lane.b32.xlu0 %v1170, 12
  %v2154 = vpop.permute.xlu0 %2153
  %2155 = vrot.lane.b32.xlu0 %v1171, 12
  %v2156 = vpop.permute.xlu0 %2155
  %2157 = vrot.lane.b32.xlu0 %v1172, 12
  %v2158 = vpop.permute.xlu0 %2157
  %2159 = vrot.lane.b32.xlu0 %v1173, 12
  %v2160 = vpop.permute.xlu0 %2159
  %2161 = vrot.lane.b32.xlu0 %v1174, 12
  %v2162 = vpop.permute.xlu0 %2161
  %2163 = vrot.lane.b32.xlu0 %v1175, 12
  %v2164 = vpop.permute.xlu0 %2163
  %2165 = vrot.lane.b32.xlu0 %v1176, 12
  %v2166 = vpop.permute.xlu0 %2165
  %2167 = vrot.lane.b32.xlu0 %v1177, 12
  %v2168 = vpop.permute.xlu0 %2167
  %2169 = vrot.lane.b32.xlu0 %v1178, 12
  %v2170 = vpop.permute.xlu0 %2169
  %2171 = vrot.lane.b32.xlu0 %v1179, 12
  %v2172 = vpop.permute.xlu0 %2171
  %2173 = vrot.lane.b32.xlu0 %v1180, 12
  %v2174 = vpop.permute.xlu0 %2173
  %2175 = vrot.lane.b32.xlu0 %v1181, 12
  %v2176 = vpop.permute.xlu0 %2175
  %2177 = vrot.lane.b32.xlu0 %v1182, 12
  %v2178 = vpop.permute.xlu0 %2177
  %2179 = vrot.lane.b32.xlu0 %v1183, 12
  %v2180 = vpop.permute.xlu0 %2179
  %2181 = vrot.lane.b32.xlu0 %v1184, 12
  %v2182 = vpop.permute.xlu0 %2181
  %2183 = vrot.lane.b32.xlu0 %v1185, 12
  %v2184 = vpop.permute.xlu0 %2183
  %2185 = vrot.lane.b32.xlu0 %v1186, 12
  %v2186 = vpop.permute.xlu0 %2185
  %2187 = vrot.lane.b32.xlu0 %v1187, 12
  %v2188 = vpop.permute.xlu0 %2187
  %2189 = vrot.lane.b32.xlu0 %v1188, 12
  %v2190 = vpop.permute.xlu0 %2189
  %2191 = vrot.lane.b32.xlu0 %v1189, 12
  %v2192 = vpop.permute.xlu0 %2191
  %2193 = vrot.lane.b32.xlu0 %v1190, 12
  %v2194 = vpop.permute.xlu0 %2193
  %2195 = vrot.lane.b32.xlu0 %v1191, 12
  %v2196 = vpop.permute.xlu0 %2195
  %2197 = vrot.lane.b32.xlu0 %v1192, 12
  %v2198 = vpop.permute.xlu0 %2197
  %2199 = vrot.lane.b32.xlu0 %v1193, 12
  %v2200 = vpop.permute.xlu0 %2199
  %2201 = vrot.lane.b32.xlu0 %v1194, 12
  %v2202 = vpop.permute.xlu0 %2201
  %2203 = vrot.lane.b32.xlu0 %v1195, 12
  %v2204 = vpop.permute.xlu0 %2203
  %2205 = vrot.lane.b32.xlu0 %v1196, 12
  %v2206 = vpop.permute.xlu0 %2205
  %2207 = vrot.lane.b32.xlu0 %v1197, 12
  %v2208 = vpop.permute.xlu0 %2207
  %2209 = vrot.lane.b32.xlu0 %v1198, 12
  %v2210 = vpop.permute.xlu0 %2209
  %2211 = vrot.lane.b32.xlu0 %v1199, 12
  %v2212 = vpop.permute.xlu0 %2211
  %2213 = vrot.lane.b32.xlu0 %v1200, 12
  %v2214 = vpop.permute.xlu0 %2213
  %2215 = vrot.lane.b32.xlu0 %v1201, 12
  %v2216 = vpop.permute.xlu0 %2215
  %2217 = vrot.lane.b32.xlu0 %v1202, 12
  %v2218 = vpop.permute.xlu0 %2217
  %2219 = vrot.lane.b32.xlu0 %v1203, 12
  %v2220 = vpop.permute.xlu0 %2219
  %2221 = vrot.lane.b32.xlu0 %v1204, 12
  %v2222 = vpop.permute.xlu0 %2221
  %2223 = vrot.lane.b32.xlu0 %v1205, 12
  %v2224 = vpop.permute.xlu0 %2223
  %2225 = vrot.lane.b32.xlu0 %v1206, 12
  %v2226 = vpop.permute.xlu0 %2225
  %2227 = vrot.lane.b32.xlu0 %v1207, 12
  %v2228 = vpop.permute.xlu0 %2227
  %2229 = vrot.lane.b32.xlu0 %v1208, 12
  %v2230 = vpop.permute.xlu0 %2229
  %2231 = vrot.lane.b32.xlu0 %v1209, 12
  %v2232 = vpop.permute.xlu0 %2231
  %2233 = vrot.lane.b32.xlu0 %v1210, 12
  %v2234 = vpop.permute.xlu0 %2233
  %2235 = vrot.lane.b32.xlu0 %v1211, 12
  %v2236 = vpop.permute.xlu0 %2235
  %2365 = vrot.lane.b32.xlu0 %v1212, 16
  %v2366 = vpop.permute.xlu0 %2365
  %2367 = vrot.lane.b32.xlu0 %v1213, 16
  %v2368 = vpop.permute.xlu0 %2367
  %2369 = vrot.lane.b32.xlu0 %v1214, 16
  %v2370 = vpop.permute.xlu0 %2369
  %2371 = vrot.lane.b32.xlu0 %v1215, 16
  %v2372 = vpop.permute.xlu0 %2371
  %2373 = vrot.lane.b32.xlu0 %v1216, 16
  %v2374 = vpop.permute.xlu0 %2373
  %2375 = vrot.lane.b32.xlu0 %v1217, 16
  %v2376 = vpop.permute.xlu0 %2375
  %2377 = vrot.lane.b32.xlu0 %v1218, 16
  %v2378 = vpop.permute.xlu0 %2377
  %2379 = vrot.lane.b32.xlu0 %v1219, 16
  %v2380 = vpop.permute.xlu0 %2379
  %2381 = vrot.lane.b32.xlu0 %v1220, 16
  %v2382 = vpop.permute.xlu0 %2381
  %2383 = vrot.lane.b32.xlu0 %v1221, 16
  %v2384 = vpop.permute.xlu0 %2383
  %2385 = vrot.lane.b32.xlu0 %v1222, 16
  %v2386 = vpop.permute.xlu0 %2385
  %2387 = vrot.lane.b32.xlu0 %v1223, 16
  %v2388 = vpop.permute.xlu0 %2387
  %2389 = vrot.lane.b32.xlu0 %v1224, 16
  %v2390 = vpop.permute.xlu0 %2389
  %2391 = vrot.lane.b32.xlu0 %v1225, 16
  %v2392 = vpop.permute.xlu0 %2391
  %2393 = vrot.lane.b32.xlu0 %v1226, 16
  %v2394 = vpop.permute.xlu0 %2393
  %2395 = vrot.lane.b32.xlu0 %v1227, 16
  %v2396 = vpop.permute.xlu0 %2395
  %2397 = vrot.lane.b32.xlu0 %v1228, 16
  %v2398 = vpop.permute.xlu0 %2397
  %2399 = vrot.lane.b32.xlu0 %v1229, 16
  %v2400 = vpop.permute.xlu0 %2399
  %2401 = vrot.lane.b32.xlu0 %v1230, 16
  %v2402 = vpop.permute.xlu0 %2401
  %2403 = vrot.lane.b32.xlu0 %v1231, 16
  %v2404 = vpop.permute.xlu0 %2403
  %2405 = vrot.lane.b32.xlu0 %v1232, 16
  %v2406 = vpop.permute.xlu0 %2405
  %2407 = vrot.lane.b32.xlu0 %v1233, 16
  %v2408 = vpop.permute.xlu0 %2407
  %2409 = vrot.lane.b32.xlu0 %v1234, 16
  %v2410 = vpop.permute.xlu0 %2409
  %2411 = vrot.lane.b32.xlu0 %v1235, 16
  %v2412 = vpop.permute.xlu0 %2411
  %2413 = vrot.lane.b32.xlu0 %v1236, 16
  %v2414 = vpop.permute.xlu0 %2413
  %2415 = vrot.lane.b32.xlu0 %v1237, 16
  %v2416 = vpop.permute.xlu0 %2415
  %2417 = vrot.lane.b32.xlu0 %v1238, 16
  %v2418 = vpop.permute.xlu0 %2417
  %2419 = vrot.lane.b32.xlu0 %v1239, 16
  %v2420 = vpop.permute.xlu0 %2419
  %2421 = vrot.lane.b32.xlu0 %v1240, 16
  %v2422 = vpop.permute.xlu0 %2421
  %2423 = vrot.lane.b32.xlu0 %v1241, 16
  %v2424 = vpop.permute.xlu0 %2423
  %2425 = vrot.lane.b32.xlu0 %v1242, 16
  %v2426 = vpop.permute.xlu0 %2425
  %2427 = vrot.lane.b32.xlu0 %v1243, 16
  %v2428 = vpop.permute.xlu0 %2427
  %2429 = vrot.lane.b32.xlu0 %v1244, 16
  %v2430 = vpop.permute.xlu0 %2429
  %2431 = vrot.lane.b32.xlu0 %v1245, 16
  %v2432 = vpop.permute.xlu0 %2431
  %2433 = vrot.lane.b32.xlu0 %v1246, 16
  %v2434 = vpop.permute.xlu0 %2433
  %2435 = vrot.lane.b32.xlu0 %v1247, 16
  %v2436 = vpop.permute.xlu0 %2435
  %2437 = vrot.lane.b32.xlu0 %v1248, 16
  %v2438 = vpop.permute.xlu0 %2437
  %2439 = vrot.lane.b32.xlu0 %v1249, 16
  %v2440 = vpop.permute.xlu0 %2439
  %2441 = vrot.lane.b32.xlu0 %v1250, 16
  %v2442 = vpop.permute.xlu0 %2441
  %2443 = vrot.lane.b32.xlu0 %v1251, 16
  %v2444 = vpop.permute.xlu0 %2443
  %2445 = vrot.lane.b32.xlu0 %v1252, 16
  %v2446 = vpop.permute.xlu0 %2445
  %2447 = vrot.lane.b32.xlu0 %v1253, 16
  %v2448 = vpop.permute.xlu0 %2447
  %2449 = vrot.lane.b32.xlu0 %v1254, 16
  %v2450 = vpop.permute.xlu0 %2449
  %2451 = vrot.lane.b32.xlu0 %v1255, 16
  %v2452 = vpop.permute.xlu0 %2451
  %2453 = vrot.lane.b32.xlu0 %v1256, 16
  %v2454 = vpop.permute.xlu0 %2453
  %2455 = vrot.lane.b32.xlu0 %v1257, 16
  %v2456 = vpop.permute.xlu0 %2455
  %2457 = vrot.lane.b32.xlu0 %v1258, 16
  %v2458 = vpop.permute.xlu0 %2457
  %2459 = vrot.lane.b32.xlu0 %v1259, 16
  %v2460 = vpop.permute.xlu0 %2459
  %2461 = vrot.lane.b32.xlu0 %v1260, 16
  %v2462 = vpop.permute.xlu0 %2461
  %2463 = vrot.lane.b32.xlu0 %v1261, 16
  %v2464 = vpop.permute.xlu0 %2463
  %2465 = vrot.lane.b32.xlu0 %v1262, 16
  %v2466 = vpop.permute.xlu0 %2465
  %2467 = vrot.lane.b32.xlu0 %v1263, 16
  %v2468 = vpop.permute.xlu0 %2467
  %2469 = vrot.lane.b32.xlu0 %v1264, 16
  %v2470 = vpop.permute.xlu0 %2469
  %2471 = vrot.lane.b32.xlu0 %v1265, 16
  %v2472 = vpop.permute.xlu0 %2471
  %2473 = vrot.lane.b32.xlu0 %v1266, 16
  %v2474 = vpop.permute.xlu0 %2473
  %2475 = vrot.lane.b32.xlu0 %v1267, 16
  %v2476 = vpop.permute.xlu0 %2475
  %2477 = vrot.lane.b32.xlu0 %v1268, 16
  %v2478 = vpop.permute.xlu0 %2477
  %2479 = vrot.lane.b32.xlu0 %v1269, 16
  %v2480 = vpop.permute.xlu0 %2479
  %2481 = vrot.lane.b32.xlu0 %v1270, 16
  %v2482 = vpop.permute.xlu0 %2481
  %2483 = vrot.lane.b32.xlu0 %v1271, 16
  %v2484 = vpop.permute.xlu0 %2483
  %2485 = vrot.lane.b32.xlu0 %v1272, 16
  %v2486 = vpop.permute.xlu0 %2485
  %2487 = vrot.lane.b32.xlu0 %v1273, 16
  %v2488 = vpop.permute.xlu0 %2487
  %2489 = vrot.lane.b32.xlu0 %v1274, 16
  %v2490 = vpop.permute.xlu0 %2489
  %2491 = vrot.lane.b32.xlu0 %v1275, 16
  %v2492 = vpop.permute.xlu0 %2491
  %2621 = vrot.lane.b32.xlu0 %v1276, 20
  %v2622 = vpop.permute.xlu0 %2621
  %2623 = vrot.lane.b32.xlu0 %v1277, 20
  %v2624 = vpop.permute.xlu0 %2623
  %2625 = vrot.lane.b32.xlu0 %v1278, 20
  %v2626 = vpop.permute.xlu0 %2625
  %2627 = vrot.lane.b32.xlu0 %v1279, 20
  %v2628 = vpop.permute.xlu0 %2627
  %2629 = vrot.lane.b32.xlu0 %v1280, 20
  %v2630 = vpop.permute.xlu0 %2629
  %2631 = vrot.lane.b32.xlu0 %v1281, 20
  %v2632 = vpop.permute.xlu0 %2631
  %2633 = vrot.lane.b32.xlu0 %v1282, 20
  %v2634 = vpop.permute.xlu0 %2633
  %2635 = vrot.lane.b32.xlu0 %v1283, 20
  %v2636 = vpop.permute.xlu0 %2635
  %2637 = vrot.lane.b32.xlu0 %v1284, 20
  %v2638 = vpop.permute.xlu0 %2637
  %2639 = vrot.lane.b32.xlu0 %v1285, 20
  %v2640 = vpop.permute.xlu0 %2639
  %2641 = vrot.lane.b32.xlu0 %v1286, 20
  %v2642 = vpop.permute.xlu0 %2641
  %2643 = vrot.lane.b32.xlu0 %v1287, 20
  %v2644 = vpop.permute.xlu0 %2643
  %2645 = vrot.lane.b32.xlu0 %v1288, 20
  %v2646 = vpop.permute.xlu0 %2645
  %2647 = vrot.lane.b32.xlu0 %v1289, 20
  %v2648 = vpop.permute.xlu0 %2647
  %2649 = vrot.lane.b32.xlu0 %v1290, 20
  %v2650 = vpop.permute.xlu0 %2649
  %2651 = vrot.lane.b32.xlu0 %v1291, 20
  %v2652 = vpop.permute.xlu0 %2651
  %2653 = vrot.lane.b32.xlu0 %v1292, 20
  %v2654 = vpop.permute.xlu0 %2653
  %2655 = vrot.lane.b32.xlu0 %v1293, 20
  %v2656 = vpop.permute.xlu0 %2655
  %2657 = vrot.lane.b32.xlu0 %v1294, 20
  %v2658 = vpop.permute.xlu0 %2657
  %2659 = vrot.lane.b32.xlu0 %v1295, 20
  %v2660 = vpop.permute.xlu0 %2659
  %2661 = vrot.lane.b32.xlu0 %v1296, 20
  %v2662 = vpop.permute.xlu0 %2661
  %2663 = vrot.lane.b32.xlu0 %v1297, 20
  %v2664 = vpop.permute.xlu0 %2663
  %2665 = vrot.lane.b32.xlu0 %v1298, 20
  %v2666 = vpop.permute.xlu0 %2665
  %2667 = vrot.lane.b32.xlu0 %v1299, 20
  %v2668 = vpop.permute.xlu0 %2667
  %2669 = vrot.lane.b32.xlu0 %v1300, 20
  %v2670 = vpop.permute.xlu0 %2669
  %2671 = vrot.lane.b32.xlu0 %v1301, 20
  %v2672 = vpop.permute.xlu0 %2671
  %2673 = vrot.lane.b32.xlu0 %v1302, 20
  %v2674 = vpop.permute.xlu0 %2673
  %2675 = vrot.lane.b32.xlu0 %v1303, 20
  %v2676 = vpop.permute.xlu0 %2675
  %2677 = vrot.lane.b32.xlu0 %v1304, 20
  %v2678 = vpop.permute.xlu0 %2677
  %2679 = vrot.lane.b32.xlu0 %v1305, 20
  %v2680 = vpop.permute.xlu0 %2679
  %2681 = vrot.lane.b32.xlu0 %v1306, 20
  %v2682 = vpop.permute.xlu0 %2681
  %2683 = vrot.lane.b32.xlu0 %v1307, 20
  %v2684 = vpop.permute.xlu0 %2683
  %2685 = vrot.lane.b32.xlu0 %v1308, 20
  %v2686 = vpop.permute.xlu0 %2685
  %2687 = vrot.lane.b32.xlu0 %v1309, 20
  %v2688 = vpop.permute.xlu0 %2687
  %2689 = vrot.lane.b32.xlu0 %v1310, 20
  %v2690 = vpop.permute.xlu0 %2689
  %2691 = vrot.lane.b32.xlu0 %v1311, 20
  %v2692 = vpop.permute.xlu0 %2691
  %2693 = vrot.lane.b32.xlu0 %v1312, 20
  %v2694 = vpop.permute.xlu0 %2693
  %2695 = vrot.lane.b32.xlu0 %v1313, 20
  %v2696 = vpop.permute.xlu0 %2695
  %2697 = vrot.lane.b32.xlu0 %v1314, 20
  %v2698 = vpop.permute.xlu0 %2697
  %2699 = vrot.lane.b32.xlu0 %v1315, 20
  %v2700 = vpop.permute.xlu0 %2699
  %2701 = vrot.lane.b32.xlu0 %v1316, 20
  %v2702 = vpop.permute.xlu0 %2701
  %2703 = vrot.lane.b32.xlu0 %v1317, 20
  %v2704 = vpop.permute.xlu0 %2703
  %2705 = vrot.lane.b32.xlu0 %v1318, 20
  %v2706 = vpop.permute.xlu0 %2705
  %2707 = vrot.lane.b32.xlu0 %v1319, 20
  %v2708 = vpop.permute.xlu0 %2707
  %2709 = vrot.lane.b32.xlu0 %v1320, 20
  %v2710 = vpop.permute.xlu0 %2709
  %2711 = vrot.lane.b32.xlu0 %v1321, 20
  %v2712 = vpop.permute.xlu0 %2711
  %2713 = vrot.lane.b32.xlu0 %v1322, 20
  %v2714 = vpop.permute.xlu0 %2713
  %2715 = vrot.lane.b32.xlu0 %v1323, 20
  %v2716 = vpop.permute.xlu0 %2715
  %2717 = vrot.lane.b32.xlu0 %v1324, 20
  %v2718 = vpop.permute.xlu0 %2717
  %2719 = vrot.lane.b32.xlu0 %v1325, 20
  %v2720 = vpop.permute.xlu0 %2719
  %2721 = vrot.lane.b32.xlu0 %v1326, 20
  %v2722 = vpop.permute.xlu0 %2721
  %2723 = vrot.lane.b32.xlu0 %v1327, 20
  %v2724 = vpop.permute.xlu0 %2723
  %2725 = vrot.lane.b32.xlu0 %v1328, 20
  %v2726 = vpop.permute.xlu0 %2725
  %2727 = vrot.lane.b32.xlu0 %v1329, 20
  %v2728 = vpop.permute.xlu0 %2727
  %2729 = vrot.lane.b32.xlu0 %v1330, 20
  %v2730 = vpop.permute.xlu0 %2729
  %2731 = vrot.lane.b32.xlu0 %v1331, 20
  %v2732 = vpop.permute.xlu0 %2731
  %2733 = vrot.lane.b32.xlu0 %v1332, 20
  %v2734 = vpop.permute.xlu0 %2733
  %2735 = vrot.lane.b32.xlu0 %v1333, 20
  %v2736 = vpop.permute.xlu0 %2735
  %2737 = vrot.lane.b32.xlu0 %v1334, 20
  %v2738 = vpop.permute.xlu0 %2737
  %2739 = vrot.lane.b32.xlu0 %v1335, 20
  %v2740 = vpop.permute.xlu0 %2739
  %2741 = vrot.lane.b32.xlu0 %v1336, 20
  %v2742 = vpop.permute.xlu0 %2741
  %2743 = vrot.lane.b32.xlu0 %v1337, 20
  %v2744 = vpop.permute.xlu0 %2743
  %2745 = vrot.lane.b32.xlu0 %v1338, 20
  %v2746 = vpop.permute.xlu0 %2745
  %2747 = vrot.lane.b32.xlu0 %v1339, 20
  %v2748 = vpop.permute.xlu0 %2747
  %2877 = vrot.lane.b32.xlu0 %v1341, 24
  %v2878 = vpop.permute.xlu0 %2877
  %2879 = vrot.lane.b32.xlu0 %v1342, 24
  %v2880 = vpop.permute.xlu0 %2879
  %2881 = vrot.lane.b32.xlu0 %v1343, 24
  %v2882 = vpop.permute.xlu0 %2881
  %2883 = vrot.lane.b32.xlu0 %v1344, 24
  %v2884 = vpop.permute.xlu0 %2883
  %2885 = vrot.lane.b32.xlu0 %v1345, 24
  %v2886 = vpop.permute.xlu0 %2885
  %2887 = vrot.lane.b32.xlu0 %v1346, 24
  %v2888 = vpop.permute.xlu0 %2887
  %2889 = vrot.lane.b32.xlu0 %v1347, 24
  %v2890 = vpop.permute.xlu0 %2889
  %2891 = vrot.lane.b32.xlu0 %v1348, 24
  %v2892 = vpop.permute.xlu0 %2891
  %2893 = vrot.lane.b32.xlu0 %v1349, 24
  %v2894 = vpop.permute.xlu0 %2893
  %2895 = vrot.lane.b32.xlu0 %v1350, 24
  %v2896 = vpop.permute.xlu0 %2895
  %2897 = vrot.lane.b32.xlu0 %v1351, 24
  %v2898 = vpop.permute.xlu0 %2897
  %2899 = vrot.lane.b32.xlu0 %v1352, 24
  %v2900 = vpop.permute.xlu0 %2899
  %2901 = vrot.lane.b32.xlu0 %v1353, 24
  %v2902 = vpop.permute.xlu0 %2901
  %2903 = vrot.lane.b32.xlu0 %v1354, 24
  %v2904 = vpop.permute.xlu0 %2903
  %2905 = vrot.lane.b32.xlu0 %v1355, 24
  %v2906 = vpop.permute.xlu0 %2905
  %2907 = vrot.lane.b32.xlu0 %v1356, 24
  %v2908 = vpop.permute.xlu0 %2907
  %2909 = vrot.lane.b32.xlu0 %v1357, 24
  %v2910 = vpop.permute.xlu0 %2909
  %2911 = vrot.lane.b32.xlu0 %v1358, 24
  %v2912 = vpop.permute.xlu0 %2911
  %2913 = vrot.lane.b32.xlu0 %v1359, 24
  %v2914 = vpop.permute.xlu0 %2913
  %2915 = vrot.lane.b32.xlu0 %v1360, 24
  %v2916 = vpop.permute.xlu0 %2915
  %2917 = vrot.lane.b32.xlu0 %v1361, 24
  %v2918 = vpop.permute.xlu0 %2917
  %2919 = vrot.lane.b32.xlu0 %v1362, 24
  %v2920 = vpop.permute.xlu0 %2919
  %2921 = vrot.lane.b32.xlu0 %v1363, 24
  %v2922 = vpop.permute.xlu0 %2921
  %2923 = vrot.lane.b32.xlu0 %v1364, 24
  %v2924 = vpop.permute.xlu0 %2923
  %2925 = vrot.lane.b32.xlu0 %v1365, 24
  %v2926 = vpop.permute.xlu0 %2925
  %2927 = vrot.lane.b32.xlu0 %v1366, 24
  %v2928 = vpop.permute.xlu0 %2927
  %2929 = vrot.lane.b32.xlu0 %v1367, 24
  %v2930 = vpop.permute.xlu0 %2929
  %2931 = vrot.lane.b32.xlu0 %v1368, 24
  %v2932 = vpop.permute.xlu0 %2931
  %2933 = vrot.lane.b32.xlu0 %v1369, 24
  %v2934 = vpop.permute.xlu0 %2933
  %2935 = vrot.lane.b32.xlu0 %v1370, 24
  %v2936 = vpop.permute.xlu0 %2935
  %2937 = vrot.lane.b32.xlu0 %v1371, 24
  %v2938 = vpop.permute.xlu0 %2937
  %2939 = vrot.lane.b32.xlu0 %v1372, 24
  %v2940 = vpop.permute.xlu0 %2939
  %2941 = vrot.lane.b32.xlu0 %v1373, 24
  %v2942 = vpop.permute.xlu0 %2941
  %2943 = vrot.lane.b32.xlu0 %v1374, 24
  %v2944 = vpop.permute.xlu0 %2943
  %2945 = vrot.lane.b32.xlu0 %v1375, 24
  %v2946 = vpop.permute.xlu0 %2945
  %2947 = vrot.lane.b32.xlu0 %v1376, 24
  %v2948 = vpop.permute.xlu0 %2947
  %2949 = vrot.lane.b32.xlu0 %v1377, 24
  %v2950 = vpop.permute.xlu0 %2949
  %2951 = vrot.lane.b32.xlu0 %v1378, 24
  %v2952 = vpop.permute.xlu0 %2951
  %2953 = vrot.lane.b32.xlu0 %v1379, 24
  %v2954 = vpop.permute.xlu0 %2953
  %2955 = vrot.lane.b32.xlu0 %v1380, 24
  %v2956 = vpop.permute.xlu0 %2955
  %2957 = vrot.lane.b32.xlu0 %v1381, 24
  %v2958 = vpop.permute.xlu0 %2957
  %2959 = vrot.lane.b32.xlu0 %v1382, 24
  %v2960 = vpop.permute.xlu0 %2959
  %2961 = vrot.lane.b32.xlu0 %v1383, 24
  %v2962 = vpop.permute.xlu0 %2961
  %2963 = vrot.lane.b32.xlu0 %v1384, 24
  %v2964 = vpop.permute.xlu0 %2963
  %2965 = vrot.lane.b32.xlu0 %v1385, 24
  %v2966 = vpop.permute.xlu0 %2965
  %2967 = vrot.lane.b32.xlu0 %v1386, 24
  %v2968 = vpop.permute.xlu0 %2967
  %2969 = vrot.lane.b32.xlu0 %v1387, 24
  %v2970 = vpop.permute.xlu0 %2969
  %2971 = vrot.lane.b32.xlu0 %v1388, 24
  %v2972 = vpop.permute.xlu0 %2971
  %2973 = vrot.lane.b32.xlu0 %v1389, 24
  %v2974 = vpop.permute.xlu0 %2973
  %2975 = vrot.lane.b32.xlu0 %v1390, 24
  %v2976 = vpop.permute.xlu0 %2975
  %2977 = vrot.lane.b32.xlu0 %v1391, 24
  %v2978 = vpop.permute.xlu0 %2977
  %2979 = vrot.lane.b32.xlu0 %v1392, 24
  %v2980 = vpop.permute.xlu0 %2979
  %2981 = vrot.lane.b32.xlu0 %v1393, 24
  %v2982 = vpop.permute.xlu0 %2981
  %2983 = vrot.lane.b32.xlu0 %v1394, 24
  %v2984 = vpop.permute.xlu0 %2983
  %2985 = vrot.lane.b32.xlu0 %v1395, 24
  %v2986 = vpop.permute.xlu0 %2985
  %2987 = vrot.lane.b32.xlu0 %v1396, 24
  %v2988 = vpop.permute.xlu0 %2987
  %2989 = vrot.lane.b32.xlu0 %v1397, 24
  %v2990 = vpop.permute.xlu0 %2989
  %2991 = vrot.lane.b32.xlu0 %v1398, 24
  %v2992 = vpop.permute.xlu0 %2991
  %2993 = vrot.lane.b32.xlu0 %v1399, 24
  %v2994 = vpop.permute.xlu0 %2993
  %2995 = vrot.lane.b32.xlu0 %v1400, 24
  %v2996 = vpop.permute.xlu0 %2995
  %2997 = vrot.lane.b32.xlu0 %v1401, 24
  %v2998 = vpop.permute.xlu0 %2997
  %2999 = vrot.lane.b32.xlu0 %v1402, 24
  %v3000 = vpop.permute.xlu0 %2999
  %3001 = vrot.lane.b32.xlu0 %v1403, 24
  %v3002 = vpop.permute.xlu0 %3001
  %3003 = vrot.lane.b32.xlu0 %v1404, 24
  %v3004 = vpop.permute.xlu0 %3003
  %3133 = vrot.lane.b32.xlu0 %v1405, 28
  %v3134 = vpop.permute.xlu0 %3133
  %3135 = vrot.lane.b32.xlu0 %v1406, 28
  %v3136 = vpop.permute.xlu0 %3135
  %3137 = vrot.lane.b32.xlu0 %v1407, 28
  %v3138 = vpop.permute.xlu0 %3137
  %3139 = vrot.lane.b32.xlu0 %v1408, 28
  %v3140 = vpop.permute.xlu0 %3139
  %3141 = vrot.lane.b32.xlu0 %v1409, 28
  %v3142 = vpop.permute.xlu0 %3141
  %3143 = vrot.lane.b32.xlu0 %v1410, 28
  %v3144 = vpop.permute.xlu0 %3143
  %3145 = vrot.lane.b32.xlu0 %v1411, 28
  %v3146 = vpop.permute.xlu0 %3145
  %3147 = vrot.lane.b32.xlu0 %v1412, 28
  %v3148 = vpop.permute.xlu0 %3147
  %3149 = vrot.lane.b32.xlu0 %v1413, 28
  %v3150 = vpop.permute.xlu0 %3149
  %3151 = vrot.lane.b32.xlu0 %v1414, 28
  %v3152 = vpop.permute.xlu0 %3151
  %3153 = vrot.lane.b32.xlu0 %v1415, 28
  %v3154 = vpop.permute.xlu0 %3153
  %3155 = vrot.lane.b32.xlu0 %v1416, 28
  %v3156 = vpop.permute.xlu0 %3155
  %3157 = vrot.lane.b32.xlu0 %v1417, 28
  %v3158 = vpop.permute.xlu0 %3157
  %3159 = vrot.lane.b32.xlu0 %v1418, 28
  %v3160 = vpop.permute.xlu0 %3159
  %3161 = vrot.lane.b32.xlu0 %v1419, 28
  %v3162 = vpop.permute.xlu0 %3161
  %3163 = vrot.lane.b32.xlu0 %v1420, 28
  %v3164 = vpop.permute.xlu0 %3163
  %3165 = vrot.lane.b32.xlu0 %v1421, 28
  %v3166 = vpop.permute.xlu0 %3165
  %3167 = vrot.lane.b32.xlu0 %v1422, 28
  %v3168 = vpop.permute.xlu0 %3167
  %3169 = vrot.lane.b32.xlu0 %v1423, 28
  %v3170 = vpop.permute.xlu0 %3169
  %3171 = vrot.lane.b32.xlu0 %v1424, 28
  %v3172 = vpop.permute.xlu0 %3171
  %3173 = vrot.lane.b32.xlu0 %v1425, 28
  %v3174 = vpop.permute.xlu0 %3173
  %3175 = vrot.lane.b32.xlu0 %v1426, 28
  %v3176 = vpop.permute.xlu0 %3175
  %3177 = vrot.lane.b32.xlu0 %v1427, 28
  %v3178 = vpop.permute.xlu0 %3177
  %3179 = vrot.lane.b32.xlu0 %v1428, 28
  %v3180 = vpop.permute.xlu0 %3179
  %3181 = vrot.lane.b32.xlu0 %v1429, 28
  %v3182 = vpop.permute.xlu0 %3181
  %3183 = vrot.lane.b32.xlu0 %v1430, 28
  %v3184 = vpop.permute.xlu0 %3183
  %3185 = vrot.lane.b32.xlu0 %v1431, 28
  %v3186 = vpop.permute.xlu0 %3185
  %3187 = vrot.lane.b32.xlu0 %v1432, 28
  %v3188 = vpop.permute.xlu0 %3187
  %3189 = vrot.lane.b32.xlu0 %v1433, 28
  %v3190 = vpop.permute.xlu0 %3189
  %3191 = vrot.lane.b32.xlu0 %v1434, 28
  %v3192 = vpop.permute.xlu0 %3191
  %3193 = vrot.lane.b32.xlu0 %v1435, 28
  %v3194 = vpop.permute.xlu0 %3193
  %3195 = vrot.lane.b32.xlu0 %v1436, 28
  %v3196 = vpop.permute.xlu0 %3195
  %3197 = vrot.lane.b32.xlu0 %v1437, 28
  %v3198 = vpop.permute.xlu0 %3197
  %3199 = vrot.lane.b32.xlu0 %v1438, 28
  %v3200 = vpop.permute.xlu0 %3199
  %3201 = vrot.lane.b32.xlu0 %v1439, 28
  %v3202 = vpop.permute.xlu0 %3201
  %3203 = vrot.lane.b32.xlu0 %v1440, 28
  %v3204 = vpop.permute.xlu0 %3203
  %3205 = vrot.lane.b32.xlu0 %v1441, 28
  %v3206 = vpop.permute.xlu0 %3205
  %3207 = vrot.lane.b32.xlu0 %v1442, 28
  %v3208 = vpop.permute.xlu0 %3207
  %3209 = vrot.lane.b32.xlu0 %v1443, 28
  %v3210 = vpop.permute.xlu0 %3209
  %3211 = vrot.lane.b32.xlu0 %v1444, 28
  %v3212 = vpop.permute.xlu0 %3211
  %3213 = vrot.lane.b32.xlu0 %v1445, 28
  %v3214 = vpop.permute.xlu0 %3213
  %3215 = vrot.lane.b32.xlu0 %v1446, 28
  %v3216 = vpop.permute.xlu0 %3215
  %3217 = vrot.lane.b32.xlu0 %v1447, 28
  %v3218 = vpop.permute.xlu0 %3217
  %3219 = vrot.lane.b32.xlu0 %v1448, 28
  %v3220 = vpop.permute.xlu0 %3219
  %3221 = vrot.lane.b32.xlu0 %v1449, 28
  %v3222 = vpop.permute.xlu0 %3221
  %3223 = vrot.lane.b32.xlu0 %v1450, 28
  %v3224 = vpop.permute.xlu0 %3223
  %3225 = vrot.lane.b32.xlu0 %v1451, 28
  %v3226 = vpop.permute.xlu0 %3225
  %3227 = vrot.lane.b32.xlu0 %v1452, 28
  %v3228 = vpop.permute.xlu0 %3227
  %3229 = vrot.lane.b32.xlu0 %v1453, 28
  %v3230 = vpop.permute.xlu0 %3229
  %3231 = vrot.lane.b32.xlu0 %v1454, 28
  %v3232 = vpop.permute.xlu0 %3231
  %3233 = vrot.lane.b32.xlu0 %v1455, 28
  %v3234 = vpop.permute.xlu0 %3233
  %3235 = vrot.lane.b32.xlu0 %v1456, 28
  %v3236 = vpop.permute.xlu0 %3235
  %3237 = vrot.lane.b32.xlu0 %v1457, 28
  %v3238 = vpop.permute.xlu0 %3237
  %3239 = vrot.lane.b32.xlu0 %v1458, 28
  %v3240 = vpop.permute.xlu0 %3239
  %3241 = vrot.lane.b32.xlu0 %v1459, 28
  %v3242 = vpop.permute.xlu0 %3241
  %3243 = vrot.lane.b32.xlu0 %v1460, 28
  %v3244 = vpop.permute.xlu0 %3243
  %3245 = vrot.lane.b32.xlu0 %v1461, 28
  %v3246 = vpop.permute.xlu0 %3245
  %3247 = vrot.lane.b32.xlu0 %v1462, 28
  %v3248 = vpop.permute.xlu0 %3247
  %3249 = vrot.lane.b32.xlu0 %v1463, 28
  %v3250 = vpop.permute.xlu0 %3249
  %3251 = vrot.lane.b32.xlu0 %v1464, 28
  %v3252 = vpop.permute.xlu0 %3251
  %3253 = vrot.lane.b32.xlu0 %v1465, 28
  %v3254 = vpop.permute.xlu0 %3253
  %3255 = vrot.lane.b32.xlu0 %v1466, 28
  %v3256 = vpop.permute.xlu0 %3255
  %3257 = vrot.lane.b32.xlu0 %v1467, 28
  %v3258 = vpop.permute.xlu0 %3257
  %3259 = vrot.lane.b32.xlu0 %v1468, 28
  %v3260 = vpop.permute.xlu0 %3259
  %3389 = vrot.lane.b32.xlu0 %v1469, 32
  %v3390 = vpop.permute.xlu0 %3389
  %3391 = vrot.lane.b32.xlu0 %v1470, 32
  %v3392 = vpop.permute.xlu0 %3391
  %3393 = vrot.lane.b32.xlu0 %v1471, 32
  %v3394 = vpop.permute.xlu0 %3393
  %3395 = vrot.lane.b32.xlu0 %v1472, 32
  %v3396 = vpop.permute.xlu0 %3395
  %3397 = vrot.lane.b32.xlu0 %v1473, 32
  %v3398 = vpop.permute.xlu0 %3397
  %3399 = vrot.lane.b32.xlu0 %v1474, 32
  %v3400 = vpop.permute.xlu0 %3399
  %3401 = vrot.lane.b32.xlu0 %v1475, 32
  %v3402 = vpop.permute.xlu0 %3401
  %3403 = vrot.lane.b32.xlu0 %v1476, 32
  %v3404 = vpop.permute.xlu0 %3403
  %3405 = vrot.lane.b32.xlu0 %v1477, 32
  %v3406 = vpop.permute.xlu0 %3405
  %3407 = vrot.lane.b32.xlu0 %v1478, 32
  %v3408 = vpop.permute.xlu0 %3407
  %3409 = vrot.lane.b32.xlu0 %v1479, 32
  %v3410 = vpop.permute.xlu0 %3409
  %3411 = vrot.lane.b32.xlu0 %v1480, 32
  %v3412 = vpop.permute.xlu0 %3411
  %3413 = vrot.lane.b32.xlu0 %v1481, 32
  %v3414 = vpop.permute.xlu0 %3413
  %3415 = vrot.lane.b32.xlu0 %v1482, 32
  %v3416 = vpop.permute.xlu0 %3415
  %3417 = vrot.lane.b32.xlu0 %v1483, 32
  %v3418 = vpop.permute.xlu0 %3417
  %3419 = vrot.lane.b32.xlu0 %v1484, 32
  %v3420 = vpop.permute.xlu0 %3419
  %3421 = vrot.lane.b32.xlu0 %v1485, 32
  %v3422 = vpop.permute.xlu0 %3421
  %3423 = vrot.lane.b32.xlu0 %v1486, 32
  %v3424 = vpop.permute.xlu0 %3423
  %3425 = vrot.lane.b32.xlu0 %v1487, 32
  %v3426 = vpop.permute.xlu0 %3425
  %3427 = vrot.lane.b32.xlu0 %v1488, 32
  %v3428 = vpop.permute.xlu0 %3427
  %3429 = vrot.lane.b32.xlu0 %v1489, 32
  %v3430 = vpop.permute.xlu0 %3429
  %3431 = vrot.lane.b32.xlu0 %v1490, 32
  %v3432 = vpop.permute.xlu0 %3431
  %3433 = vrot.lane.b32.xlu0 %v1491, 32
  %v3434 = vpop.permute.xlu0 %3433
  %3435 = vrot.lane.b32.xlu0 %v1492, 32
  %v3436 = vpop.permute.xlu0 %3435
  %3437 = vrot.lane.b32.xlu0 %v1493, 32
  %v3438 = vpop.permute.xlu0 %3437
  %3439 = vrot.lane.b32.xlu0 %v1494, 32
  %v3440 = vpop.permute.xlu0 %3439
  %3441 = vrot.lane.b32.xlu0 %v1495, 32
  %v3442 = vpop.permute.xlu0 %3441
  %3443 = vrot.lane.b32.xlu0 %v1496, 32
  %v3444 = vpop.permute.xlu0 %3443
  %3445 = vrot.lane.b32.xlu0 %v1497, 32
  %v3446 = vpop.permute.xlu0 %3445
  %3447 = vrot.lane.b32.xlu0 %v1498, 32
  %v3448 = vpop.permute.xlu0 %3447
  %3449 = vrot.lane.b32.xlu0 %v1499, 32
  %v3450 = vpop.permute.xlu0 %3449
  %3451 = vrot.lane.b32.xlu0 %v1500, 32
  %v3452 = vpop.permute.xlu0 %3451
  %3453 = vrot.lane.b32.xlu0 %v1501, 32
  %v3454 = vpop.permute.xlu0 %3453
  %3455 = vrot.lane.b32.xlu0 %v1502, 32
  %v3456 = vpop.permute.xlu0 %3455
  %3457 = vrot.lane.b32.xlu0 %v1503, 32
  %v3458 = vpop.permute.xlu0 %3457
  %3459 = vrot.lane.b32.xlu0 %v1504, 32
  %v3460 = vpop.permute.xlu0 %3459
  %3461 = vrot.lane.b32.xlu0 %v1505, 32
  %v3462 = vpop.permute.xlu0 %3461
  %3463 = vrot.lane.b32.xlu0 %v1506, 32
  %v3464 = vpop.permute.xlu0 %3463
  %3465 = vrot.lane.b32.xlu0 %v1507, 32
  %v3466 = vpop.permute.xlu0 %3465
  %3467 = vrot.lane.b32.xlu0 %v1508, 32
  %v3468 = vpop.permute.xlu0 %3467
  %3469 = vrot.lane.b32.xlu0 %v1509, 32
  %v3470 = vpop.permute.xlu0 %3469
  %3471 = vrot.lane.b32.xlu0 %v1510, 32
  %v3472 = vpop.permute.xlu0 %3471
  %3473 = vrot.lane.b32.xlu0 %v1511, 32
  %v3474 = vpop.permute.xlu0 %3473
  %3475 = vrot.lane.b32.xlu0 %v1512, 32
  %v3476 = vpop.permute.xlu0 %3475
  %3477 = vrot.lane.b32.xlu0 %v1513, 32
  %v3478 = vpop.permute.xlu0 %3477
  %3479 = vrot.lane.b32.xlu0 %v1514, 32
  %v3480 = vpop.permute.xlu0 %3479
  %3481 = vrot.lane.b32.xlu0 %v1515, 32
  %v3482 = vpop.permute.xlu0 %3481
  %3483 = vrot.lane.b32.xlu0 %v1516, 32
  %v3484 = vpop.permute.xlu0 %3483
  %3485 = vrot.lane.b32.xlu0 %v1517, 32
  %v3486 = vpop.permute.xlu0 %3485
  %3487 = vrot.lane.b32.xlu0 %v1518, 32
  %v3488 = vpop.permute.xlu0 %3487
  %3489 = vrot.lane.b32.xlu0 %v1519, 32
  %v3490 = vpop.permute.xlu0 %3489
  %3491 = vrot.lane.b32.xlu0 %v1520, 32
  %v3492 = vpop.permute.xlu0 %3491
  %3493 = vrot.lane.b32.xlu0 %v1521, 32
  %v3494 = vpop.permute.xlu0 %3493
  %3495 = vrot.lane.b32.xlu0 %v1522, 32
  %v3496 = vpop.permute.xlu0 %3495
  %3497 = vrot.lane.b32.xlu0 %v1523, 32
  %v3498 = vpop.permute.xlu0 %3497
  %3499 = vrot.lane.b32.xlu0 %v1524, 32
  %v3500 = vpop.permute.xlu0 %3499
  %3501 = vrot.lane.b32.xlu0 %v1525, 32
  %v3502 = vpop.permute.xlu0 %3501
  %3503 = vrot.lane.b32.xlu0 %v1526, 32
  %v3504 = vpop.permute.xlu0 %3503
  %3505 = vrot.lane.b32.xlu0 %v1527, 32
  %v3506 = vpop.permute.xlu0 %3505
  %3507 = vrot.lane.b32.xlu0 %v1528, 32
  %v3508 = vpop.permute.xlu0 %3507
  %3509 = vrot.lane.b32.xlu0 %v1529, 32
  %v3510 = vpop.permute.xlu0 %3509
  %3511 = vrot.lane.b32.xlu0 %v1530, 32
  %v3512 = vpop.permute.xlu0 %3511
  %3513 = vrot.lane.b32.xlu0 %v1531, 32
  %v3514 = vpop.permute.xlu0 %3513
  %3515 = vrot.lane.b32.xlu0 %v1532, 32
  %v3516 = vpop.permute.xlu0 %3515
  %v3581 = vsel %vm108, %v956, %v1598
  %v3582 = vsel %vm108, %v957, %v1600
  %v3583 = vsel %vm108, %v958, %v1602
  %v3584 = vsel %vm108, %v959, %v1604
  %v3585 = vsel %vm108, %v960, %v1606
  %v3586 = vsel %vm108, %v961, %v1608
  %v3587 = vsel %vm108, %v962, %v1610
  %v3588 = vsel %vm108, %v963, %v1612
  %v3589 = vsel %vm108, %v964, %v1614
  %v3590 = vsel %vm108, %v965, %v1616
  %v3591 = vsel %vm108, %v966, %v1618
  %v3592 = vsel %vm108, %v967, %v1620
  %v3593 = vsel %vm108, %v968, %v1622
  %v3594 = vsel %vm108, %v969, %v1624
  %v3595 = vsel %vm108, %v970, %v1626
  %v3596 = vsel %vm108, %v971, %v1628
  %v3597 = vsel %vm108, %v972, %v1630
  %v3598 = vsel %vm108, %v973, %v1632
  %v3599 = vsel %vm108, %v974, %v1634
  %v3600 = vsel %vm108, %v975, %v1636
  %v3601 = vsel %vm108, %v976, %v1638
  %v3602 = vsel %vm108, %v977, %v1640
  %v3603 = vsel %vm108, %v978, %v1642
  %v3604 = vsel %vm108, %v979, %v1644
  %v3605 = vsel %vm108, %v980, %v1646
  %v3606 = vsel %vm108, %v981, %v1648
  %v3607 = vsel %vm108, %v982, %v1650
  %v3608 = vsel %vm108, %v983, %v1652
  %v3609 = vsel %vm108, %v984, %v1654
  %v3610 = vsel %vm108, %v985, %v1656
  %v3611 = vsel %vm108, %v986, %v1658
  %v3612 = vsel %vm108, %v987, %v1660
  %v3613 = vsel %vm108, %v988, %v1662
  %v3614 = vsel %vm108, %v989, %v1664
  %v3615 = vsel %vm108, %v990, %v1666
  %v3616 = vsel %vm108, %v991, %v1668
  %v3617 = vsel %vm108, %v992, %v1670
  %v3618 = vsel %vm108, %v993, %v1672
  %v3619 = vsel %vm108, %v994, %v1674
  %v3620 = vsel %vm108, %v995, %v1676
  %v3621 = vsel %vm108, %v996, %v1678
  %v3622 = vsel %vm108, %v997, %v1680
  %v3623 = vsel %vm108, %v998, %v1682
  %v3624 = vsel %vm108, %v999, %v1684
  %v3625 = vsel %vm108, %v1000, %v1686
  %v3626 = vsel %vm108, %v1001, %v1688
  %v3627 = vsel %vm108, %v1002, %v1690
  %v3628 = vsel %vm108, %v1003, %v1692
  %v3629 = vsel %vm108, %v1004, %v1694
  %v3630 = vsel %vm108, %v1005, %v1696
  %v3631 = vsel %vm108, %v1006, %v1698
  %v3632 = vsel %vm108, %v1007, %v1700
  %v3633 = vsel %vm108, %v1008, %v1702
  %v3634 = vsel %vm108, %v1009, %v1704
  %v3635 = vsel %vm108, %v1010, %v1706
  %v3636 = vsel %vm108, %v1011, %v1708
  %v3637 = vsel %vm108, %v1012, %v1710
  %v3638 = vsel %vm108, %v1013, %v1712
  %v3639 = vsel %vm108, %v1014, %v1714
  %v3640 = vsel %vm108, %v1015, %v1716
  %v3641 = vsel %vm108, %v1016, %v1718
  %v3642 = vsel %vm108, %v1017, %v1720
  %v3643 = vsel %vm108, %v1018, %v1722
  %v3644 = vsel %vm108, %v1019, %v1724
  %vm3645 = vcmask 64512
  %v3646 = vsel %vm3645, %v3581, %v1854
  %v3647 = vsel %vm3645, %v3582, %v1856
  %v3648 = vsel %vm3645, %v3583, %v1858
  %v3649 = vsel %vm3645, %v3584, %v1860
  %v3650 = vsel %vm3645, %v3585, %v1862
  %v3651 = vsel %vm3645, %v3586, %v1864
  %v3652 = vsel %vm3645, %v3587, %v1866
  %v3653 = vsel %vm3645, %v3588, %v1868
  %v3654 = vsel %vm3645, %v3589, %v1870
  %v3655 = vsel %vm3645, %v3590, %v1872
  %v3656 = vsel %vm3645, %v3591, %v1874
  %v3657 = vsel %vm3645, %v3592, %v1876
  %v3658 = vsel %vm3645, %v3593, %v1878
  %v3659 = vsel %vm3645, %v3594, %v1880
  %v3660 = vsel %vm3645, %v3595, %v1882
  %v3661 = vsel %vm3645, %v3596, %v1884
  %v3662 = vsel %vm3645, %v3597, %v1886
  %v3663 = vsel %vm3645, %v3598, %v1888
  %v3664 = vsel %vm3645, %v3599, %v1890
  %v3665 = vsel %vm3645, %v3600, %v1892
  %v3666 = vsel %vm3645, %v3601, %v1894
  %v3667 = vsel %vm3645, %v3602, %v1896
  %v3668 = vsel %vm3645, %v3603, %v1898
  %v3669 = vsel %vm3645, %v3604, %v1900
  %v3670 = vsel %vm3645, %v3605, %v1902
  %v3671 = vsel %vm3645, %v3606, %v1904
  %v3672 = vsel %vm3645, %v3607, %v1906
  %v3673 = vsel %vm3645, %v3608, %v1908
  %v3674 = vsel %vm3645, %v3609, %v1910
  %v3675 = vsel %vm3645, %v3610, %v1912
  %v3676 = vsel %vm3645, %v3611, %v1914
  %v3677 = vsel %vm3645, %v3612, %v1916
  %v3678 = vsel %vm3645, %v3613, %v1918
  %v3679 = vsel %vm3645, %v3614, %v1920
  %v3680 = vsel %vm3645, %v3615, %v1922
  %v3681 = vsel %vm3645, %v3616, %v1924
  %v3682 = vsel %vm3645, %v3617, %v1926
  %v3683 = vsel %vm3645, %v3618, %v1928
  %v3684 = vsel %vm3645, %v3619, %v1930
  %v3685 = vsel %vm3645, %v3620, %v1932
  %v3686 = vsel %vm3645, %v3621, %v1934
  %v3687 = vsel %vm3645, %v3622, %v1936
  %v3688 = vsel %vm3645, %v3623, %v1938
  %v3689 = vsel %vm3645, %v3624, %v1940
  %v3690 = vsel %vm3645, %v3625, %v1942
  %v3691 = vsel %vm3645, %v3626, %v1944
  %v3692 = vsel %vm3645, %v3627, %v1946
  %v3693 = vsel %vm3645, %v3628, %v1948
  %v3694 = vsel %vm3645, %v3629, %v1950
  %v3695 = vsel %vm3645, %v3630, %v1952
  %v3696 = vsel %vm3645, %v3631, %v1954
  %v3697 = vsel %vm3645, %v3632, %v1956
  %v3698 = vsel %vm3645, %v3633, %v1958
  %v3699 = vsel %vm3645, %v3634, %v1960
  %v3700 = vsel %vm3645, %v3635, %v1962
  %v3701 = vsel %vm3645, %v3636, %v1964
  %v3702 = vsel %vm3645, %v3637, %v1966
  %v3703 = vsel %vm3645, %v3638, %v1968
  %v3704 = vsel %vm3645, %v3639, %v1970
  %v3705 = vsel %vm3645, %v3640, %v1972
  %v3706 = vsel %vm3645, %v3641, %v1974
  %v3707 = vsel %vm3645, %v3642, %v1976
  %v3708 = vsel %vm3645, %v3643, %v1978
  %v3709 = vsel %vm3645, %v3644, %v1980
  %vm3710 = vcmask 97280
  %v3711 = vsel %vm3710, %v3646, %v2110
  %v3712 = vsel %vm3710, %v3647, %v2112
  %v3713 = vsel %vm3710, %v3648, %v2114
  %v3714 = vsel %vm3710, %v3649, %v2116
  %v3715 = vsel %vm3710, %v3650, %v2118
  %v3716 = vsel %vm3710, %v3651, %v2120
  %v3717 = vsel %vm3710, %v3652, %v2122
  %v3718 = vsel %vm3710, %v3653, %v2124
  %v3719 = vsel %vm3710, %v3654, %v2126
  %v3720 = vsel %vm3710, %v3655, %v2128
  %v3721 = vsel %vm3710, %v3656, %v2130
  %v3722 = vsel %vm3710, %v3657, %v2132
  %v3723 = vsel %vm3710, %v3658, %v2134
  %v3724 = vsel %vm3710, %v3659, %v2136
  %v3725 = vsel %vm3710, %v3660, %v2138
  %v3726 = vsel %vm3710, %v3661, %v2140
  %v3727 = vsel %vm3710, %v3662, %v2142
  %v3728 = vsel %vm3710, %v3663, %v2144
  %v3729 = vsel %vm3710, %v3664, %v2146
  %v3730 = vsel %vm3710, %v3665, %v2148
  %v3731 = vsel %vm3710, %v3666, %v2150
  %v3732 = vsel %vm3710, %v3667, %v2152
  %v3733 = vsel %vm3710, %v3668, %v2154
  %v3734 = vsel %vm3710, %v3669, %v2156
  %v3735 = vsel %vm3710, %v3670, %v2158
  %v3736 = vsel %vm3710, %v3671, %v2160
  %v3737 = vsel %vm3710, %v3672, %v2162
  %v3738 = vsel %vm3710, %v3673, %v2164
  %v3739 = vsel %vm3710, %v3674, %v2166
  %v3740 = vsel %vm3710, %v3675, %v2168
  %v3741 = vsel %vm3710, %v3676, %v2170
  %v3742 = vsel %vm3710, %v3677, %v2172
  %v3743 = vsel %vm3710, %v3678, %v2174
  %v3744 = vsel %vm3710, %v3679, %v2176
  %v3745 = vsel %vm3710, %v3680, %v2178
  %v3746 = vsel %vm3710, %v3681, %v2180
  %v3747 = vsel %vm3710, %v3682, %v2182
  %v3748 = vsel %vm3710, %v3683, %v2184
  %v3749 = vsel %vm3710, %v3684, %v2186
  %v3750 = vsel %vm3710, %v3685, %v2188
  %v3751 = vsel %vm3710, %v3686, %v2190
  %v3752 = vsel %vm3710, %v3687, %v2192
  %v3753 = vsel %vm3710, %v3688, %v2194
  %v3754 = vsel %vm3710, %v3689, %v2196
  %v3755 = vsel %vm3710, %v3690, %v2198
  %v3756 = vsel %vm3710, %v3691, %v2200
  %v3757 = vsel %vm3710, %v3692, %v2202
  %v3758 = vsel %vm3710, %v3693, %v2204
  %v3759 = vsel %vm3710, %v3694, %v2206
  %v3760 = vsel %vm3710, %v3695, %v2208
  %v3761 = vsel %vm3710, %v3696, %v2210
  %v3762 = vsel %vm3710, %v3697, %v2212
  %v3763 = vsel %vm3710, %v3698, %v2214
  %v3764 = vsel %vm3710, %v3699, %v2216
  %v3765 = vsel %vm3710, %v3700, %v2218
  %v3766 = vsel %vm3710, %v3701, %v2220
  %v3767 = vsel %vm3710, %v3702, %v2222
  %v3768 = vsel %vm3710, %v3703, %v2224
  %v3769 = vsel %vm3710, %v3704, %v2226
  %v3770 = vsel %vm3710, %v3705, %v2228
  %v3771 = vsel %vm3710, %v3706, %v2230
  %v3772 = vsel %vm3710, %v3707, %v2232
  %v3773 = vsel %vm3710, %v3708, %v2234
  %v3774 = vsel %vm3710, %v3709, %v2236
  %vm3775 = vcmask 130048
  %v3776 = vsel %vm3775, %v3711, %v2366
  %v3777 = vsel %vm3775, %v3712, %v2368
  %v3778 = vsel %vm3775, %v3713, %v2370
  %v3779 = vsel %vm3775, %v3714, %v2372
  %v3780 = vsel %vm3775, %v3715, %v2374
  %v3781 = vsel %vm3775, %v3716, %v2376
  %v3782 = vsel %vm3775, %v3717, %v2378
  %v3783 = vsel %vm3775, %v3718, %v2380
  %v3784 = vsel %vm3775, %v3719, %v2382
  %v3785 = vsel %vm3775, %v3720, %v2384
  %v3786 = vsel %vm3775, %v3721, %v2386
  %v3787 = vsel %vm3775, %v3722, %v2388
  %v3788 = vsel %vm3775, %v3723, %v2390
  %v3789 = vsel %vm3775, %v3724, %v2392
  %v3790 = vsel %vm3775, %v3725, %v2394
  %v3791 = vsel %vm3775, %v3726, %v2396
  %v3792 = vsel %vm3775, %v3727, %v2398
  %v3793 = vsel %vm3775, %v3728, %v2400
  %v3794 = vsel %vm3775, %v3729, %v2402
  %v3795 = vsel %vm3775, %v3730, %v2404
  %v3796 = vsel %vm3775, %v3731, %v2406
  %v3797 = vsel %vm3775, %v3732, %v2408
  %v3798 = vsel %vm3775, %v3733, %v2410
  %v3799 = vsel %vm3775, %v3734, %v2412
  %v3800 = vsel %vm3775, %v3735, %v2414
  %v3801 = vsel %vm3775, %v3736, %v2416
  %v3802 = vsel %vm3775, %v3737, %v2418
  %v3803 = vsel %vm3775, %v3738, %v2420
  %v3804 = vsel %vm3775, %v3739, %v2422
  %v3805 = vsel %vm3775, %v3740, %v2424
  %v3806 = vsel %vm3775, %v3741, %v2426
  %v3807 = vsel %vm3775, %v3742, %v2428
  %v3808 = vsel %vm3775, %v3743, %v2430
  %v3809 = vsel %vm3775, %v3744, %v2432
  %v3810 = vsel %vm3775, %v3745, %v2434
  %v3811 = vsel %vm3775, %v3746, %v2436
  %v3812 = vsel %vm3775, %v3747, %v2438
  %v3813 = vsel %vm3775, %v3748, %v2440
  %v3814 = vsel %vm3775, %v3749, %v2442
  %v3815 = vsel %vm3775, %v3750, %v2444
  %v3816 = vsel %vm3775, %v3751, %v2446
  %v3817 = vsel %vm3775, %v3752, %v2448
  %v3818 = vsel %vm3775, %v3753, %v2450
  %v3819 = vsel %vm3775, %v3754, %v2452
  %v3820 = vsel %vm3775, %v3755, %v2454
  %v3821 = vsel %vm3775, %v3756, %v2456
  %v3822 = vsel %vm3775, %v3757, %v2458
  %v3823 = vsel %vm3775, %v3758, %v2460
  %v3824 = vsel %vm3775, %v3759, %v2462
  %v3825 = vsel %vm3775, %v3760, %v2464
  %v3826 = vsel %vm3775, %v3761, %v2466
  %v3827 = vsel %vm3775, %v3762, %v2468
  %v3828 = vsel %vm3775, %v3763, %v2470
  %v3829 = vsel %vm3775, %v3764, %v2472
  %v3830 = vsel %vm3775, %v3765, %v2474
  %v3831 = vsel %vm3775, %v3766, %v2476
  %v3832 = vsel %vm3775, %v3767, %v2478
  %v3833 = vsel %vm3775, %v3768, %v2480
  %v3834 = vsel %vm3775, %v3769, %v2482
  %v3835 = vsel %vm3775, %v3770, %v2484
  %v3836 = vsel %vm3775, %v3771, %v2486
  %v3837 = vsel %vm3775, %v3772, %v2488
  %v3838 = vsel %vm3775, %v3773, %v2490
  %v3839 = vsel %vm3775, %v3774, %v2492
  %vm3840 = vcmask 162816
  %v3841 = vsel %vm3840, %v3776, %v2622
  %v3842 = vsel %vm3840, %v3777, %v2624
  %v3843 = vsel %vm3840, %v3778, %v2626
  %v3844 = vsel %vm3840, %v3779, %v2628
  %v3845 = vsel %vm3840, %v3780, %v2630
  %v3846 = vsel %vm3840, %v3781, %v2632
  %v3847 = vsel %vm3840, %v3782, %v2634
  %v3848 = vsel %vm3840, %v3783, %v2636
  %v3849 = vsel %vm3840, %v3784, %v2638
  %v3850 = vsel %vm3840, %v3785, %v2640
  %v3851 = vsel %vm3840, %v3786, %v2642
  %v3852 = vsel %vm3840, %v3787, %v2644
  %v3853 = vsel %vm3840, %v3788, %v2646
  %v3854 = vsel %vm3840, %v3789, %v2648
  %v3855 = vsel %vm3840, %v3790, %v2650
  %v3856 = vsel %vm3840, %v3791, %v2652
  %v3857 = vsel %vm3840, %v3792, %v2654
  %v3858 = vsel %vm3840, %v3793, %v2656
  %v3859 = vsel %vm3840, %v3794, %v2658
  %v3860 = vsel %vm3840, %v3795, %v2660
  %v3861 = vsel %vm3840, %v3796, %v2662
  %v3862 = vsel %vm3840, %v3797, %v2664
  %v3863 = vsel %vm3840, %v3798, %v2666
  %v3864 = vsel %vm3840, %v3799, %v2668
  %v3865 = vsel %vm3840, %v3800, %v2670
  %v3866 = vsel %vm3840, %v3801, %v2672
  %v3867 = vsel %vm3840, %v3802, %v2674
  %v3868 = vsel %vm3840, %v3803, %v2676
  %v3869 = vsel %vm3840, %v3804, %v2678
  %v3870 = vsel %vm3840, %v3805, %v2680
  %v3871 = vsel %vm3840, %v3806, %v2682
  %v3872 = vsel %vm3840, %v3807, %v2684
  %v3873 = vsel %vm3840, %v3808, %v2686
  %v3874 = vsel %vm3840, %v3809, %v2688
  %v3875 = vsel %vm3840, %v3810, %v2690
  %v3876 = vsel %vm3840, %v3811, %v2692
  %v3877 = vsel %vm3840, %v3812, %v2694
  %v3878 = vsel %vm3840, %v3813, %v2696
  %v3879 = vsel %vm3840, %v3814, %v2698
  %v3880 = vsel %vm3840, %v3815, %v2700
  %v3881 = vsel %vm3840, %v3816, %v2702
  %v3882 = vsel %vm3840, %v3817, %v2704
  %v3883 = vsel %vm3840, %v3818, %v2706
  %v3884 = vsel %vm3840, %v3819, %v2708
  %v3885 = vsel %vm3840, %v3820, %v2710
  %v3886 = vsel %vm3840, %v3821, %v2712
  %v3887 = vsel %vm3840, %v3822, %v2714
  %v3888 = vsel %vm3840, %v3823, %v2716
  %v3889 = vsel %vm3840, %v3824, %v2718
  %v3890 = vsel %vm3840, %v3825, %v2720
  %v3891 = vsel %vm3840, %v3826, %v2722
  %v3892 = vsel %vm3840, %v3827, %v2724
  %v3893 = vsel %vm3840, %v3828, %v2726
  %v3894 = vsel %vm3840, %v3829, %v2728
  %v3895 = vsel %vm3840, %v3830, %v2730
  %v3896 = vsel %vm3840, %v3831, %v2732
  %v3897 = vsel %vm3840, %v3832, %v2734
  %v3898 = vsel %vm3840, %v3833, %v2736
  %v3899 = vsel %vm3840, %v3834, %v2738
  %v3900 = vsel %vm3840, %v3835, %v2740
  %v3901 = vsel %vm3840, %v3836, %v2742
  %v3902 = vsel %vm3840, %v3837, %v2744
  %v3903 = vsel %vm3840, %v3838, %v2746
  %v3904 = vsel %vm3840, %v3839, %v2748
  %vm3905 = vcmask 195584
  %v3906 = vsel %vm3905, %v3841, %v2878
  %v3907 = vsel %vm3905, %v3842, %v2880
  %v3908 = vsel %vm3905, %v3843, %v2882
  %v3909 = vsel %vm3905, %v3844, %v2884
  %v3910 = vsel %vm3905, %v3845, %v2886
  %v3911 = vsel %vm3905, %v3846, %v2888
  %v3912 = vsel %vm3905, %v3847, %v2890
  %v3913 = vsel %vm3905, %v3848, %v2892
  %v3914 = vsel %vm3905, %v3849, %v2894
  %v3915 = vsel %vm3905, %v3850, %v2896
  %v3916 = vsel %vm3905, %v3851, %v2898
  %v3917 = vsel %vm3905, %v3852, %v2900
  %v3918 = vsel %vm3905, %v3853, %v2902
  %v3919 = vsel %vm3905, %v3854, %v2904
  %v3920 = vsel %vm3905, %v3855, %v2906
  %v3921 = vsel %vm3905, %v3856, %v2908
  %v3922 = vsel %vm3905, %v3857, %v2910
  %v3923 = vsel %vm3905, %v3858, %v2912
  %v3924 = vsel %vm3905, %v3859, %v2914
  %v3925 = vsel %vm3905, %v3860, %v2916
  %v3926 = vsel %vm3905, %v3861, %v2918
  %v3927 = vsel %vm3905, %v3862, %v2920
  %v3928 = vsel %vm3905, %v3863, %v2922
  %v3929 = vsel %vm3905, %v3864, %v2924
  %v3930 = vsel %vm3905, %v3865, %v2926
  %v3931 = vsel %vm3905, %v3866, %v2928
  %v3932 = vsel %vm3905, %v3867, %v2930
  %v3933 = vsel %vm3905, %v3868, %v2932
  %v3934 = vsel %vm3905, %v3869, %v2934
  %v3935 = vsel %vm3905, %v3870, %v2936
  %v3936 = vsel %vm3905, %v3871, %v2938
  %v3937 = vsel %vm3905, %v3872, %v2940
  %v3938 = vsel %vm3905, %v3873, %v2942
  %v3939 = vsel %vm3905, %v3874, %v2944
  %v3940 = vsel %vm3905, %v3875, %v2946
  %v3941 = vsel %vm3905, %v3876, %v2948
  %v3942 = vsel %vm3905, %v3877, %v2950
  %v3943 = vsel %vm3905, %v3878, %v2952
  %v3944 = vsel %vm3905, %v3879, %v2954
  %v3945 = vsel %vm3905, %v3880, %v2956
  %v3946 = vsel %vm3905, %v3881, %v2958
  %v3947 = vsel %vm3905, %v3882, %v2960
  %v3948 = vsel %vm3905, %v3883, %v2962
  %v3949 = vsel %vm3905, %v3884, %v2964
  %v3950 = vsel %vm3905, %v3885, %v2966
  %v3951 = vsel %vm3905, %v3886, %v2968
  %v3952 = vsel %vm3905, %v3887, %v2970
  %v3953 = vsel %vm3905, %v3888, %v2972
  %v3954 = vsel %vm3905, %v3889, %v2974
  %v3955 = vsel %vm3905, %v3890, %v2976
  %v3956 = vsel %vm3905, %v3891, %v2978
  %v3957 = vsel %vm3905, %v3892, %v2980
  %v3958 = vsel %vm3905, %v3893, %v2982
  %v3959 = vsel %vm3905, %v3894, %v2984
  %v3960 = vsel %vm3905, %v3895, %v2986
  %v3961 = vsel %vm3905, %v3896, %v2988
  %v3962 = vsel %vm3905, %v3897, %v2990
  %v3963 = vsel %vm3905, %v3898, %v2992
  %v3964 = vsel %vm3905, %v3899, %v2994
  %v3965 = vsel %vm3905, %v3900, %v2996
  %v3966 = vsel %vm3905, %v3901, %v2998
  %v3967 = vsel %vm3905, %v3902, %v3000
  %v3968 = vsel %vm3905, %v3903, %v3002
  %v3969 = vsel %vm3905, %v3904, %v3004
  %vm3970 = vcmask 228352
  %v3971 = vsel %vm3970, %v3906, %v3134
  %v3972 = vsel %vm3970, %v3907, %v3136
  %v3973 = vsel %vm3970, %v3908, %v3138
  %v3974 = vsel %vm3970, %v3909, %v3140
  %v3975 = vsel %vm3970, %v3910, %v3142
  %v3976 = vsel %vm3970, %v3911, %v3144
  %v3977 = vsel %vm3970, %v3912, %v3146
  %v3978 = vsel %vm3970, %v3913, %v3148
  %v3979 = vsel %vm3970, %v3914, %v3150
  %v3980 = vsel %vm3970, %v3915, %v3152
  %v3981 = vsel %vm3970, %v3916, %v3154
  %v3982 = vsel %vm3970, %v3917, %v3156
  %v3983 = vsel %vm3970, %v3918, %v3158
  %v3984 = vsel %vm3970, %v3919, %v3160
  %v3985 = vsel %vm3970, %v3920, %v3162
  %v3986 = vsel %vm3970, %v3921, %v3164
  %v3987 = vsel %vm3970, %v3922, %v3166
  %v3988 = vsel %vm3970, %v3923, %v3168
  %v3989 = vsel %vm3970, %v3924, %v3170
  %v3990 = vsel %vm3970, %v3925, %v3172
  %v3991 = vsel %vm3970, %v3926, %v3174
  %v3992 = vsel %vm3970, %v3927, %v3176
  %v3993 = vsel %vm3970, %v3928, %v3178
  %v3994 = vsel %vm3970, %v3929, %v3180
  %v3995 = vsel %vm3970, %v3930, %v3182
  %v3996 = vsel %vm3970, %v3931, %v3184
  %v3997 = vsel %vm3970, %v3932, %v3186
  %v3998 = vsel %vm3970, %v3933, %v3188
  %v3999 = vsel %vm3970, %v3934, %v3190
  %v4000 = vsel %vm3970, %v3935, %v3192
  %v4001 = vsel %vm3970, %v3936, %v3194
  %v4002 = vsel %vm3970, %v3937, %v3196
  %v4003 = vsel %vm3970, %v3938, %v3198
  %v4004 = vsel %vm3970, %v3939, %v3200
  %v4005 = vsel %vm3970, %v3940, %v3202
  %v4006 = vsel %vm3970, %v3941, %v3204
  %v4007 = vsel %vm3970, %v3942, %v3206
  %v4008 = vsel %vm3970, %v3943, %v3208
  %v4009 = vsel %vm3970, %v3944, %v3210
  %v4010 = vsel %vm3970, %v3945, %v3212
  %v4011 = vsel %vm3970, %v3946, %v3214
  %v4012 = vsel %vm3970, %v3947, %v3216
  %v4013 = vsel %vm3970, %v3948, %v3218
  %v4014 = vsel %vm3970, %v3949, %v3220
  %v4015 = vsel %vm3970, %v3950, %v3222
  %v4016 = vsel %vm3970, %v3951, %v3224
  %v4017 = vsel %vm3970, %v3952, %v3226
  %v4018 = vsel %vm3970, %v3953, %v3228
  %v4019 = vsel %vm3970, %v3954, %v3230
  %v4020 = vsel %vm3970, %v3955, %v3232
  %v4021 = vsel %vm3970, %v3956, %v3234
  %v4022 = vsel %vm3970, %v3957, %v3236
  %v4023 = vsel %vm3970, %v3958, %v3238
  %v4024 = vsel %vm3970, %v3959, %v3240
  %v4025 = vsel %vm3970, %v3960, %v3242
  %v4026 = vsel %vm3970, %v3961, %v3244
  %v4027 = vsel %vm3970, %v3962, %v3246
  %v4028 = vsel %vm3970, %v3963, %v3248
  %v4029 = vsel %vm3970, %v3964, %v3250
  %v4030 = vsel %vm3970, %v3965, %v3252
  %v4031 = vsel %vm3970, %v3966, %v3254
  %v4032 = vsel %vm3970, %v3967, %v3256
  %v4033 = vsel %vm3970, %v3968, %v3258
  %v4034 = vsel %vm3970, %v3969, %v3260
  %vm4035 = vcmask 261120
  %v4036 = vsel %vm4035, %v3971, %v3390
  %v4037 = vsel %vm4035, %v3972, %v3392
  %v4038 = vsel %vm4035, %v3973, %v3394
  %v4039 = vsel %vm4035, %v3974, %v3396
  %v4040 = vsel %vm4035, %v3975, %v3398
  %v4041 = vsel %vm4035, %v3976, %v3400
  %v4042 = vsel %vm4035, %v3977, %v3402
  %v4043 = vsel %vm4035, %v3978, %v3404
  %v4044 = vsel %vm4035, %v3979, %v3406
  %v4045 = vsel %vm4035, %v3980, %v3408
  %v4046 = vsel %vm4035, %v3981, %v3410
  %v4047 = vsel %vm4035, %v3982, %v3412
  %v4048 = vsel %vm4035, %v3983, %v3414
  %v4049 = vsel %vm4035, %v3984, %v3416
  %v4050 = vsel %vm4035, %v3985, %v3418
  %v4051 = vsel %vm4035, %v3986, %v3420
  %v4052 = vsel %vm4035, %v3987, %v3422
  %v4053 = vsel %vm4035, %v3988, %v3424
  %v4054 = vsel %vm4035, %v3989, %v3426
  %v4055 = vsel %vm4035, %v3990, %v3428
  %v4056 = vsel %vm4035, %v3991, %v3430
  %v4057 = vsel %vm4035, %v3992, %v3432
  %v4058 = vsel %vm4035, %v3993, %v3434
  %v4059 = vsel %vm4035, %v3994, %v3436
  %v4060 = vsel %vm4035, %v3995, %v3438
  %v4061 = vsel %vm4035, %v3996, %v3440
  %v4062 = vsel %vm4035, %v3997, %v3442
  %v4063 = vsel %vm4035, %v3998, %v3444
  %v4064 = vsel %vm4035, %v3999, %v3446
  %v4065 = vsel %vm4035, %v4000, %v3448
  %v4066 = vsel %vm4035, %v4001, %v3450
  %v4067 = vsel %vm4035, %v4002, %v3452
  %v4068 = vsel %vm4035, %v4003, %v3454
  %v4069 = vsel %vm4035, %v4004, %v3456
  %v4070 = vsel %vm4035, %v4005, %v3458
  %v4071 = vsel %vm4035, %v4006, %v3460
  %v4072 = vsel %vm4035, %v4007, %v3462
  %v4073 = vsel %vm4035, %v4008, %v3464
  %v4074 = vsel %vm4035, %v4009, %v3466
  %v4075 = vsel %vm4035, %v4010, %v3468
  %v4076 = vsel %vm4035, %v4011, %v3470
  %v4077 = vsel %vm4035, %v4012, %v3472
  %v4078 = vsel %vm4035, %v4013, %v3474
  %v4079 = vsel %vm4035, %v4014, %v3476
  %v4080 = vsel %vm4035, %v4015, %v3478
  %v4081 = vsel %vm4035, %v4016, %v3480
  %v4082 = vsel %vm4035, %v4017, %v3482
  %v4083 = vsel %vm4035, %v4018, %v3484
  %v4084 = vsel %vm4035, %v4019, %v3486
  %v4085 = vsel %vm4035, %v4020, %v3488
  %v4086 = vsel %vm4035, %v4021, %v3490
  %v4087 = vsel %vm4035, %v4022, %v3492
  %v4088 = vsel %vm4035, %v4023, %v3494
  %v4089 = vsel %vm4035, %v4024, %v3496
  %v4090 = vsel %vm4035, %v4025, %v3498
  %v4091 = vsel %vm4035, %v4026, %v3500
  %v4092 = vsel %vm4035, %v4027, %v3502
  %v4093 = vsel %vm4035, %v4028, %v3504
  %v4094 = vsel %vm4035, %v4029, %v3506
  %v4095 = vsel %vm4035, %v4030, %v3508
  %v4096 = vsel %vm4035, %v4031, %v3510
  %v4097 = vsel %vm4035, %v4032, %v3512
  %v4098 = vsel %vm4035, %v4033, %v3514
  %v4099 = vsel %vm4035, %v4034, %v3516
  %v4100 = vld [vmem:[%s1] sm:$0xff]
  %v4101 = vld [vmem:[%s1 + $0x8] sm:$0xff]
  %v4102 = vld [vmem:[%s1 + $0x10] sm:$0xff]
  %v4103 = vld [vmem:[%s1 + $0x18] sm:$0xff]
  %v4104 = vld [vmem:[%s1 + $0x20] sm:$0xf]
  %vm4105 = vcmask 293888
  %v4107 = vsel %vm4105, %v4036, 0
  %v4110 = vsel %vm4105, %v4037, 0
  %v4113 = vsel %vm4105, %v4038, 0
  %v4116 = vsel %vm4105, %v4039, 0
  %v4119 = vsel %vm4105, %v4040, 0
  %v4122 = vsel %vm4105, %v4041, 0
  %v4125 = vsel %vm4105, %v4042, 0
  %v4128 = vsel %vm4105, %v4043, 0
  %v4131 = vsel %vm4105, %v4044, 0
  %v4134 = vsel %vm4105, %v4045, 0
  %v4137 = vsel %vm4105, %v4046, 0
  %v4140 = vsel %vm4105, %v4047, 0
  %v4143 = vsel %vm4105, %v4048, 0
  %v4146 = vsel %vm4105, %v4049, 0
  %v4149 = vsel %vm4105, %v4050, 0
  %v4152 = vsel %vm4105, %v4051, 0
  %v4155 = vsel %vm4105, %v4052, 0
  %v4158 = vsel %vm4105, %v4053, 0
  %v4161 = vsel %vm4105, %v4054, 0
  %v4164 = vsel %vm4105, %v4055, 0
  %v4167 = vsel %vm4105, %v4056, 0
  %v4170 = vsel %vm4105, %v4057, 0
  %v4173 = vsel %vm4105, %v4058, 0
  %v4176 = vsel %vm4105, %v4059, 0
  %v4179 = vsel %vm4105, %v4060, 0
  %v4182 = vsel %vm4105, %v4061, 0
  %v4185 = vsel %vm4105, %v4062, 0
  %v4188 = vsel %vm4105, %v4063, 0
  %v4191 = vsel %vm4105, %v4064, 0
  %v4194 = vsel %vm4105, %v4065, 0
  %v4197 = vsel %vm4105, %v4066, 0
  %v4200 = vsel %vm4105, %v4067, 0
  %v4203 = vsel %vm4105, %v4068, 0
  %v4206 = vsel %vm4105, %v4069, 0
  %v4209 = vsel %vm4105, %v4070, 0
  %v4212 = vsel %vm4105, %v4071, 0
  %v4215 = vsel %vm4105, %v4072, 0
  %v4218 = vsel %vm4105, %v4073, 0
  %v4221 = vsel %vm4105, %v4074, 0
  %v4224 = vsel %vm4105, %v4075, 0
  %v4227 = vsel %vm4105, %v4076, 0
  %v4230 = vsel %vm4105, %v4077, 0
  %v4233 = vsel %vm4105, %v4078, 0
  %v4236 = vsel %vm4105, %v4079, 0
  %v4239 = vsel %vm4105, %v4080, 0
  %v4242 = vsel %vm4105, %v4081, 0
  %v4245 = vsel %vm4105, %v4082, 0
  %v4248 = vsel %vm4105, %v4083, 0
  %v4251 = vsel %vm4105, %v4084, 0
  %v4254 = vsel %vm4105, %v4085, 0
  %v4257 = vsel %vm4105, %v4086, 0
  %v4260 = vsel %vm4105, %v4087, 0
  %v4263 = vsel %vm4105, %v4088, 0
  %v4266 = vsel %vm4105, %v4089, 0
  %v4269 = vsel %vm4105, %v4090, 0
  %v4272 = vsel %vm4105, %v4091, 0
  %v4275 = vsel %vm4105, %v4092, 0
  %v4278 = vsel %vm4105, %v4093, 0
  %v4281 = vsel %vm4105, %v4094, 0
  %v4284 = vsel %vm4105, %v4095, 0
  %v4287 = vsel %vm4105, %v4096, 0
  %v4290 = vsel %vm4105, %v4097, 0
  %v4293 = vsel %vm4105, %v4098, 0
  %v4296 = vsel %vm4105, %v4099, 0
  %vm4298 = vcmask 1043456
  %v4300 = vsel %vm4298, %v4104, 0
  %4302 = vmatpush.msra.mxu0 0.0
  %4303 = vmatpush.msra.mxu0 0.0
  %4304 = vmatpush.msra.mxu0 0.0
  %4305 = vmatpush.msra.mxu0 0.0
  %4306 = vmatpush.msra.mxu0 0.0
  %4307 = vmatpush.msra.mxu0 0.0
  %4308 = vmatpush.msra.mxu0 0.0
  %4309 = vmatpush.msra.mxu0 0.0
  %4310 = vmatpush.msra.mxu0 0.0
  %4311 = vmatpush.msra.mxu0 0.0
  %4312 = vmatpush.msra.mxu0 0.0
  %4313 = vmatpush.msra.mxu0 %v4300
  %4314 = vmatpush.msra.mxu0 %v4103
  %4315 = vmatpush.msra.mxu0 %v4102
  %4316 = vmatpush.msra.mxu0 %v4101
  %4317 = vmatpush.msra.mxu0 %v4100
  %4318 = vmatmul.f32.gmra.mxu0 %v4107
  %v4319 = vpop.f32.mrf.mxu0
  %v4320 = vadd.f32 0.0, %v4319
  %4321 = vmatmul.f32.gmra.mxu0 %v4110
  %v4322 = vpop.f32.mrf.mxu0
  %v4323 = vadd.f32 0.0, %v4322
  %4324 = vmatmul.f32.gmra.mxu0 %v4113
  %v4325 = vpop.f32.mrf.mxu0
  %v4326 = vadd.f32 0.0, %v4325
  %4327 = vmatmul.f32.gmra.mxu0 %v4116
  %v4328 = vpop.f32.mrf.mxu0
  %v4329 = vadd.f32 0.0, %v4328
  %4330 = vmatmul.f32.gmra.mxu0 %v4119
  %v4331 = vpop.f32.mrf.mxu0
  %v4332 = vadd.f32 0.0, %v4331
  %4333 = vmatmul.f32.gmra.mxu0 %v4122
  %v4334 = vpop.f32.mrf.mxu0
  %v4335 = vadd.f32 0.0, %v4334
  %4336 = vmatmul.f32.gmra.mxu0 %v4125
  %v4337 = vpop.f32.mrf.mxu0
  %v4338 = vadd.f32 0.0, %v4337
  %4339 = vmatmul.f32.gmra.mxu0 %v4128
  %v4340 = vpop.f32.mrf.mxu0
  %v4341 = vadd.f32 0.0, %v4340
  %4342 = vmatmul.f32.gmra.mxu0 %v4131
  %v4343 = vpop.f32.mrf.mxu0
  %v4344 = vadd.f32 0.0, %v4343
  %4345 = vmatmul.f32.gmra.mxu0 %v4134
  %v4346 = vpop.f32.mrf.mxu0
  %v4347 = vadd.f32 0.0, %v4346
  %4348 = vmatmul.f32.gmra.mxu0 %v4137
  %v4349 = vpop.f32.mrf.mxu0
  %v4350 = vadd.f32 0.0, %v4349
  %4351 = vmatmul.f32.gmra.mxu0 %v4140
  %v4352 = vpop.f32.mrf.mxu0
  %v4353 = vadd.f32 0.0, %v4352
  %4354 = vmatmul.f32.gmra.mxu0 %v4143
  %v4355 = vpop.f32.mrf.mxu0
  %v4356 = vadd.f32 0.0, %v4355
  %4357 = vmatmul.f32.gmra.mxu0 %v4146
  %v4358 = vpop.f32.mrf.mxu0
  %v4359 = vadd.f32 0.0, %v4358
  %4360 = vmatmul.f32.gmra.mxu0 %v4149
  %v4361 = vpop.f32.mrf.mxu0
  %v4362 = vadd.f32 0.0, %v4361
  %4363 = vmatmul.f32.gmra.mxu0 %v4152
  %v4364 = vpop.f32.mrf.mxu0
  %v4365 = vadd.f32 0.0, %v4364
  %4366 = vmatmul.f32.gmra.mxu0 %v4155
  %v4367 = vpop.f32.mrf.mxu0
  %v4368 = vadd.f32 0.0, %v4367
  %4369 = vmatmul.f32.gmra.mxu0 %v4158
  %v4370 = vpop.f32.mrf.mxu0
  %v4371 = vadd.f32 0.0, %v4370
  %4372 = vmatmul.f32.gmra.mxu0 %v4161
  %v4373 = vpop.f32.mrf.mxu0
  %v4374 = vadd.f32 0.0, %v4373
  %4375 = vmatmul.f32.gmra.mxu0 %v4164
  %v4376 = vpop.f32.mrf.mxu0
  %v4377 = vadd.f32 0.0, %v4376
  %4378 = vmatmul.f32.gmra.mxu0 %v4167
  %v4379 = vpop.f32.mrf.mxu0
  %v4380 = vadd.f32 0.0, %v4379
  %4381 = vmatmul.f32.gmra.mxu0 %v4170
  %v4382 = vpop.f32.mrf.mxu0
  %v4383 = vadd.f32 0.0, %v4382
  %4384 = vmatmul.f32.gmra.mxu0 %v4173
  %v4385 = vpop.f32.mrf.mxu0
  %v4386 = vadd.f32 0.0, %v4385
  %4387 = vmatmul.f32.gmra.mxu0 %v4176
  %v4388 = vpop.f32.mrf.mxu0
  %v4389 = vadd.f32 0.0, %v4388
  %4390 = vmatmul.f32.gmra.mxu0 %v4179
  %v4391 = vpop.f32.mrf.mxu0
  %v4392 = vadd.f32 0.0, %v4391
  %4393 = vmatmul.f32.gmra.mxu0 %v4182
  %v4394 = vpop.f32.mrf.mxu0
  %v4395 = vadd.f32 0.0, %v4394
  %4396 = vmatmul.f32.gmra.mxu0 %v4185
  %v4397 = vpop.f32.mrf.mxu0
  %v4398 = vadd.f32 0.0, %v4397
  %4399 = vmatmul.f32.gmra.mxu0 %v4188
  %v4400 = vpop.f32.mrf.mxu0
  %v4401 = vadd.f32 0.0, %v4400
  %4402 = vmatmul.f32.gmra.mxu0 %v4191
  %v4403 = vpop.f32.mrf.mxu0
  %v4404 = vadd.f32 0.0, %v4403
  %4405 = vmatmul.f32.gmra.mxu0 %v4194
  %v4406 = vpop.f32.mrf.mxu0
  %v4407 = vadd.f32 0.0, %v4406
  %4408 = vmatmul.f32.gmra.mxu0 %v4197
  %v4409 = vpop.f32.mrf.mxu0
  %v4410 = vadd.f32 0.0, %v4409
  %4411 = vmatmul.f32.gmra.mxu0 %v4200
  %v4412 = vpop.f32.mrf.mxu0
  %v4413 = vadd.f32 0.0, %v4412
  %4414 = vmatmul.f32.gmra.mxu0 %v4203
  %v4415 = vpop.f32.mrf.mxu0
  %v4416 = vadd.f32 0.0, %v4415
  %4417 = vmatmul.f32.gmra.mxu0 %v4206
  %v4418 = vpop.f32.mrf.mxu0
  %v4419 = vadd.f32 0.0, %v4418
  %4420 = vmatmul.f32.gmra.mxu0 %v4209
  %v4421 = vpop.f32.mrf.mxu0
  %v4422 = vadd.f32 0.0, %v4421
  %4423 = vmatmul.f32.gmra.mxu0 %v4212
  %v4424 = vpop.f32.mrf.mxu0
  %v4425 = vadd.f32 0.0, %v4424
  %4426 = vmatmul.f32.gmra.mxu0 %v4215
  %v4427 = vpop.f32.mrf.mxu0
  %v4428 = vadd.f32 0.0, %v4427
  %4429 = vmatmul.f32.gmra.mxu0 %v4218
  %v4430 = vpop.f32.mrf.mxu0
  %v4431 = vadd.f32 0.0, %v4430
  %4432 = vmatmul.f32.gmra.mxu0 %v4221
  %v4433 = vpop.f32.mrf.mxu0
  %v4434 = vadd.f32 0.0, %v4433
  %4435 = vmatmul.f32.gmra.mxu0 %v4224
  %v4436 = vpop.f32.mrf.mxu0
  %v4437 = vadd.f32 0.0, %v4436
  %4438 = vmatmul.f32.gmra.mxu0 %v4227
  %v4439 = vpop.f32.mrf.mxu0
  %v4440 = vadd.f32 0.0, %v4439
  %4441 = vmatmul.f32.gmra.mxu0 %v4230
  %v4442 = vpop.f32.mrf.mxu0
  %v4443 = vadd.f32 0.0, %v4442
  %4444 = vmatmul.f32.gmra.mxu0 %v4233
  %v4445 = vpop.f32.mrf.mxu0
  %v4446 = vadd.f32 0.0, %v4445
  %4447 = vmatmul.f32.gmra.mxu0 %v4236
  %v4448 = vpop.f32.mrf.mxu0
  %v4449 = vadd.f32 0.0, %v4448
  %4450 = vmatmul.f32.gmra.mxu0 %v4239
  %v4451 = vpop.f32.mrf.mxu0
  %v4452 = vadd.f32 0.0, %v4451
  %4453 = vmatmul.f32.gmra.mxu0 %v4242
  %v4454 = vpop.f32.mrf.mxu0
  %v4455 = vadd.f32 0.0, %v4454
  %4456 = vmatmul.f32.gmra.mxu0 %v4245
  %v4457 = vpop.f32.mrf.mxu0
  %v4458 = vadd.f32 0.0, %v4457
  %4459 = vmatmul.f32.gmra.mxu0 %v4248
  %v4460 = vpop.f32.mrf.mxu0
  %v4461 = vadd.f32 0.0, %v4460
  %4462 = vmatmul.f32.gmra.mxu0 %v4251
  %v4463 = vpop.f32.mrf.mxu0
  %v4464 = vadd.f32 0.0, %v4463
  %4465 = vmatmul.f32.gmra.mxu0 %v4254
  %v4466 = vpop.f32.mrf.mxu0
  %v4467 = vadd.f32 0.0, %v4466
  %4468 = vmatmul.f32.gmra.mxu0 %v4257
  %v4469 = vpop.f32.mrf.mxu0
  %v4470 = vadd.f32 0.0, %v4469
  %4471 = vmatmul.f32.gmra.mxu0 %v4260
  %v4472 = vpop.f32.mrf.mxu0
  %v4473 = vadd.f32 0.0, %v4472
  %4474 = vmatmul.f32.gmra.mxu0 %v4263
  %v4475 = vpop.f32.mrf.mxu0
  %v4476 = vadd.f32 0.0, %v4475
  %4477 = vmatmul.f32.gmra.mxu0 %v4266
  %v4478 = vpop.f32.mrf.mxu0
  %v4479 = vadd.f32 0.0, %v4478
  %4480 = vmatmul.f32.gmra.mxu0 %v4269
  %v4481 = vpop.f32.mrf.mxu0
  %v4482 = vadd.f32 0.0, %v4481
  %4483 = vmatmul.f32.gmra.mxu0 %v4272
  %v4484 = vpop.f32.mrf.mxu0
  %v4485 = vadd.f32 0.0, %v4484
  %4486 = vmatmul.f32.gmra.mxu0 %v4275
  %v4487 = vpop.f32.mrf.mxu0
  %v4488 = vadd.f32 0.0, %v4487
  %4489 = vmatmul.f32.gmra.mxu0 %v4278
  %v4490 = vpop.f32.mrf.mxu0
  %v4491 = vadd.f32 0.0, %v4490
  %4492 = vmatmul.f32.gmra.mxu0 %v4281
  %v4493 = vpop.f32.mrf.mxu0
  %v4494 = vadd.f32 0.0, %v4493
  %4495 = vmatmul.f32.gmra.mxu0 %v4284
  %v4496 = vpop.f32.mrf.mxu0
  %v4497 = vadd.f32 0.0, %v4496
  %4498 = vmatmul.f32.gmra.mxu0 %v4287
  %v4499 = vpop.f32.mrf.mxu0
  %v4500 = vadd.f32 0.0, %v4499
  %4501 = vmatmul.f32.gmra.mxu0 %v4290
  %v4502 = vpop.f32.mrf.mxu0
  %v4503 = vadd.f32 0.0, %v4502
  %4504 = vmatmul.f32.gmra.mxu0 %v4293
  %v4505 = vpop.f32.mrf.mxu0
  %v4506 = vadd.f32 0.0, %v4505
  %4507 = vmatmul.f32.gmra.mxu0 %v4296
  %v4508 = vpop.f32.mrf.mxu0
  %v4509 = vadd.f32 0.0, %v4508
  %4510 = vdwg.mxu0
  %v4511 = vsel %vm108, %v4320, 0.0
  %v4512 = vsel %vm108, %v4323, 0.0
  %v4513 = vadd.f32 %v4511, %v4512
  %v4514 = vsel %vm108, %v4326, 0.0
  %v4515 = vadd.f32 %v4513, %v4514
  %v4516 = vsel %vm108, %v4329, 0.0
  %v4517 = vadd.f32 %v4515, %v4516
  %v4518 = vsel %vm108, %v4332, 0.0
  %v4519 = vadd.f32 %v4517, %v4518
  %v4520 = vsel %vm108, %v4335, 0.0
  %v4521 = vadd.f32 %v4519, %v4520
  %v4522 = vsel %vm108, %v4338, 0.0
  %v4523 = vadd.f32 %v4521, %v4522
  %v4524 = vsel %vm108, %v4341, 0.0
  %v4525 = vadd.f32 %v4523, %v4524
  %v4526 = vsel %vm108, %v4344, 0.0
  %v4527 = vadd.f32 %v4525, %v4526
  %v4528 = vsel %vm108, %v4347, 0.0
  %v4529 = vadd.f32 %v4527, %v4528
  %v4530 = vsel %vm108, %v4350, 0.0
  %v4531 = vadd.f32 %v4529, %v4530
  %v4532 = vsel %vm108, %v4353, 0.0
  %v4533 = vadd.f32 %v4531, %v4532
  %v4534 = vsel %vm108, %v4356, 0.0
  %v4535 = vadd.f32 %v4533, %v4534
  %v4536 = vsel %vm108, %v4359, 0.0
  %v4537 = vadd.f32 %v4535, %v4536
  %v4538 = vsel %vm108, %v4362, 0.0
  %v4539 = vadd.f32 %v4537, %v4538
  %v4540 = vsel %vm108, %v4365, 0.0
  %v4541 = vadd.f32 %v4539, %v4540
  %v4542 = vsel %vm108, %v4368, 0.0
  %v4543 = vadd.f32 %v4541, %v4542
  %v4544 = vsel %vm108, %v4371, 0.0
  %v4545 = vadd.f32 %v4543, %v4544
  %v4546 = vsel %vm108, %v4374, 0.0
  %v4547 = vadd.f32 %v4545, %v4546
  %v4548 = vsel %vm108, %v4377, 0.0
  %v4549 = vadd.f32 %v4547, %v4548
  %v4550 = vsel %vm108, %v4380, 0.0
  %v4551 = vadd.f32 %v4549, %v4550
  %v4552 = vsel %vm108, %v4383, 0.0
  %v4553 = vadd.f32 %v4551, %v4552
  %v4554 = vsel %vm108, %v4386, 0.0
  %v4555 = vadd.f32 %v4553, %v4554
  %v4556 = vsel %vm108, %v4389, 0.0
  %v4557 = vadd.f32 %v4555, %v4556
  %v4558 = vsel %vm108, %v4392, 0.0
  %v4559 = vadd.f32 %v4557, %v4558
  %v4560 = vsel %vm108, %v4395, 0.0
  %v4561 = vadd.f32 %v4559, %v4560
  %v4562 = vsel %vm108, %v4398, 0.0
  %v4563 = vadd.f32 %v4561, %v4562
  %v4564 = vsel %vm108, %v4401, 0.0
  %v4565 = vadd.f32 %v4563, %v4564
  %v4566 = vsel %vm108, %v4404, 0.0
  %v4567 = vadd.f32 %v4565, %v4566
  %v4568 = vsel %vm108, %v4407, 0.0
  %v4569 = vadd.f32 %v4567, %v4568
  %v4570 = vsel %vm108, %v4410, 0.0
  %v4571 = vadd.f32 %v4569, %v4570
  %v4572 = vsel %vm108, %v4413, 0.0
  %v4573 = vadd.f32 %v4571, %v4572
  %v4574 = vsel %vm108, %v4416, 0.0
  %v4575 = vadd.f32 %v4573, %v4574
  %v4576 = vsel %vm108, %v4419, 0.0
  %v4577 = vadd.f32 %v4575, %v4576
  %v4578 = vsel %vm108, %v4422, 0.0
  %v4579 = vadd.f32 %v4577, %v4578
  %v4580 = vsel %vm108, %v4425, 0.0
  %v4581 = vadd.f32 %v4579, %v4580
  %v4582 = vsel %vm108, %v4428, 0.0
  %v4583 = vadd.f32 %v4581, %v4582
  %v4584 = vsel %vm108, %v4431, 0.0
  %v4585 = vadd.f32 %v4583, %v4584
  %v4586 = vsel %vm108, %v4434, 0.0
  %v4587 = vadd.f32 %v4585, %v4586
  %v4588 = vsel %vm108, %v4437, 0.0
  %v4589 = vadd.f32 %v4587, %v4588
  %v4590 = vsel %vm108, %v4440, 0.0
  %v4591 = vadd.f32 %v4589, %v4590
  %v4592 = vsel %vm108, %v4443, 0.0
  %v4593 = vadd.f32 %v4591, %v4592
  %v4594 = vsel %vm108, %v4446, 0.0
  %v4595 = vadd.f32 %v4593, %v4594
  %v4596 = vsel %vm108, %v4449, 0.0
  %v4597 = vadd.f32 %v4595, %v4596
  %v4598 = vsel %vm108, %v4452, 0.0
  %v4599 = vadd.f32 %v4597, %v4598
  %v4600 = vsel %vm108, %v4455, 0.0
  %v4601 = vadd.f32 %v4599, %v4600
  %v4602 = vsel %vm108, %v4458, 0.0
  %v4603 = vadd.f32 %v4601, %v4602
  %v4604 = vsel %vm108, %v4461, 0.0
  %v4605 = vadd.f32 %v4603, %v4604
  %v4606 = vsel %vm108, %v4464, 0.0
  %v4607 = vadd.f32 %v4605, %v4606
  %v4608 = vsel %vm108, %v4467, 0.0
  %v4609 = vadd.f32 %v4607, %v4608
  %v4610 = vsel %vm108, %v4470, 0.0
  %v4611 = vadd.f32 %v4609, %v4610
  %v4612 = vsel %vm108, %v4473, 0.0
  %v4613 = vadd.f32 %v4611, %v4612
  %v4614 = vsel %vm108, %v4476, 0.0
  %v4615 = vadd.f32 %v4613, %v4614
  %v4616 = vsel %vm108, %v4479, 0.0
  %v4617 = vadd.f32 %v4615, %v4616
  %v4618 = vsel %vm108, %v4482, 0.0
  %v4619 = vadd.f32 %v4617, %v4618
  %v4620 = vsel %vm108, %v4485, 0.0
  %v4621 = vadd.f32 %v4619, %v4620
  %v4622 = vsel %vm108, %v4488, 0.0
  %v4623 = vadd.f32 %v4621, %v4622
  %v4624 = vsel %vm108, %v4491, 0.0
  %v4625 = vadd.f32 %v4623, %v4624
  %v4626 = vsel %vm108, %v4494, 0.0
  %v4627 = vadd.f32 %v4625, %v4626
  %v4628 = vsel %vm108, %v4497, 0.0
  %v4629 = vadd.f32 %v4627, %v4628
  %v4630 = vsel %vm108, %v4500, 0.0
  %v4631 = vadd.f32 %v4629, %v4630
  %v4632 = vsel %vm108, %v4503, 0.0
  %v4633 = vadd.f32 %v4631, %v4632
  %v4634 = vsel %vm108, %v4506, 0.0
  %v4635 = vadd.f32 %v4633, %v4634
  %v4636 = vsel %vm108, %v4509, 0.0
  %v4637 = vadd.f32 %v4635, %v4636
  %v4638 = vrot.slane %v4637, 4
  %v4639 = vadd.f32 %v4637, %v4638
  %v4640 = vrot.slane %v4639, 2
  %v4641 = vadd.f32 %v4639, %v4640
  %v4642 = vrot.slane %v4641, 1
  %v4643 = vadd.f32 %v4641, %v4642
  %v4644 = vmul.f32 %v4643, 0.001953125
  %v4645 = vmul.f32 %v4320, %v4320
  %v4646 = vmul.f32 %v4323, %v4323
  %v4647 = vmul.f32 %v4326, %v4326
  %v4648 = vmul.f32 %v4329, %v4329
  %v4649 = vmul.f32 %v4332, %v4332
  %v4650 = vmul.f32 %v4335, %v4335
  %v4651 = vmul.f32 %v4338, %v4338
  %v4652 = vmul.f32 %v4341, %v4341
  %v4653 = vmul.f32 %v4344, %v4344
  %v4654 = vmul.f32 %v4347, %v4347
  %v4655 = vmul.f32 %v4350, %v4350
  %v4656 = vmul.f32 %v4353, %v4353
  %v4657 = vmul.f32 %v4356, %v4356
  %v4658 = vmul.f32 %v4359, %v4359
  %v4659 = vmul.f32 %v4362, %v4362
  %v4660 = vmul.f32 %v4365, %v4365
  %v4661 = vmul.f32 %v4368, %v4368
  %v4662 = vmul.f32 %v4371, %v4371
  %v4663 = vmul.f32 %v4374, %v4374
  %v4664 = vmul.f32 %v4377, %v4377
  %v4665 = vmul.f32 %v4380, %v4380
  %v4666 = vmul.f32 %v4383, %v4383
  %v4667 = vmul.f32 %v4386, %v4386
  %v4668 = vmul.f32 %v4389, %v4389
  %v4669 = vmul.f32 %v4392, %v4392
  %v4670 = vmul.f32 %v4395, %v4395
  %v4671 = vmul.f32 %v4398, %v4398
  %v4672 = vmul.f32 %v4401, %v4401
  %v4673 = vmul.f32 %v4404, %v4404
  %v4674 = vmul.f32 %v4407, %v4407
  %v4675 = vmul.f32 %v4410, %v4410
  %v4676 = vmul.f32 %v4413, %v4413
  %v4677 = vmul.f32 %v4416, %v4416
  %v4678 = vmul.f32 %v4419, %v4419
  %v4679 = vmul.f32 %v4422, %v4422
  %v4680 = vmul.f32 %v4425, %v4425
  %v4681 = vmul.f32 %v4428, %v4428
  %v4682 = vmul.f32 %v4431, %v4431
  %v4683 = vmul.f32 %v4434, %v4434
  %v4684 = vmul.f32 %v4437, %v4437
  %v4685 = vmul.f32 %v4440, %v4440
  %v4686 = vmul.f32 %v4443, %v4443
  %v4687 = vmul.f32 %v4446, %v4446
  %v4688 = vmul.f32 %v4449, %v4449
  %v4689 = vmul.f32 %v4452, %v4452
  %v4690 = vmul.f32 %v4455, %v4455
  %v4691 = vmul.f32 %v4458, %v4458
  %v4692 = vmul.f32 %v4461, %v4461
  %v4693 = vmul.f32 %v4464, %v4464
  %v4694 = vmul.f32 %v4467, %v4467
  %v4695 = vmul.f32 %v4470, %v4470
  %v4696 = vmul.f32 %v4473, %v4473
  %v4697 = vmul.f32 %v4476, %v4476
  %v4698 = vmul.f32 %v4479, %v4479
  %v4699 = vmul.f32 %v4482, %v4482
  %v4700 = vmul.f32 %v4485, %v4485
  %v4701 = vmul.f32 %v4488, %v4488
  %v4702 = vmul.f32 %v4491, %v4491
  %v4703 = vmul.f32 %v4494, %v4494
  %v4704 = vmul.f32 %v4497, %v4497
  %v4705 = vmul.f32 %v4500, %v4500
  %v4706 = vmul.f32 %v4503, %v4503
  %v4707 = vmul.f32 %v4506, %v4506
  %v4708 = vmul.f32 %v4509, %v4509
  %v4709 = vsel %vm108, %v4645, 0.0
  %v4710 = vsel %vm108, %v4646, 0.0
  %v4711 = vadd.f32 %v4709, %v4710
  %v4712 = vsel %vm108, %v4647, 0.0
  %v4713 = vadd.f32 %v4711, %v4712
  %v4714 = vsel %vm108, %v4648, 0.0
  %v4715 = vadd.f32 %v4713, %v4714
  %v4716 = vsel %vm108, %v4649, 0.0
  %v4717 = vadd.f32 %v4715, %v4716
  %v4718 = vsel %vm108, %v4650, 0.0
  %v4719 = vadd.f32 %v4717, %v4718
  %v4720 = vsel %vm108, %v4651, 0.0
  %v4721 = vadd.f32 %v4719, %v4720
  %v4722 = vsel %vm108, %v4652, 0.0
  %v4723 = vadd.f32 %v4721, %v4722
  %v4724 = vsel %vm108, %v4653, 0.0
  %v4725 = vadd.f32 %v4723, %v4724
  %v4726 = vsel %vm108, %v4654, 0.0
  %v4727 = vadd.f32 %v4725, %v4726
  %v4728 = vsel %vm108, %v4655, 0.0
  %v4729 = vadd.f32 %v4727, %v4728
  %v4730 = vsel %vm108, %v4656, 0.0
  %v4731 = vadd.f32 %v4729, %v4730
  %v4732 = vsel %vm108, %v4657, 0.0
  %v4733 = vadd.f32 %v4731, %v4732
  %v4734 = vsel %vm108, %v4658, 0.0
  %v4735 = vadd.f32 %v4733, %v4734
  %v4736 = vsel %vm108, %v4659, 0.0
  %v4737 = vadd.f32 %v4735, %v4736
  %v4738 = vsel %vm108, %v4660, 0.0
  %v4739 = vadd.f32 %v4737, %v4738
  %v4740 = vsel %vm108, %v4661, 0.0
  %v4741 = vadd.f32 %v4739, %v4740
  %v4742 = vsel %vm108, %v4662, 0.0
  %v4743 = vadd.f32 %v4741, %v4742
  %v4744 = vsel %vm108, %v4663, 0.0
  %v4745 = vadd.f32 %v4743, %v4744
  %v4746 = vsel %vm108, %v4664, 0.0
  %v4747 = vadd.f32 %v4745, %v4746
  %v4748 = vsel %vm108, %v4665, 0.0
  %v4749 = vadd.f32 %v4747, %v4748
  %v4750 = vsel %vm108, %v4666, 0.0
  %v4751 = vadd.f32 %v4749, %v4750
  %v4752 = vsel %vm108, %v4667, 0.0
  %v4753 = vadd.f32 %v4751, %v4752
  %v4754 = vsel %vm108, %v4668, 0.0
  %v4755 = vadd.f32 %v4753, %v4754
  %v4756 = vsel %vm108, %v4669, 0.0
  %v4757 = vadd.f32 %v4755, %v4756
  %v4758 = vsel %vm108, %v4670, 0.0
  %v4759 = vadd.f32 %v4757, %v4758
  %v4760 = vsel %vm108, %v4671, 0.0
  %v4761 = vadd.f32 %v4759, %v4760
  %v4762 = vsel %vm108, %v4672, 0.0
  %v4763 = vadd.f32 %v4761, %v4762
  %v4764 = vsel %vm108, %v4673, 0.0
  %v4765 = vadd.f32 %v4763, %v4764
  %v4766 = vsel %vm108, %v4674, 0.0
  %v4767 = vadd.f32 %v4765, %v4766
  %v4768 = vsel %vm108, %v4675, 0.0
  %v4769 = vadd.f32 %v4767, %v4768
  %v4770 = vsel %vm108, %v4676, 0.0
  %v4771 = vadd.f32 %v4769, %v4770
  %v4772 = vsel %vm108, %v4677, 0.0
  %v4773 = vadd.f32 %v4771, %v4772
  %v4774 = vsel %vm108, %v4678, 0.0
  %v4775 = vadd.f32 %v4773, %v4774
  %v4776 = vsel %vm108, %v4679, 0.0
  %v4777 = vadd.f32 %v4775, %v4776
  %v4778 = vsel %vm108, %v4680, 0.0
  %v4779 = vadd.f32 %v4777, %v4778
  %v4780 = vsel %vm108, %v4681, 0.0
  %v4781 = vadd.f32 %v4779, %v4780
  %v4782 = vsel %vm108, %v4682, 0.0
  %v4783 = vadd.f32 %v4781, %v4782
  %v4784 = vsel %vm108, %v4683, 0.0
  %v4785 = vadd.f32 %v4783, %v4784
  %v4786 = vsel %vm108, %v4684, 0.0
  %v4787 = vadd.f32 %v4785, %v4786
  %v4788 = vsel %vm108, %v4685, 0.0
  %v4789 = vadd.f32 %v4787, %v4788
  %v4790 = vsel %vm108, %v4686, 0.0
  %v4791 = vadd.f32 %v4789, %v4790
  %v4792 = vsel %vm108, %v4687, 0.0
  %v4793 = vadd.f32 %v4791, %v4792
  %v4794 = vsel %vm108, %v4688, 0.0
  %v4795 = vadd.f32 %v4793, %v4794
  %v4796 = vsel %vm108, %v4689, 0.0
  %v4797 = vadd.f32 %v4795, %v4796
  %v4798 = vsel %vm108, %v4690, 0.0
  %v4799 = vadd.f32 %v4797, %v4798
  %v4800 = vsel %vm108, %v4691, 0.0
  %v4801 = vadd.f32 %v4799, %v4800
  %v4802 = vsel %vm108, %v4692, 0.0
  %v4803 = vadd.f32 %v4801, %v4802
  %v4804 = vsel %vm108, %v4693, 0.0
  %v4805 = vadd.f32 %v4803, %v4804
  %v4806 = vsel %vm108, %v4694, 0.0
  %v4807 = vadd.f32 %v4805, %v4806
  %v4808 = vsel %vm108, %v4695, 0.0
  %v4809 = vadd.f32 %v4807, %v4808
  %v4810 = vsel %vm108, %v4696, 0.0
  %v4811 = vadd.f32 %v4809, %v4810
  %v4812 = vsel %vm108, %v4697, 0.0
  %v4813 = vadd.f32 %v4811, %v4812
  %v4814 = vsel %vm108, %v4698, 0.0
  %v4815 = vadd.f32 %v4813, %v4814
  %v4816 = vsel %vm108, %v4699, 0.0
  %v4817 = vadd.f32 %v4815, %v4816
  %v4818 = vsel %vm108, %v4700, 0.0
  %v4819 = vadd.f32 %v4817, %v4818
  %v4820 = vsel %vm108, %v4701, 0.0
  %v4821 = vadd.f32 %v4819, %v4820
  %v4822 = vsel %vm108, %v4702, 0.0
  %v4823 = vadd.f32 %v4821, %v4822
  %v4824 = vsel %vm108, %v4703, 0.0
  %v4825 = vadd.f32 %v4823, %v4824
  %v4826 = vsel %vm108, %v4704, 0.0
  %v4827 = vadd.f32 %v4825, %v4826
  %v4828 = vsel %vm108, %v4705, 0.0
  %v4829 = vadd.f32 %v4827, %v4828
  %v4830 = vsel %vm108, %v4706, 0.0
  %v4831 = vadd.f32 %v4829, %v4830
  %v4832 = vsel %vm108, %v4707, 0.0
  %v4833 = vadd.f32 %v4831, %v4832
  %v4834 = vsel %vm108, %v4708, 0.0
  %v4835 = vadd.f32 %v4833, %v4834
  %v4836 = vrot.slane %v4835, 4
  %v4837 = vadd.f32 %v4835, %v4836
  %v4838 = vrot.slane %v4837, 2
  %v4839 = vadd.f32 %v4837, %v4838
  %v4840 = vrot.slane %v4839, 1
  %v4841 = vadd.f32 %v4839, %v4840
  %v4842 = vmul.f32 %v4841, 0.001953125
  %v4843 = vmul.f32 %v4644, %v4644
  %v4844 = vsub.f32 %v4842, %v4843
  %v4845 = vsub.f32 %v4320, %v4644
  %v4846 = vsub.f32 %v4323, %v4644
  %v4847 = vsub.f32 %v4326, %v4644
  %v4848 = vsub.f32 %v4329, %v4644
  %v4849 = vsub.f32 %v4332, %v4644
  %v4850 = vsub.f32 %v4335, %v4644
  %v4851 = vsub.f32 %v4338, %v4644
  %v4852 = vsub.f32 %v4341, %v4644
  %v4853 = vsub.f32 %v4344, %v4644
  %v4854 = vsub.f32 %v4347, %v4644
  %v4855 = vsub.f32 %v4350, %v4644
  %v4856 = vsub.f32 %v4353, %v4644
  %v4857 = vsub.f32 %v4356, %v4644
  %v4858 = vsub.f32 %v4359, %v4644
  %v4859 = vsub.f32 %v4362, %v4644
  %v4860 = vsub.f32 %v4365, %v4644
  %v4861 = vsub.f32 %v4368, %v4644
  %v4862 = vsub.f32 %v4371, %v4644
  %v4863 = vsub.f32 %v4374, %v4644
  %v4864 = vsub.f32 %v4377, %v4644
  %v4865 = vsub.f32 %v4380, %v4644
  %v4866 = vsub.f32 %v4383, %v4644
  %v4867 = vsub.f32 %v4386, %v4644
  %v4868 = vsub.f32 %v4389, %v4644
  %v4869 = vsub.f32 %v4392, %v4644
  %v4870 = vsub.f32 %v4395, %v4644
  %v4871 = vsub.f32 %v4398, %v4644
  %v4872 = vsub.f32 %v4401, %v4644
  %v4873 = vsub.f32 %v4404, %v4644
  %v4874 = vsub.f32 %v4407, %v4644
  %v4875 = vsub.f32 %v4410, %v4644
  %v4876 = vsub.f32 %v4413, %v4644
  %v4877 = vsub.f32 %v4416, %v4644
  %v4878 = vsub.f32 %v4419, %v4644
  %v4879 = vsub.f32 %v4422, %v4644
  %v4880 = vsub.f32 %v4425, %v4644
  %v4881 = vsub.f32 %v4428, %v4644
  %v4882 = vsub.f32 %v4431, %v4644
  %v4883 = vsub.f32 %v4434, %v4644
  %v4884 = vsub.f32 %v4437, %v4644
  %v4885 = vsub.f32 %v4440, %v4644
  %v4886 = vsub.f32 %v4443, %v4644
  %v4887 = vsub.f32 %v4446, %v4644
  %v4888 = vsub.f32 %v4449, %v4644
  %v4889 = vsub.f32 %v4452, %v4644
  %v4890 = vsub.f32 %v4455, %v4644
  %v4891 = vsub.f32 %v4458, %v4644
  %v4892 = vsub.f32 %v4461, %v4644
  %v4893 = vsub.f32 %v4464, %v4644
  %v4894 = vsub.f32 %v4467, %v4644
  %v4895 = vsub.f32 %v4470, %v4644
  %v4896 = vsub.f32 %v4473, %v4644
  %v4897 = vsub.f32 %v4476, %v4644
  %v4898 = vsub.f32 %v4479, %v4644
  %v4899 = vsub.f32 %v4482, %v4644
  %v4900 = vsub.f32 %v4485, %v4644
  %v4901 = vsub.f32 %v4488, %v4644
  %v4902 = vsub.f32 %v4491, %v4644
  %v4903 = vsub.f32 %v4494, %v4644
  %v4904 = vsub.f32 %v4497, %v4644
  %v4905 = vsub.f32 %v4500, %v4644
  %v4906 = vsub.f32 %v4503, %v4644
  %v4907 = vsub.f32 %v4506, %v4644
  %v4908 = vsub.f32 %v4509, %v4644
  %v4909 = vadd.f32 %v4844, 1e-05
  %v4910 = vrsqrt.pop %v4909
  %v4911 = vmul.f32 %v4910, %v4909
  %v4912 = vmul.f32 %v4911, %v4910
  %v4913 = vmul.f32 0.5, %v4912
  %v4914 = vsub.f32 1.5, %v4913
  %v4915 = vmul.f32 %v4910, %v4914
  %vm4916 = vweird.f32 %v4909
  %vm4917 = vweird.f32 %v4910
  %vm4918 = vmor %vm4916, %vm4917
  %v4919 = vsel %vm4918, %v4910, %v4915
  %v4920 = vmul.f32 %v4845, %v4919
  %v4921 = vmul.f32 %v4846, %v4919
  %v4922 = vmul.f32 %v4847, %v4919
  %v4923 = vmul.f32 %v4848, %v4919
  %v4924 = vmul.f32 %v4849, %v4919
  %v4925 = vmul.f32 %v4850, %v4919
  %v4926 = vmul.f32 %v4851, %v4919
  %v4927 = vmul.f32 %v4852, %v4919
  %v4928 = vmul.f32 %v4853, %v4919
  %v4929 = vmul.f32 %v4854, %v4919
  %v4930 = vmul.f32 %v4855, %v4919
  %v4931 = vmul.f32 %v4856, %v4919
  %v4932 = vmul.f32 %v4857, %v4919
  %v4933 = vmul.f32 %v4858, %v4919
  %v4934 = vmul.f32 %v4859, %v4919
  %v4935 = vmul.f32 %v4860, %v4919
  %v4936 = vmul.f32 %v4861, %v4919
  %v4937 = vmul.f32 %v4862, %v4919
  %v4938 = vmul.f32 %v4863, %v4919
  %v4939 = vmul.f32 %v4864, %v4919
  %v4940 = vmul.f32 %v4865, %v4919
  %v4941 = vmul.f32 %v4866, %v4919
  %v4942 = vmul.f32 %v4867, %v4919
  %v4943 = vmul.f32 %v4868, %v4919
  %v4944 = vmul.f32 %v4869, %v4919
  %v4945 = vmul.f32 %v4870, %v4919
  %v4946 = vmul.f32 %v4871, %v4919
  %v4947 = vmul.f32 %v4872, %v4919
  %v4948 = vmul.f32 %v4873, %v4919
  %v4949 = vmul.f32 %v4874, %v4919
  %v4950 = vmul.f32 %v4875, %v4919
  %v4951 = vmul.f32 %v4876, %v4919
  %v4952 = vmul.f32 %v4877, %v4919
  %v4953 = vmul.f32 %v4878, %v4919
  %v4954 = vmul.f32 %v4879, %v4919
  %v4955 = vmul.f32 %v4880, %v4919
  %v4956 = vmul.f32 %v4881, %v4919
  %v4957 = vmul.f32 %v4882, %v4919
  %v4958 = vmul.f32 %v4883, %v4919
  %v4959 = vmul.f32 %v4884, %v4919
  %v4960 = vmul.f32 %v4885, %v4919
  %v4961 = vmul.f32 %v4886, %v4919
  %v4962 = vmul.f32 %v4887, %v4919
  %v4963 = vmul.f32 %v4888, %v4919
  %v4964 = vmul.f32 %v4889, %v4919
  %v4965 = vmul.f32 %v4890, %v4919
  %v4966 = vmul.f32 %v4891, %v4919
  %v4967 = vmul.f32 %v4892, %v4919
  %v4968 = vmul.f32 %v4893, %v4919
  %v4969 = vmul.f32 %v4894, %v4919
  %v4970 = vmul.f32 %v4895, %v4919
  %v4971 = vmul.f32 %v4896, %v4919
  %v4972 = vmul.f32 %v4897, %v4919
  %v4973 = vmul.f32 %v4898, %v4919
  %v4974 = vmul.f32 %v4899, %v4919
  %v4975 = vmul.f32 %v4900, %v4919
  %v4976 = vmul.f32 %v4901, %v4919
  %v4977 = vmul.f32 %v4902, %v4919
  %v4978 = vmul.f32 %v4903, %v4919
  %v4979 = vmul.f32 %v4904, %v4919
  %v4980 = vmul.f32 %v4905, %v4919
  %v4981 = vmul.f32 %v4906, %v4919
  %v4982 = vmul.f32 %v4907, %v4919
  %v4983 = vmul.f32 %v4908, %v4919
  %v4984 = vld [vmem:[%s9] sm:$0x1]
  %v4986 = vperm.slane %v4984, 0
  %v4988 = vmul.f32 %v4920, %v4986
  %v4989 = vmul.f32 %v4921, %v4986
  %v4990 = vmul.f32 %v4922, %v4986
  %v4991 = vmul.f32 %v4923, %v4986
  %v4992 = vmul.f32 %v4924, %v4986
  %v4993 = vmul.f32 %v4925, %v4986
  %v4994 = vmul.f32 %v4926, %v4986
  %v4995 = vmul.f32 %v4927, %v4986
  %v4996 = vmul.f32 %v4928, %v4986
  %v4997 = vmul.f32 %v4929, %v4986
  %v4998 = vmul.f32 %v4930, %v4986
  %v4999 = vmul.f32 %v4931, %v4986
  %v5000 = vmul.f32 %v4932, %v4986
  %v5001 = vmul.f32 %v4933, %v4986
  %v5002 = vmul.f32 %v4934, %v4986
  %v5003 = vmul.f32 %v4935, %v4986
  %v5004 = vmul.f32 %v4936, %v4986
  %v5005 = vmul.f32 %v4937, %v4986
  %v5006 = vmul.f32 %v4938, %v4986
  %v5007 = vmul.f32 %v4939, %v4986
  %v5008 = vmul.f32 %v4940, %v4986
  %v5009 = vmul.f32 %v4941, %v4986
  %v5010 = vmul.f32 %v4942, %v4986
  %v5011 = vmul.f32 %v4943, %v4986
  %v5012 = vmul.f32 %v4944, %v4986
  %v5013 = vmul.f32 %v4945, %v4986
  %v5014 = vmul.f32 %v4946, %v4986
  %v5015 = vmul.f32 %v4947, %v4986
  %v5016 = vmul.f32 %v4948, %v4986
  %v5017 = vmul.f32 %v4949, %v4986
  %v5018 = vmul.f32 %v4950, %v4986
  %v5019 = vmul.f32 %v4951, %v4986
  %v5020 = vmul.f32 %v4952, %v4986
  %v5021 = vmul.f32 %v4953, %v4986
  %v5022 = vmul.f32 %v4954, %v4986
  %v5023 = vmul.f32 %v4955, %v4986
  %v5024 = vmul.f32 %v4956, %v4986
  %v5025 = vmul.f32 %v4957, %v4986
  %v5026 = vmul.f32 %v4958, %v4986
  %v5027 = vmul.f32 %v4959, %v4986
  %v5028 = vmul.f32 %v4960, %v4986
  %v5029 = vmul.f32 %v4961, %v4986
  %v5030 = vmul.f32 %v4962, %v4986
  %v5031 = vmul.f32 %v4963, %v4986
  %v5032 = vmul.f32 %v4964, %v4986
  %v5033 = vmul.f32 %v4965, %v4986
  %v5034 = vmul.f32 %v4966, %v4986
  %v5035 = vmul.f32 %v4967, %v4986
  %v5036 = vmul.f32 %v4968, %v4986
  %v5037 = vmul.f32 %v4969, %v4986
  %v5038 = vmul.f32 %v4970, %v4986
  %v5039 = vmul.f32 %v4971, %v4986
  %v5040 = vmul.f32 %v4972, %v4986
  %v5041 = vmul.f32 %v4973, %v4986
  %v5042 = vmul.f32 %v4974, %v4986
  %v5043 = vmul.f32 %v4975, %v4986
  %v5044 = vmul.f32 %v4976, %v4986
  %v5045 = vmul.f32 %v4977, %v4986
  %v5046 = vmul.f32 %v4978, %v4986
  %v5047 = vmul.f32 %v4979, %v4986
  %v5048 = vmul.f32 %v4980, %v4986
  %v5049 = vmul.f32 %v4981, %v4986
  %v5050 = vmul.f32 %v4982, %v4986
  %v5051 = vmul.f32 %v4983, %v4986
  %v5052 = vld [vmem:[%s10] sm:$0x1]
  %v5054 = vperm.slane %v5052, 0
  %v5056 = vadd.f32 %v4988, %v5054
  %v5057 = vadd.f32 %v4989, %v5054
  %v5058 = vadd.f32 %v4990, %v5054
  %v5059 = vadd.f32 %v4991, %v5054
  %v5060 = vadd.f32 %v4992, %v5054
  %v5061 = vadd.f32 %v4993, %v5054
  %v5062 = vadd.f32 %v4994, %v5054
  %v5063 = vadd.f32 %v4995, %v5054
  %v5064 = vadd.f32 %v4996, %v5054
  %v5065 = vadd.f32 %v4997, %v5054
  %v5066 = vadd.f32 %v4998, %v5054
  %v5067 = vadd.f32 %v4999, %v5054
  %v5068 = vadd.f32 %v5000, %v5054
  %v5069 = vadd.f32 %v5001, %v5054
  %v5070 = vadd.f32 %v5002, %v5054
  %v5071 = vadd.f32 %v5003, %v5054
  %v5072 = vadd.f32 %v5004, %v5054
  %v5073 = vadd.f32 %v5005, %v5054
  %v5074 = vadd.f32 %v5006, %v5054
  %v5075 = vadd.f32 %v5007, %v5054
  %v5076 = vadd.f32 %v5008, %v5054
  %v5077 = vadd.f32 %v5009, %v5054
  %v5078 = vadd.f32 %v5010, %v5054
  %v5079 = vadd.f32 %v5011, %v5054
  %v5080 = vadd.f32 %v5012, %v5054
  %v5081 = vadd.f32 %v5013, %v5054
  %v5082 = vadd.f32 %v5014, %v5054
  %v5083 = vadd.f32 %v5015, %v5054
  %v5084 = vadd.f32 %v5016, %v5054
  %v5085 = vadd.f32 %v5017, %v5054
  %v5086 = vadd.f32 %v5018, %v5054
  %v5087 = vadd.f32 %v5019, %v5054
  %v5088 = vadd.f32 %v5020, %v5054
  %v5089 = vadd.f32 %v5021, %v5054
  %v5090 = vadd.f32 %v5022, %v5054
  %v5091 = vadd.f32 %v5023, %v5054
  %v5092 = vadd.f32 %v5024, %v5054
  %v5093 = vadd.f32 %v5025, %v5054
  %v5094 = vadd.f32 %v5026, %v5054
  %v5095 = vadd.f32 %v5027, %v5054
  %v5096 = vadd.f32 %v5028, %v5054
  %v5097 = vadd.f32 %v5029, %v5054
  %v5098 = vadd.f32 %v5030, %v5054
  %v5099 = vadd.f32 %v5031, %v5054
  %v5100 = vadd.f32 %v5032, %v5054
  %v5101 = vadd.f32 %v5033, %v5054
  %v5102 = vadd.f32 %v5034, %v5054
  %v5103 = vadd.f32 %v5035, %v5054
  %v5104 = vadd.f32 %v5036, %v5054
  %v5105 = vadd.f32 %v5037, %v5054
  %v5106 = vadd.f32 %v5038, %v5054
  %v5107 = vadd.f32 %v5039, %v5054
  %v5108 = vadd.f32 %v5040, %v5054
  %v5109 = vadd.f32 %v5041, %v5054
  %v5110 = vadd.f32 %v5042, %v5054
  %v5111 = vadd.f32 %v5043, %v5054
  %v5112 = vadd.f32 %v5044, %v5054
  %v5113 = vadd.f32 %v5045, %v5054
  %v5114 = vadd.f32 %v5046, %v5054
  %v5115 = vadd.f32 %v5047, %v5054
  %v5116 = vadd.f32 %v5048, %v5054
  %v5117 = vadd.f32 %v5049, %v5054
  %v5118 = vadd.f32 %v5050, %v5054
  %v5119 = vadd.f32 %v5051, %v5054
  %v5120 = vmax.f32 %v5056, 0.0
  %v5121 = vmax.f32 %v5057, 0.0
  %v5122 = vmax.f32 %v5058, 0.0
  %v5123 = vmax.f32 %v5059, 0.0
  %v5124 = vmax.f32 %v5060, 0.0
  %v5125 = vmax.f32 %v5061, 0.0
  %v5126 = vmax.f32 %v5062, 0.0
  %v5127 = vmax.f32 %v5063, 0.0
  %v5128 = vmax.f32 %v5064, 0.0
  %v5129 = vmax.f32 %v5065, 0.0
  %v5130 = vmax.f32 %v5066, 0.0
  %v5131 = vmax.f32 %v5067, 0.0
  %v5132 = vmax.f32 %v5068, 0.0
  %v5133 = vmax.f32 %v5069, 0.0
  %v5134 = vmax.f32 %v5070, 0.0
  %v5135 = vmax.f32 %v5071, 0.0
  %v5136 = vmax.f32 %v5072, 0.0
  %v5137 = vmax.f32 %v5073, 0.0
  %v5138 = vmax.f32 %v5074, 0.0
  %v5139 = vmax.f32 %v5075, 0.0
  %v5140 = vmax.f32 %v5076, 0.0
  %v5141 = vmax.f32 %v5077, 0.0
  %v5142 = vmax.f32 %v5078, 0.0
  %v5143 = vmax.f32 %v5079, 0.0
  %v5144 = vmax.f32 %v5080, 0.0
  %v5145 = vmax.f32 %v5081, 0.0
  %v5146 = vmax.f32 %v5082, 0.0
  %v5147 = vmax.f32 %v5083, 0.0
  %v5148 = vmax.f32 %v5084, 0.0
  %v5149 = vmax.f32 %v5085, 0.0
  %v5150 = vmax.f32 %v5086, 0.0
  %v5151 = vmax.f32 %v5087, 0.0
  %v5152 = vmax.f32 %v5088, 0.0
  %v5153 = vmax.f32 %v5089, 0.0
  %v5154 = vmax.f32 %v5090, 0.0
  %v5155 = vmax.f32 %v5091, 0.0
  %v5156 = vmax.f32 %v5092, 0.0
  %v5157 = vmax.f32 %v5093, 0.0
  %v5158 = vmax.f32 %v5094, 0.0
  %v5159 = vmax.f32 %v5095, 0.0
  %v5160 = vmax.f32 %v5096, 0.0
  %v5161 = vmax.f32 %v5097, 0.0
  %v5162 = vmax.f32 %v5098, 0.0
  %v5163 = vmax.f32 %v5099, 0.0
  %v5164 = vmax.f32 %v5100, 0.0
  %v5165 = vmax.f32 %v5101, 0.0
  %v5166 = vmax.f32 %v5102, 0.0
  %v5167 = vmax.f32 %v5103, 0.0
  %v5168 = vmax.f32 %v5104, 0.0
  %v5169 = vmax.f32 %v5105, 0.0
  %v5170 = vmax.f32 %v5106, 0.0
  %v5171 = vmax.f32 %v5107, 0.0
  %v5172 = vmax.f32 %v5108, 0.0
  %v5173 = vmax.f32 %v5109, 0.0
  %v5174 = vmax.f32 %v5110, 0.0
  %v5175 = vmax.f32 %v5111, 0.0
  %v5176 = vmax.f32 %v5112, 0.0
  %v5177 = vmax.f32 %v5113, 0.0
  %v5178 = vmax.f32 %v5114, 0.0
  %v5179 = vmax.f32 %v5115, 0.0
  %v5180 = vmax.f32 %v5116, 0.0
  %v5181 = vmax.f32 %v5117, 0.0
  %v5182 = vmax.f32 %v5118, 0.0
  %v5183 = vmax.f32 %v5119, 0.0
  %5184 = vst.msk [vmem:[#allocation3] sm:$0xff] %vm108, 0.0
  %5185 = vst.msk [vmem:[#allocation3 + $0x8] sm:$0xff] %vm108, 0.0
  %5186 = vst.msk [vmem:[#allocation3 + $0x10] sm:$0x3] %vm784, 0.0
  %5187 = vst.msk [vmem:[#allocation3 + $0x18] sm:$0xff] %vm108, 0.0
  %5188 = vst.msk [vmem:[#allocation3 + $0x20] sm:$0xff] %vm108, 0.0
  %5189 = vst.msk [vmem:[#allocation3 + $0x28] sm:$0x3] %vm784, 0.0
  %5190 = vst.msk [vmem:[#allocation3 + $0x30] sm:$0xff] %vm108, 0.0
  %5191 = vst.msk [vmem:[#allocation3 + $0x38] sm:$0xff] %vm108, 0.0
  %5192 = vst.msk [vmem:[#allocation3 + $0x40] sm:$0x3] %vm784, 0.0
  %5193 = vst.msk [vmem:[#allocation3 + $0x48] sm:$0xff] %vm108, 0.0
  %5194 = vst.msk [vmem:[#allocation3 + $0x50] sm:$0xff] %vm108, 0.0
  %5195 = vst.msk [vmem:[#allocation3 + $0x58] sm:$0x3] %vm784, 0.0
  %5196 = vst.msk [vmem:[#allocation3 + $0x60] sm:$0xff] %vm108, 0.0
  %5197 = vst.msk [vmem:[#allocation3 + $0x68] sm:$0xff] %vm108, 0.0
  %5198 = vst.msk [vmem:[#allocation3 + $0x70] sm:$0x3] %vm784, 0.0
  %5199 = vst.msk [vmem:[#allocation3 + $0x78] sm:$0xff] %vm108, 0.0
  %5200 = vst.msk [vmem:[#allocation3 + $0x80] sm:$0xff] %vm108, 0.0
  %5201 = vst.msk [vmem:[#allocation3 + $0x88] sm:$0x3] %vm784, 0.0
  %5202 = vst.msk [vmem:[#allocation3 + $0x90] sm:$0xff] %vm108, 0.0
  %5203 = vst.msk [vmem:[#allocation3 + $0x98] sm:$0xff] %vm108, 0.0
  %5204 = vst.msk [vmem:[#allocation3 + $0xa0] sm:$0x3] %vm784, 0.0
  %5205 = vst.msk [vmem:[#allocation3 + $0xa8] sm:$0xff] %vm108, 0.0
  %5206 = vst.msk [vmem:[#allocation3 + $0xb0] sm:$0xff] %vm108, 0.0
  %5207 = vst.msk [vmem:[#allocation3 + $0xb8] sm:$0x3] %vm784, 0.0
  %5208 = vst.msk [vmem:[#allocation3 + $0xc0] sm:$0xff] %vm108, 0.0
  %5209 = vst.msk [vmem:[#allocation3 + $0xc8] sm:$0xff] %vm108, 0.0
  %5210 = vst.msk [vmem:[#allocation3 + $0xd0] sm:$0x3] %vm784, 0.0
  %5211 = vst.msk [vmem:[#allocation3 + $0xd8] sm:$0xff] %vm108, 0.0
  %5212 = vst.msk [vmem:[#allocation3 + $0xe0] sm:$0xff] %vm108, 0.0
  %5213 = vst.msk [vmem:[#allocation3 + $0xe8] sm:$0x3] %vm784, 0.0
  %5214 = vst.msk [vmem:[#allocation3 + $0xf0] sm:$0xff] %vm108, 0.0
  %5215 = vst.msk [vmem:[#allocation3 + $0xf8] sm:$0xff] %vm108, 0.0
  %5216 = vst.msk [vmem:[#allocation3 + $0x100] sm:$0x3] %vm784, 0.0
  %5217 = vst.msk [vmem:[#allocation3 + $0x108] sm:$0xff] %vm108, 0.0
  %5218 = vst.msk [vmem:[#allocation3 + $0x110] sm:$0xff] %vm108, 0.0
  %5219 = vst.msk [vmem:[#allocation3 + $0x118] sm:$0x3] %vm784, 0.0
  %5220 = vst.msk [vmem:[#allocation3 + $0x120] sm:$0xff] %vm108, 0.0
  %5221 = vst.msk [vmem:[#allocation3 + $0x128] sm:$0xff] %vm108, 0.0
  %5222 = vst.msk [vmem:[#allocation3 + $0x130] sm:$0x3] %vm784, 0.0
  %5223 = vst.msk [vmem:[#allocation3 + $0x138] sm:$0xff] %vm108, 0.0
  %5224 = vst.msk [vmem:[#allocation3 + $0x140] sm:$0xff] %vm108, 0.0
  %5225 = vst.msk [vmem:[#allocation3 + $0x148] sm:$0x3] %vm784, 0.0
  %5226 = vst.msk [vmem:[#allocation3 + $0x150] sm:$0xff] %vm108, 0.0
  %5227 = vst.msk [vmem:[#allocation3 + $0x158] sm:$0xff] %vm108, 0.0
  %5228 = vst.msk [vmem:[#allocation3 + $0x160] sm:$0x3] %vm784, 0.0
  %5229 = vst.msk [vmem:[#allocation3 + $0x168] sm:$0xff] %vm108, 0.0
  %5230 = vst.msk [vmem:[#allocation3 + $0x170] sm:$0xff] %vm108, 0.0
  %5231 = vst.msk [vmem:[#allocation3 + $0x178] sm:$0x3] %vm784, 0.0
  %5232 = vst.msk [vmem:[#allocation3 + $0x180] sm:$0xff] %vm108, 0.0
  %5233 = vst.msk [vmem:[#allocation3 + $0x188] sm:$0xff] %vm108, 0.0
  %5234 = vst.msk [vmem:[#allocation3 + $0x190] sm:$0x3] %vm784, 0.0
  %5235 = vst.msk [vmem:[#allocation3 + $0x198] sm:$0xff] %vm108, 0.0
  %5236 = vst.msk [vmem:[#allocation3 + $0x1a0] sm:$0xff] %vm108, 0.0
  %5237 = vst.msk [vmem:[#allocation3 + $0x1a8] sm:$0x3] %vm784, 0.0
  %5238 = vst.msk [vmem:[#allocation3 + $0x1b0] sm:$0xff] %vm108, 0.0
  %5239 = vst.msk [vmem:[#allocation3 + $0x1b8] sm:$0xff] %vm108, 0.0
  %5240 = vst.msk [vmem:[#allocation3 + $0x1c0] sm:$0x3] %vm784, 0.0
  %5241 = vst.msk [vmem:[#allocation3 + $0x1c8] sm:$0xff] %vm108, 0.0
  %5242 = vst.msk [vmem:[#allocation3 + $0x1d0] sm:$0xff] %vm108, 0.0
  %5243 = vst.msk [vmem:[#allocation3 + $0x1d8] sm:$0x3] %vm784, 0.0
  %5244 = vst.msk [vmem:[#allocation3 + $0x1e0] sm:$0xff] %vm108, 0.0
  %5245 = vst.msk [vmem:[#allocation3 + $0x1e8] sm:$0xff] %vm108, 0.0
  %5246 = vst.msk [vmem:[#allocation3 + $0x1f0] sm:$0x3] %vm784, 0.0
  %5247 = vst.msk [vmem:[#allocation3 + $0x1f8] sm:$0xff] %vm108, 0.0
  %5248 = vst.msk [vmem:[#allocation3 + $0x200] sm:$0xff] %vm108, 0.0
  %5249 = vst.msk [vmem:[#allocation3 + $0x208] sm:$0x3] %vm784, 0.0
  %5250 = vst.msk [vmem:[#allocation3 + $0x210] sm:$0xff] %vm108, 0.0
  %5251 = vst.msk [vmem:[#allocation3 + $0x218] sm:$0xff] %vm108, 0.0
  %5252 = vst.msk [vmem:[#allocation3 + $0x220] sm:$0x3] %vm784, 0.0
  %5253 = vst.msk [vmem:[#allocation3 + $0x228] sm:$0xff] %vm108, 0.0
  %5254 = vst.msk [vmem:[#allocation3 + $0x230] sm:$0xff] %vm108, 0.0
  %5255 = vst.msk [vmem:[#allocation3 + $0x238] sm:$0x3] %vm784, 0.0
  %5256 = vst.msk [vmem:[#allocation3 + $0x240] sm:$0xff] %vm108, 0.0
  %5257 = vst.msk [vmem:[#allocation3 + $0x248] sm:$0xff] %vm108, 0.0
  %5258 = vst.msk [vmem:[#allocation3 + $0x250] sm:$0x3] %vm784, 0.0
  %5259 = vst.msk [vmem:[#allocation3 + $0x258] sm:$0xff] %vm108, 0.0
  %5260 = vst.msk [vmem:[#allocation3 + $0x260] sm:$0xff] %vm108, 0.0
  %5261 = vst.msk [vmem:[#allocation3 + $0x268] sm:$0x3] %vm784, 0.0
  %5262 = vst.msk [vmem:[#allocation3 + $0x270] sm:$0xff] %vm108, 0.0
  %5263 = vst.msk [vmem:[#allocation3 + $0x278] sm:$0xff] %vm108, 0.0
  %5264 = vst.msk [vmem:[#allocation3 + $0x280] sm:$0x3] %vm784, 0.0
  %5265 = vst.msk [vmem:[#allocation3 + $0x288] sm:$0xff] %vm108, 0.0
  %5266 = vst.msk [vmem:[#allocation3 + $0x290] sm:$0xff] %vm108, 0.0
  %5267 = vst.msk [vmem:[#allocation3 + $0x298] sm:$0x3] %vm784, 0.0
  %5268 = vst.msk [vmem:[#allocation3 + $0x2a0] sm:$0xff] %vm108, 0.0
  %5269 = vst.msk [vmem:[#allocation3 + $0x2a8] sm:$0xff] %vm108, 0.0
  %5270 = vst.msk [vmem:[#allocation3 + $0x2b0] sm:$0x3] %vm784, 0.0
  %5271 = vst.msk [vmem:[#allocation3 + $0x2b8] sm:$0xff] %vm108, 0.0
  %5272 = vst.msk [vmem:[#allocation3 + $0x2c0] sm:$0xff] %vm108, 0.0
  %5273 = vst.msk [vmem:[#allocation3 + $0x2c8] sm:$0x3] %vm784, 0.0
  %5274 = vst.msk [vmem:[#allocation3 + $0x2d0] sm:$0xff] %vm108, 0.0
  %5275 = vst.msk [vmem:[#allocation3 + $0x2d8] sm:$0xff] %vm108, 0.0
  %5276 = vst.msk [vmem:[#allocation3 + $0x2e0] sm:$0x3] %vm784, 0.0
  %5277 = vst.msk [vmem:[#allocation3 + $0x2e8] sm:$0xff] %vm108, 0.0
  %5278 = vst.msk [vmem:[#allocation3 + $0x2f0] sm:$0xff] %vm108, 0.0
  %5279 = vst.msk [vmem:[#allocation3 + $0x2f8] sm:$0x3] %vm784, 0.0
  %5280 = vst.msk [vmem:[#allocation3 + $0x300] sm:$0xff] %vm108, 0.0
  %5281 = vst.msk [vmem:[#allocation3 + $0x308] sm:$0xff] %vm108, 0.0
  %5282 = vst.msk [vmem:[#allocation3 + $0x310] sm:$0x3] %vm784, 0.0
  %5283 = vst.msk [vmem:[#allocation3 + $0x318] sm:$0xff] %vm108, 0.0
  %5284 = vst.msk [vmem:[#allocation3 + $0x320] sm:$0xff] %vm108, 0.0
  %5285 = vst.msk [vmem:[#allocation3 + $0x328] sm:$0x3] %vm784, 0.0
  %5286 = vst.msk [vmem:[#allocation3 + $0x330] sm:$0xff] %vm108, 0.0
  %5287 = vst.msk [vmem:[#allocation3 + $0x338] sm:$0xff] %vm108, 0.0
  %5288 = vst.msk [vmem:[#allocation3 + $0x340] sm:$0x3] %vm784, 0.0
  %5289 = vst.msk [vmem:[#allocation3 + $0x348] sm:$0xff] %vm108, 0.0
  %5290 = vst.msk [vmem:[#allocation3 + $0x350] sm:$0xff] %vm108, 0.0
  %5291 = vst.msk [vmem:[#allocation3 + $0x358] sm:$0x3] %vm784, 0.0
  %s5292 = scalar_lea.vmem [#allocation3], 24
  %5293 = vst.msk [vmem:[%s5292 + $0x1] sm:$0xff] %vm108, %v5120
  %5294 = vst.msk [vmem:[%s5292 + $0x9] sm:$0xff] %vm108, %v5121
  %5295 = vst.msk [vmem:[%s5292 + $0x19] sm:$0xff] %vm108, %v5122
  %5296 = vst.msk [vmem:[%s5292 + $0x21] sm:$0xff] %vm108, %v5123
  %5297 = vst.msk [vmem:[%s5292 + $0x31] sm:$0xff] %vm108, %v5124
  %5298 = vst.msk [vmem:[%s5292 + $0x39] sm:$0xff] %vm108, %v5125
  %5299 = vst.msk [vmem:[%s5292 + $0x49] sm:$0xff] %vm108, %v5126
  %5300 = vst.msk [vmem:[%s5292 + $0x51] sm:$0xff] %vm108, %v5127
  %5301 = vst.msk [vmem:[%s5292 + $0x61] sm:$0xff] %vm108, %v5128
  %5302 = vst.msk [vmem:[%s5292 + $0x69] sm:$0xff] %vm108, %v5129
  %5303 = vst.msk [vmem:[%s5292 + $0x79] sm:$0xff] %vm108, %v5130
  %5304 = vst.msk [vmem:[%s5292 + $0x81] sm:$0xff] %vm108, %v5131
  %5305 = vst.msk [vmem:[%s5292 + $0x91] sm:$0xff] %vm108, %v5132
  %5306 = vst.msk [vmem:[%s5292 + $0x99] sm:$0xff] %vm108, %v5133
  %5307 = vst.msk [vmem:[%s5292 + $0xa9] sm:$0xff] %vm108, %v5134
  %5308 = vst.msk [vmem:[%s5292 + $0xb1] sm:$0xff] %vm108, %v5135
  %5309 = vst.msk [vmem:[%s5292 + $0xc1] sm:$0xff] %vm108, %v5136
  %5310 = vst.msk [vmem:[%s5292 + $0xc9] sm:$0xff] %vm108, %v5137
  %5311 = vst.msk [vmem:[%s5292 + $0xd9] sm:$0xff] %vm108, %v5138
  %5312 = vst.msk [vmem:[%s5292 + $0xe1] sm:$0xff] %vm108, %v5139
  %5313 = vst.msk [vmem:[%s5292 + $0xf1] sm:$0xff] %vm108, %v5140
  %5314 = vst.msk [vmem:[%s5292 + $0xf9] sm:$0xff] %vm108, %v5141
  %5315 = vst.msk [vmem:[%s5292 + $0x109] sm:$0xff] %vm108, %v5142
  %5316 = vst.msk [vmem:[%s5292 + $0x111] sm:$0xff] %vm108, %v5143
  %5317 = vst.msk [vmem:[%s5292 + $0x121] sm:$0xff] %vm108, %v5144
  %5318 = vst.msk [vmem:[%s5292 + $0x129] sm:$0xff] %vm108, %v5145
  %5319 = vst.msk [vmem:[%s5292 + $0x139] sm:$0xff] %vm108, %v5146
  %5320 = vst.msk [vmem:[%s5292 + $0x141] sm:$0xff] %vm108, %v5147
  %5321 = vst.msk [vmem:[%s5292 + $0x151] sm:$0xff] %vm108, %v5148
  %5322 = vst.msk [vmem:[%s5292 + $0x159] sm:$0xff] %vm108, %v5149
  %5323 = vst.msk [vmem:[%s5292 + $0x169] sm:$0xff] %vm108, %v5150
  %5324 = vst.msk [vmem:[%s5292 + $0x171] sm:$0xff] %vm108, %v5151
  %5325 = vst.msk [vmem:[%s5292 + $0x1b1] sm:$0xff] %vm108, %v5152
  %5326 = vst.msk [vmem:[%s5292 + $0x1b9] sm:$0xff] %vm108, %v5153
  %5327 = vst.msk [vmem:[%s5292 + $0x1c9] sm:$0xff] %vm108, %v5154
  %5328 = vst.msk [vmem:[%s5292 + $0x1d1] sm:$0xff] %vm108, %v5155
  %5329 = vst.msk [vmem:[%s5292 + $0x1e1] sm:$0xff] %vm108, %v5156
  %5330 = vst.msk [vmem:[%s5292 + $0x1e9] sm:$0xff] %vm108, %v5157
  %5331 = vst.msk [vmem:[%s5292 + $0x1f9] sm:$0xff] %vm108, %v5158
  %5332 = vst.msk [vmem:[%s5292 + $0x201] sm:$0xff] %vm108, %v5159
  %5333 = vst.msk [vmem:[%s5292 + $0x211] sm:$0xff] %vm108, %v5160
  %5334 = vst.msk [vmem:[%s5292 + $0x219] sm:$0xff] %vm108, %v5161
  %5335 = vst.msk [vmem:[%s5292 + $0x229] sm:$0xff] %vm108, %v5162
  %5336 = vst.msk [vmem:[%s5292 + $0x231] sm:$0xff] %vm108, %v5163
  %5337 = vst.msk [vmem:[%s5292 + $0x241] sm:$0xff] %vm108, %v5164
  %5338 = vst.msk [vmem:[%s5292 + $0x249] sm:$0xff] %vm108, %v5165
  %5339 = vst.msk [vmem:[%s5292 + $0x259] sm:$0xff] %vm108, %v5166
  %5340 = vst.msk [vmem:[%s5292 + $0x261] sm:$0xff] %vm108, %v5167
  %5341 = vst.msk [vmem:[%s5292 + $0x271] sm:$0xff] %vm108, %v5168
  %5342 = vst.msk [vmem:[%s5292 + $0x279] sm:$0xff] %vm108, %v5169
  %5343 = vst.msk [vmem:[%s5292 + $0x289] sm:$0xff] %vm108, %v5170
  %5344 = vst.msk [vmem:[%s5292 + $0x291] sm:$0xff] %vm108, %v5171
  %5345 = vst.msk [vmem:[%s5292 + $0x2a1] sm:$0xff] %vm108, %v5172
  %5346 = vst.msk [vmem:[%s5292 + $0x2a9] sm:$0xff] %vm108, %v5173
  %5347 = vst.msk [vmem:[%s5292 + $0x2b9] sm:$0xff] %vm108, %v5174
  %5348 = vst.msk [vmem:[%s5292 + $0x2c1] sm:$0xff] %vm108, %v5175
  %5349 = vst.msk [vmem:[%s5292 + $0x2d1] sm:$0xff] %vm108, %v5176
  %5350 = vst.msk [vmem:[%s5292 + $0x2d9] sm:$0xff] %vm108, %v5177
  %5351 = vst.msk [vmem:[%s5292 + $0x2e9] sm:$0xff] %vm108, %v5178
  %5352 = vst.msk [vmem:[%s5292 + $0x2f1] sm:$0xff] %vm108, %v5179
  %5353 = vst.msk [vmem:[%s5292 + $0x301] sm:$0xff] %vm108, %v5180
  %5354 = vst.msk [vmem:[%s5292 + $0x309] sm:$0xff] %vm108, %v5181
  %5355 = vst.msk [vmem:[%s5292 + $0x319] sm:$0xff] %vm108, %v5182
  %5356 = vst.msk [vmem:[%s5292 + $0x321] sm:$0xff] %vm108, %v5183
  %v5357 = vld [vmem:[#allocation3] sm:$0xff]
  %v5358 = vld [vmem:[#allocation3 + $0x8] sm:$0xff]
  %v5359 = vld [vmem:[#allocation3 + $0x18] sm:$0xff]
  %v5360 = vld [vmem:[#allocation3 + $0x20] sm:$0xff]
  %v5361 = vld [vmem:[#allocation3 + $0x30] sm:$0xff]
  %v5362 = vld [vmem:[#allocation3 + $0x38] sm:$0xff]
  %v5363 = vld [vmem:[#allocation3 + $0x48] sm:$0xff]
  %v5364 = vld [vmem:[#allocation3 + $0x50] sm:$0xff]
  %v5365 = vld [vmem:[#allocation3 + $0x60] sm:$0xff]
  %v5366 = vld [vmem:[#allocation3 + $0x68] sm:$0xff]
  %v5367 = vld [vmem:[#allocation3 + $0x78] sm:$0xff]
  %v5368 = vld [vmem:[#allocation3 + $0x80] sm:$0xff]
  %v5369 = vld [vmem:[#allocation3 + $0x90] sm:$0xff]
  %v5370 = vld [vmem:[#allocation3 + $0x98] sm:$0xff]
  %v5371 = vld [vmem:[#allocation3 + $0xa8] sm:$0xff]
  %v5372 = vld [vmem:[#allocation3 + $0xb0] sm:$0xff]
  %v5373 = vld [vmem:[#allocation3 + $0xc0] sm:$0xff]
  %v5374 = vld [vmem:[#allocation3 + $0xc8] sm:$0xff]
  %v5375 = vld [vmem:[#allocation3 + $0xd8] sm:$0xff]
  %v5376 = vld [vmem:[#allocation3 + $0xe0] sm:$0xff]
  %v5377 = vld [vmem:[#allocation3 + $0xf0] sm:$0xff]
  %v5378 = vld [vmem:[#allocation3 + $0xf8] sm:$0xff]
  %v5379 = vld [vmem:[#allocation3 + $0x108] sm:$0xff]
  %v5380 = vld [vmem:[#allocation3 + $0x110] sm:$0xff]
  %v5381 = vld [vmem:[#allocation3 + $0x120] sm:$0xff]
  %v5382 = vld [vmem:[#allocation3 + $0x128] sm:$0xff]
  %v5383 = vld [vmem:[#allocation3 + $0x138] sm:$0xff]
  %v5384 = vld [vmem:[#allocation3 + $0x140] sm:$0xff]
  %v5385 = vld [vmem:[#allocation3 + $0x150] sm:$0xff]
  %v5386 = vld [vmem:[#allocation3 + $0x158] sm:$0xff]
  %v5387 = vld [vmem:[#allocation3 + $0x168] sm:$0xff]
  %v5388 = vld [vmem:[#allocation3 + $0x170] sm:$0xff]
  %v5389 = vld [vmem:[#allocation3 + $0x1b0] sm:$0xff]
  %v5390 = vld [vmem:[#allocation3 + $0x1b8] sm:$0xff]
  %v5391 = vld [vmem:[#allocation3 + $0x1c8] sm:$0xff]
  %v5392 = vld [vmem:[#allocation3 + $0x1d0] sm:$0xff]
  %v5393 = vld [vmem:[#allocation3 + $0x1e0] sm:$0xff]
  %v5394 = vld [vmem:[#allocation3 + $0x1e8] sm:$0xff]
  %v5395 = vld [vmem:[#allocation3 + $0x1f8] sm:$0xff]
  %v5396 = vld [vmem:[#allocation3 + $0x200] sm:$0xff]
  %v5397 = vld [vmem:[#allocation3 + $0x210] sm:$0xff]
  %v5398 = vld [vmem:[#allocation3 + $0x218] sm:$0xff]
  %v5399 = vld [vmem:[#allocation3 + $0x228] sm:$0xff]
  %v5400 = vld [vmem:[#allocation3 + $0x230] sm:$0xff]
  %v5401 = vld [vmem:[#allocation3 + $0x240] sm:$0xff]
  %v5402 = vld [vmem:[#allocation3 + $0x248] sm:$0xff]
  %v5403 = vld [vmem:[#allocation3 + $0x258] sm:$0xff]
  %v5404 = vld [vmem:[#allocation3 + $0x260] sm:$0xff]
  %v5405 = vld [vmem:[#allocation3 + $0x270] sm:$0xff]
  %v5406 = vld [vmem:[#allocation3 + $0x278] sm:$0xff]
  %v5407 = vld [vmem:[#allocation3 + $0x288] sm:$0xff]
  %v5408 = vld [vmem:[#allocation3 + $0x290] sm:$0xff]
  %v5409 = vld [vmem:[#allocation3 + $0x2a0] sm:$0xff]
  %v5410 = vld [vmem:[#allocation3 + $0x2a8] sm:$0xff]
  %v5411 = vld [vmem:[#allocation3 + $0x2b8] sm:$0xff]
  %v5412 = vld [vmem:[#allocation3 + $0x2c0] sm:$0xff]
  %v5413 = vld [vmem:[#allocation3 + $0x2d0] sm:$0xff]
  %v5414 = vld [vmem:[#allocation3 + $0x2d8] sm:$0xff]
  %v5415 = vld [vmem:[#allocation3 + $0x2e8] sm:$0xff]
  %v5416 = vld [vmem:[#allocation3 + $0x2f0] sm:$0xff]
  %v5417 = vld [vmem:[#allocation3 + $0x300] sm:$0xff]
  %v5418 = vld [vmem:[#allocation3 + $0x308] sm:$0xff]
  %v5419 = vld [vmem:[#allocation3 + $0x318] sm:$0xff]
  %v5420 = vld [vmem:[#allocation3 + $0x320] sm:$0xff]
  %v5421 = vld [vmem:[#allocation3 + $0x1] sm:$0xff]
  %v5422 = vld [vmem:[#allocation3 + $0x9] sm:$0xff]
  %v5423 = vld [vmem:[#allocation3 + $0x19] sm:$0xff]
  %v5424 = vld [vmem:[#allocation3 + $0x21] sm:$0xff]
  %v5425 = vld [vmem:[#allocation3 + $0x31] sm:$0xff]
  %v5426 = vld [vmem:[#allocation3 + $0x39] sm:$0xff]
  %v5427 = vld [vmem:[#allocation3 + $0x49] sm:$0xff]
  %v5428 = vld [vmem:[#allocation3 + $0x51] sm:$0xff]
  %v5429 = vld [vmem:[#allocation3 + $0x61] sm:$0xff]
  %v5430 = vld [vmem:[#allocation3 + $0x69] sm:$0xff]
  %v5431 = vld [vmem:[#allocation3 + $0x79] sm:$0xff]
  %v5432 = vld [vmem:[#allocation3 + $0x81] sm:$0xff]
  %v5433 = vld [vmem:[#allocation3 + $0x91] sm:$0xff]
  %v5434 = vld [vmem:[#allocation3 + $0x99] sm:$0xff]
  %v5435 = vld [vmem:[#allocation3 + $0xa9] sm:$0xff]
  %v5436 = vld [vmem:[#allocation3 + $0xb1] sm:$0xff]
  %v5437 = vld [vmem:[#allocation3 + $0xc1] sm:$0xff]
  %v5438 = vld [vmem:[#allocation3 + $0xc9] sm:$0xff]
  %v5439 = vld [vmem:[#allocation3 + $0xd9] sm:$0xff]
  %v5440 = vld [vmem:[#allocation3 + $0xe1] sm:$0xff]
  %v5441 = vld [vmem:[#allocation3 + $0xf1] sm:$0xff]
  %v5442 = vld [vmem:[#allocation3 + $0xf9] sm:$0xff]
  %v5443 = vld [vmem:[#allocation3 + $0x109] sm:$0xff]
  %v5444 = vld [vmem:[#allocation3 + $0x111] sm:$0xff]
  %v5445 = vld [vmem:[#allocation3 + $0x121] sm:$0xff]
  %v5446 = vld [vmem:[#allocation3 + $0x129] sm:$0xff]
  %v5447 = vld [vmem:[#allocation3 + $0x139] sm:$0xff]
  %v5448 = vld [vmem:[#allocation3 + $0x141] sm:$0xff]
  %v5449 = vld [vmem:[#allocation3 + $0x151] sm:$0xff]
  %v5450 = vld [vmem:[#allocation3 + $0x159] sm:$0xff]
  %v5451 = vld [vmem:[#allocation3 + $0x169] sm:$0xff]
  %v5452 = vld [vmem:[#allocation3 + $0x171] sm:$0xff]
  %v5453 = vld [vmem:[#allocation3 + $0x1b1] sm:$0xff]
  %v5454 = vld [vmem:[#allocation3 + $0x1b9] sm:$0xff]
  %v5455 = vld [vmem:[#allocation3 + $0x1c9] sm:$0xff]
  %v5456 = vld [vmem:[#allocation3 + $0x1d1] sm:$0xff]
  %v5457 = vld [vmem:[#allocation3 + $0x1e1] sm:$0xff]
  %v5458 = vld [vmem:[#allocation3 + $0x1e9] sm:$0xff]
  %v5459 = vld [vmem:[#allocation3 + $0x1f9] sm:$0xff]
  %v5460 = vld [vmem:[#allocation3 + $0x201] sm:$0xff]
  %v5461 = vld [vmem:[#allocation3 + $0x211] sm:$0xff]
  %v5462 = vld [vmem:[#allocation3 + $0x219] sm:$0xff]
  %v5463 = vld [vmem:[#allocation3 + $0x229] sm:$0xff]
  %v5464 = vld [vmem:[#allocation3 + $0x231] sm:$0xff]
  %v5465 = vld [vmem:[#allocation3 + $0x241] sm:$0xff]
  %v5466 = vld [vmem:[#allocation3 + $0x249] sm:$0xff]
  %v5467 = vld [vmem:[#allocation3 + $0x259] sm:$0xff]
  %v5468 = vld [vmem:[#allocation3 + $0x261] sm:$0xff]
  %v5469 = vld [vmem:[#allocation3 + $0x271] sm:$0xff]
  %v5470 = vld [vmem:[#allocation3 + $0x279] sm:$0xff]
  %v5471 = vld [vmem:[#allocation3 + $0x289] sm:$0xff]
  %v5472 = vld [vmem:[#allocation3 + $0x291] sm:$0xff]
  %v5473 = vld [vmem:[#allocation3 + $0x2a1] sm:$0xff]
  %v5474 = vld [vmem:[#allocation3 + $0x2a9] sm:$0xff]
  %v5475 = vld [vmem:[#allocation3 + $0x2b9] sm:$0xff]
  %v5476 = vld [vmem:[#allocation3 + $0x2c1] sm:$0xff]
  %v5477 = vld [vmem:[#allocation3 + $0x2d1] sm:$0xff]
  %v5478 = vld [vmem:[#allocation3 + $0x2d9] sm:$0xff]
  %v5479 = vld [vmem:[#allocation3 + $0x2e9] sm:$0xff]
  %v5480 = vld [vmem:[#allocation3 + $0x2f1] sm:$0xff]
  %v5481 = vld [vmem:[#allocation3 + $0x301] sm:$0xff]
  %v5482 = vld [vmem:[#allocation3 + $0x309] sm:$0xff]
  %v5483 = vld [vmem:[#allocation3 + $0x319] sm:$0xff]
  %v5484 = vld [vmem:[#allocation3 + $0x321] sm:$0xff]
  %v5485 = vld [vmem:[#allocation3 + $0x2] sm:$0xff]
  %v5486 = vld [vmem:[#allocation3 + $0xa] sm:$0xff]
  %v5487 = vld [vmem:[#allocation3 + $0x1a] sm:$0xff]
  %v5488 = vld [vmem:[#allocation3 + $0x22] sm:$0xff]
  %v5489 = vld [vmem:[#allocation3 + $0x32] sm:$0xff]
  %v5490 = vld [vmem:[#allocation3 + $0x3a] sm:$0xff]
  %v5491 = vld [vmem:[#allocation3 + $0x4a] sm:$0xff]
  %v5492 = vld [vmem:[#allocation3 + $0x52] sm:$0xff]
  %v5493 = vld [vmem:[#allocation3 + $0x62] sm:$0xff]
  %v5494 = vld [vmem:[#allocation3 + $0x6a] sm:$0xff]
  %v5495 = vld [vmem:[#allocation3 + $0x7a] sm:$0xff]
  %v5496 = vld [vmem:[#allocation3 + $0x82] sm:$0xff]
  %v5497 = vld [vmem:[#allocation3 + $0x92] sm:$0xff]
  %v5498 = vld [vmem:[#allocation3 + $0x9a] sm:$0xff]
  %v5499 = vld [vmem:[#allocation3 + $0xaa] sm:$0xff]
  %v5500 = vld [vmem:[#allocation3 + $0xb2] sm:$0xff]
  %v5501 = vld [vmem:[#allocation3 + $0xc2] sm:$0xff]
  %v5502 = vld [vmem:[#allocation3 + $0xca] sm:$0xff]
  %v5503 = vld [vmem:[#allocation3 + $0xda] sm:$0xff]
  %v5504 = vld [vmem:[#allocation3 + $0xe2] sm:$0xff]
  %v5505 = vld [vmem:[#allocation3 + $0xf2] sm:$0xff]
  %v5506 = vld [vmem:[#allocation3 + $0xfa] sm:$0xff]
  %v5507 = vld [vmem:[#allocation3 + $0x10a] sm:$0xff]
  %v5508 = vld [vmem:[#allocation3 + $0x112] sm:$0xff]
  %v5509 = vld [vmem:[#allocation3 + $0x122] sm:$0xff]
  %v5510 = vld [vmem:[#allocation3 + $0x12a] sm:$0xff]
  %v5511 = vld [vmem:[#allocation3 + $0x13a] sm:$0xff]
  %v5512 = vld [vmem:[#allocation3 + $0x142] sm:$0xff]
  %v5513 = vld [vmem:[#allocation3 + $0x152] sm:$0xff]
  %v5514 = vld [vmem:[#allocation3 + $0x15a] sm:$0xff]
  %v5515 = vld [vmem:[#allocation3 + $0x16a] sm:$0xff]
  %v5516 = vld [vmem:[#allocation3 + $0x172] sm:$0xff]
  %v5517 = vld [vmem:[#allocation3 + $0x1b2] sm:$0xff]
  %v5518 = vld [vmem:[#allocation3 + $0x1ba] sm:$0xff]
  %v5519 = vld [vmem:[#allocation3 + $0x1ca] sm:$0xff]
  %v5520 = vld [vmem:[#allocation3 + $0x1d2] sm:$0xff]
  %v5521 = vld [vmem:[#allocation3 + $0x1e2] sm:$0xff]
  %v5522 = vld [vmem:[#allocation3 + $0x1ea] sm:$0xff]
  %v5523 = vld [vmem:[#allocation3 + $0x1fa] sm:$0xff]
  %v5524 = vld [vmem:[#allocation3 + $0x202] sm:$0xff]
  %v5525 = vld [vmem:[#allocation3 + $0x212] sm:$0xff]
  %v5526 = vld [vmem:[#allocation3 + $0x21a] sm:$0xff]
  %v5527 = vld [vmem:[#allocation3 + $0x22a] sm:$0xff]
  %v5528 = vld [vmem:[#allocation3 + $0x232] sm:$0xff]
  %v5529 = vld [vmem:[#allocation3 + $0x242] sm:$0xff]
  %v5530 = vld [vmem:[#allocation3 + $0x24a] sm:$0xff]
  %v5531 = vld [vmem:[#allocation3 + $0x25a] sm:$0xff]
  %v5532 = vld [vmem:[#allocation3 + $0x262] sm:$0xff]
  %v5533 = vld [vmem:[#allocation3 + $0x272] sm:$0xff]
  %v5534 = vld [vmem:[#allocation3 + $0x27a] sm:$0xff]
  %v5535 = vld [vmem:[#allocation3 + $0x28a] sm:$0xff]
  %v5536 = vld [vmem:[#allocation3 + $0x292] sm:$0xff]
  %v5537 = vld [vmem:[#allocation3 + $0x2a2] sm:$0xff]
  %v5538 = vld [vmem:[#allocation3 + $0x2aa] sm:$0xff]
  %v5539 = vld [vmem:[#allocation3 + $0x2ba] sm:$0xff]
  %v5540 = vld [vmem:[#allocation3 + $0x2c2] sm:$0xff]
  %v5541 = vld [vmem:[#allocation3 + $0x2d2] sm:$0xff]
  %v5542 = vld [vmem:[#allocation3 + $0x2da] sm:$0xff]
  %v5543 = vld [vmem:[#allocation3 + $0x2ea] sm:$0xff]
  %v5544 = vld [vmem:[#allocation3 + $0x2f2] sm:$0xff]
  %v5545 = vld [vmem:[#allocation3 + $0x302] sm:$0xff]
  %v5546 = vld [vmem:[#allocation3 + $0x30a] sm:$0xff]
  %v5547 = vld [vmem:[#allocation3 + $0x31a] sm:$0xff]
  %v5548 = vld [vmem:[#allocation3 + $0x322] sm:$0xff]
  %v5549 = vld [vmem:[%s5292] sm:$0xff]
  %v5550 = vld [vmem:[%s5292 + $0x8] sm:$0xff]
  %v5551 = vld [vmem:[%s5292 + $0x18] sm:$0xff]
  %v5552 = vld [vmem:[%s5292 + $0x20] sm:$0xff]
  %v5553 = vld [vmem:[%s5292 + $0x30] sm:$0xff]
  %v5554 = vld [vmem:[%s5292 + $0x38] sm:$0xff]
  %v5555 = vld [vmem:[%s5292 + $0x48] sm:$0xff]
  %v5556 = vld [vmem:[%s5292 + $0x50] sm:$0xff]
  %v5557 = vld [vmem:[%s5292 + $0x60] sm:$0xff]
  %v5558 = vld [vmem:[%s5292 + $0x68] sm:$0xff]
  %v5559 = vld [vmem:[%s5292 + $0x78] sm:$0xff]
  %v5560 = vld [vmem:[%s5292 + $0x80] sm:$0xff]
  %v5561 = vld [vmem:[%s5292 + $0x90] sm:$0xff]
  %v5562 = vld [vmem:[%s5292 + $0x98] sm:$0xff]
  %v5563 = vld [vmem:[%s5292 + $0xa8] sm:$0xff]
  %v5564 = vld [vmem:[%s5292 + $0xb0] sm:$0xff]
  %v5565 = vld [vmem:[%s5292 + $0xc0] sm:$0xff]
  %v5566 = vld [vmem:[%s5292 + $0xc8] sm:$0xff]
  %v5567 = vld [vmem:[%s5292 + $0xd8] sm:$0xff]
  %v5568 = vld [vmem:[%s5292 + $0xe0] sm:$0xff]
  %v5569 = vld [vmem:[%s5292 + $0xf0] sm:$0xff]
  %v5570 = vld [vmem:[%s5292 + $0xf8] sm:$0xff]
  %v5571 = vld [vmem:[%s5292 + $0x108] sm:$0xff]
  %v5572 = vld [vmem:[%s5292 + $0x110] sm:$0xff]
  %v5573 = vld [vmem:[%s5292 + $0x120] sm:$0xff]
  %v5574 = vld [vmem:[%s5292 + $0x128] sm:$0xff]
  %v5575 = vld [vmem:[%s5292 + $0x138] sm:$0xff]
  %v5576 = vld [vmem:[%s5292 + $0x140] sm:$0xff]
  %v5577 = vld [vmem:[%s5292 + $0x150] sm:$0xff]
  %v5578 = vld [vmem:[%s5292 + $0x158] sm:$0xff]
  %v5579 = vld [vmem:[%s5292 + $0x168] sm:$0xff]
  %v5580 = vld [vmem:[%s5292 + $0x170] sm:$0xff]
  %v5581 = vld [vmem:[%s5292 + $0x1b0] sm:$0xff]
  %v5582 = vld [vmem:[%s5292 + $0x1b8] sm:$0xff]
  %v5583 = vld [vmem:[%s5292 + $0x1c8] sm:$0xff]
  %v5584 = vld [vmem:[%s5292 + $0x1d0] sm:$0xff]
  %v5585 = vld [vmem:[%s5292 + $0x1e0] sm:$0xff]
  %v5586 = vld [vmem:[%s5292 + $0x1e8] sm:$0xff]
  %v5587 = vld [vmem:[%s5292 + $0x1f8] sm:$0xff]
  %v5588 = vld [vmem:[%s5292 + $0x200] sm:$0xff]
  %v5589 = vld [vmem:[%s5292 + $0x210] sm:$0xff]
  %v5590 = vld [vmem:[%s5292 + $0x218] sm:$0xff]
  %v5591 = vld [vmem:[%s5292 + $0x228] sm:$0xff]
  %v5592 = vld [vmem:[%s5292 + $0x230] sm:$0xff]
  %v5593 = vld [vmem:[%s5292 + $0x240] sm:$0xff]
  %v5594 = vld [vmem:[%s5292 + $0x248] sm:$0xff]
  %v5595 = vld [vmem:[%s5292 + $0x258] sm:$0xff]
  %v5596 = vld [vmem:[%s5292 + $0x260] sm:$0xff]
  %v5597 = vld [vmem:[%s5292 + $0x270] sm:$0xff]
  %v5598 = vld [vmem:[%s5292 + $0x278] sm:$0xff]
  %v5599 = vld [vmem:[%s5292 + $0x288] sm:$0xff]
  %v5600 = vld [vmem:[%s5292 + $0x290] sm:$0xff]
  %v5601 = vld [vmem:[%s5292 + $0x2a0] sm:$0xff]
  %v5602 = vld [vmem:[%s5292 + $0x2a8] sm:$0xff]
  %v5603 = vld [vmem:[%s5292 + $0x2b8] sm:$0xff]
  %v5604 = vld [vmem:[%s5292 + $0x2c0] sm:$0xff]
  %v5605 = vld [vmem:[%s5292 + $0x2d0] sm:$0xff]
  %v5606 = vld [vmem:[%s5292 + $0x2d8] sm:$0xff]
  %v5607 = vld [vmem:[%s5292 + $0x2e8] sm:$0xff]
  %v5608 = vld [vmem:[%s5292 + $0x2f0] sm:$0xff]
  %v5609 = vld [vmem:[%s5292 + $0x300] sm:$0xff]
  %v5610 = vld [vmem:[%s5292 + $0x308] sm:$0xff]
  %v5611 = vld [vmem:[%s5292 + $0x318] sm:$0xff]
  %v5612 = vld [vmem:[%s5292 + $0x320] sm:$0xff]
  %v5613 = vld [vmem:[%s5292 + $0x1] sm:$0xff]
  %v5614 = vld [vmem:[%s5292 + $0x9] sm:$0xff]
  %v5615 = vld [vmem:[%s5292 + $0x19] sm:$0xff]
  %v5616 = vld [vmem:[%s5292 + $0x21] sm:$0xff]
  %v5617 = vld [vmem:[%s5292 + $0x31] sm:$0xff]
  %v5618 = vld [vmem:[%s5292 + $0x39] sm:$0xff]
  %v5619 = vld [vmem:[%s5292 + $0x49] sm:$0xff]
  %v5620 = vld [vmem:[%s5292 + $0x51] sm:$0xff]
  %v5621 = vld [vmem:[%s5292 + $0x61] sm:$0xff]
  %v5622 = vld [vmem:[%s5292 + $0x69] sm:$0xff]
  %v5623 = vld [vmem:[%s5292 + $0x79] sm:$0xff]
  %v5624 = vld [vmem:[%s5292 + $0x81] sm:$0xff]
  %v5625 = vld [vmem:[%s5292 + $0x91] sm:$0xff]
  %v5626 = vld [vmem:[%s5292 + $0x99] sm:$0xff]
  %v5627 = vld [vmem:[%s5292 + $0xa9] sm:$0xff]
  %v5628 = vld [vmem:[%s5292 + $0xb1] sm:$0xff]
  %v5629 = vld [vmem:[%s5292 + $0xc1] sm:$0xff]
  %v5630 = vld [vmem:[%s5292 + $0xc9] sm:$0xff]
  %v5631 = vld [vmem:[%s5292 + $0xd9] sm:$0xff]
  %v5632 = vld [vmem:[%s5292 + $0xe1] sm:$0xff]
  %v5633 = vld [vmem:[%s5292 + $0xf1] sm:$0xff]
  %v5634 = vld [vmem:[%s5292 + $0xf9] sm:$0xff]
  %v5635 = vld [vmem:[%s5292 + $0x109] sm:$0xff]
  %v5636 = vld [vmem:[%s5292 + $0x111] sm:$0xff]
  %v5637 = vld [vmem:[%s5292 + $0x121] sm:$0xff]
  %v5638 = vld [vmem:[%s5292 + $0x129] sm:$0xff]
  %v5639 = vld [vmem:[%s5292 + $0x139] sm:$0xff]
  %v5640 = vld [vmem:[%s5292 + $0x141] sm:$0xff]
  %v5641 = vld [vmem:[%s5292 + $0x151] sm:$0xff]
  %v5642 = vld [vmem:[%s5292 + $0x159] sm:$0xff]
  %v5643 = vld [vmem:[%s5292 + $0x169] sm:$0xff]
  %v5644 = vld [vmem:[%s5292 + $0x171] sm:$0xff]
  %v5645 = vld [vmem:[%s5292 + $0x1b1] sm:$0xff]
  %v5646 = vld [vmem:[%s5292 + $0x1b9] sm:$0xff]
  %v5647 = vld [vmem:[%s5292 + $0x1c9] sm:$0xff]
  %v5648 = vld [vmem:[%s5292 + $0x1d1] sm:$0xff]
  %v5649 = vld [vmem:[%s5292 + $0x1e1] sm:$0xff]
  %v5650 = vld [vmem:[%s5292 + $0x1e9] sm:$0xff]
  %v5651 = vld [vmem:[%s5292 + $0x1f9] sm:$0xff]
  %v5652 = vld [vmem:[%s5292 + $0x201] sm:$0xff]
  %v5653 = vld [vmem:[%s5292 + $0x211] sm:$0xff]
  %v5654 = vld [vmem:[%s5292 + $0x219] sm:$0xff]
  %v5655 = vld [vmem:[%s5292 + $0x229] sm:$0xff]
  %v5656 = vld [vmem:[%s5292 + $0x231] sm:$0xff]
  %v5657 = vld [vmem:[%s5292 + $0x241] sm:$0xff]
  %v5658 = vld [vmem:[%s5292 + $0x249] sm:$0xff]
  %v5659 = vld [vmem:[%s5292 + $0x259] sm:$0xff]
  %v5660 = vld [vmem:[%s5292 + $0x261] sm:$0xff]
  %v5661 = vld [vmem:[%s5292 + $0x271] sm:$0xff]
  %v5662 = vld [vmem:[%s5292 + $0x279] sm:$0xff]
  %v5663 = vld [vmem:[%s5292 + $0x289] sm:$0xff]
  %v5664 = vld [vmem:[%s5292 + $0x291] sm:$0xff]
  %v5665 = vld [vmem:[%s5292 + $0x2a1] sm:$0xff]
  %v5666 = vld [vmem:[%s5292 + $0x2a9] sm:$0xff]
  %v5667 = vld [vmem:[%s5292 + $0x2b9] sm:$0xff]
  %v5668 = vld [vmem:[%s5292 + $0x2c1] sm:$0xff]
  %v5669 = vld [vmem:[%s5292 + $0x2d1] sm:$0xff]
  %v5670 = vld [vmem:[%s5292 + $0x2d9] sm:$0xff]
  %v5671 = vld [vmem:[%s5292 + $0x2e9] sm:$0xff]
  %v5672 = vld [vmem:[%s5292 + $0x2f1] sm:$0xff]
  %v5673 = vld [vmem:[%s5292 + $0x301] sm:$0xff]
  %v5674 = vld [vmem:[%s5292 + $0x309] sm:$0xff]
  %v5675 = vld [vmem:[%s5292 + $0x319] sm:$0xff]
  %v5676 = vld [vmem:[%s5292 + $0x321] sm:$0xff]
  %v5677 = vld [vmem:[%s5292 + $0x2] sm:$0xff]
  %v5678 = vld [vmem:[%s5292 + $0xa] sm:$0xff]
  %v5679 = vld [vmem:[%s5292 + $0x1a] sm:$0xff]
  %v5680 = vld [vmem:[%s5292 + $0x22] sm:$0xff]
  %v5681 = vld [vmem:[%s5292 + $0x32] sm:$0xff]
  %v5682 = vld [vmem:[%s5292 + $0x3a] sm:$0xff]
  %v5683 = vld [vmem:[%s5292 + $0x4a] sm:$0xff]
  %v5684 = vld [vmem:[%s5292 + $0x52] sm:$0xff]
  %v5685 = vld [vmem:[%s5292 + $0x62] sm:$0xff]
  %v5686 = vld [vmem:[%s5292 + $0x6a] sm:$0xff]
  %v5687 = vld [vmem:[%s5292 + $0x7a] sm:$0xff]
  %v5688 = vld [vmem:[%s5292 + $0x82] sm:$0xff]
  %v5689 = vld [vmem:[%s5292 + $0x92] sm:$0xff]
  %v5690 = vld [vmem:[%s5292 + $0x9a] sm:$0xff]
  %v5691 = vld [vmem:[%s5292 + $0xaa] sm:$0xff]
  %v5692 = vld [vmem:[%s5292 + $0xb2] sm:$0xff]
  %v5693 = vld [vmem:[%s5292 + $0xc2] sm:$0xff]
  %v5694 = vld [vmem:[%s5292 + $0xca] sm:$0xff]
  %v5695 = vld [vmem:[%s5292 + $0xda] sm:$0xff]
  %v5696 = vld [vmem:[%s5292 + $0xe2] sm:$0xff]
  %v5697 = vld [vmem:[%s5292 + $0xf2] sm:$0xff]
  %v5698 = vld [vmem:[%s5292 + $0xfa] sm:$0xff]
  %v5699 = vld [vmem:[%s5292 + $0x10a] sm:$0xff]
  %v5700 = vld [vmem:[%s5292 + $0x112] sm:$0xff]
  %v5701 = vld [vmem:[%s5292 + $0x122] sm:$0xff]
  %v5702 = vld [vmem:[%s5292 + $0x12a] sm:$0xff]
  %v5703 = vld [vmem:[%s5292 + $0x13a] sm:$0xff]
  %v5704 = vld [vmem:[%s5292 + $0x142] sm:$0xff]
  %v5705 = vld [vmem:[%s5292 + $0x152] sm:$0xff]
  %v5706 = vld [vmem:[%s5292 + $0x15a] sm:$0xff]
  %v5707 = vld [vmem:[%s5292 + $0x16a] sm:$0xff]
  %v5708 = vld [vmem:[%s5292 + $0x172] sm:$0xff]
  %v5709 = vld [vmem:[%s5292 + $0x1b2] sm:$0xff]
  %v5710 = vld [vmem:[%s5292 + $0x1ba] sm:$0xff]
  %v5711 = vld [vmem:[%s5292 + $0x1ca] sm:$0xff]
  %v5712 = vld [vmem:[%s5292 + $0x1d2] sm:$0xff]
  %v5713 = vld [vmem:[%s5292 + $0x1e2] sm:$0xff]
  %v5714 = vld [vmem:[%s5292 + $0x1ea] sm:$0xff]
  %v5715 = vld [vmem:[%s5292 + $0x1fa] sm:$0xff]
  %v5716 = vld [vmem:[%s5292 + $0x202] sm:$0xff]
  %v5717 = vld [vmem:[%s5292 + $0x212] sm:$0xff]
  %v5718 = vld [vmem:[%s5292 + $0x21a] sm:$0xff]
  %v5719 = vld [vmem:[%s5292 + $0x22a] sm:$0xff]
  %v5720 = vld [vmem:[%s5292 + $0x232] sm:$0xff]
  %v5721 = vld [vmem:[%s5292 + $0x242] sm:$0xff]
  %v5722 = vld [vmem:[%s5292 + $0x24a] sm:$0xff]
  %v5723 = vld [vmem:[%s5292 + $0x25a] sm:$0xff]
  %v5724 = vld [vmem:[%s5292 + $0x262] sm:$0xff]
  %v5725 = vld [vmem:[%s5292 + $0x272] sm:$0xff]
  %v5726 = vld [vmem:[%s5292 + $0x27a] sm:$0xff]
  %v5727 = vld [vmem:[%s5292 + $0x28a] sm:$0xff]
  %v5728 = vld [vmem:[%s5292 + $0x292] sm:$0xff]
  %v5729 = vld [vmem:[%s5292 + $0x2a2] sm:$0xff]
  %v5730 = vld [vmem:[%s5292 + $0x2aa] sm:$0xff]
  %v5731 = vld [vmem:[%s5292 + $0x2ba] sm:$0xff]
  %v5732 = vld [vmem:[%s5292 + $0x2c2] sm:$0xff]
  %v5733 = vld [vmem:[%s5292 + $0x2d2] sm:$0xff]
  %v5734 = vld [vmem:[%s5292 + $0x2da] sm:$0xff]
  %v5735 = vld [vmem:[%s5292 + $0x2ea] sm:$0xff]
  %v5736 = vld [vmem:[%s5292 + $0x2f2] sm:$0xff]
  %v5737 = vld [vmem:[%s5292 + $0x302] sm:$0xff]
  %v5738 = vld [vmem:[%s5292 + $0x30a] sm:$0xff]
  %v5739 = vld [vmem:[%s5292 + $0x31a] sm:$0xff]
  %v5740 = vld [vmem:[%s5292 + $0x322] sm:$0xff]
  %s5741 = scalar_lea.vmem [#allocation3], 48
  %v5742 = vld [vmem:[%s5741] sm:$0xff]
  %v5743 = vld [vmem:[%s5741 + $0x8] sm:$0xff]
  %v5744 = vld [vmem:[%s5741 + $0x18] sm:$0xff]
  %v5745 = vld [vmem:[%s5741 + $0x20] sm:$0xff]
  %v5746 = vld [vmem:[%s5741 + $0x30] sm:$0xff]
  %v5747 = vld [vmem:[%s5741 + $0x38] sm:$0xff]
  %v5748 = vld [vmem:[%s5741 + $0x48] sm:$0xff]
  %v5749 = vld [vmem:[%s5741 + $0x50] sm:$0xff]
  %v5750 = vld [vmem:[%s5741 + $0x60] sm:$0xff]
  %v5751 = vld [vmem:[%s5741 + $0x68] sm:$0xff]
  %v5752 = vld [vmem:[%s5741 + $0x78] sm:$0xff]
  %v5753 = vld [vmem:[%s5741 + $0x80] sm:$0xff]
  %v5754 = vld [vmem:[%s5741 + $0x90] sm:$0xff]
  %v5755 = vld [vmem:[%s5741 + $0x98] sm:$0xff]
  %v5756 = vld [vmem:[%s5741 + $0xa8] sm:$0xff]
  %v5757 = vld [vmem:[%s5741 + $0xb0] sm:$0xff]
  %v5758 = vld [vmem:[%s5741 + $0xc0] sm:$0xff]
  %v5759 = vld [vmem:[%s5741 + $0xc8] sm:$0xff]
  %v5760 = vld [vmem:[%s5741 + $0xd8] sm:$0xff]
  %v5761 = vld [vmem:[%s5741 + $0xe0] sm:$0xff]
  %v5762 = vld [vmem:[%s5741 + $0xf0] sm:$0xff]
  %v5763 = vld [vmem:[%s5741 + $0xf8] sm:$0xff]
  %v5764 = vld [vmem:[%s5741 + $0x108] sm:$0xff]
  %v5765 = vld [vmem:[%s5741 + $0x110] sm:$0xff]
  %v5766 = vld [vmem:[%s5741 + $0x120] sm:$0xff]
  %v5767 = vld [vmem:[%s5741 + $0x128] sm:$0xff]
  %v5768 = vld [vmem:[%s5741 + $0x138] sm:$0xff]
  %v5769 = vld [vmem:[%s5741 + $0x140] sm:$0xff]
  %v5770 = vld [vmem:[%s5741 + $0x150] sm:$0xff]
  %v5771 = vld [vmem:[%s5741 + $0x158] sm:$0xff]
  %v5772 = vld [vmem:[%s5741 + $0x168] sm:$0xff]
  %v5773 = vld [vmem:[%s5741 + $0x170] sm:$0xff]
  %v5774 = vld [vmem:[%s5741 + $0x1b0] sm:$0xff]
  %v5775 = vld [vmem:[%s5741 + $0x1b8] sm:$0xff]
  %v5776 = vld [vmem:[%s5741 + $0x1c8] sm:$0xff]
  %v5777 = vld [vmem:[%s5741 + $0x1d0] sm:$0xff]
  %v5778 = vld [vmem:[%s5741 + $0x1e0] sm:$0xff]
  %v5779 = vld [vmem:[%s5741 + $0x1e8] sm:$0xff]
  %v5780 = vld [vmem:[%s5741 + $0x1f8] sm:$0xff]
  %v5781 = vld [vmem:[%s5741 + $0x200] sm:$0xff]
  %v5782 = vld [vmem:[%s5741 + $0x210] sm:$0xff]
  %v5783 = vld [vmem:[%s5741 + $0x218] sm:$0xff]
  %v5784 = vld [vmem:[%s5741 + $0x228] sm:$0xff]
  %v5785 = vld [vmem:[%s5741 + $0x230] sm:$0xff]
  %v5786 = vld [vmem:[%s5741 + $0x240] sm:$0xff]
  %v5787 = vld [vmem:[%s5741 + $0x248] sm:$0xff]
  %v5788 = vld [vmem:[%s5741 + $0x258] sm:$0xff]
  %v5789 = vld [vmem:[%s5741 + $0x260] sm:$0xff]
  %v5790 = vld [vmem:[%s5741 + $0x270] sm:$0xff]
  %v5791 = vld [vmem:[%s5741 + $0x278] sm:$0xff]
  %v5792 = vld [vmem:[%s5741 + $0x288] sm:$0xff]
  %v5793 = vld [vmem:[%s5741 + $0x290] sm:$0xff]
  %v5794 = vld [vmem:[%s5741 + $0x2a0] sm:$0xff]
  %v5795 = vld [vmem:[%s5741 + $0x2a8] sm:$0xff]
  %v5796 = vld [vmem:[%s5741 + $0x2b8] sm:$0xff]
  %v5797 = vld [vmem:[%s5741 + $0x2c0] sm:$0xff]
  %v5798 = vld [vmem:[%s5741 + $0x2d0] sm:$0xff]
  %v5799 = vld [vmem:[%s5741 + $0x2d8] sm:$0xff]
  %v5800 = vld [vmem:[%s5741 + $0x2e8] sm:$0xff]
  %v5801 = vld [vmem:[%s5741 + $0x2f0] sm:$0xff]
  %v5802 = vld [vmem:[%s5741 + $0x300] sm:$0xff]
  %v5803 = vld [vmem:[%s5741 + $0x308] sm:$0xff]
  %v5804 = vld [vmem:[%s5741 + $0x318] sm:$0xff]
  %v5805 = vld [vmem:[%s5741 + $0x320] sm:$0xff]
  %v5806 = vld [vmem:[%s5741 + $0x1] sm:$0xff]
  %v5807 = vld [vmem:[%s5741 + $0x9] sm:$0xff]
  %v5808 = vld [vmem:[%s5741 + $0x19] sm:$0xff]
  %v5809 = vld [vmem:[%s5741 + $0x21] sm:$0xff]
  %v5810 = vld [vmem:[%s5741 + $0x31] sm:$0xff]
  %v5811 = vld [vmem:[%s5741 + $0x39] sm:$0xff]
  %v5812 = vld [vmem:[%s5741 + $0x49] sm:$0xff]
  %v5813 = vld [vmem:[%s5741 + $0x51] sm:$0xff]
  %v5814 = vld [vmem:[%s5741 + $0x61] sm:$0xff]
  %v5815 = vld [vmem:[%s5741 + $0x69] sm:$0xff]
  %v5816 = vld [vmem:[%s5741 + $0x79] sm:$0xff]
  %v5817 = vld [vmem:[%s5741 + $0x81] sm:$0xff]
  %v5818 = vld [vmem:[%s5741 + $0x91] sm:$0xff]
  %v5819 = vld [vmem:[%s5741 + $0x99] sm:$0xff]
  %v5820 = vld [vmem:[%s5741 + $0xa9] sm:$0xff]
  %v5821 = vld [vmem:[%s5741 + $0xb1] sm:$0xff]
  %v5822 = vld [vmem:[%s5741 + $0xc1] sm:$0xff]
  %v5823 = vld [vmem:[%s5741 + $0xc9] sm:$0xff]
  %v5824 = vld [vmem:[%s5741 + $0xd9] sm:$0xff]
  %v5825 = vld [vmem:[%s5741 + $0xe1] sm:$0xff]
  %v5826 = vld [vmem:[%s5741 + $0xf1] sm:$0xff]
  %v5827 = vld [vmem:[%s5741 + $0xf9] sm:$0xff]
  %v5828 = vld [vmem:[%s5741 + $0x109] sm:$0xff]
  %v5829 = vld [vmem:[%s5741 + $0x111] sm:$0xff]
  %v5830 = vld [vmem:[%s5741 + $0x121] sm:$0xff]
  %v5831 = vld [vmem:[%s5741 + $0x129] sm:$0xff]
  %v5832 = vld [vmem:[%s5741 + $0x139] sm:$0xff]
  %v5833 = vld [vmem:[%s5741 + $0x141] sm:$0xff]
  %v5834 = vld [vmem:[%s5741 + $0x151] sm:$0xff]
  %v5835 = vld [vmem:[%s5741 + $0x159] sm:$0xff]
  %v5836 = vld [vmem:[%s5741 + $0x169] sm:$0xff]
  %v5837 = vld [vmem:[%s5741 + $0x171] sm:$0xff]
  %v5838 = vld [vmem:[%s5741 + $0x1b1] sm:$0xff]
  %v5839 = vld [vmem:[%s5741 + $0x1b9] sm:$0xff]
  %v5840 = vld [vmem:[%s5741 + $0x1c9] sm:$0xff]
  %v5841 = vld [vmem:[%s5741 + $0x1d1] sm:$0xff]
  %v5842 = vld [vmem:[%s5741 + $0x1e1] sm:$0xff]
  %v5843 = vld [vmem:[%s5741 + $0x1e9] sm:$0xff]
  %v5844 = vld [vmem:[%s5741 + $0x1f9] sm:$0xff]
  %v5845 = vld [vmem:[%s5741 + $0x201] sm:$0xff]
  %v5846 = vld [vmem:[%s5741 + $0x211] sm:$0xff]
  %v5847 = vld [vmem:[%s5741 + $0x219] sm:$0xff]
  %v5848 = vld [vmem:[%s5741 + $0x229] sm:$0xff]
  %v5849 = vld [vmem:[%s5741 + $0x231] sm:$0xff]
  %v5850 = vld [vmem:[%s5741 + $0x241] sm:$0xff]
  %v5851 = vld [vmem:[%s5741 + $0x249] sm:$0xff]
  %v5852 = vld [vmem:[%s5741 + $0x259] sm:$0xff]
  %v5853 = vld [vmem:[%s5741 + $0x261] sm:$0xff]
  %v5854 = vld [vmem:[%s5741 + $0x271] sm:$0xff]
  %v5855 = vld [vmem:[%s5741 + $0x279] sm:$0xff]
  %v5856 = vld [vmem:[%s5741 + $0x289] sm:$0xff]
  %v5857 = vld [vmem:[%s5741 + $0x291] sm:$0xff]
  %v5858 = vld [vmem:[%s5741 + $0x2a1] sm:$0xff]
  %v5859 = vld [vmem:[%s5741 + $0x2a9] sm:$0xff]
  %v5860 = vld [vmem:[%s5741 + $0x2b9] sm:$0xff]
  %v5861 = vld [vmem:[%s5741 + $0x2c1] sm:$0xff]
  %v5862 = vld [vmem:[%s5741 + $0x2d1] sm:$0xff]
  %v5863 = vld [vmem:[%s5741 + $0x2d9] sm:$0xff]
  %v5864 = vld [vmem:[%s5741 + $0x2e9] sm:$0xff]
  %v5865 = vld [vmem:[%s5741 + $0x2f1] sm:$0xff]
  %v5866 = vld [vmem:[%s5741 + $0x301] sm:$0xff]
  %v5867 = vld [vmem:[%s5741 + $0x309] sm:$0xff]
  %v5868 = vld [vmem:[%s5741 + $0x319] sm:$0xff]
  %v5869 = vld [vmem:[%s5741 + $0x321] sm:$0xff]
  %v5870 = vld [vmem:[%s5741 + $0x2] sm:$0xff]
  %v5871 = vld [vmem:[%s5741 + $0xa] sm:$0xff]
  %v5872 = vld [vmem:[%s5741 + $0x1a] sm:$0xff]
  %v5873 = vld [vmem:[%s5741 + $0x22] sm:$0xff]
  %v5874 = vld [vmem:[%s5741 + $0x32] sm:$0xff]
  %v5875 = vld [vmem:[%s5741 + $0x3a] sm:$0xff]
  %v5876 = vld [vmem:[%s5741 + $0x4a] sm:$0xff]
  %v5877 = vld [vmem:[%s5741 + $0x52] sm:$0xff]
  %v5878 = vld [vmem:[%s5741 + $0x62] sm:$0xff]
  %v5879 = vld [vmem:[%s5741 + $0x6a] sm:$0xff]
  %v5880 = vld [vmem:[%s5741 + $0x7a] sm:$0xff]
  %v5881 = vld [vmem:[%s5741 + $0x82] sm:$0xff]
  %v5882 = vld [vmem:[%s5741 + $0x92] sm:$0xff]
  %v5883 = vld [vmem:[%s5741 + $0x9a] sm:$0xff]
  %v5884 = vld [vmem:[%s5741 + $0xaa] sm:$0xff]
  %v5885 = vld [vmem:[%s5741 + $0xb2] sm:$0xff]
  %v5886 = vld [vmem:[%s5741 + $0xc2] sm:$0xff]
  %v5887 = vld [vmem:[%s5741 + $0xca] sm:$0xff]
  %v5888 = vld [vmem:[%s5741 + $0xda] sm:$0xff]
  %v5889 = vld [vmem:[%s5741 + $0xe2] sm:$0xff]
  %v5890 = vld [vmem:[%s5741 + $0xf2] sm:$0xff]
  %v5891 = vld [vmem:[%s5741 + $0xfa] sm:$0xff]
  %v5892 = vld [vmem:[%s5741 + $0x10a] sm:$0xff]
  %v5893 = vld [vmem:[%s5741 + $0x112] sm:$0xff]
  %v5894 = vld [vmem:[%s5741 + $0x122] sm:$0xff]
  %v5895 = vld [vmem:[%s5741 + $0x12a] sm:$0xff]
  %v5896 = vld [vmem:[%s5741 + $0x13a] sm:$0xff]
  %v5897 = vld [vmem:[%s5741 + $0x142] sm:$0xff]
  %v5898 = vld [vmem:[%s5741 + $0x152] sm:$0xff]
  %v5899 = vld [vmem:[%s5741 + $0x15a] sm:$0xff]
  %v5900 = vld [vmem:[%s5741 + $0x16a] sm:$0xff]
  %v5901 = vld [vmem:[%s5741 + $0x172] sm:$0xff]
  %v5902 = vld [vmem:[%s5741 + $0x1b2] sm:$0xff]
  %v5903 = vld [vmem:[%s5741 + $0x1ba] sm:$0xff]
  %v5904 = vld [vmem:[%s5741 + $0x1ca] sm:$0xff]
  %v5905 = vld [vmem:[%s5741 + $0x1d2] sm:$0xff]
  %v5906 = vld [vmem:[%s5741 + $0x1e2] sm:$0xff]
  %v5907 = vld [vmem:[%s5741 + $0x1ea] sm:$0xff]
  %v5908 = vld [vmem:[%s5741 + $0x1fa] sm:$0xff]
  %v5909 = vld [vmem:[%s5741 + $0x202] sm:$0xff]
  %v5910 = vld [vmem:[%s5741 + $0x212] sm:$0xff]
  %v5911 = vld [vmem:[%s5741 + $0x21a] sm:$0xff]
  %v5912 = vld [vmem:[%s5741 + $0x22a] sm:$0xff]
  %v5913 = vld [vmem:[%s5741 + $0x232] sm:$0xff]
  %v5914 = vld [vmem:[%s5741 + $0x242] sm:$0xff]
  %v5915 = vld [vmem:[%s5741 + $0x24a] sm:$0xff]
  %v5916 = vld [vmem:[%s5741 + $0x25a] sm:$0xff]
  %v5917 = vld [vmem:[%s5741 + $0x262] sm:$0xff]
  %v5918 = vld [vmem:[%s5741 + $0x272] sm:$0xff]
  %v5919 = vld [vmem:[%s5741 + $0x27a] sm:$0xff]
  %v5920 = vld [vmem:[%s5741 + $0x28a] sm:$0xff]
  %v5921 = vld [vmem:[%s5741 + $0x292] sm:$0xff]
  %v5922 = vld [vmem:[%s5741 + $0x2a2] sm:$0xff]
  %v5923 = vld [vmem:[%s5741 + $0x2aa] sm:$0xff]
  %v5924 = vld [vmem:[%s5741 + $0x2ba] sm:$0xff]
  %v5925 = vld [vmem:[%s5741 + $0x2c2] sm:$0xff]
  %v5926 = vld [vmem:[%s5741 + $0x2d2] sm:$0xff]
  %v5927 = vld [vmem:[%s5741 + $0x2da] sm:$0xff]
  %v5928 = vld [vmem:[%s5741 + $0x2ea] sm:$0xff]
  %v5929 = vld [vmem:[%s5741 + $0x2f2] sm:$0xff]
  %v5930 = vld [vmem:[%s5741 + $0x302] sm:$0xff]
  %v5931 = vld [vmem:[%s5741 + $0x30a] sm:$0xff]
  %v5932 = vld [vmem:[%s5741 + $0x31a] sm:$0xff]
  %v5933 = vld [vmem:[%s5741 + $0x322] sm:$0xff]
  %5998 = vrot.lane.b32.xlu0 %v5421, 4
  %v5999 = vpop.permute.xlu0 %5998
  %6000 = vrot.lane.b32.xlu0 %v5422, 4
  %v6001 = vpop.permute.xlu0 %6000
  %6002 = vrot.lane.b32.xlu0 %v5423, 4
  %v6003 = vpop.permute.xlu0 %6002
  %6004 = vrot.lane.b32.xlu0 %v5424, 4
  %v6005 = vpop.permute.xlu0 %6004
  %6006 = vrot.lane.b32.xlu0 %v5425, 4
  %v6007 = vpop.permute.xlu0 %6006
  %6008 = vrot.lane.b32.xlu0 %v5426, 4
  %v6009 = vpop.permute.xlu0 %6008
  %6010 = vrot.lane.b32.xlu0 %v5427, 4
  %v6011 = vpop.permute.xlu0 %6010
  %6012 = vrot.lane.b32.xlu0 %v5428, 4
  %v6013 = vpop.permute.xlu0 %6012
  %6014 = vrot.lane.b32.xlu0 %v5429, 4
  %v6015 = vpop.permute.xlu0 %6014
  %6016 = vrot.lane.b32.xlu0 %v5430, 4
  %v6017 = vpop.permute.xlu0 %6016
  %6018 = vrot.lane.b32.xlu0 %v5431, 4
  %v6019 = vpop.permute.xlu0 %6018
  %6020 = vrot.lane.b32.xlu0 %v5432, 4
  %v6021 = vpop.permute.xlu0 %6020
  %6022 = vrot.lane.b32.xlu0 %v5433, 4
  %v6023 = vpop.permute.xlu0 %6022
  %6024 = vrot.lane.b32.xlu0 %v5434, 4
  %v6025 = vpop.permute.xlu0 %6024
  %6026 = vrot.lane.b32.xlu0 %v5435, 4
  %v6027 = vpop.permute.xlu0 %6026
  %6028 = vrot.lane.b32.xlu0 %v5436, 4
  %v6029 = vpop.permute.xlu0 %6028
  %6030 = vrot.lane.b32.xlu0 %v5437, 4
  %v6031 = vpop.permute.xlu0 %6030
  %6032 = vrot.lane.b32.xlu0 %v5438, 4
  %v6033 = vpop.permute.xlu0 %6032
  %6034 = vrot.lane.b32.xlu0 %v5439, 4
  %v6035 = vpop.permute.xlu0 %6034
  %6036 = vrot.lane.b32.xlu0 %v5440, 4
  %v6037 = vpop.permute.xlu0 %6036
  %6038 = vrot.lane.b32.xlu0 %v5441, 4
  %v6039 = vpop.permute.xlu0 %6038
  %6040 = vrot.lane.b32.xlu0 %v5442, 4
  %v6041 = vpop.permute.xlu0 %6040
  %6042 = vrot.lane.b32.xlu0 %v5443, 4
  %v6043 = vpop.permute.xlu0 %6042
  %6044 = vrot.lane.b32.xlu0 %v5444, 4
  %v6045 = vpop.permute.xlu0 %6044
  %6046 = vrot.lane.b32.xlu0 %v5445, 4
  %v6047 = vpop.permute.xlu0 %6046
  %6048 = vrot.lane.b32.xlu0 %v5446, 4
  %v6049 = vpop.permute.xlu0 %6048
  %6050 = vrot.lane.b32.xlu0 %v5447, 4
  %v6051 = vpop.permute.xlu0 %6050
  %6052 = vrot.lane.b32.xlu0 %v5448, 4
  %v6053 = vpop.permute.xlu0 %6052
  %6054 = vrot.lane.b32.xlu0 %v5449, 4
  %v6055 = vpop.permute.xlu0 %6054
  %6056 = vrot.lane.b32.xlu0 %v5450, 4
  %v6057 = vpop.permute.xlu0 %6056
  %6058 = vrot.lane.b32.xlu0 %v5451, 4
  %v6059 = vpop.permute.xlu0 %6058
  %6060 = vrot.lane.b32.xlu0 %v5452, 4
  %v6061 = vpop.permute.xlu0 %6060
  %6062 = vrot.lane.b32.xlu0 %v5453, 4
  %v6063 = vpop.permute.xlu0 %6062
  %6064 = vrot.lane.b32.xlu0 %v5454, 4
  %v6065 = vpop.permute.xlu0 %6064
  %6066 = vrot.lane.b32.xlu0 %v5455, 4
  %v6067 = vpop.permute.xlu0 %6066
  %6068 = vrot.lane.b32.xlu0 %v5456, 4
  %v6069 = vpop.permute.xlu0 %6068
  %6070 = vrot.lane.b32.xlu0 %v5457, 4
  %v6071 = vpop.permute.xlu0 %6070
  %6072 = vrot.lane.b32.xlu0 %v5458, 4
  %v6073 = vpop.permute.xlu0 %6072
  %6074 = vrot.lane.b32.xlu0 %v5459, 4
  %v6075 = vpop.permute.xlu0 %6074
  %6076 = vrot.lane.b32.xlu0 %v5460, 4
  %v6077 = vpop.permute.xlu0 %6076
  %6078 = vrot.lane.b32.xlu0 %v5461, 4
  %v6079 = vpop.permute.xlu0 %6078
  %6080 = vrot.lane.b32.xlu0 %v5462, 4
  %v6081 = vpop.permute.xlu0 %6080
  %6082 = vrot.lane.b32.xlu0 %v5463, 4
  %v6083 = vpop.permute.xlu0 %6082
  %6084 = vrot.lane.b32.xlu0 %v5464, 4
  %v6085 = vpop.permute.xlu0 %6084
  %6086 = vrot.lane.b32.xlu0 %v5465, 4
  %v6087 = vpop.permute.xlu0 %6086
  %6088 = vrot.lane.b32.xlu0 %v5466, 4
  %v6089 = vpop.permute.xlu0 %6088
  %6090 = vrot.lane.b32.xlu0 %v5467, 4
  %v6091 = vpop.permute.xlu0 %6090
  %6092 = vrot.lane.b32.xlu0 %v5468, 4
  %v6093 = vpop.permute.xlu0 %6092
  %6094 = vrot.lane.b32.xlu0 %v5469, 4
  %v6095 = vpop.permute.xlu0 %6094
  %6096 = vrot.lane.b32.xlu0 %v5470, 4
  %v6097 = vpop.permute.xlu0 %6096
  %6098 = vrot.lane.b32.xlu0 %v5471, 4
  %v6099 = vpop.permute.xlu0 %6098
  %6100 = vrot.lane.b32.xlu0 %v5472, 4
  %v6101 = vpop.permute.xlu0 %6100
  %6102 = vrot.lane.b32.xlu0 %v5473, 4
  %v6103 = vpop.permute.xlu0 %6102
  %6104 = vrot.lane.b32.xlu0 %v5474, 4
  %v6105 = vpop.permute.xlu0 %6104
  %6106 = vrot.lane.b32.xlu0 %v5475, 4
  %v6107 = vpop.permute.xlu0 %6106
  %6108 = vrot.lane.b32.xlu0 %v5476, 4
  %v6109 = vpop.permute.xlu0 %6108
  %6110 = vrot.lane.b32.xlu0 %v5477, 4
  %v6111 = vpop.permute.xlu0 %6110
  %6112 = vrot.lane.b32.xlu0 %v5478, 4
  %v6113 = vpop.permute.xlu0 %6112
  %6114 = vrot.lane.b32.xlu0 %v5479, 4
  %v6115 = vpop.permute.xlu0 %6114
  %6116 = vrot.lane.b32.xlu0 %v5480, 4
  %v6117 = vpop.permute.xlu0 %6116
  %6118 = vrot.lane.b32.xlu0 %v5481, 4
  %v6119 = vpop.permute.xlu0 %6118
  %6120 = vrot.lane.b32.xlu0 %v5482, 4
  %v6121 = vpop.permute.xlu0 %6120
  %6122 = vrot.lane.b32.xlu0 %v5483, 4
  %v6123 = vpop.permute.xlu0 %6122
  %6124 = vrot.lane.b32.xlu0 %v5484, 4
  %v6125 = vpop.permute.xlu0 %6124
  %6254 = vrot.lane.b32.xlu0 %v5485, 8
  %v6255 = vpop.permute.xlu0 %6254
  %6256 = vrot.lane.b32.xlu0 %v5486, 8
  %v6257 = vpop.permute.xlu0 %6256
  %6258 = vrot.lane.b32.xlu0 %v5487, 8
  %v6259 = vpop.permute.xlu0 %6258
  %6260 = vrot.lane.b32.xlu0 %v5488, 8
  %v6261 = vpop.permute.xlu0 %6260
  %6262 = vrot.lane.b32.xlu0 %v5489, 8
  %v6263 = vpop.permute.xlu0 %6262
  %6264 = vrot.lane.b32.xlu0 %v5490, 8
  %v6265 = vpop.permute.xlu0 %6264
  %6266 = vrot.lane.b32.xlu0 %v5491, 8
  %v6267 = vpop.permute.xlu0 %6266
  %6268 = vrot.lane.b32.xlu0 %v5492, 8
  %v6269 = vpop.permute.xlu0 %6268
  %6270 = vrot.lane.b32.xlu0 %v5493, 8
  %v6271 = vpop.permute.xlu0 %6270
  %6272 = vrot.lane.b32.xlu0 %v5494, 8
  %v6273 = vpop.permute.xlu0 %6272
  %6274 = vrot.lane.b32.xlu0 %v5495, 8
  %v6275 = vpop.permute.xlu0 %6274
  %6276 = vrot.lane.b32.xlu0 %v5496, 8
  %v6277 = vpop.permute.xlu0 %6276
  %6278 = vrot.lane.b32.xlu0 %v5497, 8
  %v6279 = vpop.permute.xlu0 %6278
  %6280 = vrot.lane.b32.xlu0 %v5498, 8
  %v6281 = vpop.permute.xlu0 %6280
  %6282 = vrot.lane.b32.xlu0 %v5499, 8
  %v6283 = vpop.permute.xlu0 %6282
  %6284 = vrot.lane.b32.xlu0 %v5500, 8
  %v6285 = vpop.permute.xlu0 %6284
  %6286 = vrot.lane.b32.xlu0 %v5501, 8
  %v6287 = vpop.permute.xlu0 %6286
  %6288 = vrot.lane.b32.xlu0 %v5502, 8
  %v6289 = vpop.permute.xlu0 %6288
  %6290 = vrot.lane.b32.xlu0 %v5503, 8
  %v6291 = vpop.permute.xlu0 %6290
  %6292 = vrot.lane.b32.xlu0 %v5504, 8
  %v6293 = vpop.permute.xlu0 %6292
  %6294 = vrot.lane.b32.xlu0 %v5505, 8
  %v6295 = vpop.permute.xlu0 %6294
  %6296 = vrot.lane.b32.xlu0 %v5506, 8
  %v6297 = vpop.permute.xlu0 %6296
  %6298 = vrot.lane.b32.xlu0 %v5507, 8
  %v6299 = vpop.permute.xlu0 %6298
  %6300 = vrot.lane.b32.xlu0 %v5508, 8
  %v6301 = vpop.permute.xlu0 %6300
  %6302 = vrot.lane.b32.xlu0 %v5509, 8
  %v6303 = vpop.permute.xlu0 %6302
  %6304 = vrot.lane.b32.xlu0 %v5510, 8
  %v6305 = vpop.permute.xlu0 %6304
  %6306 = vrot.lane.b32.xlu0 %v5511, 8
  %v6307 = vpop.permute.xlu0 %6306
  %6308 = vrot.lane.b32.xlu0 %v5512, 8
  %v6309 = vpop.permute.xlu0 %6308
  %6310 = vrot.lane.b32.xlu0 %v5513, 8
  %v6311 = vpop.permute.xlu0 %6310
  %6312 = vrot.lane.b32.xlu0 %v5514, 8
  %v6313 = vpop.permute.xlu0 %6312
  %6314 = vrot.lane.b32.xlu0 %v5515, 8
  %v6315 = vpop.permute.xlu0 %6314
  %6316 = vrot.lane.b32.xlu0 %v5516, 8
  %v6317 = vpop.permute.xlu0 %6316
  %6318 = vrot.lane.b32.xlu0 %v5517, 8
  %v6319 = vpop.permute.xlu0 %6318
  %6320 = vrot.lane.b32.xlu0 %v5518, 8
  %v6321 = vpop.permute.xlu0 %6320
  %6322 = vrot.lane.b32.xlu0 %v5519, 8
  %v6323 = vpop.permute.xlu0 %6322
  %6324 = vrot.lane.b32.xlu0 %v5520, 8
  %v6325 = vpop.permute.xlu0 %6324
  %6326 = vrot.lane.b32.xlu0 %v5521, 8
  %v6327 = vpop.permute.xlu0 %6326
  %6328 = vrot.lane.b32.xlu0 %v5522, 8
  %v6329 = vpop.permute.xlu0 %6328
  %6330 = vrot.lane.b32.xlu0 %v5523, 8
  %v6331 = vpop.permute.xlu0 %6330
  %6332 = vrot.lane.b32.xlu0 %v5524, 8
  %v6333 = vpop.permute.xlu0 %6332
  %6334 = vrot.lane.b32.xlu0 %v5525, 8
  %v6335 = vpop.permute.xlu0 %6334
  %6336 = vrot.lane.b32.xlu0 %v5526, 8
  %v6337 = vpop.permute.xlu0 %6336
  %6338 = vrot.lane.b32.xlu0 %v5527, 8
  %v6339 = vpop.permute.xlu0 %6338
  %6340 = vrot.lane.b32.xlu0 %v5528, 8
  %v6341 = vpop.permute.xlu0 %6340
  %6342 = vrot.lane.b32.xlu0 %v5529, 8
  %v6343 = vpop.permute.xlu0 %6342
  %6344 = vrot.lane.b32.xlu0 %v5530, 8
  %v6345 = vpop.permute.xlu0 %6344
  %6346 = vrot.lane.b32.xlu0 %v5531, 8
  %v6347 = vpop.permute.xlu0 %6346
  %6348 = vrot.lane.b32.xlu0 %v5532, 8
  %v6349 = vpop.permute.xlu0 %6348
  %6350 = vrot.lane.b32.xlu0 %v5533, 8
  %v6351 = vpop.permute.xlu0 %6350
  %6352 = vrot.lane.b32.xlu0 %v5534, 8
  %v6353 = vpop.permute.xlu0 %6352
  %6354 = vrot.lane.b32.xlu0 %v5535, 8
  %v6355 = vpop.permute.xlu0 %6354
  %6356 = vrot.lane.b32.xlu0 %v5536, 8
  %v6357 = vpop.permute.xlu0 %6356
  %6358 = vrot.lane.b32.xlu0 %v5537, 8
  %v6359 = vpop.permute.xlu0 %6358
  %6360 = vrot.lane.b32.xlu0 %v5538, 8
  %v6361 = vpop.permute.xlu0 %6360
  %6362 = vrot.lane.b32.xlu0 %v5539, 8
  %v6363 = vpop.permute.xlu0 %6362
  %6364 = vrot.lane.b32.xlu0 %v5540, 8
  %v6365 = vpop.permute.xlu0 %6364
  %6366 = vrot.lane.b32.xlu0 %v5541, 8
  %v6367 = vpop.permute.xlu0 %6366
  %6368 = vrot.lane.b32.xlu0 %v5542, 8
  %v6369 = vpop.permute.xlu0 %6368
  %6370 = vrot.lane.b32.xlu0 %v5543, 8
  %v6371 = vpop.permute.xlu0 %6370
  %6372 = vrot.lane.b32.xlu0 %v5544, 8
  %v6373 = vpop.permute.xlu0 %6372
  %6374 = vrot.lane.b32.xlu0 %v5545, 8
  %v6375 = vpop.permute.xlu0 %6374
  %6376 = vrot.lane.b32.xlu0 %v5546, 8
  %v6377 = vpop.permute.xlu0 %6376
  %6378 = vrot.lane.b32.xlu0 %v5547, 8
  %v6379 = vpop.permute.xlu0 %6378
  %6380 = vrot.lane.b32.xlu0 %v5548, 8
  %v6381 = vpop.permute.xlu0 %6380
  %6510 = vrot.lane.b32.xlu0 %v5549, 12
  %v6511 = vpop.permute.xlu0 %6510
  %6512 = vrot.lane.b32.xlu0 %v5550, 12
  %v6513 = vpop.permute.xlu0 %6512
  %6514 = vrot.lane.b32.xlu0 %v5551, 12
  %v6515 = vpop.permute.xlu0 %6514
  %6516 = vrot.lane.b32.xlu0 %v5552, 12
  %v6517 = vpop.permute.xlu0 %6516
  %6518 = vrot.lane.b32.xlu0 %v5553, 12
  %v6519 = vpop.permute.xlu0 %6518
  %6520 = vrot.lane.b32.xlu0 %v5554, 12
  %v6521 = vpop.permute.xlu0 %6520
  %6522 = vrot.lane.b32.xlu0 %v5555, 12
  %v6523 = vpop.permute.xlu0 %6522
  %6524 = vrot.lane.b32.xlu0 %v5556, 12
  %v6525 = vpop.permute.xlu0 %6524
  %6526 = vrot.lane.b32.xlu0 %v5557, 12
  %v6527 = vpop.permute.xlu0 %6526
  %6528 = vrot.lane.b32.xlu0 %v5558, 12
  %v6529 = vpop.permute.xlu0 %6528
  %6530 = vrot.lane.b32.xlu0 %v5559, 12
  %v6531 = vpop.permute.xlu0 %6530
  %6532 = vrot.lane.b32.xlu0 %v5560, 12
  %v6533 = vpop.permute.xlu0 %6532
  %6534 = vrot.lane.b32.xlu0 %v5561, 12
  %v6535 = vpop.permute.xlu0 %6534
  %6536 = vrot.lane.b32.xlu0 %v5562, 12
  %v6537 = vpop.permute.xlu0 %6536
  %6538 = vrot.lane.b32.xlu0 %v5563, 12
  %v6539 = vpop.permute.xlu0 %6538
  %6540 = vrot.lane.b32.xlu0 %v5564, 12
  %v6541 = vpop.permute.xlu0 %6540
  %6542 = vrot.lane.b32.xlu0 %v5565, 12
  %v6543 = vpop.permute.xlu0 %6542
  %6544 = vrot.lane.b32.xlu0 %v5566, 12
  %v6545 = vpop.permute.xlu0 %6544
  %6546 = vrot.lane.b32.xlu0 %v5567, 12
  %v6547 = vpop.permute.xlu0 %6546
  %6548 = vrot.lane.b32.xlu0 %v5568, 12
  %v6549 = vpop.permute.xlu0 %6548
  %6550 = vrot.lane.b32.xlu0 %v5569, 12
  %v6551 = vpop.permute.xlu0 %6550
  %6552 = vrot.lane.b32.xlu0 %v5570, 12
  %v6553 = vpop.permute.xlu0 %6552
  %6554 = vrot.lane.b32.xlu0 %v5571, 12
  %v6555 = vpop.permute.xlu0 %6554
  %6556 = vrot.lane.b32.xlu0 %v5572, 12
  %v6557 = vpop.permute.xlu0 %6556
  %6558 = vrot.lane.b32.xlu0 %v5573, 12
  %v6559 = vpop.permute.xlu0 %6558
  %6560 = vrot.lane.b32.xlu0 %v5574, 12
  %v6561 = vpop.permute.xlu0 %6560
  %6562 = vrot.lane.b32.xlu0 %v5575, 12
  %v6563 = vpop.permute.xlu0 %6562
  %6564 = vrot.lane.b32.xlu0 %v5576, 12
  %v6565 = vpop.permute.xlu0 %6564
  %6566 = vrot.lane.b32.xlu0 %v5577, 12
  %v6567 = vpop.permute.xlu0 %6566
  %6568 = vrot.lane.b32.xlu0 %v5578, 12
  %v6569 = vpop.permute.xlu0 %6568
  %6570 = vrot.lane.b32.xlu0 %v5579, 12
  %v6571 = vpop.permute.xlu0 %6570
  %6572 = vrot.lane.b32.xlu0 %v5580, 12
  %v6573 = vpop.permute.xlu0 %6572
  %6574 = vrot.lane.b32.xlu0 %v5581, 12
  %v6575 = vpop.permute.xlu0 %6574
  %6576 = vrot.lane.b32.xlu0 %v5582, 12
  %v6577 = vpop.permute.xlu0 %6576
  %6578 = vrot.lane.b32.xlu0 %v5583, 12
  %v6579 = vpop.permute.xlu0 %6578
  %6580 = vrot.lane.b32.xlu0 %v5584, 12
  %v6581 = vpop.permute.xlu0 %6580
  %6582 = vrot.lane.b32.xlu0 %v5585, 12
  %v6583 = vpop.permute.xlu0 %6582
  %6584 = vrot.lane.b32.xlu0 %v5586, 12
  %v6585 = vpop.permute.xlu0 %6584
  %6586 = vrot.lane.b32.xlu0 %v5587, 12
  %v6587 = vpop.permute.xlu0 %6586
  %6588 = vrot.lane.b32.xlu0 %v5588, 12
  %v6589 = vpop.permute.xlu0 %6588
  %6590 = vrot.lane.b32.xlu0 %v5589, 12
  %v6591 = vpop.permute.xlu0 %6590
  %6592 = vrot.lane.b32.xlu0 %v5590, 12
  %v6593 = vpop.permute.xlu0 %6592
  %6594 = vrot.lane.b32.xlu0 %v5591, 12
  %v6595 = vpop.permute.xlu0 %6594
  %6596 = vrot.lane.b32.xlu0 %v5592, 12
  %v6597 = vpop.permute.xlu0 %6596
  %6598 = vrot.lane.b32.xlu0 %v5593, 12
  %v6599 = vpop.permute.xlu0 %6598
  %6600 = vrot.lane.b32.xlu0 %v5594, 12
  %v6601 = vpop.permute.xlu0 %6600
  %6602 = vrot.lane.b32.xlu0 %v5595, 12
  %v6603 = vpop.permute.xlu0 %6602
  %6604 = vrot.lane.b32.xlu0 %v5596, 12
  %v6605 = vpop.permute.xlu0 %6604
  %6606 = vrot.lane.b32.xlu0 %v5597, 12
  %v6607 = vpop.permute.xlu0 %6606
  %6608 = vrot.lane.b32.xlu0 %v5598, 12
  %v6609 = vpop.permute.xlu0 %6608
  %6610 = vrot.lane.b32.xlu0 %v5599, 12
  %v6611 = vpop.permute.xlu0 %6610
  %6612 = vrot.lane.b32.xlu0 %v5600, 12
  %v6613 = vpop.permute.xlu0 %6612
  %6614 = vrot.lane.b32.xlu0 %v5601, 12
  %v6615 = vpop.permute.xlu0 %6614
  %6616 = vrot.lane.b32.xlu0 %v5602, 12
  %v6617 = vpop.permute.xlu0 %6616
  %6618 = vrot.lane.b32.xlu0 %v5603, 12
  %v6619 = vpop.permute.xlu0 %6618
  %6620 = vrot.lane.b32.xlu0 %v5604, 12
  %v6621 = vpop.permute.xlu0 %6620
  %6622 = vrot.lane.b32.xlu0 %v5605, 12
  %v6623 = vpop.permute.xlu0 %6622
  %6624 = vrot.lane.b32.xlu0 %v5606, 12
  %v6625 = vpop.permute.xlu0 %6624
  %6626 = vrot.lane.b32.xlu0 %v5607, 12
  %v6627 = vpop.permute.xlu0 %6626
  %6628 = vrot.lane.b32.xlu0 %v5608, 12
  %v6629 = vpop.permute.xlu0 %6628
  %6630 = vrot.lane.b32.xlu0 %v5609, 12
  %v6631 = vpop.permute.xlu0 %6630
  %6632 = vrot.lane.b32.xlu0 %v5610, 12
  %v6633 = vpop.permute.xlu0 %6632
  %6634 = vrot.lane.b32.xlu0 %v5611, 12
  %v6635 = vpop.permute.xlu0 %6634
  %6636 = vrot.lane.b32.xlu0 %v5612, 12
  %v6637 = vpop.permute.xlu0 %6636
  %6766 = vrot.lane.b32.xlu0 %v5613, 16
  %v6767 = vpop.permute.xlu0 %6766
  %6768 = vrot.lane.b32.xlu0 %v5614, 16
  %v6769 = vpop.permute.xlu0 %6768
  %6770 = vrot.lane.b32.xlu0 %v5615, 16
  %v6771 = vpop.permute.xlu0 %6770
  %6772 = vrot.lane.b32.xlu0 %v5616, 16
  %v6773 = vpop.permute.xlu0 %6772
  %6774 = vrot.lane.b32.xlu0 %v5617, 16
  %v6775 = vpop.permute.xlu0 %6774
  %6776 = vrot.lane.b32.xlu0 %v5618, 16
  %v6777 = vpop.permute.xlu0 %6776
  %6778 = vrot.lane.b32.xlu0 %v5619, 16
  %v6779 = vpop.permute.xlu0 %6778
  %6780 = vrot.lane.b32.xlu0 %v5620, 16
  %v6781 = vpop.permute.xlu0 %6780
  %6782 = vrot.lane.b32.xlu0 %v5621, 16
  %v6783 = vpop.permute.xlu0 %6782
  %6784 = vrot.lane.b32.xlu0 %v5622, 16
  %v6785 = vpop.permute.xlu0 %6784
  %6786 = vrot.lane.b32.xlu0 %v5623, 16
  %v6787 = vpop.permute.xlu0 %6786
  %6788 = vrot.lane.b32.xlu0 %v5624, 16
  %v6789 = vpop.permute.xlu0 %6788
  %6790 = vrot.lane.b32.xlu0 %v5625, 16
  %v6791 = vpop.permute.xlu0 %6790
  %6792 = vrot.lane.b32.xlu0 %v5626, 16
  %v6793 = vpop.permute.xlu0 %6792
  %6794 = vrot.lane.b32.xlu0 %v5627, 16
  %v6795 = vpop.permute.xlu0 %6794
  %6796 = vrot.lane.b32.xlu0 %v5628, 16
  %v6797 = vpop.permute.xlu0 %6796
  %6798 = vrot.lane.b32.xlu0 %v5629, 16
  %v6799 = vpop.permute.xlu0 %6798
  %6800 = vrot.lane.b32.xlu0 %v5630, 16
  %v6801 = vpop.permute.xlu0 %6800
  %6802 = vrot.lane.b32.xlu0 %v5631, 16
  %v6803 = vpop.permute.xlu0 %6802
  %6804 = vrot.lane.b32.xlu0 %v5632, 16
  %v6805 = vpop.permute.xlu0 %6804
  %6806 = vrot.lane.b32.xlu0 %v5633, 16
  %v6807 = vpop.permute.xlu0 %6806
  %6808 = vrot.lane.b32.xlu0 %v5634, 16
  %v6809 = vpop.permute.xlu0 %6808
  %6810 = vrot.lane.b32.xlu0 %v5635, 16
  %v6811 = vpop.permute.xlu0 %6810
  %6812 = vrot.lane.b32.xlu0 %v5636, 16
  %v6813 = vpop.permute.xlu0 %6812
  %6814 = vrot.lane.b32.xlu0 %v5637, 16
  %v6815 = vpop.permute.xlu0 %6814
  %6816 = vrot.lane.b32.xlu0 %v5638, 16
  %v6817 = vpop.permute.xlu0 %6816
  %6818 = vrot.lane.b32.xlu0 %v5639, 16
  %v6819 = vpop.permute.xlu0 %6818
  %6820 = vrot.lane.b32.xlu0 %v5640, 16
  %v6821 = vpop.permute.xlu0 %6820
  %6822 = vrot.lane.b32.xlu0 %v5641, 16
  %v6823 = vpop.permute.xlu0 %6822
  %6824 = vrot.lane.b32.xlu0 %v5642, 16
  %v6825 = vpop.permute.xlu0 %6824
  %6826 = vrot.lane.b32.xlu0 %v5643, 16
  %v6827 = vpop.permute.xlu0 %6826
  %6828 = vrot.lane.b32.xlu0 %v5644, 16
  %v6829 = vpop.permute.xlu0 %6828
  %6830 = vrot.lane.b32.xlu0 %v5645, 16
  %v6831 = vpop.permute.xlu0 %6830
  %6832 = vrot.lane.b32.xlu0 %v5646, 16
  %v6833 = vpop.permute.xlu0 %6832
  %6834 = vrot.lane.b32.xlu0 %v5647, 16
  %v6835 = vpop.permute.xlu0 %6834
  %6836 = vrot.lane.b32.xlu0 %v5648, 16
  %v6837 = vpop.permute.xlu0 %6836
  %6838 = vrot.lane.b32.xlu0 %v5649, 16
  %v6839 = vpop.permute.xlu0 %6838
  %6840 = vrot.lane.b32.xlu0 %v5650, 16
  %v6841 = vpop.permute.xlu0 %6840
  %6842 = vrot.lane.b32.xlu0 %v5651, 16
  %v6843 = vpop.permute.xlu0 %6842
  %6844 = vrot.lane.b32.xlu0 %v5652, 16
  %v6845 = vpop.permute.xlu0 %6844
  %6846 = vrot.lane.b32.xlu0 %v5653, 16
  %v6847 = vpop.permute.xlu0 %6846
  %6848 = vrot.lane.b32.xlu0 %v5654, 16
  %v6849 = vpop.permute.xlu0 %6848
  %6850 = vrot.lane.b32.xlu0 %v5655, 16
  %v6851 = vpop.permute.xlu0 %6850
  %6852 = vrot.lane.b32.xlu0 %v5656, 16
  %v6853 = vpop.permute.xlu0 %6852
  %6854 = vrot.lane.b32.xlu0 %v5657, 16
  %v6855 = vpop.permute.xlu0 %6854
  %6856 = vrot.lane.b32.xlu0 %v5658, 16
  %v6857 = vpop.permute.xlu0 %6856
  %6858 = vrot.lane.b32.xlu0 %v5659, 16
  %v6859 = vpop.permute.xlu0 %6858
  %6860 = vrot.lane.b32.xlu0 %v5660, 16
  %v6861 = vpop.permute.xlu0 %6860
  %6862 = vrot.lane.b32.xlu0 %v5661, 16
  %v6863 = vpop.permute.xlu0 %6862
  %6864 = vrot.lane.b32.xlu0 %v5662, 16
  %v6865 = vpop.permute.xlu0 %6864
  %6866 = vrot.lane.b32.xlu0 %v5663, 16
  %v6867 = vpop.permute.xlu0 %6866
  %6868 = vrot.lane.b32.xlu0 %v5664, 16
  %v6869 = vpop.permute.xlu0 %6868
  %6870 = vrot.lane.b32.xlu0 %v5665, 16
  %v6871 = vpop.permute.xlu0 %6870
  %6872 = vrot.lane.b32.xlu0 %v5666, 16
  %v6873 = vpop.permute.xlu0 %6872
  %6874 = vrot.lane.b32.xlu0 %v5667, 16
  %v6875 = vpop.permute.xlu0 %6874
  %6876 = vrot.lane.b32.xlu0 %v5668, 16
  %v6877 = vpop.permute.xlu0 %6876
  %6878 = vrot.lane.b32.xlu0 %v5669, 16
  %v6879 = vpop.permute.xlu0 %6878
  %6880 = vrot.lane.b32.xlu0 %v5670, 16
  %v6881 = vpop.permute.xlu0 %6880
  %6882 = vrot.lane.b32.xlu0 %v5671, 16
  %v6883 = vpop.permute.xlu0 %6882
  %6884 = vrot.lane.b32.xlu0 %v5672, 16
  %v6885 = vpop.permute.xlu0 %6884
  %6886 = vrot.lane.b32.xlu0 %v5673, 16
  %v6887 = vpop.permute.xlu0 %6886
  %6888 = vrot.lane.b32.xlu0 %v5674, 16
  %v6889 = vpop.permute.xlu0 %6888
  %6890 = vrot.lane.b32.xlu0 %v5675, 16
  %v6891 = vpop.permute.xlu0 %6890
  %6892 = vrot.lane.b32.xlu0 %v5676, 16
  %v6893 = vpop.permute.xlu0 %6892
  %7022 = vrot.lane.b32.xlu0 %v5677, 20
  %v7023 = vpop.permute.xlu0 %7022
  %7024 = vrot.lane.b32.xlu0 %v5678, 20
  %v7025 = vpop.permute.xlu0 %7024
  %7026 = vrot.lane.b32.xlu0 %v5679, 20
  %v7027 = vpop.permute.xlu0 %7026
  %7028 = vrot.lane.b32.xlu0 %v5680, 20
  %v7029 = vpop.permute.xlu0 %7028
  %7030 = vrot.lane.b32.xlu0 %v5681, 20
  %v7031 = vpop.permute.xlu0 %7030
  %7032 = vrot.lane.b32.xlu0 %v5682, 20
  %v7033 = vpop.permute.xlu0 %7032
  %7034 = vrot.lane.b32.xlu0 %v5683, 20
  %v7035 = vpop.permute.xlu0 %7034
  %7036 = vrot.lane.b32.xlu0 %v5684, 20
  %v7037 = vpop.permute.xlu0 %7036
  %7038 = vrot.lane.b32.xlu0 %v5685, 20
  %v7039 = vpop.permute.xlu0 %7038
  %7040 = vrot.lane.b32.xlu0 %v5686, 20
  %v7041 = vpop.permute.xlu0 %7040
  %7042 = vrot.lane.b32.xlu0 %v5687, 20
  %v7043 = vpop.permute.xlu0 %7042
  %7044 = vrot.lane.b32.xlu0 %v5688, 20
  %v7045 = vpop.permute.xlu0 %7044
  %7046 = vrot.lane.b32.xlu0 %v5689, 20
  %v7047 = vpop.permute.xlu0 %7046
  %7048 = vrot.lane.b32.xlu0 %v5690, 20
  %v7049 = vpop.permute.xlu0 %7048
  %7050 = vrot.lane.b32.xlu0 %v5691, 20
  %v7051 = vpop.permute.xlu0 %7050
  %7052 = vrot.lane.b32.xlu0 %v5692, 20
  %v7053 = vpop.permute.xlu0 %7052
  %7054 = vrot.lane.b32.xlu0 %v5693, 20
  %v7055 = vpop.permute.xlu0 %7054
  %7056 = vrot.lane.b32.xlu0 %v5694, 20
  %v7057 = vpop.permute.xlu0 %7056
  %7058 = vrot.lane.b32.xlu0 %v5695, 20
  %v7059 = vpop.permute.xlu0 %7058
  %7060 = vrot.lane.b32.xlu0 %v5696, 20
  %v7061 = vpop.permute.xlu0 %7060
  %7062 = vrot.lane.b32.xlu0 %v5697, 20
  %v7063 = vpop.permute.xlu0 %7062
  %7064 = vrot.lane.b32.xlu0 %v5698, 20
  %v7065 = vpop.permute.xlu0 %7064
  %7066 = vrot.lane.b32.xlu0 %v5699, 20
  %v7067 = vpop.permute.xlu0 %7066
  %7068 = vrot.lane.b32.xlu0 %v5700, 20
  %v7069 = vpop.permute.xlu0 %7068
  %7070 = vrot.lane.b32.xlu0 %v5701, 20
  %v7071 = vpop.permute.xlu0 %7070
  %7072 = vrot.lane.b32.xlu0 %v5702, 20
  %v7073 = vpop.permute.xlu0 %7072
  %7074 = vrot.lane.b32.xlu0 %v5703, 20
  %v7075 = vpop.permute.xlu0 %7074
  %7076 = vrot.lane.b32.xlu0 %v5704, 20
  %v7077 = vpop.permute.xlu0 %7076
  %7078 = vrot.lane.b32.xlu0 %v5705, 20
  %v7079 = vpop.permute.xlu0 %7078
  %7080 = vrot.lane.b32.xlu0 %v5706, 20
  %v7081 = vpop.permute.xlu0 %7080
  %7082 = vrot.lane.b32.xlu0 %v5707, 20
  %v7083 = vpop.permute.xlu0 %7082
  %7084 = vrot.lane.b32.xlu0 %v5708, 20
  %v7085 = vpop.permute.xlu0 %7084
  %7086 = vrot.lane.b32.xlu0 %v5709, 20
  %v7087 = vpop.permute.xlu0 %7086
  %7088 = vrot.lane.b32.xlu0 %v5710, 20
  %v7089 = vpop.permute.xlu0 %7088
  %7090 = vrot.lane.b32.xlu0 %v5711, 20
  %v7091 = vpop.permute.xlu0 %7090
  %7092 = vrot.lane.b32.xlu0 %v5712, 20
  %v7093 = vpop.permute.xlu0 %7092
  %7094 = vrot.lane.b32.xlu0 %v5713, 20
  %v7095 = vpop.permute.xlu0 %7094
  %7096 = vrot.lane.b32.xlu0 %v5714, 20
  %v7097 = vpop.permute.xlu0 %7096
  %7098 = vrot.lane.b32.xlu0 %v5715, 20
  %v7099 = vpop.permute.xlu0 %7098
  %7100 = vrot.lane.b32.xlu0 %v5716, 20
  %v7101 = vpop.permute.xlu0 %7100
  %7102 = vrot.lane.b32.xlu0 %v5717, 20
  %v7103 = vpop.permute.xlu0 %7102
  %7104 = vrot.lane.b32.xlu0 %v5718, 20
  %v7105 = vpop.permute.xlu0 %7104
  %7106 = vrot.lane.b32.xlu0 %v5719, 20
  %v7107 = vpop.permute.xlu0 %7106
  %7108 = vrot.lane.b32.xlu0 %v5720, 20
  %v7109 = vpop.permute.xlu0 %7108
  %7110 = vrot.lane.b32.xlu0 %v5721, 20
  %v7111 = vpop.permute.xlu0 %7110
  %7112 = vrot.lane.b32.xlu0 %v5722, 20
  %v7113 = vpop.permute.xlu0 %7112
  %7114 = vrot.lane.b32.xlu0 %v5723, 20
  %v7115 = vpop.permute.xlu0 %7114
  %7116 = vrot.lane.b32.xlu0 %v5724, 20
  %v7117 = vpop.permute.xlu0 %7116
  %7118 = vrot.lane.b32.xlu0 %v5725, 20
  %v7119 = vpop.permute.xlu0 %7118
  %7120 = vrot.lane.b32.xlu0 %v5726, 20
  %v7121 = vpop.permute.xlu0 %7120
  %7122 = vrot.lane.b32.xlu0 %v5727, 20
  %v7123 = vpop.permute.xlu0 %7122
  %7124 = vrot.lane.b32.xlu0 %v5728, 20
  %v7125 = vpop.permute.xlu0 %7124
  %7126 = vrot.lane.b32.xlu0 %v5729, 20
  %v7127 = vpop.permute.xlu0 %7126
  %7128 = vrot.lane.b32.xlu0 %v5730, 20
  %v7129 = vpop.permute.xlu0 %7128
  %7130 = vrot.lane.b32.xlu0 %v5731, 20
  %v7131 = vpop.permute.xlu0 %7130
  %7132 = vrot.lane.b32.xlu0 %v5732, 20
  %v7133 = vpop.permute.xlu0 %7132
  %7134 = vrot.lane.b32.xlu0 %v5733, 20
  %v7135 = vpop.permute.xlu0 %7134
  %7136 = vrot.lane.b32.xlu0 %v5734, 20
  %v7137 = vpop.permute.xlu0 %7136
  %7138 = vrot.lane.b32.xlu0 %v5735, 20
  %v7139 = vpop.permute.xlu0 %7138
  %7140 = vrot.lane.b32.xlu0 %v5736, 20
  %v7141 = vpop.permute.xlu0 %7140
  %7142 = vrot.lane.b32.xlu0 %v5737, 20
  %v7143 = vpop.permute.xlu0 %7142
  %7144 = vrot.lane.b32.xlu0 %v5738, 20
  %v7145 = vpop.permute.xlu0 %7144
  %7146 = vrot.lane.b32.xlu0 %v5739, 20
  %v7147 = vpop.permute.xlu0 %7146
  %7148 = vrot.lane.b32.xlu0 %v5740, 20
  %v7149 = vpop.permute.xlu0 %7148
  %7278 = vrot.lane.b32.xlu0 %v5742, 24
  %v7279 = vpop.permute.xlu0 %7278
  %7280 = vrot.lane.b32.xlu0 %v5743, 24
  %v7281 = vpop.permute.xlu0 %7280
  %7282 = vrot.lane.b32.xlu0 %v5744, 24
  %v7283 = vpop.permute.xlu0 %7282
  %7284 = vrot.lane.b32.xlu0 %v5745, 24
  %v7285 = vpop.permute.xlu0 %7284
  %7286 = vrot.lane.b32.xlu0 %v5746, 24
  %v7287 = vpop.permute.xlu0 %7286
  %7288 = vrot.lane.b32.xlu0 %v5747, 24
  %v7289 = vpop.permute.xlu0 %7288
  %7290 = vrot.lane.b32.xlu0 %v5748, 24
  %v7291 = vpop.permute.xlu0 %7290
  %7292 = vrot.lane.b32.xlu0 %v5749, 24
  %v7293 = vpop.permute.xlu0 %7292
  %7294 = vrot.lane.b32.xlu0 %v5750, 24
  %v7295 = vpop.permute.xlu0 %7294
  %7296 = vrot.lane.b32.xlu0 %v5751, 24
  %v7297 = vpop.permute.xlu0 %7296
  %7298 = vrot.lane.b32.xlu0 %v5752, 24
  %v7299 = vpop.permute.xlu0 %7298
  %7300 = vrot.lane.b32.xlu0 %v5753, 24
  %v7301 = vpop.permute.xlu0 %7300
  %7302 = vrot.lane.b32.xlu0 %v5754, 24
  %v7303 = vpop.permute.xlu0 %7302
  %7304 = vrot.lane.b32.xlu0 %v5755, 24
  %v7305 = vpop.permute.xlu0 %7304
  %7306 = vrot.lane.b32.xlu0 %v5756, 24
  %v7307 = vpop.permute.xlu0 %7306
  %7308 = vrot.lane.b32.xlu0 %v5757, 24
  %v7309 = vpop.permute.xlu0 %7308
  %7310 = vrot.lane.b32.xlu0 %v5758, 24
  %v7311 = vpop.permute.xlu0 %7310
  %7312 = vrot.lane.b32.xlu0 %v5759, 24
  %v7313 = vpop.permute.xlu0 %7312
  %7314 = vrot.lane.b32.xlu0 %v5760, 24
  %v7315 = vpop.permute.xlu0 %7314
  %7316 = vrot.lane.b32.xlu0 %v5761, 24
  %v7317 = vpop.permute.xlu0 %7316
  %7318 = vrot.lane.b32.xlu0 %v5762, 24
  %v7319 = vpop.permute.xlu0 %7318
  %7320 = vrot.lane.b32.xlu0 %v5763, 24
  %v7321 = vpop.permute.xlu0 %7320
  %7322 = vrot.lane.b32.xlu0 %v5764, 24
  %v7323 = vpop.permute.xlu0 %7322
  %7324 = vrot.lane.b32.xlu0 %v5765, 24
  %v7325 = vpop.permute.xlu0 %7324
  %7326 = vrot.lane.b32.xlu0 %v5766, 24
  %v7327 = vpop.permute.xlu0 %7326
  %7328 = vrot.lane.b32.xlu0 %v5767, 24
  %v7329 = vpop.permute.xlu0 %7328
  %7330 = vrot.lane.b32.xlu0 %v5768, 24
  %v7331 = vpop.permute.xlu0 %7330
  %7332 = vrot.lane.b32.xlu0 %v5769, 24
  %v7333 = vpop.permute.xlu0 %7332
  %7334 = vrot.lane.b32.xlu0 %v5770, 24
  %v7335 = vpop.permute.xlu0 %7334
  %7336 = vrot.lane.b32.xlu0 %v5771, 24
  %v7337 = vpop.permute.xlu0 %7336
  %7338 = vrot.lane.b32.xlu0 %v5772, 24
  %v7339 = vpop.permute.xlu0 %7338
  %7340 = vrot.lane.b32.xlu0 %v5773, 24
  %v7341 = vpop.permute.xlu0 %7340
  %7342 = vrot.lane.b32.xlu0 %v5774, 24
  %v7343 = vpop.permute.xlu0 %7342
  %7344 = vrot.lane.b32.xlu0 %v5775, 24
  %v7345 = vpop.permute.xlu0 %7344
  %7346 = vrot.lane.b32.xlu0 %v5776, 24
  %v7347 = vpop.permute.xlu0 %7346
  %7348 = vrot.lane.b32.xlu0 %v5777, 24
  %v7349 = vpop.permute.xlu0 %7348
  %7350 = vrot.lane.b32.xlu0 %v5778, 24
  %v7351 = vpop.permute.xlu0 %7350
  %7352 = vrot.lane.b32.xlu0 %v5779, 24
  %v7353 = vpop.permute.xlu0 %7352
  %7354 = vrot.lane.b32.xlu0 %v5780, 24
  %v7355 = vpop.permute.xlu0 %7354
  %7356 = vrot.lane.b32.xlu0 %v5781, 24
  %v7357 = vpop.permute.xlu0 %7356
  %7358 = vrot.lane.b32.xlu0 %v5782, 24
  %v7359 = vpop.permute.xlu0 %7358
  %7360 = vrot.lane.b32.xlu0 %v5783, 24
  %v7361 = vpop.permute.xlu0 %7360
  %7362 = vrot.lane.b32.xlu0 %v5784, 24
  %v7363 = vpop.permute.xlu0 %7362
  %7364 = vrot.lane.b32.xlu0 %v5785, 24
  %v7365 = vpop.permute.xlu0 %7364
  %7366 = vrot.lane.b32.xlu0 %v5786, 24
  %v7367 = vpop.permute.xlu0 %7366
  %7368 = vrot.lane.b32.xlu0 %v5787, 24
  %v7369 = vpop.permute.xlu0 %7368
  %7370 = vrot.lane.b32.xlu0 %v5788, 24
  %v7371 = vpop.permute.xlu0 %7370
  %7372 = vrot.lane.b32.xlu0 %v5789, 24
  %v7373 = vpop.permute.xlu0 %7372
  %7374 = vrot.lane.b32.xlu0 %v5790, 24
  %v7375 = vpop.permute.xlu0 %7374
  %7376 = vrot.lane.b32.xlu0 %v5791, 24
  %v7377 = vpop.permute.xlu0 %7376
  %7378 = vrot.lane.b32.xlu0 %v5792, 24
  %v7379 = vpop.permute.xlu0 %7378
  %7380 = vrot.lane.b32.xlu0 %v5793, 24
  %v7381 = vpop.permute.xlu0 %7380
  %7382 = vrot.lane.b32.xlu0 %v5794, 24
  %v7383 = vpop.permute.xlu0 %7382
  %7384 = vrot.lane.b32.xlu0 %v5795, 24
  %v7385 = vpop.permute.xlu0 %7384
  %7386 = vrot.lane.b32.xlu0 %v5796, 24
  %v7387 = vpop.permute.xlu0 %7386
  %7388 = vrot.lane.b32.xlu0 %v5797, 24
  %v7389 = vpop.permute.xlu0 %7388
  %7390 = vrot.lane.b32.xlu0 %v5798, 24
  %v7391 = vpop.permute.xlu0 %7390
  %7392 = vrot.lane.b32.xlu0 %v5799, 24
  %v7393 = vpop.permute.xlu0 %7392
  %7394 = vrot.lane.b32.xlu0 %v5800, 24
  %v7395 = vpop.permute.xlu0 %7394
  %7396 = vrot.lane.b32.xlu0 %v5801, 24
  %v7397 = vpop.permute.xlu0 %7396
  %7398 = vrot.lane.b32.xlu0 %v5802, 24
  %v7399 = vpop.permute.xlu0 %7398
  %7400 = vrot.lane.b32.xlu0 %v5803, 24
  %v7401 = vpop.permute.xlu0 %7400
  %7402 = vrot.lane.b32.xlu0 %v5804, 24
  %v7403 = vpop.permute.xlu0 %7402
  %7404 = vrot.lane.b32.xlu0 %v5805, 24
  %v7405 = vpop.permute.xlu0 %7404
  %7534 = vrot.lane.b32.xlu0 %v5806, 28
  %v7535 = vpop.permute.xlu0 %7534
  %7536 = vrot.lane.b32.xlu0 %v5807, 28
  %v7537 = vpop.permute.xlu0 %7536
  %7538 = vrot.lane.b32.xlu0 %v5808, 28
  %v7539 = vpop.permute.xlu0 %7538
  %7540 = vrot.lane.b32.xlu0 %v5809, 28
  %v7541 = vpop.permute.xlu0 %7540
  %7542 = vrot.lane.b32.xlu0 %v5810, 28
  %v7543 = vpop.permute.xlu0 %7542
  %7544 = vrot.lane.b32.xlu0 %v5811, 28
  %v7545 = vpop.permute.xlu0 %7544
  %7546 = vrot.lane.b32.xlu0 %v5812, 28
  %v7547 = vpop.permute.xlu0 %7546
  %7548 = vrot.lane.b32.xlu0 %v5813, 28
  %v7549 = vpop.permute.xlu0 %7548
  %7550 = vrot.lane.b32.xlu0 %v5814, 28
  %v7551 = vpop.permute.xlu0 %7550
  %7552 = vrot.lane.b32.xlu0 %v5815, 28
  %v7553 = vpop.permute.xlu0 %7552
  %7554 = vrot.lane.b32.xlu0 %v5816, 28
  %v7555 = vpop.permute.xlu0 %7554
  %7556 = vrot.lane.b32.xlu0 %v5817, 28
  %v7557 = vpop.permute.xlu0 %7556
  %7558 = vrot.lane.b32.xlu0 %v5818, 28
  %v7559 = vpop.permute.xlu0 %7558
  %7560 = vrot.lane.b32.xlu0 %v5819, 28
  %v7561 = vpop.permute.xlu0 %7560
  %7562 = vrot.lane.b32.xlu0 %v5820, 28
  %v7563 = vpop.permute.xlu0 %7562
  %7564 = vrot.lane.b32.xlu0 %v5821, 28
  %v7565 = vpop.permute.xlu0 %7564
  %7566 = vrot.lane.b32.xlu0 %v5822, 28
  %v7567 = vpop.permute.xlu0 %7566
  %7568 = vrot.lane.b32.xlu0 %v5823, 28
  %v7569 = vpop.permute.xlu0 %7568
  %7570 = vrot.lane.b32.xlu0 %v5824, 28
  %v7571 = vpop.permute.xlu0 %7570
  %7572 = vrot.lane.b32.xlu0 %v5825, 28
  %v7573 = vpop.permute.xlu0 %7572
  %7574 = vrot.lane.b32.xlu0 %v5826, 28
  %v7575 = vpop.permute.xlu0 %7574
  %7576 = vrot.lane.b32.xlu0 %v5827, 28
  %v7577 = vpop.permute.xlu0 %7576
  %7578 = vrot.lane.b32.xlu0 %v5828, 28
  %v7579 = vpop.permute.xlu0 %7578
  %7580 = vrot.lane.b32.xlu0 %v5829, 28
  %v7581 = vpop.permute.xlu0 %7580
  %7582 = vrot.lane.b32.xlu0 %v5830, 28
  %v7583 = vpop.permute.xlu0 %7582
  %7584 = vrot.lane.b32.xlu0 %v5831, 28
  %v7585 = vpop.permute.xlu0 %7584
  %7586 = vrot.lane.b32.xlu0 %v5832, 28
  %v7587 = vpop.permute.xlu0 %7586
  %7588 = vrot.lane.b32.xlu0 %v5833, 28
  %v7589 = vpop.permute.xlu0 %7588
  %7590 = vrot.lane.b32.xlu0 %v5834, 28
  %v7591 = vpop.permute.xlu0 %7590
  %7592 = vrot.lane.b32.xlu0 %v5835, 28
  %v7593 = vpop.permute.xlu0 %7592
  %7594 = vrot.lane.b32.xlu0 %v5836, 28
  %v7595 = vpop.permute.xlu0 %7594
  %7596 = vrot.lane.b32.xlu0 %v5837, 28
  %v7597 = vpop.permute.xlu0 %7596
  %7598 = vrot.lane.b32.xlu0 %v5838, 28
  %v7599 = vpop.permute.xlu0 %7598
  %7600 = vrot.lane.b32.xlu0 %v5839, 28
  %v7601 = vpop.permute.xlu0 %7600
  %7602 = vrot.lane.b32.xlu0 %v5840, 28
  %v7603 = vpop.permute.xlu0 %7602
  %7604 = vrot.lane.b32.xlu0 %v5841, 28
  %v7605 = vpop.permute.xlu0 %7604
  %7606 = vrot.lane.b32.xlu0 %v5842, 28
  %v7607 = vpop.permute.xlu0 %7606
  %7608 = vrot.lane.b32.xlu0 %v5843, 28
  %v7609 = vpop.permute.xlu0 %7608
  %7610 = vrot.lane.b32.xlu0 %v5844, 28
  %v7611 = vpop.permute.xlu0 %7610
  %7612 = vrot.lane.b32.xlu0 %v5845, 28
  %v7613 = vpop.permute.xlu0 %7612
  %7614 = vrot.lane.b32.xlu0 %v5846, 28
  %v7615 = vpop.permute.xlu0 %7614
  %7616 = vrot.lane.b32.xlu0 %v5847, 28
  %v7617 = vpop.permute.xlu0 %7616
  %7618 = vrot.lane.b32.xlu0 %v5848, 28
  %v7619 = vpop.permute.xlu0 %7618
  %7620 = vrot.lane.b32.xlu0 %v5849, 28
  %v7621 = vpop.permute.xlu0 %7620
  %7622 = vrot.lane.b32.xlu0 %v5850, 28
  %v7623 = vpop.permute.xlu0 %7622
  %7624 = vrot.lane.b32.xlu0 %v5851, 28
  %v7625 = vpop.permute.xlu0 %7624
  %7626 = vrot.lane.b32.xlu0 %v5852, 28
  %v7627 = vpop.permute.xlu0 %7626
  %7628 = vrot.lane.b32.xlu0 %v5853, 28
  %v7629 = vpop.permute.xlu0 %7628
  %7630 = vrot.lane.b32.xlu0 %v5854, 28
  %v7631 = vpop.permute.xlu0 %7630
  %7632 = vrot.lane.b32.xlu0 %v5855, 28
  %v7633 = vpop.permute.xlu0 %7632
  %7634 = vrot.lane.b32.xlu0 %v5856, 28
  %v7635 = vpop.permute.xlu0 %7634
  %7636 = vrot.lane.b32.xlu0 %v5857, 28
  %v7637 = vpop.permute.xlu0 %7636
  %7638 = vrot.lane.b32.xlu0 %v5858, 28
  %v7639 = vpop.permute.xlu0 %7638
  %7640 = vrot.lane.b32.xlu0 %v5859, 28
  %v7641 = vpop.permute.xlu0 %7640
  %7642 = vrot.lane.b32.xlu0 %v5860, 28
  %v7643 = vpop.permute.xlu0 %7642
  %7644 = vrot.lane.b32.xlu0 %v5861, 28
  %v7645 = vpop.permute.xlu0 %7644
  %7646 = vrot.lane.b32.xlu0 %v5862, 28
  %v7647 = vpop.permute.xlu0 %7646
  %7648 = vrot.lane.b32.xlu0 %v5863, 28
  %v7649 = vpop.permute.xlu0 %7648
  %7650 = vrot.lane.b32.xlu0 %v5864, 28
  %v7651 = vpop.permute.xlu0 %7650
  %7652 = vrot.lane.b32.xlu0 %v5865, 28
  %v7653 = vpop.permute.xlu0 %7652
  %7654 = vrot.lane.b32.xlu0 %v5866, 28
  %v7655 = vpop.permute.xlu0 %7654
  %7656 = vrot.lane.b32.xlu0 %v5867, 28
  %v7657 = vpop.permute.xlu0 %7656
  %7658 = vrot.lane.b32.xlu0 %v5868, 28
  %v7659 = vpop.permute.xlu0 %7658
  %7660 = vrot.lane.b32.xlu0 %v5869, 28
  %v7661 = vpop.permute.xlu0 %7660
  %7790 = vrot.lane.b32.xlu0 %v5870, 32
  %v7791 = vpop.permute.xlu0 %7790
  %7792 = vrot.lane.b32.xlu0 %v5871, 32
  %v7793 = vpop.permute.xlu0 %7792
  %7794 = vrot.lane.b32.xlu0 %v5872, 32
  %v7795 = vpop.permute.xlu0 %7794
  %7796 = vrot.lane.b32.xlu0 %v5873, 32
  %v7797 = vpop.permute.xlu0 %7796
  %7798 = vrot.lane.b32.xlu0 %v5874, 32
  %v7799 = vpop.permute.xlu0 %7798
  %7800 = vrot.lane.b32.xlu0 %v5875, 32
  %v7801 = vpop.permute.xlu0 %7800
  %7802 = vrot.lane.b32.xlu0 %v5876, 32
  %v7803 = vpop.permute.xlu0 %7802
  %7804 = vrot.lane.b32.xlu0 %v5877, 32
  %v7805 = vpop.permute.xlu0 %7804
  %7806 = vrot.lane.b32.xlu0 %v5878, 32
  %v7807 = vpop.permute.xlu0 %7806
  %7808 = vrot.lane.b32.xlu0 %v5879, 32
  %v7809 = vpop.permute.xlu0 %7808
  %7810 = vrot.lane.b32.xlu0 %v5880, 32
  %v7811 = vpop.permute.xlu0 %7810
  %7812 = vrot.lane.b32.xlu0 %v5881, 32
  %v7813 = vpop.permute.xlu0 %7812
  %7814 = vrot.lane.b32.xlu0 %v5882, 32
  %v7815 = vpop.permute.xlu0 %7814
  %7816 = vrot.lane.b32.xlu0 %v5883, 32
  %v7817 = vpop.permute.xlu0 %7816
  %7818 = vrot.lane.b32.xlu0 %v5884, 32
  %v7819 = vpop.permute.xlu0 %7818
  %7820 = vrot.lane.b32.xlu0 %v5885, 32
  %v7821 = vpop.permute.xlu0 %7820
  %7822 = vrot.lane.b32.xlu0 %v5886, 32
  %v7823 = vpop.permute.xlu0 %7822
  %7824 = vrot.lane.b32.xlu0 %v5887, 32
  %v7825 = vpop.permute.xlu0 %7824
  %7826 = vrot.lane.b32.xlu0 %v5888, 32
  %v7827 = vpop.permute.xlu0 %7826
  %7828 = vrot.lane.b32.xlu0 %v5889, 32
  %v7829 = vpop.permute.xlu0 %7828
  %7830 = vrot.lane.b32.xlu0 %v5890, 32
  %v7831 = vpop.permute.xlu0 %7830
  %7832 = vrot.lane.b32.xlu0 %v5891, 32
  %v7833 = vpop.permute.xlu0 %7832
  %7834 = vrot.lane.b32.xlu0 %v5892, 32
  %v7835 = vpop.permute.xlu0 %7834
  %7836 = vrot.lane.b32.xlu0 %v5893, 32
  %v7837 = vpop.permute.xlu0 %7836
  %7838 = vrot.lane.b32.xlu0 %v5894, 32
  %v7839 = vpop.permute.xlu0 %7838
  %7840 = vrot.lane.b32.xlu0 %v5895, 32
  %v7841 = vpop.permute.xlu0 %7840
  %7842 = vrot.lane.b32.xlu0 %v5896, 32
  %v7843 = vpop.permute.xlu0 %7842
  %7844 = vrot.lane.b32.xlu0 %v5897, 32
  %v7845 = vpop.permute.xlu0 %7844
  %7846 = vrot.lane.b32.xlu0 %v5898, 32
  %v7847 = vpop.permute.xlu0 %7846
  %7848 = vrot.lane.b32.xlu0 %v5899, 32
  %v7849 = vpop.permute.xlu0 %7848
  %7850 = vrot.lane.b32.xlu0 %v5900, 32
  %v7851 = vpop.permute.xlu0 %7850
  %7852 = vrot.lane.b32.xlu0 %v5901, 32
  %v7853 = vpop.permute.xlu0 %7852
  %7854 = vrot.lane.b32.xlu0 %v5902, 32
  %v7855 = vpop.permute.xlu0 %7854
  %7856 = vrot.lane.b32.xlu0 %v5903, 32
  %v7857 = vpop.permute.xlu0 %7856
  %7858 = vrot.lane.b32.xlu0 %v5904, 32
  %v7859 = vpop.permute.xlu0 %7858
  %7860 = vrot.lane.b32.xlu0 %v5905, 32
  %v7861 = vpop.permute.xlu0 %7860
  %7862 = vrot.lane.b32.xlu0 %v5906, 32
  %v7863 = vpop.permute.xlu0 %7862
  %7864 = vrot.lane.b32.xlu0 %v5907, 32
  %v7865 = vpop.permute.xlu0 %7864
  %7866 = vrot.lane.b32.xlu0 %v5908, 32
  %v7867 = vpop.permute.xlu0 %7866
  %7868 = vrot.lane.b32.xlu0 %v5909, 32
  %v7869 = vpop.permute.xlu0 %7868
  %7870 = vrot.lane.b32.xlu0 %v5910, 32
  %v7871 = vpop.permute.xlu0 %7870
  %7872 = vrot.lane.b32.xlu0 %v5911, 32
  %v7873 = vpop.permute.xlu0 %7872
  %7874 = vrot.lane.b32.xlu0 %v5912, 32
  %v7875 = vpop.permute.xlu0 %7874
  %7876 = vrot.lane.b32.xlu0 %v5913, 32
  %v7877 = vpop.permute.xlu0 %7876
  %7878 = vrot.lane.b32.xlu0 %v5914, 32
  %v7879 = vpop.permute.xlu0 %7878
  %7880 = vrot.lane.b32.xlu0 %v5915, 32
  %v7881 = vpop.permute.xlu0 %7880
  %7882 = vrot.lane.b32.xlu0 %v5916, 32
  %v7883 = vpop.permute.xlu0 %7882
  %7884 = vrot.lane.b32.xlu0 %v5917, 32
  %v7885 = vpop.permute.xlu0 %7884
  %7886 = vrot.lane.b32.xlu0 %v5918, 32
  %v7887 = vpop.permute.xlu0 %7886
  %7888 = vrot.lane.b32.xlu0 %v5919, 32
  %v7889 = vpop.permute.xlu0 %7888
  %7890 = vrot.lane.b32.xlu0 %v5920, 32
  %v7891 = vpop.permute.xlu0 %7890
  %7892 = vrot.lane.b32.xlu0 %v5921, 32
  %v7893 = vpop.permute.xlu0 %7892
  %7894 = vrot.lane.b32.xlu0 %v5922, 32
  %v7895 = vpop.permute.xlu0 %7894
  %7896 = vrot.lane.b32.xlu0 %v5923, 32
  %v7897 = vpop.permute.xlu0 %7896
  %7898 = vrot.lane.b32.xlu0 %v5924, 32
  %v7899 = vpop.permute.xlu0 %7898
  %7900 = vrot.lane.b32.xlu0 %v5925, 32
  %v7901 = vpop.permute.xlu0 %7900
  %7902 = vrot.lane.b32.xlu0 %v5926, 32
  %v7903 = vpop.permute.xlu0 %7902
  %7904 = vrot.lane.b32.xlu0 %v5927, 32
  %v7905 = vpop.permute.xlu0 %7904
  %7906 = vrot.lane.b32.xlu0 %v5928, 32
  %v7907 = vpop.permute.xlu0 %7906
  %7908 = vrot.lane.b32.xlu0 %v5929, 32
  %v7909 = vpop.permute.xlu0 %7908
  %7910 = vrot.lane.b32.xlu0 %v5930, 32
  %v7911 = vpop.permute.xlu0 %7910
  %7912 = vrot.lane.b32.xlu0 %v5931, 32
  %v7913 = vpop.permute.xlu0 %7912
  %7914 = vrot.lane.b32.xlu0 %v5932, 32
  %v7915 = vpop.permute.xlu0 %7914
  %7916 = vrot.lane.b32.xlu0 %v5933, 32
  %v7917 = vpop.permute.xlu0 %7916
  %v7982 = vsel %vm108, %v5357, %v5999
  %v7983 = vsel %vm108, %v5358, %v6001
  %v7984 = vsel %vm108, %v5359, %v6003
  %v7985 = vsel %vm108, %v5360, %v6005
  %v7986 = vsel %vm108, %v5361, %v6007
  %v7987 = vsel %vm108, %v5362, %v6009
  %v7988 = vsel %vm108, %v5363, %v6011
  %v7989 = vsel %vm108, %v5364, %v6013
  %v7990 = vsel %vm108, %v5365, %v6015
  %v7991 = vsel %vm108, %v5366, %v6017
  %v7992 = vsel %vm108, %v5367, %v6019
  %v7993 = vsel %vm108, %v5368, %v6021
  %v7994 = vsel %vm108, %v5369, %v6023
  %v7995 = vsel %vm108, %v5370, %v6025
  %v7996 = vsel %vm108, %v5371, %v6027
  %v7997 = vsel %vm108, %v5372, %v6029
  %v7998 = vsel %vm108, %v5373, %v6031
  %v7999 = vsel %vm108, %v5374, %v6033
  %v8000 = vsel %vm108, %v5375, %v6035
  %v8001 = vsel %vm108, %v5376, %v6037
  %v8002 = vsel %vm108, %v5377, %v6039
  %v8003 = vsel %vm108, %v5378, %v6041
  %v8004 = vsel %vm108, %v5379, %v6043
  %v8005 = vsel %vm108, %v5380, %v6045
  %v8006 = vsel %vm108, %v5381, %v6047
  %v8007 = vsel %vm108, %v5382, %v6049
  %v8008 = vsel %vm108, %v5383, %v6051
  %v8009 = vsel %vm108, %v5384, %v6053
  %v8010 = vsel %vm108, %v5385, %v6055
  %v8011 = vsel %vm108, %v5386, %v6057
  %v8012 = vsel %vm108, %v5387, %v6059
  %v8013 = vsel %vm108, %v5388, %v6061
  %v8014 = vsel %vm108, %v5389, %v6063
  %v8015 = vsel %vm108, %v5390, %v6065
  %v8016 = vsel %vm108, %v5391, %v6067
  %v8017 = vsel %vm108, %v5392, %v6069
  %v8018 = vsel %vm108, %v5393, %v6071
  %v8019 = vsel %vm108, %v5394, %v6073
  %v8020 = vsel %vm108, %v5395, %v6075
  %v8021 = vsel %vm108, %v5396, %v6077
  %v8022 = vsel %vm108, %v5397, %v6079
  %v8023 = vsel %vm108, %v5398, %v6081
  %v8024 = vsel %vm108, %v5399, %v6083
  %v8025 = vsel %vm108, %v5400, %v6085
  %v8026 = vsel %vm108, %v5401, %v6087
  %v8027 = vsel %vm108, %v5402, %v6089
  %v8028 = vsel %vm108, %v5403, %v6091
  %v8029 = vsel %vm108, %v5404, %v6093
  %v8030 = vsel %vm108, %v5405, %v6095
  %v8031 = vsel %vm108, %v5406, %v6097
  %v8032 = vsel %vm108, %v5407, %v6099
  %v8033 = vsel %vm108, %v5408, %v6101
  %v8034 = vsel %vm108, %v5409, %v6103
  %v8035 = vsel %vm108, %v5410, %v6105
  %v8036 = vsel %vm108, %v5411, %v6107
  %v8037 = vsel %vm108, %v5412, %v6109
  %v8038 = vsel %vm108, %v5413, %v6111
  %v8039 = vsel %vm108, %v5414, %v6113
  %v8040 = vsel %vm108, %v5415, %v6115
  %v8041 = vsel %vm108, %v5416, %v6117
  %v8042 = vsel %vm108, %v5417, %v6119
  %v8043 = vsel %vm108, %v5418, %v6121
  %v8044 = vsel %vm108, %v5419, %v6123
  %v8045 = vsel %vm108, %v5420, %v6125
  %v8046 = vsel %vm3645, %v7982, %v6255
  %v8047 = vsel %vm3645, %v7983, %v6257
  %v8048 = vsel %vm3645, %v7984, %v6259
  %v8049 = vsel %vm3645, %v7985, %v6261
  %v8050 = vsel %vm3645, %v7986, %v6263
  %v8051 = vsel %vm3645, %v7987, %v6265
  %v8052 = vsel %vm3645, %v7988, %v6267
  %v8053 = vsel %vm3645, %v7989, %v6269
  %v8054 = vsel %vm3645, %v7990, %v6271
  %v8055 = vsel %vm3645, %v7991, %v6273
  %v8056 = vsel %vm3645, %v7992, %v6275
  %v8057 = vsel %vm3645, %v7993, %v6277
  %v8058 = vsel %vm3645, %v7994, %v6279
  %v8059 = vsel %vm3645, %v7995, %v6281
  %v8060 = vsel %vm3645, %v7996, %v6283
  %v8061 = vsel %vm3645, %v7997, %v6285
  %v8062 = vsel %vm3645, %v7998, %v6287
  %v8063 = vsel %vm3645, %v7999, %v6289
  %v8064 = vsel %vm3645, %v8000, %v6291
  %v8065 = vsel %vm3645, %v8001, %v6293
  %v8066 = vsel %vm3645, %v8002, %v6295
  %v8067 = vsel %vm3645, %v8003, %v6297
  %v8068 = vsel %vm3645, %v8004, %v6299
  %v8069 = vsel %vm3645, %v8005, %v6301
  %v8070 = vsel %vm3645, %v8006, %v6303
  %v8071 = vsel %vm3645, %v8007, %v6305
  %v8072 = vsel %vm3645, %v8008, %v6307
  %v8073 = vsel %vm3645, %v8009, %v6309
  %v8074 = vsel %vm3645, %v8010, %v6311
  %v8075 = vsel %vm3645, %v8011, %v6313
  %v8076 = vsel %vm3645, %v8012, %v6315
  %v8077 = vsel %vm3645, %v8013, %v6317
  %v8078 = vsel %vm3645, %v8014, %v6319
  %v8079 = vsel %vm3645, %v8015, %v6321
  %v8080 = vsel %vm3645, %v8016, %v6323
  %v8081 = vsel %vm3645, %v8017, %v6325
  %v8082 = vsel %vm3645, %v8018, %v6327
  %v8083 = vsel %vm3645, %v8019, %v6329
  %v8084 = vsel %vm3645, %v8020, %v6331
  %v8085 = vsel %vm3645, %v8021, %v6333
  %v8086 = vsel %vm3645, %v8022, %v6335
  %v8087 = vsel %vm3645, %v8023, %v6337
  %v8088 = vsel %vm3645, %v8024, %v6339
  %v8089 = vsel %vm3645, %v8025, %v6341
  %v8090 = vsel %vm3645, %v8026, %v6343
  %v8091 = vsel %vm3645, %v8027, %v6345
  %v8092 = vsel %vm3645, %v8028, %v6347
  %v8093 = vsel %vm3645, %v8029, %v6349
  %v8094 = vsel %vm3645, %v8030, %v6351
  %v8095 = vsel %vm3645, %v8031, %v6353
  %v8096 = vsel %vm3645, %v8032, %v6355
  %v8097 = vsel %vm3645, %v8033, %v6357
  %v8098 = vsel %vm3645, %v8034, %v6359
  %v8099 = vsel %vm3645, %v8035, %v6361
  %v8100 = vsel %vm3645, %v8036, %v6363
  %v8101 = vsel %vm3645, %v8037, %v6365
  %v8102 = vsel %vm3645, %v8038, %v6367
  %v8103 = vsel %vm3645, %v8039, %v6369
  %v8104 = vsel %vm3645, %v8040, %v6371
  %v8105 = vsel %vm3645, %v8041, %v6373
  %v8106 = vsel %vm3645, %v8042, %v6375
  %v8107 = vsel %vm3645, %v8043, %v6377
  %v8108 = vsel %vm3645, %v8044, %v6379
  %v8109 = vsel %vm3645, %v8045, %v6381
  %v8110 = vsel %vm3710, %v8046, %v6511
  %v8111 = vsel %vm3710, %v8047, %v6513
  %v8112 = vsel %vm3710, %v8048, %v6515
  %v8113 = vsel %vm3710, %v8049, %v6517
  %v8114 = vsel %vm3710, %v8050, %v6519
  %v8115 = vsel %vm3710, %v8051, %v6521
  %v8116 = vsel %vm3710, %v8052, %v6523
  %v8117 = vsel %vm3710, %v8053, %v6525
  %v8118 = vsel %vm3710, %v8054, %v6527
  %v8119 = vsel %vm3710, %v8055, %v6529
  %v8120 = vsel %vm3710, %v8056, %v6531
  %v8121 = vsel %vm3710, %v8057, %v6533
  %v8122 = vsel %vm3710, %v8058, %v6535
  %v8123 = vsel %vm3710, %v8059, %v6537
  %v8124 = vsel %vm3710, %v8060, %v6539
  %v8125 = vsel %vm3710, %v8061, %v6541
  %v8126 = vsel %vm3710, %v8062, %v6543
  %v8127 = vsel %vm3710, %v8063, %v6545
  %v8128 = vsel %vm3710, %v8064, %v6547
  %v8129 = vsel %vm3710, %v8065, %v6549
  %v8130 = vsel %vm3710, %v8066, %v6551
  %v8131 = vsel %vm3710, %v8067, %v6553
  %v8132 = vsel %vm3710, %v8068, %v6555
  %v8133 = vsel %vm3710, %v8069, %v6557
  %v8134 = vsel %vm3710, %v8070, %v6559
  %v8135 = vsel %vm3710, %v8071, %v6561
  %v8136 = vsel %vm3710, %v8072, %v6563
  %v8137 = vsel %vm3710, %v8073, %v6565
  %v8138 = vsel %vm3710, %v8074, %v6567
  %v8139 = vsel %vm3710, %v8075, %v6569
  %v8140 = vsel %vm3710, %v8076, %v6571
  %v8141 = vsel %vm3710, %v8077, %v6573
  %v8142 = vsel %vm3710, %v8078, %v6575
  %v8143 = vsel %vm3710, %v8079, %v6577
  %v8144 = vsel %vm3710, %v8080, %v6579
  %v8145 = vsel %vm3710, %v8081, %v6581
  %v8146 = vsel %vm3710, %v8082, %v6583
  %v8147 = vsel %vm3710, %v8083, %v6585
  %v8148 = vsel %vm3710, %v8084, %v6587
  %v8149 = vsel %vm3710, %v8085, %v6589
  %v8150 = vsel %vm3710, %v8086, %v6591
  %v8151 = vsel %vm3710, %v8087, %v6593
  %v8152 = vsel %vm3710, %v8088, %v6595
  %v8153 = vsel %vm3710, %v8089, %v6597
  %v8154 = vsel %vm3710, %v8090, %v6599
  %v8155 = vsel %vm3710, %v8091, %v6601
  %v8156 = vsel %vm3710, %v8092, %v6603
  %v8157 = vsel %vm3710, %v8093, %v6605
  %v8158 = vsel %vm3710, %v8094, %v6607
  %v8159 = vsel %vm3710, %v8095, %v6609
  %v8160 = vsel %vm3710, %v8096, %v6611
  %v8161 = vsel %vm3710, %v8097, %v6613
  %v8162 = vsel %vm3710, %v8098, %v6615
  %v8163 = vsel %vm3710, %v8099, %v6617
  %v8164 = vsel %vm3710, %v8100, %v6619
  %v8165 = vsel %vm3710, %v8101, %v6621
  %v8166 = vsel %vm3710, %v8102, %v6623
  %v8167 = vsel %vm3710, %v8103, %v6625
  %v8168 = vsel %vm3710, %v8104, %v6627
  %v8169 = vsel %vm3710, %v8105, %v6629
  %v8170 = vsel %vm3710, %v8106, %v6631
  %v8171 = vsel %vm3710, %v8107, %v6633
  %v8172 = vsel %vm3710, %v8108, %v6635
  %v8173 = vsel %vm3710, %v8109, %v6637
  %v8174 = vsel %vm3775, %v8110, %v6767
  %v8175 = vsel %vm3775, %v8111, %v6769
  %v8176 = vsel %vm3775, %v8112, %v6771
  %v8177 = vsel %vm3775, %v8113, %v6773
  %v8178 = vsel %vm3775, %v8114, %v6775
  %v8179 = vsel %vm3775, %v8115, %v6777
  %v8180 = vsel %vm3775, %v8116, %v6779
  %v8181 = vsel %vm3775, %v8117, %v6781
  %v8182 = vsel %vm3775, %v8118, %v6783
  %v8183 = vsel %vm3775, %v8119, %v6785
  %v8184 = vsel %vm3775, %v8120, %v6787
  %v8185 = vsel %vm3775, %v8121, %v6789
  %v8186 = vsel %vm3775, %v8122, %v6791
  %v8187 = vsel %vm3775, %v8123, %v6793
  %v8188 = vsel %vm3775, %v8124, %v6795
  %v8189 = vsel %vm3775, %v8125, %v6797
  %v8190 = vsel %vm3775, %v8126, %v6799
  %v8191 = vsel %vm3775, %v8127, %v6801
  %v8192 = vsel %vm3775, %v8128, %v6803
  %v8193 = vsel %vm3775, %v8129, %v6805
  %v8194 = vsel %vm3775, %v8130, %v6807
  %v8195 = vsel %vm3775, %v8131, %v6809
  %v8196 = vsel %vm3775, %v8132, %v6811
  %v8197 = vsel %vm3775, %v8133, %v6813
  %v8198 = vsel %vm3775, %v8134, %v6815
  %v8199 = vsel %vm3775, %v8135, %v6817
  %v8200 = vsel %vm3775, %v8136, %v6819
  %v8201 = vsel %vm3775, %v8137, %v6821
  %v8202 = vsel %vm3775, %v8138, %v6823
  %v8203 = vsel %vm3775, %v8139, %v6825
  %v8204 = vsel %vm3775, %v8140, %v6827
  %v8205 = vsel %vm3775, %v8141, %v6829
  %v8206 = vsel %vm3775, %v8142, %v6831
  %v8207 = vsel %vm3775, %v8143, %v6833
  %v8208 = vsel %vm3775, %v8144, %v6835
  %v8209 = vsel %vm3775, %v8145, %v6837
  %v8210 = vsel %vm3775, %v8146, %v6839
  %v8211 = vsel %vm3775, %v8147, %v6841
  %v8212 = vsel %vm3775, %v8148, %v6843
  %v8213 = vsel %vm3775, %v8149, %v6845
  %v8214 = vsel %vm3775, %v8150, %v6847
  %v8215 = vsel %vm3775, %v8151, %v6849
  %v8216 = vsel %vm3775, %v8152, %v6851
  %v8217 = vsel %vm3775, %v8153, %v6853
  %v8218 = vsel %vm3775, %v8154, %v6855
  %v8219 = vsel %vm3775, %v8155, %v6857
  %v8220 = vsel %vm3775, %v8156, %v6859
  %v8221 = vsel %vm3775, %v8157, %v6861
  %v8222 = vsel %vm3775, %v8158, %v6863
  %v8223 = vsel %vm3775, %v8159, %v6865
  %v8224 = vsel %vm3775, %v8160, %v6867
  %v8225 = vsel %vm3775, %v8161, %v6869
  %v8226 = vsel %vm3775, %v8162, %v6871
  %v8227 = vsel %vm3775, %v8163, %v6873
  %v8228 = vsel %vm3775, %v8164, %v6875
  %v8229 = vsel %vm3775, %v8165, %v6877
  %v8230 = vsel %vm3775, %v8166, %v6879
  %v8231 = vsel %vm3775, %v8167, %v6881
  %v8232 = vsel %vm3775, %v8168, %v6883
  %v8233 = vsel %vm3775, %v8169, %v6885
  %v8234 = vsel %vm3775, %v8170, %v6887
  %v8235 = vsel %vm3775, %v8171, %v6889
  %v8236 = vsel %vm3775, %v8172, %v6891
  %v8237 = vsel %vm3775, %v8173, %v6893
  %v8238 = vsel %vm3840, %v8174, %v7023
  %v8239 = vsel %vm3840, %v8175, %v7025
  %v8240 = vsel %vm3840, %v8176, %v7027
  %v8241 = vsel %vm3840, %v8177, %v7029
  %v8242 = vsel %vm3840, %v8178, %v7031
  %v8243 = vsel %vm3840, %v8179, %v7033
  %v8244 = vsel %vm3840, %v8180, %v7035
  %v8245 = vsel %vm3840, %v8181, %v7037
  %v8246 = vsel %vm3840, %v8182, %v7039
  %v8247 = vsel %vm3840, %v8183, %v7041
  %v8248 = vsel %vm3840, %v8184, %v7043
  %v8249 = vsel %vm3840, %v8185, %v7045
  %v8250 = vsel %vm3840, %v8186, %v7047
  %v8251 = vsel %vm3840, %v8187, %v7049
  %v8252 = vsel %vm3840, %v8188, %v7051
  %v8253 = vsel %vm3840, %v8189, %v7053
  %v8254 = vsel %vm3840, %v8190, %v7055
  %v8255 = vsel %vm3840, %v8191, %v7057
  %v8256 = vsel %vm3840, %v8192, %v7059
  %v8257 = vsel %vm3840, %v8193, %v7061
  %v8258 = vsel %vm3840, %v8194, %v7063
  %v8259 = vsel %vm3840, %v8195, %v7065
  %v8260 = vsel %vm3840, %v8196, %v7067
  %v8261 = vsel %vm3840, %v8197, %v7069
  %v8262 = vsel %vm3840, %v8198, %v7071
  %v8263 = vsel %vm3840, %v8199, %v7073
  %v8264 = vsel %vm3840, %v8200, %v7075
  %v8265 = vsel %vm3840, %v8201, %v7077
  %v8266 = vsel %vm3840, %v8202, %v7079
  %v8267 = vsel %vm3840, %v8203, %v7081
  %v8268 = vsel %vm3840, %v8204, %v7083
  %v8269 = vsel %vm3840, %v8205, %v7085
  %v8270 = vsel %vm3840, %v8206, %v7087
  %v8271 = vsel %vm3840, %v8207, %v7089
  %v8272 = vsel %vm3840, %v8208, %v7091
  %v8273 = vsel %vm3840, %v8209, %v7093
  %v8274 = vsel %vm3840, %v8210, %v7095
  %v8275 = vsel %vm3840, %v8211, %v7097
  %v8276 = vsel %vm3840, %v8212, %v7099
  %v8277 = vsel %vm3840, %v8213, %v7101
  %v8278 = vsel %vm3840, %v8214, %v7103
  %v8279 = vsel %vm3840, %v8215, %v7105
  %v8280 = vsel %vm3840, %v8216, %v7107
  %v8281 = vsel %vm3840, %v8217, %v7109
  %v8282 = vsel %vm3840, %v8218, %v7111
  %v8283 = vsel %vm3840, %v8219, %v7113
  %v8284 = vsel %vm3840, %v8220, %v7115
  %v8285 = vsel %vm3840, %v8221, %v7117
  %v8286 = vsel %vm3840, %v8222, %v7119
  %v8287 = vsel %vm3840, %v8223, %v7121
  %v8288 = vsel %vm3840, %v8224, %v7123
  %v8289 = vsel %vm3840, %v8225, %v7125
  %v8290 = vsel %vm3840, %v8226, %v7127
  %v8291 = vsel %vm3840, %v8227, %v7129
  %v8292 = vsel %vm3840, %v8228, %v7131
  %v8293 = vsel %vm3840, %v8229, %v7133
  %v8294 = vsel %vm3840, %v8230, %v7135
  %v8295 = vsel %vm3840, %v8231, %v7137
  %v8296 = vsel %vm3840, %v8232, %v7139
  %v8297 = vsel %vm3840, %v8233, %v7141
  %v8298 = vsel %vm3840, %v8234, %v7143
  %v8299 = vsel %vm3840, %v8235, %v7145
  %v8300 = vsel %vm3840, %v8236, %v7147
  %v8301 = vsel %vm3840, %v8237, %v7149
  %v8302 = vsel %vm3905, %v8238, %v7279
  %v8303 = vsel %vm3905, %v8239, %v7281
  %v8304 = vsel %vm3905, %v8240, %v7283
  %v8305 = vsel %vm3905, %v8241, %v7285
  %v8306 = vsel %vm3905, %v8242, %v7287
  %v8307 = vsel %vm3905, %v8243, %v7289
  %v8308 = vsel %vm3905, %v8244, %v7291
  %v8309 = vsel %vm3905, %v8245, %v7293
  %v8310 = vsel %vm3905, %v8246, %v7295
  %v8311 = vsel %vm3905, %v8247, %v7297
  %v8312 = vsel %vm3905, %v8248, %v7299
  %v8313 = vsel %vm3905, %v8249, %v7301
  %v8314 = vsel %vm3905, %v8250, %v7303
  %v8315 = vsel %vm3905, %v8251, %v7305
  %v8316 = vsel %vm3905, %v8252, %v7307
  %v8317 = vsel %vm3905, %v8253, %v7309
  %v8318 = vsel %vm3905, %v8254, %v7311
  %v8319 = vsel %vm3905, %v8255, %v7313
  %v8320 = vsel %vm3905, %v8256, %v7315
  %v8321 = vsel %vm3905, %v8257, %v7317
  %v8322 = vsel %vm3905, %v8258, %v7319
  %v8323 = vsel %vm3905, %v8259, %v7321
  %v8324 = vsel %vm3905, %v8260, %v7323
  %v8325 = vsel %vm3905, %v8261, %v7325
  %v8326 = vsel %vm3905, %v8262, %v7327
  %v8327 = vsel %vm3905, %v8263, %v7329
  %v8328 = vsel %vm3905, %v8264, %v7331
  %v8329 = vsel %vm3905, %v8265, %v7333
  %v8330 = vsel %vm3905, %v8266, %v7335
  %v8331 = vsel %vm3905, %v8267, %v7337
  %v8332 = vsel %vm3905, %v8268, %v7339
  %v8333 = vsel %vm3905, %v8269, %v7341
  %v8334 = vsel %vm3905, %v8270, %v7343
  %v8335 = vsel %vm3905, %v8271, %v7345
  %v8336 = vsel %vm3905, %v8272, %v7347
  %v8337 = vsel %vm3905, %v8273, %v7349
  %v8338 = vsel %vm3905, %v8274, %v7351
  %v8339 = vsel %vm3905, %v8275, %v7353
  %v8340 = vsel %vm3905, %v8276, %v7355
  %v8341 = vsel %vm3905, %v8277, %v7357
  %v8342 = vsel %vm3905, %v8278, %v7359
  %v8343 = vsel %vm3905, %v8279, %v7361
  %v8344 = vsel %vm3905, %v8280, %v7363
  %v8345 = vsel %vm3905, %v8281, %v7365
  %v8346 = vsel %vm3905, %v8282, %v7367
  %v8347 = vsel %vm3905, %v8283, %v7369
  %v8348 = vsel %vm3905, %v8284, %v7371
  %v8349 = vsel %vm3905, %v8285, %v7373
  %v8350 = vsel %vm3905, %v8286, %v7375
  %v8351 = vsel %vm3905, %v8287, %v7377
  %v8352 = vsel %vm3905, %v8288, %v7379
  %v8353 = vsel %vm3905, %v8289, %v7381
  %v8354 = vsel %vm3905, %v8290, %v7383
  %v8355 = vsel %vm3905, %v8291, %v7385
  %v8356 = vsel %vm3905, %v8292, %v7387
  %v8357 = vsel %vm3905, %v8293, %v7389
  %v8358 = vsel %vm3905, %v8294, %v7391
  %v8359 = vsel %vm3905, %v8295, %v7393
  %v8360 = vsel %vm3905, %v8296, %v7395
  %v8361 = vsel %vm3905, %v8297, %v7397
  %v8362 = vsel %vm3905, %v8298, %v7399
  %v8363 = vsel %vm3905, %v8299, %v7401
  %v8364 = vsel %vm3905, %v8300, %v7403
  %v8365 = vsel %vm3905, %v8301, %v7405
  %v8366 = vsel %vm3970, %v8302, %v7535
  %v8367 = vsel %vm3970, %v8303, %v7537
  %v8368 = vsel %vm3970, %v8304, %v7539
  %v8369 = vsel %vm3970, %v8305, %v7541
  %v8370 = vsel %vm3970, %v8306, %v7543
  %v8371 = vsel %vm3970, %v8307, %v7545
  %v8372 = vsel %vm3970, %v8308, %v7547
  %v8373 = vsel %vm3970, %v8309, %v7549
  %v8374 = vsel %vm3970, %v8310, %v7551
  %v8375 = vsel %vm3970, %v8311, %v7553
  %v8376 = vsel %vm3970, %v8312, %v7555
  %v8377 = vsel %vm3970, %v8313, %v7557
  %v8378 = vsel %vm3970, %v8314, %v7559
  %v8379 = vsel %vm3970, %v8315, %v7561
  %v8380 = vsel %vm3970, %v8316, %v7563
  %v8381 = vsel %vm3970, %v8317, %v7565
  %v8382 = vsel %vm3970, %v8318, %v7567
  %v8383 = vsel %vm3970, %v8319, %v7569
  %v8384 = vsel %vm3970, %v8320, %v7571
  %v8385 = vsel %vm3970, %v8321, %v7573
  %v8386 = vsel %vm3970, %v8322, %v7575
  %v8387 = vsel %vm3970, %v8323, %v7577
  %v8388 = vsel %vm3970, %v8324, %v7579
  %v8389 = vsel %vm3970, %v8325, %v7581
  %v8390 = vsel %vm3970, %v8326, %v7583
  %v8391 = vsel %vm3970, %v8327, %v7585
  %v8392 = vsel %vm3970, %v8328, %v7587
  %v8393 = vsel %vm3970, %v8329, %v7589
  %v8394 = vsel %vm3970, %v8330, %v7591
  %v8395 = vsel %vm3970, %v8331, %v7593
  %v8396 = vsel %vm3970, %v8332, %v7595
  %v8397 = vsel %vm3970, %v8333, %v7597
  %v8398 = vsel %vm3970, %v8334, %v7599
  %v8399 = vsel %vm3970, %v8335, %v7601
  %v8400 = vsel %vm3970, %v8336, %v7603
  %v8401 = vsel %vm3970, %v8337, %v7605
  %v8402 = vsel %vm3970, %v8338, %v7607
  %v8403 = vsel %vm3970, %v8339, %v7609
  %v8404 = vsel %vm3970, %v8340, %v7611
  %v8405 = vsel %vm3970, %v8341, %v7613
  %v8406 = vsel %vm3970, %v8342, %v7615
  %v8407 = vsel %vm3970, %v8343, %v7617
  %v8408 = vsel %vm3970, %v8344, %v7619
  %v8409 = vsel %vm3970, %v8345, %v7621
  %v8410 = vsel %vm3970, %v8346, %v7623
  %v8411 = vsel %vm3970, %v8347, %v7625
  %v8412 = vsel %vm3970, %v8348, %v7627
  %v8413 = vsel %vm3970, %v8349, %v7629
  %v8414 = vsel %vm3970, %v8350, %v7631
  %v8415 = vsel %vm3970, %v8351, %v7633
  %v8416 = vsel %vm3970, %v8352, %v7635
  %v8417 = vsel %vm3970, %v8353, %v7637
  %v8418 = vsel %vm3970, %v8354, %v7639
  %v8419 = vsel %vm3970, %v8355, %v7641
  %v8420 = vsel %vm3970, %v8356, %v7643
  %v8421 = vsel %vm3970, %v8357, %v7645
  %v8422 = vsel %vm3970, %v8358, %v7647
  %v8423 = vsel %vm3970, %v8359, %v7649
  %v8424 = vsel %vm3970, %v8360, %v7651
  %v8425 = vsel %vm3970, %v8361, %v7653
  %v8426 = vsel %vm3970, %v8362, %v7655
  %v8427 = vsel %vm3970, %v8363, %v7657
  %v8428 = vsel %vm3970, %v8364, %v7659
  %v8429 = vsel %vm3970, %v8365, %v7661
  %v8430 = vsel %vm4035, %v8366, %v7791
  %v8431 = vsel %vm4035, %v8367, %v7793
  %v8432 = vsel %vm4035, %v8368, %v7795
  %v8433 = vsel %vm4035, %v8369, %v7797
  %v8434 = vsel %vm4035, %v8370, %v7799
  %v8435 = vsel %vm4035, %v8371, %v7801
  %v8436 = vsel %vm4035, %v8372, %v7803
  %v8437 = vsel %vm4035, %v8373, %v7805
  %v8438 = vsel %vm4035, %v8374, %v7807
  %v8439 = vsel %vm4035, %v8375, %v7809
  %v8440 = vsel %vm4035, %v8376, %v7811
  %v8441 = vsel %vm4035, %v8377, %v7813
  %v8442 = vsel %vm4035, %v8378, %v7815
  %v8443 = vsel %vm4035, %v8379, %v7817
  %v8444 = vsel %vm4035, %v8380, %v7819
  %v8445 = vsel %vm4035, %v8381, %v7821
  %v8446 = vsel %vm4035, %v8382, %v7823
  %v8447 = vsel %vm4035, %v8383, %v7825
  %v8448 = vsel %vm4035, %v8384, %v7827
  %v8449 = vsel %vm4035, %v8385, %v7829
  %v8450 = vsel %vm4035, %v8386, %v7831
  %v8451 = vsel %vm4035, %v8387, %v7833
  %v8452 = vsel %vm4035, %v8388, %v7835
  %v8453 = vsel %vm4035, %v8389, %v7837
  %v8454 = vsel %vm4035, %v8390, %v7839
  %v8455 = vsel %vm4035, %v8391, %v7841
  %v8456 = vsel %vm4035, %v8392, %v7843
  %v8457 = vsel %vm4035, %v8393, %v7845
  %v8458 = vsel %vm4035, %v8394, %v7847
  %v8459 = vsel %vm4035, %v8395, %v7849
  %v8460 = vsel %vm4035, %v8396, %v7851
  %v8461 = vsel %vm4035, %v8397, %v7853
  %v8462 = vsel %vm4035, %v8398, %v7855
  %v8463 = vsel %vm4035, %v8399, %v7857
  %v8464 = vsel %vm4035, %v8400, %v7859
  %v8465 = vsel %vm4035, %v8401, %v7861
  %v8466 = vsel %vm4035, %v8402, %v7863
  %v8467 = vsel %vm4035, %v8403, %v7865
  %v8468 = vsel %vm4035, %v8404, %v7867
  %v8469 = vsel %vm4035, %v8405, %v7869
  %v8470 = vsel %vm4035, %v8406, %v7871
  %v8471 = vsel %vm4035, %v8407, %v7873
  %v8472 = vsel %vm4035, %v8408, %v7875
  %v8473 = vsel %vm4035, %v8409, %v7877
  %v8474 = vsel %vm4035, %v8410, %v7879
  %v8475 = vsel %vm4035, %v8411, %v7881
  %v8476 = vsel %vm4035, %v8412, %v7883
  %v8477 = vsel %vm4035, %v8413, %v7885
  %v8478 = vsel %vm4035, %v8414, %v7887
  %v8479 = vsel %vm4035, %v8415, %v7889
  %v8480 = vsel %vm4035, %v8416, %v7891
  %v8481 = vsel %vm4035, %v8417, %v7893
  %v8482 = vsel %vm4035, %v8418, %v7895
  %v8483 = vsel %vm4035, %v8419, %v7897
  %v8484 = vsel %vm4035, %v8420, %v7899
  %v8485 = vsel %vm4035, %v8421, %v7901
  %v8486 = vsel %vm4035, %v8422, %v7903
  %v8487 = vsel %vm4035, %v8423, %v7905
  %v8488 = vsel %vm4035, %v8424, %v7907
  %v8489 = vsel %vm4035, %v8425, %v7909
  %v8490 = vsel %vm4035, %v8426, %v7911
  %v8491 = vsel %vm4035, %v8427, %v7913
  %v8492 = vsel %vm4035, %v8428, %v7915
  %v8493 = vsel %vm4035, %v8429, %v7917
  %v8494 = vld [vmem:[%s2] sm:$0xff]
  %v8495 = vld [vmem:[%s2 + $0x8] sm:$0xff]
  %v8496 = vld [vmem:[%s2 + $0x10] sm:$0xff]
  %v8497 = vld [vmem:[%s2 + $0x18] sm:$0xff]
  %v8498 = vld [vmem:[%s2 + $0x20] sm:$0xf]
  %v8500 = vsel %vm4105, %v8430, 0
  %v8503 = vsel %vm4105, %v8431, 0
  %v8506 = vsel %vm4105, %v8432, 0
  %v8509 = vsel %vm4105, %v8433, 0
  %v8512 = vsel %vm4105, %v8434, 0
  %v8515 = vsel %vm4105, %v8435, 0
  %v8518 = vsel %vm4105, %v8436, 0
  %v8521 = vsel %vm4105, %v8437, 0
  %v8524 = vsel %vm4105, %v8438, 0
  %v8527 = vsel %vm4105, %v8439, 0
  %v8530 = vsel %vm4105, %v8440, 0
  %v8533 = vsel %vm4105, %v8441, 0
  %v8536 = vsel %vm4105, %v8442, 0
  %v8539 = vsel %vm4105, %v8443, 0
  %v8542 = vsel %vm4105, %v8444, 0
  %v8545 = vsel %vm4105, %v8445, 0
  %v8548 = vsel %vm4105, %v8446, 0
  %v8551 = vsel %vm4105, %v8447, 0
  %v8554 = vsel %vm4105, %v8448, 0
  %v8557 = vsel %vm4105, %v8449, 0
  %v8560 = vsel %vm4105, %v8450, 0
  %v8563 = vsel %vm4105, %v8451, 0
  %v8566 = vsel %vm4105, %v8452, 0
  %v8569 = vsel %vm4105, %v8453, 0
  %v8572 = vsel %vm4105, %v8454, 0
  %v8575 = vsel %vm4105, %v8455, 0
  %v8578 = vsel %vm4105, %v8456, 0
  %v8581 = vsel %vm4105, %v8457, 0
  %v8584 = vsel %vm4105, %v8458, 0
  %v8587 = vsel %vm4105, %v8459, 0
  %v8590 = vsel %vm4105, %v8460, 0
  %v8593 = vsel %vm4105, %v8461, 0
  %v8596 = vsel %vm4105, %v8462, 0
  %v8599 = vsel %vm4105, %v8463, 0
  %v8602 = vsel %vm4105, %v8464, 0
  %v8605 = vsel %vm4105, %v8465, 0
  %v8608 = vsel %vm4105, %v8466, 0
  %v8611 = vsel %vm4105, %v8467, 0
  %v8614 = vsel %vm4105, %v8468, 0
  %v8617 = vsel %vm4105, %v8469, 0
  %v8620 = vsel %vm4105, %v8470, 0
  %v8623 = vsel %vm4105, %v8471, 0
  %v8626 = vsel %vm4105, %v8472, 0
  %v8629 = vsel %vm4105, %v8473, 0
  %v8632 = vsel %vm4105, %v8474, 0
  %v8635 = vsel %vm4105, %v8475, 0
  %v8638 = vsel %vm4105, %v8476, 0
  %v8641 = vsel %vm4105, %v8477, 0
  %v8644 = vsel %vm4105, %v8478, 0
  %v8647 = vsel %vm4105, %v8479, 0
  %v8650 = vsel %vm4105, %v8480, 0
  %v8653 = vsel %vm4105, %v8481, 0
  %v8656 = vsel %vm4105, %v8482, 0
  %v8659 = vsel %vm4105, %v8483, 0
  %v8662 = vsel %vm4105, %v8484, 0
  %v8665 = vsel %vm4105, %v8485, 0
  %v8668 = vsel %vm4105, %v8486, 0
  %v8671 = vsel %vm4105, %v8487, 0
  %v8674 = vsel %vm4105, %v8488, 0
  %v8677 = vsel %vm4105, %v8489, 0
  %v8680 = vsel %vm4105, %v8490, 0
  %v8683 = vsel %vm4105, %v8491, 0
  %v8686 = vsel %vm4105, %v8492, 0
  %v8689 = vsel %vm4105, %v8493, 0
  %v8692 = vsel %vm4298, %v8498, 0
  %8694 = vmatpush.msra.mxu0 0.0
  %8695 = vmatpush.msra.mxu0 0.0
  %8696 = vmatpush.msra.mxu0 0.0
  %8697 = vmatpush.msra.mxu0 0.0
  %8698 = vmatpush.msra.mxu0 0.0
  %8699 = vmatpush.msra.mxu0 0.0
  %8700 = vmatpush.msra.mxu0 0.0
  %8701 = vmatpush.msra.mxu0 0.0
  %8702 = vmatpush.msra.mxu0 0.0
  %8703 = vmatpush.msra.mxu0 0.0
  %8704 = vmatpush.msra.mxu0 0.0
  %8705 = vmatpush.msra.mxu0 %v8692
  %8706 = vmatpush.msra.mxu0 %v8497
  %8707 = vmatpush.msra.mxu0 %v8496
  %8708 = vmatpush.msra.mxu0 %v8495
  %8709 = vmatpush.msra.mxu0 %v8494
  %8710 = vmatmul.f32.gmra.mxu0 %v8500
  %v8711 = vpop.f32.mrf.mxu0
  %v8712 = vadd.f32 0.0, %v8711
  %8713 = vmatmul.f32.gmra.mxu0 %v8503
  %v8714 = vpop.f32.mrf.mxu0
  %v8715 = vadd.f32 0.0, %v8714
  %8716 = vmatmul.f32.gmra.mxu0 %v8506
  %v8717 = vpop.f32.mrf.mxu0
  %v8718 = vadd.f32 0.0, %v8717
  %8719 = vmatmul.f32.gmra.mxu0 %v8509
  %v8720 = vpop.f32.mrf.mxu0
  %v8721 = vadd.f32 0.0, %v8720
  %8722 = vmatmul.f32.gmra.mxu0 %v8512
  %v8723 = vpop.f32.mrf.mxu0
  %v8724 = vadd.f32 0.0, %v8723
  %8725 = vmatmul.f32.gmra.mxu0 %v8515
  %v8726 = vpop.f32.mrf.mxu0
  %v8727 = vadd.f32 0.0, %v8726
  %8728 = vmatmul.f32.gmra.mxu0 %v8518
  %v8729 = vpop.f32.mrf.mxu0
  %v8730 = vadd.f32 0.0, %v8729
  %8731 = vmatmul.f32.gmra.mxu0 %v8521
  %v8732 = vpop.f32.mrf.mxu0
  %v8733 = vadd.f32 0.0, %v8732
  %8734 = vmatmul.f32.gmra.mxu0 %v8524
  %v8735 = vpop.f32.mrf.mxu0
  %v8736 = vadd.f32 0.0, %v8735
  %8737 = vmatmul.f32.gmra.mxu0 %v8527
  %v8738 = vpop.f32.mrf.mxu0
  %v8739 = vadd.f32 0.0, %v8738
  %8740 = vmatmul.f32.gmra.mxu0 %v8530
  %v8741 = vpop.f32.mrf.mxu0
  %v8742 = vadd.f32 0.0, %v8741
  %8743 = vmatmul.f32.gmra.mxu0 %v8533
  %v8744 = vpop.f32.mrf.mxu0
  %v8745 = vadd.f32 0.0, %v8744
  %8746 = vmatmul.f32.gmra.mxu0 %v8536
  %v8747 = vpop.f32.mrf.mxu0
  %v8748 = vadd.f32 0.0, %v8747
  %8749 = vmatmul.f32.gmra.mxu0 %v8539
  %v8750 = vpop.f32.mrf.mxu0
  %v8751 = vadd.f32 0.0, %v8750
  %8752 = vmatmul.f32.gmra.mxu0 %v8542
  %v8753 = vpop.f32.mrf.mxu0
  %v8754 = vadd.f32 0.0, %v8753
  %8755 = vmatmul.f32.gmra.mxu0 %v8545
  %v8756 = vpop.f32.mrf.mxu0
  %v8757 = vadd.f32 0.0, %v8756
  %8758 = vmatmul.f32.gmra.mxu0 %v8548
  %v8759 = vpop.f32.mrf.mxu0
  %v8760 = vadd.f32 0.0, %v8759
  %8761 = vmatmul.f32.gmra.mxu0 %v8551
  %v8762 = vpop.f32.mrf.mxu0
  %v8763 = vadd.f32 0.0, %v8762
  %8764 = vmatmul.f32.gmra.mxu0 %v8554
  %v8765 = vpop.f32.mrf.mxu0
  %v8766 = vadd.f32 0.0, %v8765
  %8767 = vmatmul.f32.gmra.mxu0 %v8557
  %v8768 = vpop.f32.mrf.mxu0
  %v8769 = vadd.f32 0.0, %v8768
  %8770 = vmatmul.f32.gmra.mxu0 %v8560
  %v8771 = vpop.f32.mrf.mxu0
  %v8772 = vadd.f32 0.0, %v8771
  %8773 = vmatmul.f32.gmra.mxu0 %v8563
  %v8774 = vpop.f32.mrf.mxu0
  %v8775 = vadd.f32 0.0, %v8774
  %8776 = vmatmul.f32.gmra.mxu0 %v8566
  %v8777 = vpop.f32.mrf.mxu0
  %v8778 = vadd.f32 0.0, %v8777
  %8779 = vmatmul.f32.gmra.mxu0 %v8569
  %v8780 = vpop.f32.mrf.mxu0
  %v8781 = vadd.f32 0.0, %v8780
  %8782 = vmatmul.f32.gmra.mxu0 %v8572
  %v8783 = vpop.f32.mrf.mxu0
  %v8784 = vadd.f32 0.0, %v8783
  %8785 = vmatmul.f32.gmra.mxu0 %v8575
  %v8786 = vpop.f32.mrf.mxu0
  %v8787 = vadd.f32 0.0, %v8786
  %8788 = vmatmul.f32.gmra.mxu0 %v8578
  %v8789 = vpop.f32.mrf.mxu0
  %v8790 = vadd.f32 0.0, %v8789
  %8791 = vmatmul.f32.gmra.mxu0 %v8581
  %v8792 = vpop.f32.mrf.mxu0
  %v8793 = vadd.f32 0.0, %v8792
  %8794 = vmatmul.f32.gmra.mxu0 %v8584
  %v8795 = vpop.f32.mrf.mxu0
  %v8796 = vadd.f32 0.0, %v8795
  %8797 = vmatmul.f32.gmra.mxu0 %v8587
  %v8798 = vpop.f32.mrf.mxu0
  %v8799 = vadd.f32 0.0, %v8798
  %8800 = vmatmul.f32.gmra.mxu0 %v8590
  %v8801 = vpop.f32.mrf.mxu0
  %v8802 = vadd.f32 0.0, %v8801
  %8803 = vmatmul.f32.gmra.mxu0 %v8593
  %v8804 = vpop.f32.mrf.mxu0
  %v8805 = vadd.f32 0.0, %v8804
  %8806 = vmatmul.f32.gmra.mxu0 %v8596
  %v8807 = vpop.f32.mrf.mxu0
  %v8808 = vadd.f32 0.0, %v8807
  %8809 = vmatmul.f32.gmra.mxu0 %v8599
  %v8810 = vpop.f32.mrf.mxu0
  %v8811 = vadd.f32 0.0, %v8810
  %8812 = vmatmul.f32.gmra.mxu0 %v8602
  %v8813 = vpop.f32.mrf.mxu0
  %v8814 = vadd.f32 0.0, %v8813
  %8815 = vmatmul.f32.gmra.mxu0 %v8605
  %v8816 = vpop.f32.mrf.mxu0
  %v8817 = vadd.f32 0.0, %v8816
  %8818 = vmatmul.f32.gmra.mxu0 %v8608
  %v8819 = vpop.f32.mrf.mxu0
  %v8820 = vadd.f32 0.0, %v8819
  %8821 = vmatmul.f32.gmra.mxu0 %v8611
  %v8822 = vpop.f32.mrf.mxu0
  %v8823 = vadd.f32 0.0, %v8822
  %8824 = vmatmul.f32.gmra.mxu0 %v8614
  %v8825 = vpop.f32.mrf.mxu0
  %v8826 = vadd.f32 0.0, %v8825
  %8827 = vmatmul.f32.gmra.mxu0 %v8617
  %v8828 = vpop.f32.mrf.mxu0
  %v8829 = vadd.f32 0.0, %v8828
  %8830 = vmatmul.f32.gmra.mxu0 %v8620
  %v8831 = vpop.f32.mrf.mxu0
  %v8832 = vadd.f32 0.0, %v8831
  %8833 = vmatmul.f32.gmra.mxu0 %v8623
  %v8834 = vpop.f32.mrf.mxu0
  %v8835 = vadd.f32 0.0, %v8834
  %8836 = vmatmul.f32.gmra.mxu0 %v8626
  %v8837 = vpop.f32.mrf.mxu0
  %v8838 = vadd.f32 0.0, %v8837
  %8839 = vmatmul.f32.gmra.mxu0 %v8629
  %v8840 = vpop.f32.mrf.mxu0
  %v8841 = vadd.f32 0.0, %v8840
  %8842 = vmatmul.f32.gmra.mxu0 %v8632
  %v8843 = vpop.f32.mrf.mxu0
  %v8844 = vadd.f32 0.0, %v8843
  %8845 = vmatmul.f32.gmra.mxu0 %v8635
  %v8846 = vpop.f32.mrf.mxu0
  %v8847 = vadd.f32 0.0, %v8846
  %8848 = vmatmul.f32.gmra.mxu0 %v8638
  %v8849 = vpop.f32.mrf.mxu0
  %v8850 = vadd.f32 0.0, %v8849
  %8851 = vmatmul.f32.gmra.mxu0 %v8641
  %v8852 = vpop.f32.mrf.mxu0
  %v8853 = vadd.f32 0.0, %v8852
  %8854 = vmatmul.f32.gmra.mxu0 %v8644
  %v8855 = vpop.f32.mrf.mxu0
  %v8856 = vadd.f32 0.0, %v8855
  %8857 = vmatmul.f32.gmra.mxu0 %v8647
  %v8858 = vpop.f32.mrf.mxu0
  %v8859 = vadd.f32 0.0, %v8858
  %8860 = vmatmul.f32.gmra.mxu0 %v8650
  %v8861 = vpop.f32.mrf.mxu0
  %v8862 = vadd.f32 0.0, %v8861
  %8863 = vmatmul.f32.gmra.mxu0 %v8653
  %v8864 = vpop.f32.mrf.mxu0
  %v8865 = vadd.f32 0.0, %v8864
  %8866 = vmatmul.f32.gmra.mxu0 %v8656
  %v8867 = vpop.f32.mrf.mxu0
  %v8868 = vadd.f32 0.0, %v8867
  %8869 = vmatmul.f32.gmra.mxu0 %v8659
  %v8870 = vpop.f32.mrf.mxu0
  %v8871 = vadd.f32 0.0, %v8870
  %8872 = vmatmul.f32.gmra.mxu0 %v8662
  %v8873 = vpop.f32.mrf.mxu0
  %v8874 = vadd.f32 0.0, %v8873
  %8875 = vmatmul.f32.gmra.mxu0 %v8665
  %v8876 = vpop.f32.mrf.mxu0
  %v8877 = vadd.f32 0.0, %v8876
  %8878 = vmatmul.f32.gmra.mxu0 %v8668
  %v8879 = vpop.f32.mrf.mxu0
  %v8880 = vadd.f32 0.0, %v8879
  %8881 = vmatmul.f32.gmra.mxu0 %v8671
  %v8882 = vpop.f32.mrf.mxu0
  %v8883 = vadd.f32 0.0, %v8882
  %8884 = vmatmul.f32.gmra.mxu0 %v8674
  %v8885 = vpop.f32.mrf.mxu0
  %v8886 = vadd.f32 0.0, %v8885
  %8887 = vmatmul.f32.gmra.mxu0 %v8677
  %v8888 = vpop.f32.mrf.mxu0
  %v8889 = vadd.f32 0.0, %v8888
  %8890 = vmatmul.f32.gmra.mxu0 %v8680
  %v8891 = vpop.f32.mrf.mxu0
  %v8892 = vadd.f32 0.0, %v8891
  %8893 = vmatmul.f32.gmra.mxu0 %v8683
  %v8894 = vpop.f32.mrf.mxu0
  %v8895 = vadd.f32 0.0, %v8894
  %8896 = vmatmul.f32.gmra.mxu0 %v8686
  %v8897 = vpop.f32.mrf.mxu0
  %v8898 = vadd.f32 0.0, %v8897
  %8899 = vmatmul.f32.gmra.mxu0 %v8689
  %v8900 = vpop.f32.mrf.mxu0
  %v8901 = vadd.f32 0.0, %v8900
  %8902 = vdwg.mxu0
  %v8903 = vsel %vm108, %v8712, 0.0
  %v8904 = vsel %vm108, %v8715, 0.0
  %v8905 = vadd.f32 %v8903, %v8904
  %v8906 = vsel %vm108, %v8718, 0.0
  %v8907 = vadd.f32 %v8905, %v8906
  %v8908 = vsel %vm108, %v8721, 0.0
  %v8909 = vadd.f32 %v8907, %v8908
  %v8910 = vsel %vm108, %v8724, 0.0
  %v8911 = vadd.f32 %v8909, %v8910
  %v8912 = vsel %vm108, %v8727, 0.0
  %v8913 = vadd.f32 %v8911, %v8912
  %v8914 = vsel %vm108, %v8730, 0.0
  %v8915 = vadd.f32 %v8913, %v8914
  %v8916 = vsel %vm108, %v8733, 0.0
  %v8917 = vadd.f32 %v8915, %v8916
  %v8918 = vsel %vm108, %v8736, 0.0
  %v8919 = vadd.f32 %v8917, %v8918
  %v8920 = vsel %vm108, %v8739, 0.0
  %v8921 = vadd.f32 %v8919, %v8920
  %v8922 = vsel %vm108, %v8742, 0.0
  %v8923 = vadd.f32 %v8921, %v8922
  %v8924 = vsel %vm108, %v8745, 0.0
  %v8925 = vadd.f32 %v8923, %v8924
  %v8926 = vsel %vm108, %v8748, 0.0
  %v8927 = vadd.f32 %v8925, %v8926
  %v8928 = vsel %vm108, %v8751, 0.0
  %v8929 = vadd.f32 %v8927, %v8928
  %v8930 = vsel %vm108, %v8754, 0.0
  %v8931 = vadd.f32 %v8929, %v8930
  %v8932 = vsel %vm108, %v8757, 0.0
  %v8933 = vadd.f32 %v8931, %v8932
  %v8934 = vsel %vm108, %v8760, 0.0
  %v8935 = vadd.f32 %v8933, %v8934
  %v8936 = vsel %vm108, %v8763, 0.0
  %v8937 = vadd.f32 %v8935, %v8936
  %v8938 = vsel %vm108, %v8766, 0.0
  %v8939 = vadd.f32 %v8937, %v8938
  %v8940 = vsel %vm108, %v8769, 0.0
  %v8941 = vadd.f32 %v8939, %v8940
  %v8942 = vsel %vm108, %v8772, 0.0
  %v8943 = vadd.f32 %v8941, %v8942
  %v8944 = vsel %vm108, %v8775, 0.0
  %v8945 = vadd.f32 %v8943, %v8944
  %v8946 = vsel %vm108, %v8778, 0.0
  %v8947 = vadd.f32 %v8945, %v8946
  %v8948 = vsel %vm108, %v8781, 0.0
  %v8949 = vadd.f32 %v8947, %v8948
  %v8950 = vsel %vm108, %v8784, 0.0
  %v8951 = vadd.f32 %v8949, %v8950
  %v8952 = vsel %vm108, %v8787, 0.0
  %v8953 = vadd.f32 %v8951, %v8952
  %v8954 = vsel %vm108, %v8790, 0.0
  %v8955 = vadd.f32 %v8953, %v8954
  %v8956 = vsel %vm108, %v8793, 0.0
  %v8957 = vadd.f32 %v8955, %v8956
  %v8958 = vsel %vm108, %v8796, 0.0
  %v8959 = vadd.f32 %v8957, %v8958
  %v8960 = vsel %vm108, %v8799, 0.0
  %v8961 = vadd.f32 %v8959, %v8960
  %v8962 = vsel %vm108, %v8802, 0.0
  %v8963 = vadd.f32 %v8961, %v8962
  %v8964 = vsel %vm108, %v8805, 0.0
  %v8965 = vadd.f32 %v8963, %v8964
  %v8966 = vsel %vm108, %v8808, 0.0
  %v8967 = vadd.f32 %v8965, %v8966
  %v8968 = vsel %vm108, %v8811, 0.0
  %v8969 = vadd.f32 %v8967, %v8968
  %v8970 = vsel %vm108, %v8814, 0.0
  %v8971 = vadd.f32 %v8969, %v8970
  %v8972 = vsel %vm108, %v8817, 0.0
  %v8973 = vadd.f32 %v8971, %v8972
  %v8974 = vsel %vm108, %v8820, 0.0
  %v8975 = vadd.f32 %v8973, %v8974
  %v8976 = vsel %vm108, %v8823, 0.0
  %v8977 = vadd.f32 %v8975, %v8976
  %v8978 = vsel %vm108, %v8826, 0.0
  %v8979 = vadd.f32 %v8977, %v8978
  %v8980 = vsel %vm108, %v8829, 0.0
  %v8981 = vadd.f32 %v8979, %v8980
  %v8982 = vsel %vm108, %v8832, 0.0
  %v8983 = vadd.f32 %v8981, %v8982
  %v8984 = vsel %vm108, %v8835, 0.0
  %v8985 = vadd.f32 %v8983, %v8984
  %v8986 = vsel %vm108, %v8838, 0.0
  %v8987 = vadd.f32 %v8985, %v8986
  %v8988 = vsel %vm108, %v8841, 0.0
  %v8989 = vadd.f32 %v8987, %v8988
  %v8990 = vsel %vm108, %v8844, 0.0
  %v8991 = vadd.f32 %v8989, %v8990
  %v8992 = vsel %vm108, %v8847, 0.0
  %v8993 = vadd.f32 %v8991, %v8992
  %v8994 = vsel %vm108, %v8850, 0.0
  %v8995 = vadd.f32 %v8993, %v8994
  %v8996 = vsel %vm108, %v8853, 0.0
  %v8997 = vadd.f32 %v8995, %v8996
  %v8998 = vsel %vm108, %v8856, 0.0
  %v8999 = vadd.f32 %v8997, %v8998
  %v9000 = vsel %vm108, %v8859, 0.0
  %v9001 = vadd.f32 %v8999, %v9000
  %v9002 = vsel %vm108, %v8862, 0.0
  %v9003 = vadd.f32 %v9001, %v9002
  %v9004 = vsel %vm108, %v8865, 0.0
  %v9005 = vadd.f32 %v9003, %v9004
  %v9006 = vsel %vm108, %v8868, 0.0
  %v9007 = vadd.f32 %v9005, %v9006
  %v9008 = vsel %vm108, %v8871, 0.0
  %v9009 = vadd.f32 %v9007, %v9008
  %v9010 = vsel %vm108, %v8874, 0.0
  %v9011 = vadd.f32 %v9009, %v9010
  %v9012 = vsel %vm108, %v8877, 0.0
  %v9013 = vadd.f32 %v9011, %v9012
  %v9014 = vsel %vm108, %v8880, 0.0
  %v9015 = vadd.f32 %v9013, %v9014
  %v9016 = vsel %vm108, %v8883, 0.0
  %v9017 = vadd.f32 %v9015, %v9016
  %v9018 = vsel %vm108, %v8886, 0.0
  %v9019 = vadd.f32 %v9017, %v9018
  %v9020 = vsel %vm108, %v8889, 0.0
  %v9021 = vadd.f32 %v9019, %v9020
  %v9022 = vsel %vm108, %v8892, 0.0
  %v9023 = vadd.f32 %v9021, %v9022
  %v9024 = vsel %vm108, %v8895, 0.0
  %v9025 = vadd.f32 %v9023, %v9024
  %v9026 = vsel %vm108, %v8898, 0.0
  %v9027 = vadd.f32 %v9025, %v9026
  %v9028 = vsel %vm108, %v8901, 0.0
  %v9029 = vadd.f32 %v9027, %v9028
  %v9030 = vrot.slane %v9029, 4
  %v9031 = vadd.f32 %v9029, %v9030
  %v9032 = vrot.slane %v9031, 2
  %v9033 = vadd.f32 %v9031, %v9032
  %v9034 = vrot.slane %v9033, 1
  %v9035 = vadd.f32 %v9033, %v9034
  %v9036 = vmul.f32 %v9035, 0.001953125
  %v9037 = vmul.f32 %v8712, %v8712
  %v9038 = vmul.f32 %v8715, %v8715
  %v9039 = vmul.f32 %v8718, %v8718
  %v9040 = vmul.f32 %v8721, %v8721
  %v9041 = vmul.f32 %v8724, %v8724
  %v9042 = vmul.f32 %v8727, %v8727
  %v9043 = vmul.f32 %v8730, %v8730
  %v9044 = vmul.f32 %v8733, %v8733
  %v9045 = vmul.f32 %v8736, %v8736
  %v9046 = vmul.f32 %v8739, %v8739
  %v9047 = vmul.f32 %v8742, %v8742
  %v9048 = vmul.f32 %v8745, %v8745
  %v9049 = vmul.f32 %v8748, %v8748
  %v9050 = vmul.f32 %v8751, %v8751
  %v9051 = vmul.f32 %v8754, %v8754
  %v9052 = vmul.f32 %v8757, %v8757
  %v9053 = vmul.f32 %v8760, %v8760
  %v9054 = vmul.f32 %v8763, %v8763
  %v9055 = vmul.f32 %v8766, %v8766
  %v9056 = vmul.f32 %v8769, %v8769
  %v9057 = vmul.f32 %v8772, %v8772
  %v9058 = vmul.f32 %v8775, %v8775
  %v9059 = vmul.f32 %v8778, %v8778
  %v9060 = vmul.f32 %v8781, %v8781
  %v9061 = vmul.f32 %v8784, %v8784
  %v9062 = vmul.f32 %v8787, %v8787
  %v9063 = vmul.f32 %v8790, %v8790
  %v9064 = vmul.f32 %v8793, %v8793
  %v9065 = vmul.f32 %v8796, %v8796
  %v9066 = vmul.f32 %v8799, %v8799
  %v9067 = vmul.f32 %v8802, %v8802
  %v9068 = vmul.f32 %v8805, %v8805
  %v9069 = vmul.f32 %v8808, %v8808
  %v9070 = vmul.f32 %v8811, %v8811
  %v9071 = vmul.f32 %v8814, %v8814
  %v9072 = vmul.f32 %v8817, %v8817
  %v9073 = vmul.f32 %v8820, %v8820
  %v9074 = vmul.f32 %v8823, %v8823
  %v9075 = vmul.f32 %v8826, %v8826
  %v9076 = vmul.f32 %v8829, %v8829
  %v9077 = vmul.f32 %v8832, %v8832
  %v9078 = vmul.f32 %v8835, %v8835
  %v9079 = vmul.f32 %v8838, %v8838
  %v9080 = vmul.f32 %v8841, %v8841
  %v9081 = vmul.f32 %v8844, %v8844
  %v9082 = vmul.f32 %v8847, %v8847
  %v9083 = vmul.f32 %v8850, %v8850
  %v9084 = vmul.f32 %v8853, %v8853
  %v9085 = vmul.f32 %v8856, %v8856
  %v9086 = vmul.f32 %v8859, %v8859
  %v9087 = vmul.f32 %v8862, %v8862
  %v9088 = vmul.f32 %v8865, %v8865
  %v9089 = vmul.f32 %v8868, %v8868
  %v9090 = vmul.f32 %v8871, %v8871
  %v9091 = vmul.f32 %v8874, %v8874
  %v9092 = vmul.f32 %v8877, %v8877
  %v9093 = vmul.f32 %v8880, %v8880
  %v9094 = vmul.f32 %v8883, %v8883
  %v9095 = vmul.f32 %v8886, %v8886
  %v9096 = vmul.f32 %v8889, %v8889
  %v9097 = vmul.f32 %v8892, %v8892
  %v9098 = vmul.f32 %v8895, %v8895
  %v9099 = vmul.f32 %v8898, %v8898
  %v9100 = vmul.f32 %v8901, %v8901
  %v9101 = vsel %vm108, %v9037, 0.0
  %v9102 = vsel %vm108, %v9038, 0.0
  %v9103 = vadd.f32 %v9101, %v9102
  %v9104 = vsel %vm108, %v9039, 0.0
  %v9105 = vadd.f32 %v9103, %v9104
  %v9106 = vsel %vm108, %v9040, 0.0
  %v9107 = vadd.f32 %v9105, %v9106
  %v9108 = vsel %vm108, %v9041, 0.0
  %v9109 = vadd.f32 %v9107, %v9108
  %v9110 = vsel %vm108, %v9042, 0.0
  %v9111 = vadd.f32 %v9109, %v9110
  %v9112 = vsel %vm108, %v9043, 0.0
  %v9113 = vadd.f32 %v9111, %v9112
  %v9114 = vsel %vm108, %v9044, 0.0
  %v9115 = vadd.f32 %v9113, %v9114
  %v9116 = vsel %vm108, %v9045, 0.0
  %v9117 = vadd.f32 %v9115, %v9116
  %v9118 = vsel %vm108, %v9046, 0.0
  %v9119 = vadd.f32 %v9117, %v9118
  %v9120 = vsel %vm108, %v9047, 0.0
  %v9121 = vadd.f32 %v9119, %v9120
  %v9122 = vsel %vm108, %v9048, 0.0
  %v9123 = vadd.f32 %v9121, %v9122
  %v9124 = vsel %vm108, %v9049, 0.0
  %v9125 = vadd.f32 %v9123, %v9124
  %v9126 = vsel %vm108, %v9050, 0.0
  %v9127 = vadd.f32 %v9125, %v9126
  %v9128 = vsel %vm108, %v9051, 0.0
  %v9129 = vadd.f32 %v9127, %v9128
  %v9130 = vsel %vm108, %v9052, 0.0
  %v9131 = vadd.f32 %v9129, %v9130
  %v9132 = vsel %vm108, %v9053, 0.0
  %v9133 = vadd.f32 %v9131, %v9132
  %v9134 = vsel %vm108, %v9054, 0.0
  %v9135 = vadd.f32 %v9133, %v9134
  %v9136 = vsel %vm108, %v9055, 0.0
  %v9137 = vadd.f32 %v9135, %v9136
  %v9138 = vsel %vm108, %v9056, 0.0
  %v9139 = vadd.f32 %v9137, %v9138
  %v9140 = vsel %vm108, %v9057, 0.0
  %v9141 = vadd.f32 %v9139, %v9140
  %v9142 = vsel %vm108, %v9058, 0.0
  %v9143 = vadd.f32 %v9141, %v9142
  %v9144 = vsel %vm108, %v9059, 0.0
  %v9145 = vadd.f32 %v9143, %v9144
  %v9146 = vsel %vm108, %v9060, 0.0
  %v9147 = vadd.f32 %v9145, %v9146
  %v9148 = vsel %vm108, %v9061, 0.0
  %v9149 = vadd.f32 %v9147, %v9148
  %v9150 = vsel %vm108, %v9062, 0.0
  %v9151 = vadd.f32 %v9149, %v9150
  %v9152 = vsel %vm108, %v9063, 0.0
  %v9153 = vadd.f32 %v9151, %v9152
  %v9154 = vsel %vm108, %v9064, 0.0
  %v9155 = vadd.f32 %v9153, %v9154
  %v9156 = vsel %vm108, %v9065, 0.0
  %v9157 = vadd.f32 %v9155, %v9156
  %v9158 = vsel %vm108, %v9066, 0.0
  %v9159 = vadd.f32 %v9157, %v9158
  %v9160 = vsel %vm108, %v9067, 0.0
  %v9161 = vadd.f32 %v9159, %v9160
  %v9162 = vsel %vm108, %v9068, 0.0
  %v9163 = vadd.f32 %v9161, %v9162
  %v9164 = vsel %vm108, %v9069, 0.0
  %v9165 = vadd.f32 %v9163, %v9164
  %v9166 = vsel %vm108, %v9070, 0.0
  %v9167 = vadd.f32 %v9165, %v9166
  %v9168 = vsel %vm108, %v9071, 0.0
  %v9169 = vadd.f32 %v9167, %v9168
  %v9170 = vsel %vm108, %v9072, 0.0
  %v9171 = vadd.f32 %v9169, %v9170
  %v9172 = vsel %vm108, %v9073, 0.0
  %v9173 = vadd.f32 %v9171, %v9172
  %v9174 = vsel %vm108, %v9074, 0.0
  %v9175 = vadd.f32 %v9173, %v9174
  %v9176 = vsel %vm108, %v9075, 0.0
  %v9177 = vadd.f32 %v9175, %v9176
  %v9178 = vsel %vm108, %v9076, 0.0
  %v9179 = vadd.f32 %v9177, %v9178
  %v9180 = vsel %vm108, %v9077, 0.0
  %v9181 = vadd.f32 %v9179, %v9180
  %v9182 = vsel %vm108, %v9078, 0.0
  %v9183 = vadd.f32 %v9181, %v9182
  %v9184 = vsel %vm108, %v9079, 0.0
  %v9185 = vadd.f32 %v9183, %v9184
  %v9186 = vsel %vm108, %v9080, 0.0
  %v9187 = vadd.f32 %v9185, %v9186
  %v9188 = vsel %vm108, %v9081, 0.0
  %v9189 = vadd.f32 %v9187, %v9188
  %v9190 = vsel %vm108, %v9082, 0.0
  %v9191 = vadd.f32 %v9189, %v9190
  %v9192 = vsel %vm108, %v9083, 0.0
  %v9193 = vadd.f32 %v9191, %v9192
  %v9194 = vsel %vm108, %v9084, 0.0
  %v9195 = vadd.f32 %v9193, %v9194
  %v9196 = vsel %vm108, %v9085, 0.0
  %v9197 = vadd.f32 %v9195, %v9196
  %v9198 = vsel %vm108, %v9086, 0.0
  %v9199 = vadd.f32 %v9197, %v9198
  %v9200 = vsel %vm108, %v9087, 0.0
  %v9201 = vadd.f32 %v9199, %v9200
  %v9202 = vsel %vm108, %v9088, 0.0
  %v9203 = vadd.f32 %v9201, %v9202
  %v9204 = vsel %vm108, %v9089, 0.0
  %v9205 = vadd.f32 %v9203, %v9204
  %v9206 = vsel %vm108, %v9090, 0.0
  %v9207 = vadd.f32 %v9205, %v9206
  %v9208 = vsel %vm108, %v9091, 0.0
  %v9209 = vadd.f32 %v9207, %v9208
  %v9210 = vsel %vm108, %v9092, 0.0
  %v9211 = vadd.f32 %v9209, %v9210
  %v9212 = vsel %vm108, %v9093, 0.0
  %v9213 = vadd.f32 %v9211, %v9212
  %v9214 = vsel %vm108, %v9094, 0.0
  %v9215 = vadd.f32 %v9213, %v9214
  %v9216 = vsel %vm108, %v9095, 0.0
  %v9217 = vadd.f32 %v9215, %v9216
  %v9218 = vsel %vm108, %v9096, 0.0
  %v9219 = vadd.f32 %v9217, %v9218
  %v9220 = vsel %vm108, %v9097, 0.0
  %v9221 = vadd.f32 %v9219, %v9220
  %v9222 = vsel %vm108, %v9098, 0.0
  %v9223 = vadd.f32 %v9221, %v9222
  %v9224 = vsel %vm108, %v9099, 0.0
  %v9225 = vadd.f32 %v9223, %v9224
  %v9226 = vsel %vm108, %v9100, 0.0
  %v9227 = vadd.f32 %v9225, %v9226
  %v9228 = vrot.slane %v9227, 4
  %v9229 = vadd.f32 %v9227, %v9228
  %v9230 = vrot.slane %v9229, 2
  %v9231 = vadd.f32 %v9229, %v9230
  %v9232 = vrot.slane %v9231, 1
  %v9233 = vadd.f32 %v9231, %v9232
  %v9234 = vmul.f32 %v9233, 0.001953125
  %v9235 = vmul.f32 %v9036, %v9036
  %v9236 = vsub.f32 %v9234, %v9235
  %v9237 = vsub.f32 %v8712, %v9036
  %v9238 = vsub.f32 %v8715, %v9036
  %v9239 = vsub.f32 %v8718, %v9036
  %v9240 = vsub.f32 %v8721, %v9036
  %v9241 = vsub.f32 %v8724, %v9036
  %v9242 = vsub.f32 %v8727, %v9036
  %v9243 = vsub.f32 %v8730, %v9036
  %v9244 = vsub.f32 %v8733, %v9036
  %v9245 = vsub.f32 %v8736, %v9036
  %v9246 = vsub.f32 %v8739, %v9036
  %v9247 = vsub.f32 %v8742, %v9036
  %v9248 = vsub.f32 %v8745, %v9036
  %v9249 = vsub.f32 %v8748, %v9036
  %v9250 = vsub.f32 %v8751, %v9036
  %v9251 = vsub.f32 %v8754, %v9036
  %v9252 = vsub.f32 %v8757, %v9036
  %v9253 = vsub.f32 %v8760, %v9036
  %v9254 = vsub.f32 %v8763, %v9036
  %v9255 = vsub.f32 %v8766, %v9036
  %v9256 = vsub.f32 %v8769, %v9036
  %v9257 = vsub.f32 %v8772, %v9036
  %v9258 = vsub.f32 %v8775, %v9036
  %v9259 = vsub.f32 %v8778, %v9036
  %v9260 = vsub.f32 %v8781, %v9036
  %v9261 = vsub.f32 %v8784, %v9036
  %v9262 = vsub.f32 %v8787, %v9036
  %v9263 = vsub.f32 %v8790, %v9036
  %v9264 = vsub.f32 %v8793, %v9036
  %v9265 = vsub.f32 %v8796, %v9036
  %v9266 = vsub.f32 %v8799, %v9036
  %v9267 = vsub.f32 %v8802, %v9036
  %v9268 = vsub.f32 %v8805, %v9036
  %v9269 = vsub.f32 %v8808, %v9036
  %v9270 = vsub.f32 %v8811, %v9036
  %v9271 = vsub.f32 %v8814, %v9036
  %v9272 = vsub.f32 %v8817, %v9036
  %v9273 = vsub.f32 %v8820, %v9036
  %v9274 = vsub.f32 %v8823, %v9036
  %v9275 = vsub.f32 %v8826, %v9036
  %v9276 = vsub.f32 %v8829, %v9036
  %v9277 = vsub.f32 %v8832, %v9036
  %v9278 = vsub.f32 %v8835, %v9036
  %v9279 = vsub.f32 %v8838, %v9036
  %v9280 = vsub.f32 %v8841, %v9036
  %v9281 = vsub.f32 %v8844, %v9036
  %v9282 = vsub.f32 %v8847, %v9036
  %v9283 = vsub.f32 %v8850, %v9036
  %v9284 = vsub.f32 %v8853, %v9036
  %v9285 = vsub.f32 %v8856, %v9036
  %v9286 = vsub.f32 %v8859, %v9036
  %v9287 = vsub.f32 %v8862, %v9036
  %v9288 = vsub.f32 %v8865, %v9036
  %v9289 = vsub.f32 %v8868, %v9036
  %v9290 = vsub.f32 %v8871, %v9036
  %v9291 = vsub.f32 %v8874, %v9036
  %v9292 = vsub.f32 %v8877, %v9036
  %v9293 = vsub.f32 %v8880, %v9036
  %v9294 = vsub.f32 %v8883, %v9036
  %v9295 = vsub.f32 %v8886, %v9036
  %v9296 = vsub.f32 %v8889, %v9036
  %v9297 = vsub.f32 %v8892, %v9036
  %v9298 = vsub.f32 %v8895, %v9036
  %v9299 = vsub.f32 %v8898, %v9036
  %v9300 = vsub.f32 %v8901, %v9036
  %v9301 = vadd.f32 %v9236, 1e-05
  %v9302 = vrsqrt.pop %v9301
  %v9303 = vmul.f32 %v9302, %v9301
  %v9304 = vmul.f32 %v9303, %v9302
  %v9305 = vmul.f32 0.5, %v9304
  %v9306 = vsub.f32 1.5, %v9305
  %v9307 = vmul.f32 %v9302, %v9306
  %vm9308 = vweird.f32 %v9301
  %vm9309 = vweird.f32 %v9302
  %vm9310 = vmor %vm9308, %vm9309
  %v9311 = vsel %vm9310, %v9302, %v9307
  %v9312 = vmul.f32 %v9237, %v9311
  %v9313 = vmul.f32 %v9238, %v9311
  %v9314 = vmul.f32 %v9239, %v9311
  %v9315 = vmul.f32 %v9240, %v9311
  %v9316 = vmul.f32 %v9241, %v9311
  %v9317 = vmul.f32 %v9242, %v9311
  %v9318 = vmul.f32 %v9243, %v9311
  %v9319 = vmul.f32 %v9244, %v9311
  %v9320 = vmul.f32 %v9245, %v9311
  %v9321 = vmul.f32 %v9246, %v9311
  %v9322 = vmul.f32 %v9247, %v9311
  %v9323 = vmul.f32 %v9248, %v9311
  %v9324 = vmul.f32 %v9249, %v9311
  %v9325 = vmul.f32 %v9250, %v9311
  %v9326 = vmul.f32 %v9251, %v9311
  %v9327 = vmul.f32 %v9252, %v9311
  %v9328 = vmul.f32 %v9253, %v9311
  %v9329 = vmul.f32 %v9254, %v9311
  %v9330 = vmul.f32 %v9255, %v9311
  %v9331 = vmul.f32 %v9256, %v9311
  %v9332 = vmul.f32 %v9257, %v9311
  %v9333 = vmul.f32 %v9258, %v9311
  %v9334 = vmul.f32 %v9259, %v9311
  %v9335 = vmul.f32 %v9260, %v9311
  %v9336 = vmul.f32 %v9261, %v9311
  %v9337 = vmul.f32 %v9262, %v9311
  %v9338 = vmul.f32 %v9263, %v9311
  %v9339 = vmul.f32 %v9264, %v9311
  %v9340 = vmul.f32 %v9265, %v9311
  %v9341 = vmul.f32 %v9266, %v9311
  %v9342 = vmul.f32 %v9267, %v9311
  %v9343 = vmul.f32 %v9268, %v9311
  %v9344 = vmul.f32 %v9269, %v9311
  %v9345 = vmul.f32 %v9270, %v9311
  %v9346 = vmul.f32 %v9271, %v9311
  %v9347 = vmul.f32 %v9272, %v9311
  %v9348 = vmul.f32 %v9273, %v9311
  %v9349 = vmul.f32 %v9274, %v9311
  %v9350 = vmul.f32 %v9275, %v9311
  %v9351 = vmul.f32 %v9276, %v9311
  %v9352 = vmul.f32 %v9277, %v9311
  %v9353 = vmul.f32 %v9278, %v9311
  %v9354 = vmul.f32 %v9279, %v9311
  %v9355 = vmul.f32 %v9280, %v9311
  %v9356 = vmul.f32 %v9281, %v9311
  %v9357 = vmul.f32 %v9282, %v9311
  %v9358 = vmul.f32 %v9283, %v9311
  %v9359 = vmul.f32 %v9284, %v9311
  %v9360 = vmul.f32 %v9285, %v9311
  %v9361 = vmul.f32 %v9286, %v9311
  %v9362 = vmul.f32 %v9287, %v9311
  %v9363 = vmul.f32 %v9288, %v9311
  %v9364 = vmul.f32 %v9289, %v9311
  %v9365 = vmul.f32 %v9290, %v9311
  %v9366 = vmul.f32 %v9291, %v9311
  %v9367 = vmul.f32 %v9292, %v9311
  %v9368 = vmul.f32 %v9293, %v9311
  %v9369 = vmul.f32 %v9294, %v9311
  %v9370 = vmul.f32 %v9295, %v9311
  %v9371 = vmul.f32 %v9296, %v9311
  %v9372 = vmul.f32 %v9297, %v9311
  %v9373 = vmul.f32 %v9298, %v9311
  %v9374 = vmul.f32 %v9299, %v9311
  %v9375 = vmul.f32 %v9300, %v9311
  %v9376 = vld [vmem:[%s11] sm:$0x1]
  %v9378 = vperm.slane %v9376, 0
  %v9380 = vmul.f32 %v9312, %v9378
  %v9381 = vmul.f32 %v9313, %v9378
  %v9382 = vmul.f32 %v9314, %v9378
  %v9383 = vmul.f32 %v9315, %v9378
  %v9384 = vmul.f32 %v9316, %v9378
  %v9385 = vmul.f32 %v9317, %v9378
  %v9386 = vmul.f32 %v9318, %v9378
  %v9387 = vmul.f32 %v9319, %v9378
  %v9388 = vmul.f32 %v9320, %v9378
  %v9389 = vmul.f32 %v9321, %v9378
  %v9390 = vmul.f32 %v9322, %v9378
  %v9391 = vmul.f32 %v9323, %v9378
  %v9392 = vmul.f32 %v9324, %v9378
  %v9393 = vmul.f32 %v9325, %v9378
  %v9394 = vmul.f32 %v9326, %v9378
  %v9395 = vmul.f32 %v9327, %v9378
  %v9396 = vmul.f32 %v9328, %v9378
  %v9397 = vmul.f32 %v9329, %v9378
  %v9398 = vmul.f32 %v9330, %v9378
  %v9399 = vmul.f32 %v9331, %v9378
  %v9400 = vmul.f32 %v9332, %v9378
  %v9401 = vmul.f32 %v9333, %v9378
  %v9402 = vmul.f32 %v9334, %v9378
  %v9403 = vmul.f32 %v9335, %v9378
  %v9404 = vmul.f32 %v9336, %v9378
  %v9405 = vmul.f32 %v9337, %v9378
  %v9406 = vmul.f32 %v9338, %v9378
  %v9407 = vmul.f32 %v9339, %v9378
  %v9408 = vmul.f32 %v9340, %v9378
  %v9409 = vmul.f32 %v9341, %v9378
  %v9410 = vmul.f32 %v9342, %v9378
  %v9411 = vmul.f32 %v9343, %v9378
  %v9412 = vmul.f32 %v9344, %v9378
  %v9413 = vmul.f32 %v9345, %v9378
  %v9414 = vmul.f32 %v9346, %v9378
  %v9415 = vmul.f32 %v9347, %v9378
  %v9416 = vmul.f32 %v9348, %v9378
  %v9417 = vmul.f32 %v9349, %v9378
  %v9418 = vmul.f32 %v9350, %v9378
  %v9419 = vmul.f32 %v9351, %v9378
  %v9420 = vmul.f32 %v9352, %v9378
  %v9421 = vmul.f32 %v9353, %v9378
  %v9422 = vmul.f32 %v9354, %v9378
  %v9423 = vmul.f32 %v9355, %v9378
  %v9424 = vmul.f32 %v9356, %v9378
  %v9425 = vmul.f32 %v9357, %v9378
  %v9426 = vmul.f32 %v9358, %v9378
  %v9427 = vmul.f32 %v9359, %v9378
  %v9428 = vmul.f32 %v9360, %v9378
  %v9429 = vmul.f32 %v9361, %v9378
  %v9430 = vmul.f32 %v9362, %v9378
  %v9431 = vmul.f32 %v9363, %v9378
  %v9432 = vmul.f32 %v9364, %v9378
  %v9433 = vmul.f32 %v9365, %v9378
  %v9434 = vmul.f32 %v9366, %v9378
  %v9435 = vmul.f32 %v9367, %v9378
  %v9436 = vmul.f32 %v9368, %v9378
  %v9437 = vmul.f32 %v9369, %v9378
  %v9438 = vmul.f32 %v9370, %v9378
  %v9439 = vmul.f32 %v9371, %v9378
  %v9440 = vmul.f32 %v9372, %v9378
  %v9441 = vmul.f32 %v9373, %v9378
  %v9442 = vmul.f32 %v9374, %v9378
  %v9443 = vmul.f32 %v9375, %v9378
  %v9444 = vld [vmem:[%s12] sm:$0x1]
  %v9446 = vperm.slane %v9444, 0
  %v9448 = vadd.f32 %v9380, %v9446
  %v9449 = vadd.f32 %v9381, %v9446
  %v9450 = vadd.f32 %v9382, %v9446
  %v9451 = vadd.f32 %v9383, %v9446
  %v9452 = vadd.f32 %v9384, %v9446
  %v9453 = vadd.f32 %v9385, %v9446
  %v9454 = vadd.f32 %v9386, %v9446
  %v9455 = vadd.f32 %v9387, %v9446
  %v9456 = vadd.f32 %v9388, %v9446
  %v9457 = vadd.f32 %v9389, %v9446
  %v9458 = vadd.f32 %v9390, %v9446
  %v9459 = vadd.f32 %v9391, %v9446
  %v9460 = vadd.f32 %v9392, %v9446
  %v9461 = vadd.f32 %v9393, %v9446
  %v9462 = vadd.f32 %v9394, %v9446
  %v9463 = vadd.f32 %v9395, %v9446
  %v9464 = vadd.f32 %v9396, %v9446
  %v9465 = vadd.f32 %v9397, %v9446
  %v9466 = vadd.f32 %v9398, %v9446
  %v9467 = vadd.f32 %v9399, %v9446
  %v9468 = vadd.f32 %v9400, %v9446
  %v9469 = vadd.f32 %v9401, %v9446
  %v9470 = vadd.f32 %v9402, %v9446
  %v9471 = vadd.f32 %v9403, %v9446
  %v9472 = vadd.f32 %v9404, %v9446
  %v9473 = vadd.f32 %v9405, %v9446
  %v9474 = vadd.f32 %v9406, %v9446
  %v9475 = vadd.f32 %v9407, %v9446
  %v9476 = vadd.f32 %v9408, %v9446
  %v9477 = vadd.f32 %v9409, %v9446
  %v9478 = vadd.f32 %v9410, %v9446
  %v9479 = vadd.f32 %v9411, %v9446
  %v9480 = vadd.f32 %v9412, %v9446
  %v9481 = vadd.f32 %v9413, %v9446
  %v9482 = vadd.f32 %v9414, %v9446
  %v9483 = vadd.f32 %v9415, %v9446
  %v9484 = vadd.f32 %v9416, %v9446
  %v9485 = vadd.f32 %v9417, %v9446
  %v9486 = vadd.f32 %v9418, %v9446
  %v9487 = vadd.f32 %v9419, %v9446
  %v9488 = vadd.f32 %v9420, %v9446
  %v9489 = vadd.f32 %v9421, %v9446
  %v9490 = vadd.f32 %v9422, %v9446
  %v9491 = vadd.f32 %v9423, %v9446
  %v9492 = vadd.f32 %v9424, %v9446
  %v9493 = vadd.f32 %v9425, %v9446
  %v9494 = vadd.f32 %v9426, %v9446
  %v9495 = vadd.f32 %v9427, %v9446
  %v9496 = vadd.f32 %v9428, %v9446
  %v9497 = vadd.f32 %v9429, %v9446
  %v9498 = vadd.f32 %v9430, %v9446
  %v9499 = vadd.f32 %v9431, %v9446
  %v9500 = vadd.f32 %v9432, %v9446
  %v9501 = vadd.f32 %v9433, %v9446
  %v9502 = vadd.f32 %v9434, %v9446
  %v9503 = vadd.f32 %v9435, %v9446
  %v9504 = vadd.f32 %v9436, %v9446
  %v9505 = vadd.f32 %v9437, %v9446
  %v9506 = vadd.f32 %v9438, %v9446
  %v9507 = vadd.f32 %v9439, %v9446
  %v9508 = vadd.f32 %v9440, %v9446
  %v9509 = vadd.f32 %v9441, %v9446
  %v9510 = vadd.f32 %v9442, %v9446
  %v9511 = vadd.f32 %v9443, %v9446
  %v9512 = vmax.f32 %v9448, 0.0
  %v9513 = vmax.f32 %v9449, 0.0
  %v9514 = vmax.f32 %v9450, 0.0
  %v9515 = vmax.f32 %v9451, 0.0
  %v9516 = vmax.f32 %v9452, 0.0
  %v9517 = vmax.f32 %v9453, 0.0
  %v9518 = vmax.f32 %v9454, 0.0
  %v9519 = vmax.f32 %v9455, 0.0
  %v9520 = vmax.f32 %v9456, 0.0
  %v9521 = vmax.f32 %v9457, 0.0
  %v9522 = vmax.f32 %v9458, 0.0
  %v9523 = vmax.f32 %v9459, 0.0
  %v9524 = vmax.f32 %v9460, 0.0
  %v9525 = vmax.f32 %v9461, 0.0
  %v9526 = vmax.f32 %v9462, 0.0
  %v9527 = vmax.f32 %v9463, 0.0
  %v9528 = vmax.f32 %v9464, 0.0
  %v9529 = vmax.f32 %v9465, 0.0
  %v9530 = vmax.f32 %v9466, 0.0
  %v9531 = vmax.f32 %v9467, 0.0
  %v9532 = vmax.f32 %v9468, 0.0
  %v9533 = vmax.f32 %v9469, 0.0
  %v9534 = vmax.f32 %v9470, 0.0
  %v9535 = vmax.f32 %v9471, 0.0
  %v9536 = vmax.f32 %v9472, 0.0
  %v9537 = vmax.f32 %v9473, 0.0
  %v9538 = vmax.f32 %v9474, 0.0
  %v9539 = vmax.f32 %v9475, 0.0
  %v9540 = vmax.f32 %v9476, 0.0
  %v9541 = vmax.f32 %v9477, 0.0
  %v9542 = vmax.f32 %v9478, 0.0
  %v9543 = vmax.f32 %v9479, 0.0
  %v9544 = vmax.f32 %v9480, 0.0
  %v9545 = vmax.f32 %v9481, 0.0
  %v9546 = vmax.f32 %v9482, 0.0
  %v9547 = vmax.f32 %v9483, 0.0
  %v9548 = vmax.f32 %v9484, 0.0
  %v9549 = vmax.f32 %v9485, 0.0
  %v9550 = vmax.f32 %v9486, 0.0
  %v9551 = vmax.f32 %v9487, 0.0
  %v9552 = vmax.f32 %v9488, 0.0
  %v9553 = vmax.f32 %v9489, 0.0
  %v9554 = vmax.f32 %v9490, 0.0
  %v9555 = vmax.f32 %v9491, 0.0
  %v9556 = vmax.f32 %v9492, 0.0
  %v9557 = vmax.f32 %v9493, 0.0
  %v9558 = vmax.f32 %v9494, 0.0
  %v9559 = vmax.f32 %v9495, 0.0
  %v9560 = vmax.f32 %v9496, 0.0
  %v9561 = vmax.f32 %v9497, 0.0
  %v9562 = vmax.f32 %v9498, 0.0
  %v9563 = vmax.f32 %v9499, 0.0
  %v9564 = vmax.f32 %v9500, 0.0
  %v9565 = vmax.f32 %v9501, 0.0
  %v9566 = vmax.f32 %v9502, 0.0
  %v9567 = vmax.f32 %v9503, 0.0
  %v9568 = vmax.f32 %v9504, 0.0
  %v9569 = vmax.f32 %v9505, 0.0
  %v9570 = vmax.f32 %v9506, 0.0
  %v9571 = vmax.f32 %v9507, 0.0
  %v9572 = vmax.f32 %v9508, 0.0
  %v9573 = vmax.f32 %v9509, 0.0
  %v9574 = vmax.f32 %v9510, 0.0
  %v9575 = vmax.f32 %v9511, 0.0
  %v9576 = vld [vmem:[%s3] sm:$0xf]
  %v9577 = vld [vmem:[%s5] sm:$0x1]
  %v9579 = vperm.slane %v9577, 0
  %v9582 = vsel %vm108, %v9512, 0
  %v9585 = vsel %vm108, %v9513, 0
  %v9588 = vsel %vm108, %v9514, 0
  %v9591 = vsel %vm108, %v9515, 0
  %v9594 = vsel %vm108, %v9516, 0
  %v9597 = vsel %vm108, %v9517, 0
  %v9600 = vsel %vm108, %v9518, 0
  %v9603 = vsel %vm108, %v9519, 0
  %v9606 = vsel %vm108, %v9520, 0
  %v9609 = vsel %vm108, %v9521, 0
  %v9612 = vsel %vm108, %v9522, 0
  %v9615 = vsel %vm108, %v9523, 0
  %v9618 = vsel %vm108, %v9524, 0
  %v9621 = vsel %vm108, %v9525, 0
  %v9624 = vsel %vm108, %v9526, 0
  %v9627 = vsel %vm108, %v9527, 0
  %v9630 = vsel %vm108, %v9528, 0
  %v9633 = vsel %vm108, %v9529, 0
  %v9636 = vsel %vm108, %v9530, 0
  %v9639 = vsel %vm108, %v9531, 0
  %v9642 = vsel %vm108, %v9532, 0
  %v9645 = vsel %vm108, %v9533, 0
  %v9648 = vsel %vm108, %v9534, 0
  %v9651 = vsel %vm108, %v9535, 0
  %v9654 = vsel %vm108, %v9536, 0
  %v9657 = vsel %vm108, %v9537, 0
  %v9660 = vsel %vm108, %v9538, 0
  %v9663 = vsel %vm108, %v9539, 0
  %v9666 = vsel %vm108, %v9540, 0
  %v9669 = vsel %vm108, %v9541, 0
  %v9672 = vsel %vm108, %v9542, 0
  %v9675 = vsel %vm108, %v9543, 0
  %v9678 = vsel %vm108, %v9544, 0
  %v9681 = vsel %vm108, %v9545, 0
  %v9684 = vsel %vm108, %v9546, 0
  %v9687 = vsel %vm108, %v9547, 0
  %v9690 = vsel %vm108, %v9548, 0
  %v9693 = vsel %vm108, %v9549, 0
  %v9696 = vsel %vm108, %v9550, 0
  %v9699 = vsel %vm108, %v9551, 0
  %v9702 = vsel %vm108, %v9552, 0
  %v9705 = vsel %vm108, %v9553, 0
  %v9708 = vsel %vm108, %v9554, 0
  %v9711 = vsel %vm108, %v9555, 0
  %v9714 = vsel %vm108, %v9556, 0
  %v9717 = vsel %vm108, %v9557, 0
  %v9720 = vsel %vm108, %v9558, 0
  %v9723 = vsel %vm108, %v9559, 0
  %v9726 = vsel %vm108, %v9560, 0
  %v9729 = vsel %vm108, %v9561, 0
  %v9732 = vsel %vm108, %v9562, 0
  %v9735 = vsel %vm108, %v9563, 0
  %v9738 = vsel %vm108, %v9564, 0
  %v9741 = vsel %vm108, %v9565, 0
  %v9744 = vsel %vm108, %v9566, 0
  %v9747 = vsel %vm108, %v9567, 0
  %v9750 = vsel %vm108, %v9568, 0
  %v9753 = vsel %vm108, %v9569, 0
  %v9756 = vsel %vm108, %v9570, 0
  %v9759 = vsel %vm108, %v9571, 0
  %v9762 = vsel %vm108, %v9572, 0
  %v9765 = vsel %vm108, %v9573, 0
  %v9768 = vsel %vm108, %v9574, 0
  %v9771 = vsel %vm108, %v9575, 0
  %v9774 = vsel %vm4298, %v9576, 0
  %9776 = vmatpush.msra.mxu0 0.0
  %9777 = vmatpush.msra.mxu0 0.0
  %9778 = vmatpush.msra.mxu0 0.0
  %9779 = vmatpush.msra.mxu0 0.0
  %9780 = vmatpush.msra.mxu0 0.0
  %9781 = vmatpush.msra.mxu0 0.0
  %9782 = vmatpush.msra.mxu0 0.0
  %9783 = vmatpush.msra.mxu0 0.0
  %9784 = vmatpush.msra.mxu0 0.0
  %9785 = vmatpush.msra.mxu0 0.0
  %9786 = vmatpush.msra.mxu0 0.0
  %9787 = vmatpush.msra.mxu0 0.0
  %9788 = vmatpush.msra.mxu0 0.0
  %9789 = vmatpush.msra.mxu0 0.0
  %9790 = vmatpush.msra.mxu0 0.0
  %9791 = vmatpush.msra.mxu0 %v9774
  %9792 = vmatmul.f32.gmra.mxu0 %v9582
  %v9793 = vpop.f32.mrf.mxu0
  %v9794 = vadd.f32 %v9579, %v9793
  %9795 = vmatmul.f32.gmra.mxu0 %v9585
  %v9796 = vpop.f32.mrf.mxu0
  %v9797 = vadd.f32 %v9579, %v9796
  %9798 = vmatmul.f32.gmra.mxu0 %v9588
  %v9799 = vpop.f32.mrf.mxu0
  %v9800 = vadd.f32 %v9579, %v9799
  %9801 = vmatmul.f32.gmra.mxu0 %v9591
  %v9802 = vpop.f32.mrf.mxu0
  %v9803 = vadd.f32 %v9579, %v9802
  %9804 = vmatmul.f32.gmra.mxu0 %v9594
  %v9805 = vpop.f32.mrf.mxu0
  %v9806 = vadd.f32 %v9579, %v9805
  %9807 = vmatmul.f32.gmra.mxu0 %v9597
  %v9808 = vpop.f32.mrf.mxu0
  %v9809 = vadd.f32 %v9579, %v9808
  %9810 = vmatmul.f32.gmra.mxu0 %v9600
  %v9811 = vpop.f32.mrf.mxu0
  %v9812 = vadd.f32 %v9579, %v9811
  %9813 = vmatmul.f32.gmra.mxu0 %v9603
  %v9814 = vpop.f32.mrf.mxu0
  %v9815 = vadd.f32 %v9579, %v9814
  %9816 = vmatmul.f32.gmra.mxu0 %v9606
  %v9817 = vpop.f32.mrf.mxu0
  %v9818 = vadd.f32 %v9579, %v9817
  %9819 = vmatmul.f32.gmra.mxu0 %v9609
  %v9820 = vpop.f32.mrf.mxu0
  %v9821 = vadd.f32 %v9579, %v9820
  %9822 = vmatmul.f32.gmra.mxu0 %v9612
  %v9823 = vpop.f32.mrf.mxu0
  %v9824 = vadd.f32 %v9579, %v9823
  %9825 = vmatmul.f32.gmra.mxu0 %v9615
  %v9826 = vpop.f32.mrf.mxu0
  %v9827 = vadd.f32 %v9579, %v9826
  %9828 = vmatmul.f32.gmra.mxu0 %v9618
  %v9829 = vpop.f32.mrf.mxu0
  %v9830 = vadd.f32 %v9579, %v9829
  %9831 = vmatmul.f32.gmra.mxu0 %v9621
  %v9832 = vpop.f32.mrf.mxu0
  %v9833 = vadd.f32 %v9579, %v9832
  %9834 = vmatmul.f32.gmra.mxu0 %v9624
  %v9835 = vpop.f32.mrf.mxu0
  %v9836 = vadd.f32 %v9579, %v9835
  %9837 = vmatmul.f32.gmra.mxu0 %v9627
  %v9838 = vpop.f32.mrf.mxu0
  %v9839 = vadd.f32 %v9579, %v9838
  %9840 = vmatmul.f32.gmra.mxu0 %v9630
  %v9841 = vpop.f32.mrf.mxu0
  %v9842 = vadd.f32 %v9579, %v9841
  %9843 = vmatmul.f32.gmra.mxu0 %v9633
  %v9844 = vpop.f32.mrf.mxu0
  %v9845 = vadd.f32 %v9579, %v9844
  %9846 = vmatmul.f32.gmra.mxu0 %v9636
  %v9847 = vpop.f32.mrf.mxu0
  %v9848 = vadd.f32 %v9579, %v9847
  %9849 = vmatmul.f32.gmra.mxu0 %v9639
  %v9850 = vpop.f32.mrf.mxu0
  %v9851 = vadd.f32 %v9579, %v9850
  %9852 = vmatmul.f32.gmra.mxu0 %v9642
  %v9853 = vpop.f32.mrf.mxu0
  %v9854 = vadd.f32 %v9579, %v9853
  %9855 = vmatmul.f32.gmra.mxu0 %v9645
  %v9856 = vpop.f32.mrf.mxu0
  %v9857 = vadd.f32 %v9579, %v9856
  %9858 = vmatmul.f32.gmra.mxu0 %v9648
  %v9859 = vpop.f32.mrf.mxu0
  %v9860 = vadd.f32 %v9579, %v9859
  %9861 = vmatmul.f32.gmra.mxu0 %v9651
  %v9862 = vpop.f32.mrf.mxu0
  %v9863 = vadd.f32 %v9579, %v9862
  %9864 = vmatmul.f32.gmra.mxu0 %v9654
  %v9865 = vpop.f32.mrf.mxu0
  %v9866 = vadd.f32 %v9579, %v9865
  %9867 = vmatmul.f32.gmra.mxu0 %v9657
  %v9868 = vpop.f32.mrf.mxu0
  %v9869 = vadd.f32 %v9579, %v9868
  %9870 = vmatmul.f32.gmra.mxu0 %v9660
  %v9871 = vpop.f32.mrf.mxu0
  %v9872 = vadd.f32 %v9579, %v9871
  %9873 = vmatmul.f32.gmra.mxu0 %v9663
  %v9874 = vpop.f32.mrf.mxu0
  %v9875 = vadd.f32 %v9579, %v9874
  %9876 = vmatmul.f32.gmra.mxu0 %v9666
  %v9877 = vpop.f32.mrf.mxu0
  %v9878 = vadd.f32 %v9579, %v9877
  %9879 = vmatmul.f32.gmra.mxu0 %v9669
  %v9880 = vpop.f32.mrf.mxu0
  %v9881 = vadd.f32 %v9579, %v9880
  %9882 = vmatmul.f32.gmra.mxu0 %v9672
  %v9883 = vpop.f32.mrf.mxu0
  %v9884 = vadd.f32 %v9579, %v9883
  %9885 = vmatmul.f32.gmra.mxu0 %v9675
  %v9886 = vpop.f32.mrf.mxu0
  %v9887 = vadd.f32 %v9579, %v9886
  %9888 = vmatmul.f32.gmra.mxu0 %v9678
  %v9889 = vpop.f32.mrf.mxu0
  %v9890 = vadd.f32 %v9579, %v9889
  %9891 = vmatmul.f32.gmra.mxu0 %v9681
  %v9892 = vpop.f32.mrf.mxu0
  %v9893 = vadd.f32 %v9579, %v9892
  %9894 = vmatmul.f32.gmra.mxu0 %v9684
  %v9895 = vpop.f32.mrf.mxu0
  %v9896 = vadd.f32 %v9579, %v9895
  %9897 = vmatmul.f32.gmra.mxu0 %v9687
  %v9898 = vpop.f32.mrf.mxu0
  %v9899 = vadd.f32 %v9579, %v9898
  %9900 = vmatmul.f32.gmra.mxu0 %v9690
  %v9901 = vpop.f32.mrf.mxu0
  %v9902 = vadd.f32 %v9579, %v9901
  %9903 = vmatmul.f32.gmra.mxu0 %v9693
  %v9904 = vpop.f32.mrf.mxu0
  %v9905 = vadd.f32 %v9579, %v9904
  %9906 = vmatmul.f32.gmra.mxu0 %v9696
  %v9907 = vpop.f32.mrf.mxu0
  %v9908 = vadd.f32 %v9579, %v9907
  %9909 = vmatmul.f32.gmra.mxu0 %v9699
  %v9910 = vpop.f32.mrf.mxu0
  %v9911 = vadd.f32 %v9579, %v9910
  %9912 = vmatmul.f32.gmra.mxu0 %v9702
  %v9913 = vpop.f32.mrf.mxu0
  %v9914 = vadd.f32 %v9579, %v9913
  %9915 = vmatmul.f32.gmra.mxu0 %v9705
  %v9916 = vpop.f32.mrf.mxu0
  %v9917 = vadd.f32 %v9579, %v9916
  %9918 = vmatmul.f32.gmra.mxu0 %v9708
  %v9919 = vpop.f32.mrf.mxu0
  %v9920 = vadd.f32 %v9579, %v9919
  %9921 = vmatmul.f32.gmra.mxu0 %v9711
  %v9922 = vpop.f32.mrf.mxu0
  %v9923 = vadd.f32 %v9579, %v9922
  %9924 = vmatmul.f32.gmra.mxu0 %v9714
  %v9925 = vpop.f32.mrf.mxu0
  %v9926 = vadd.f32 %v9579, %v9925
  %9927 = vmatmul.f32.gmra.mxu0 %v9717
  %v9928 = vpop.f32.mrf.mxu0
  %v9929 = vadd.f32 %v9579, %v9928
  %9930 = vmatmul.f32.gmra.mxu0 %v9720
  %v9931 = vpop.f32.mrf.mxu0
  %v9932 = vadd.f32 %v9579, %v9931
  %9933 = vmatmul.f32.gmra.mxu0 %v9723
  %v9934 = vpop.f32.mrf.mxu0
  %v9935 = vadd.f32 %v9579, %v9934
  %9936 = vmatmul.f32.gmra.mxu0 %v9726
  %v9937 = vpop.f32.mrf.mxu0
  %v9938 = vadd.f32 %v9579, %v9937
  %9939 = vmatmul.f32.gmra.mxu0 %v9729
  %v9940 = vpop.f32.mrf.mxu0
  %v9941 = vadd.f32 %v9579, %v9940
  %9942 = vmatmul.f32.gmra.mxu0 %v9732
  %v9943 = vpop.f32.mrf.mxu0
  %v9944 = vadd.f32 %v9579, %v9943
  %9945 = vmatmul.f32.gmra.mxu0 %v9735
  %v9946 = vpop.f32.mrf.mxu0
  %v9947 = vadd.f32 %v9579, %v9946
  %9948 = vmatmul.f32.gmra.mxu0 %v9738
  %v9949 = vpop.f32.mrf.mxu0
  %v9950 = vadd.f32 %v9579, %v9949
  %9951 = vmatmul.f32.gmra.mxu0 %v9741
  %v9952 = vpop.f32.mrf.mxu0
  %v9953 = vadd.f32 %v9579, %v9952
  %9954 = vmatmul.f32.gmra.mxu0 %v9744
  %v9955 = vpop.f32.mrf.mxu0
  %v9956 = vadd.f32 %v9579, %v9955
  %9957 = vmatmul.f32.gmra.mxu0 %v9747
  %v9958 = vpop.f32.mrf.mxu0
  %v9959 = vadd.f32 %v9579, %v9958
  %9960 = vmatmul.f32.gmra.mxu0 %v9750
  %v9961 = vpop.f32.mrf.mxu0
  %v9962 = vadd.f32 %v9579, %v9961
  %9963 = vmatmul.f32.gmra.mxu0 %v9753
  %v9964 = vpop.f32.mrf.mxu0
  %v9965 = vadd.f32 %v9579, %v9964
  %9966 = vmatmul.f32.gmra.mxu0 %v9756
  %v9967 = vpop.f32.mrf.mxu0
  %v9968 = vadd.f32 %v9579, %v9967
  %9969 = vmatmul.f32.gmra.mxu0 %v9759
  %v9970 = vpop.f32.mrf.mxu0
  %v9971 = vadd.f32 %v9579, %v9970
  %9972 = vmatmul.f32.gmra.mxu0 %v9762
  %v9973 = vpop.f32.mrf.mxu0
  %v9974 = vadd.f32 %v9579, %v9973
  %9975 = vmatmul.f32.gmra.mxu0 %v9765
  %v9976 = vpop.f32.mrf.mxu0
  %v9977 = vadd.f32 %v9579, %v9976
  %9978 = vmatmul.f32.gmra.mxu0 %v9768
  %v9979 = vpop.f32.mrf.mxu0
  %v9980 = vadd.f32 %v9579, %v9979
  %9981 = vmatmul.f32.gmra.mxu0 %v9771
  %v9982 = vpop.f32.mrf.mxu0
  %v9983 = vadd.f32 %v9579, %v9982
  %9984 = vdwg.mxu0
  %v9985 = vld [vmem:[%s4] sm:$0xf]
  %v9986 = vld [vmem:[%s6] sm:$0x1]
  %v9988 = vperm.slane %v9986, 0
  %v9991 = vsel %vm108, %v44, 0
  %v9994 = vsel %vm108, %v45, 0
  %v9997 = vsel %vm108, %v46, 0
  %v10000 = vsel %vm108, %v47, 0
  %v10003 = vsel %vm108, %v48, 0
  %v10006 = vsel %vm108, %v49, 0
  %v10009 = vsel %vm108, %v50, 0
  %v10012 = vsel %vm108, %v51, 0
  %v10015 = vsel %vm108, %v52, 0
  %v10018 = vsel %vm108, %v53, 0
  %v10021 = vsel %vm108, %v54, 0
  %v10024 = vsel %vm108, %v55, 0
  %v10027 = vsel %vm108, %v56, 0
  %v10030 = vsel %vm108, %v57, 0
  %v10033 = vsel %vm108, %v58, 0
  %v10036 = vsel %vm108, %v59, 0
  %v10039 = vsel %vm108, %v60, 0
  %v10042 = vsel %vm108, %v61, 0
  %v10045 = vsel %vm108, %v62, 0
  %v10048 = vsel %vm108, %v63, 0
  %v10051 = vsel %vm108, %v64, 0
  %v10054 = vsel %vm108, %v65, 0
  %v10057 = vsel %vm108, %v66, 0
  %v10060 = vsel %vm108, %v67, 0
  %v10063 = vsel %vm108, %v68, 0
  %v10066 = vsel %vm108, %v69, 0
  %v10069 = vsel %vm108, %v70, 0
  %v10072 = vsel %vm108, %v71, 0
  %v10075 = vsel %vm108, %v72, 0
  %v10078 = vsel %vm108, %v73, 0
  %v10081 = vsel %vm108, %v74, 0
  %v10084 = vsel %vm108, %v75, 0
  %v10087 = vsel %vm108, %v76, 0
  %v10090 = vsel %vm108, %v77, 0
  %v10093 = vsel %vm108, %v78, 0
  %v10096 = vsel %vm108, %v79, 0
  %v10099 = vsel %vm108, %v80, 0
  %v10102 = vsel %vm108, %v81, 0
  %v10105 = vsel %vm108, %v82, 0
  %v10108 = vsel %vm108, %v83, 0
  %v10111 = vsel %vm108, %v84, 0
  %v10114 = vsel %vm108, %v85, 0
  %v10117 = vsel %vm108, %v86, 0
  %v10120 = vsel %vm108, %v87, 0
  %v10123 = vsel %vm108, %v88, 0
  %v10126 = vsel %vm108, %v89, 0
  %v10129 = vsel %vm108, %v90, 0
  %v10132 = vsel %vm108, %v91, 0
  %v10135 = vsel %vm108, %v92, 0
  %v10138 = vsel %vm108, %v93, 0
  %v10141 = vsel %vm108, %v94, 0
  %v10144 = vsel %vm108, %v95, 0
  %v10147 = vsel %vm108, %v96, 0
  %v10150 = vsel %vm108, %v97, 0
  %v10153 = vsel %vm108, %v98, 0
  %v10156 = vsel %vm108, %v99, 0
  %v10159 = vsel %vm108, %v100, 0
  %v10162 = vsel %vm108, %v101, 0
  %v10165 = vsel %vm108, %v102, 0
  %v10168 = vsel %vm108, %v103, 0
  %v10171 = vsel %vm108, %v104, 0
  %v10174 = vsel %vm108, %v105, 0
  %v10177 = vsel %vm108, %v106, 0
  %v10180 = vsel %vm108, %v107, 0
  %v10183 = vsel %vm4298, %v9985, 0
  %10185 = vmatpush.msra.mxu0 0.0
  %10186 = vmatpush.msra.mxu0 0.0
  %10187 = vmatpush.msra.mxu0 0.0
  %10188 = vmatpush.msra.mxu0 0.0
  %10189 = vmatpush.msra.mxu0 0.0
  %10190 = vmatpush.msra.mxu0 0.0
  %10191 = vmatpush.msra.mxu0 0.0
  %10192 = vmatpush.msra.mxu0 0.0
  %10193 = vmatpush.msra.mxu0 0.0
  %10194 = vmatpush.msra.mxu0 0.0
  %10195 = vmatpush.msra.mxu0 0.0
  %10196 = vmatpush.msra.mxu0 0.0
  %10197 = vmatpush.msra.mxu0 0.0
  %10198 = vmatpush.msra.mxu0 0.0
  %10199 = vmatpush.msra.mxu0 0.0
  %10200 = vmatpush.msra.mxu0 %v10183
  %10201 = vmatmul.f32.gmra.mxu0 %v9991
  %v10202 = vpop.f32.mrf.mxu0
  %v10203 = vadd.f32 %v9988, %v10202
  %10204 = vmatmul.f32.gmra.mxu0 %v9994
  %v10205 = vpop.f32.mrf.mxu0
  %v10206 = vadd.f32 %v9988, %v10205
  %10207 = vmatmul.f32.gmra.mxu0 %v9997
  %v10208 = vpop.f32.mrf.mxu0
  %v10209 = vadd.f32 %v9988, %v10208
  %10210 = vmatmul.f32.gmra.mxu0 %v10000
  %v10211 = vpop.f32.mrf.mxu0
  %v10212 = vadd.f32 %v9988, %v10211
  %10213 = vmatmul.f32.gmra.mxu0 %v10003
  %v10214 = vpop.f32.mrf.mxu0
  %v10215 = vadd.f32 %v9988, %v10214
  %10216 = vmatmul.f32.gmra.mxu0 %v10006
  %v10217 = vpop.f32.mrf.mxu0
  %v10218 = vadd.f32 %v9988, %v10217
  %10219 = vmatmul.f32.gmra.mxu0 %v10009
  %v10220 = vpop.f32.mrf.mxu0
  %v10221 = vadd.f32 %v9988, %v10220
  %10222 = vmatmul.f32.gmra.mxu0 %v10012
  %v10223 = vpop.f32.mrf.mxu0
  %v10224 = vadd.f32 %v9988, %v10223
  %10225 = vmatmul.f32.gmra.mxu0 %v10015
  %v10226 = vpop.f32.mrf.mxu0
  %v10227 = vadd.f32 %v9988, %v10226
  %10228 = vmatmul.f32.gmra.mxu0 %v10018
  %v10229 = vpop.f32.mrf.mxu0
  %v10230 = vadd.f32 %v9988, %v10229
  %10231 = vmatmul.f32.gmra.mxu0 %v10021
  %v10232 = vpop.f32.mrf.mxu0
  %v10233 = vadd.f32 %v9988, %v10232
  %10234 = vmatmul.f32.gmra.mxu0 %v10024
  %v10235 = vpop.f32.mrf.mxu0
  %v10236 = vadd.f32 %v9988, %v10235
  %10237 = vmatmul.f32.gmra.mxu0 %v10027
  %v10238 = vpop.f32.mrf.mxu0
  %v10239 = vadd.f32 %v9988, %v10238
  %10240 = vmatmul.f32.gmra.mxu0 %v10030
  %v10241 = vpop.f32.mrf.mxu0
  %v10242 = vadd.f32 %v9988, %v10241
  %10243 = vmatmul.f32.gmra.mxu0 %v10033
  %v10244 = vpop.f32.mrf.mxu0
  %v10245 = vadd.f32 %v9988, %v10244
  %10246 = vmatmul.f32.gmra.mxu0 %v10036
  %v10247 = vpop.f32.mrf.mxu0
  %v10248 = vadd.f32 %v9988, %v10247
  %10249 = vmatmul.f32.gmra.mxu0 %v10039
  %v10250 = vpop.f32.mrf.mxu0
  %v10251 = vadd.f32 %v9988, %v10250
  %10252 = vmatmul.f32.gmra.mxu0 %v10042
  %v10253 = vpop.f32.mrf.mxu0
  %v10254 = vadd.f32 %v9988, %v10253
  %10255 = vmatmul.f32.gmra.mxu0 %v10045
  %v10256 = vpop.f32.mrf.mxu0
  %v10257 = vadd.f32 %v9988, %v10256
  %10258 = vmatmul.f32.gmra.mxu0 %v10048
  %v10259 = vpop.f32.mrf.mxu0
  %v10260 = vadd.f32 %v9988, %v10259
  %10261 = vmatmul.f32.gmra.mxu0 %v10051
  %v10262 = vpop.f32.mrf.mxu0
  %v10263 = vadd.f32 %v9988, %v10262
  %10264 = vmatmul.f32.gmra.mxu0 %v10054
  %v10265 = vpop.f32.mrf.mxu0
  %v10266 = vadd.f32 %v9988, %v10265
  %10267 = vmatmul.f32.gmra.mxu0 %v10057
  %v10268 = vpop.f32.mrf.mxu0
  %v10269 = vadd.f32 %v9988, %v10268
  %10270 = vmatmul.f32.gmra.mxu0 %v10060
  %v10271 = vpop.f32.mrf.mxu0
  %v10272 = vadd.f32 %v9988, %v10271
  %10273 = vmatmul.f32.gmra.mxu0 %v10063
  %v10274 = vpop.f32.mrf.mxu0
  %v10275 = vadd.f32 %v9988, %v10274
  %10276 = vmatmul.f32.gmra.mxu0 %v10066
  %v10277 = vpop.f32.mrf.mxu0
  %v10278 = vadd.f32 %v9988, %v10277
  %10279 = vmatmul.f32.gmra.mxu0 %v10069
  %v10280 = vpop.f32.mrf.mxu0
  %v10281 = vadd.f32 %v9988, %v10280
  %10282 = vmatmul.f32.gmra.mxu0 %v10072
  %v10283 = vpop.f32.mrf.mxu0
  %v10284 = vadd.f32 %v9988, %v10283
  %10285 = vmatmul.f32.gmra.mxu0 %v10075
  %v10286 = vpop.f32.mrf.mxu0
  %v10287 = vadd.f32 %v9988, %v10286
  %10288 = vmatmul.f32.gmra.mxu0 %v10078
  %v10289 = vpop.f32.mrf.mxu0
  %v10290 = vadd.f32 %v9988, %v10289
  %10291 = vmatmul.f32.gmra.mxu0 %v10081
  %v10292 = vpop.f32.mrf.mxu0
  %v10293 = vadd.f32 %v9988, %v10292
  %10294 = vmatmul.f32.gmra.mxu0 %v10084
  %v10295 = vpop.f32.mrf.mxu0
  %v10296 = vadd.f32 %v9988, %v10295
  %10297 = vmatmul.f32.gmra.mxu0 %v10087
  %v10298 = vpop.f32.mrf.mxu0
  %v10299 = vadd.f32 %v9988, %v10298
  %10300 = vmatmul.f32.gmra.mxu0 %v10090
  %v10301 = vpop.f32.mrf.mxu0
  %v10302 = vadd.f32 %v9988, %v10301
  %10303 = vmatmul.f32.gmra.mxu0 %v10093
  %v10304 = vpop.f32.mrf.mxu0
  %v10305 = vadd.f32 %v9988, %v10304
  %10306 = vmatmul.f32.gmra.mxu0 %v10096
  %v10307 = vpop.f32.mrf.mxu0
  %v10308 = vadd.f32 %v9988, %v10307
  %10309 = vmatmul.f32.gmra.mxu0 %v10099
  %v10310 = vpop.f32.mrf.mxu0
  %v10311 = vadd.f32 %v9988, %v10310
  %10312 = vmatmul.f32.gmra.mxu0 %v10102
  %v10313 = vpop.f32.mrf.mxu0
  %v10314 = vadd.f32 %v9988, %v10313
  %10315 = vmatmul.f32.gmra.mxu0 %v10105
  %v10316 = vpop.f32.mrf.mxu0
  %v10317 = vadd.f32 %v9988, %v10316
  %10318 = vmatmul.f32.gmra.mxu0 %v10108
  %v10319 = vpop.f32.mrf.mxu0
  %v10320 = vadd.f32 %v9988, %v10319
  %10321 = vmatmul.f32.gmra.mxu0 %v10111
  %v10322 = vpop.f32.mrf.mxu0
  %v10323 = vadd.f32 %v9988, %v10322
  %10324 = vmatmul.f32.gmra.mxu0 %v10114
  %v10325 = vpop.f32.mrf.mxu0
  %v10326 = vadd.f32 %v9988, %v10325
  %10327 = vmatmul.f32.gmra.mxu0 %v10117
  %v10328 = vpop.f32.mrf.mxu0
  %v10329 = vadd.f32 %v9988, %v10328
  %10330 = vmatmul.f32.gmra.mxu0 %v10120
  %v10331 = vpop.f32.mrf.mxu0
  %v10332 = vadd.f32 %v9988, %v10331
  %10333 = vmatmul.f32.gmra.mxu0 %v10123
  %v10334 = vpop.f32.mrf.mxu0
  %v10335 = vadd.f32 %v9988, %v10334
  %10336 = vmatmul.f32.gmra.mxu0 %v10126
  %v10337 = vpop.f32.mrf.mxu0
  %v10338 = vadd.f32 %v9988, %v10337
  %10339 = vmatmul.f32.gmra.mxu0 %v10129
  %v10340 = vpop.f32.mrf.mxu0
  %v10341 = vadd.f32 %v9988, %v10340
  %10342 = vmatmul.f32.gmra.mxu0 %v10132
  %v10343 = vpop.f32.mrf.mxu0
  %v10344 = vadd.f32 %v9988, %v10343
  %10345 = vmatmul.f32.gmra.mxu0 %v10135
  %v10346 = vpop.f32.mrf.mxu0
  %v10347 = vadd.f32 %v9988, %v10346
  %10348 = vmatmul.f32.gmra.mxu0 %v10138
  %v10349 = vpop.f32.mrf.mxu0
  %v10350 = vadd.f32 %v9988, %v10349
  %10351 = vmatmul.f32.gmra.mxu0 %v10141
  %v10352 = vpop.f32.mrf.mxu0
  %v10353 = vadd.f32 %v9988, %v10352
  %10354 = vmatmul.f32.gmra.mxu0 %v10144
  %v10355 = vpop.f32.mrf.mxu0
  %v10356 = vadd.f32 %v9988, %v10355
  %10357 = vmatmul.f32.gmra.mxu0 %v10147
  %v10358 = vpop.f32.mrf.mxu0
  %v10359 = vadd.f32 %v9988, %v10358
  %10360 = vmatmul.f32.gmra.mxu0 %v10150
  %v10361 = vpop.f32.mrf.mxu0
  %v10362 = vadd.f32 %v9988, %v10361
  %10363 = vmatmul.f32.gmra.mxu0 %v10153
  %v10364 = vpop.f32.mrf.mxu0
  %v10365 = vadd.f32 %v9988, %v10364
  %10366 = vmatmul.f32.gmra.mxu0 %v10156
  %v10367 = vpop.f32.mrf.mxu0
  %v10368 = vadd.f32 %v9988, %v10367
  %10369 = vmatmul.f32.gmra.mxu0 %v10159
  %v10370 = vpop.f32.mrf.mxu0
  %v10371 = vadd.f32 %v9988, %v10370
  %10372 = vmatmul.f32.gmra.mxu0 %v10162
  %v10373 = vpop.f32.mrf.mxu0
  %v10374 = vadd.f32 %v9988, %v10373
  %10375 = vmatmul.f32.gmra.mxu0 %v10165
  %v10376 = vpop.f32.mrf.mxu0
  %v10377 = vadd.f32 %v9988, %v10376
  %10378 = vmatmul.f32.gmra.mxu0 %v10168
  %v10379 = vpop.f32.mrf.mxu0
  %v10380 = vadd.f32 %v9988, %v10379
  %10381 = vmatmul.f32.gmra.mxu0 %v10171
  %v10382 = vpop.f32.mrf.mxu0
  %v10383 = vadd.f32 %v9988, %v10382
  %10384 = vmatmul.f32.gmra.mxu0 %v10174
  %v10385 = vpop.f32.mrf.mxu0
  %v10386 = vadd.f32 %v9988, %v10385
  %10387 = vmatmul.f32.gmra.mxu0 %v10177
  %v10388 = vpop.f32.mrf.mxu0
  %v10389 = vadd.f32 %v9988, %v10388
  %10390 = vmatmul.f32.gmra.mxu0 %v10180
  %v10391 = vpop.f32.mrf.mxu0
  %v10392 = vadd.f32 %v9988, %v10391
  %10393 = vdwg.mxu0
  %v10394 = vadd.f32 %v9794, %v10203
  %v10395 = vadd.f32 %v9797, %v10206
  %v10396 = vadd.f32 %v9800, %v10209
  %v10397 = vadd.f32 %v9803, %v10212
  %v10398 = vadd.f32 %v9806, %v10215
  %v10399 = vadd.f32 %v9809, %v10218
  %v10400 = vadd.f32 %v9812, %v10221
  %v10401 = vadd.f32 %v9815, %v10224
  %v10402 = vadd.f32 %v9818, %v10227
  %v10403 = vadd.f32 %v9821, %v10230
  %v10404 = vadd.f32 %v9824, %v10233
  %v10405 = vadd.f32 %v9827, %v10236
  %v10406 = vadd.f32 %v9830, %v10239
  %v10407 = vadd.f32 %v9833, %v10242
  %v10408 = vadd.f32 %v9836, %v10245
  %v10409 = vadd.f32 %v9839, %v10248
  %v10410 = vadd.f32 %v9842, %v10251
  %v10411 = vadd.f32 %v9845, %v10254
  %v10412 = vadd.f32 %v9848, %v10257
  %v10413 = vadd.f32 %v9851, %v10260
  %v10414 = vadd.f32 %v9854, %v10263
  %v10415 = vadd.f32 %v9857, %v10266
  %v10416 = vadd.f32 %v9860, %v10269
  %v10417 = vadd.f32 %v9863, %v10272
  %v10418 = vadd.f32 %v9866, %v10275
  %v10419 = vadd.f32 %v9869, %v10278
  %v10420 = vadd.f32 %v9872, %v10281
  %v10421 = vadd.f32 %v9875, %v10284
  %v10422 = vadd.f32 %v9878, %v10287
  %v10423 = vadd.f32 %v9881, %v10290
  %v10424 = vadd.f32 %v9884, %v10293
  %v10425 = vadd.f32 %v9887, %v10296
  %v10426 = vadd.f32 %v9890, %v10299
  %v10427 = vadd.f32 %v9893, %v10302
  %v10428 = vadd.f32 %v9896, %v10305
  %v10429 = vadd.f32 %v9899, %v10308
  %v10430 = vadd.f32 %v9902, %v10311
  %v10431 = vadd.f32 %v9905, %v10314
  %v10432 = vadd.f32 %v9908, %v10317
  %v10433 = vadd.f32 %v9911, %v10320
  %v10434 = vadd.f32 %v9914, %v10323
  %v10435 = vadd.f32 %v9917, %v10326
  %v10436 = vadd.f32 %v9920, %v10329
  %v10437 = vadd.f32 %v9923, %v10332
  %v10438 = vadd.f32 %v9926, %v10335
  %v10439 = vadd.f32 %v9929, %v10338
  %v10440 = vadd.f32 %v9932, %v10341
  %v10441 = vadd.f32 %v9935, %v10344
  %v10442 = vadd.f32 %v9938, %v10347
  %v10443 = vadd.f32 %v9941, %v10350
  %v10444 = vadd.f32 %v9944, %v10353
  %v10445 = vadd.f32 %v9947, %v10356
  %v10446 = vadd.f32 %v9950, %v10359
  %v10447 = vadd.f32 %v9953, %v10362
  %v10448 = vadd.f32 %v9956, %v10365
  %v10449 = vadd.f32 %v9959, %v10368
  %v10450 = vadd.f32 %v9962, %v10371
  %v10451 = vadd.f32 %v9965, %v10374
  %v10452 = vadd.f32 %v9968, %v10377
  %v10453 = vadd.f32 %v9971, %v10380
  %v10454 = vadd.f32 %v9974, %v10383
  %v10455 = vadd.f32 %v9977, %v10386
  %v10456 = vadd.f32 %v9980, %v10389
  %v10457 = vadd.f32 %v9983, %v10392
  %10458 = vst.msk [vmem:[%s13] sm:$0xff] %vm3775, %v10394
  %10459 = vst.msk [vmem:[%s13 + $0x8] sm:$0xff] %vm3775, %v10395
  %10460 = vst.msk [vmem:[%s13 + $0x10] sm:$0xff] %vm3775, %v10396
  %10461 = vst.msk [vmem:[%s13 + $0x18] sm:$0xff] %vm3775, %v10397
  %10462 = vst.msk [vmem:[%s13 + $0x20] sm:$0xff] %vm3775, %v10398
  %10463 = vst.msk [vmem:[%s13 + $0x28] sm:$0xff] %vm3775, %v10399
  %10464 = vst.msk [vmem:[%s13 + $0x30] sm:$0xff] %vm3775, %v10400
  %10465 = vst.msk [vmem:[%s13 + $0x38] sm:$0xff] %vm3775, %v10401
  %10466 = vst.msk [vmem:[%s13 + $0x40] sm:$0xff] %vm3775, %v10402
  %10467 = vst.msk [vmem:[%s13 + $0x48] sm:$0xff] %vm3775, %v10403
  %10468 = vst.msk [vmem:[%s13 + $0x50] sm:$0xff] %vm3775, %v10404
  %10469 = vst.msk [vmem:[%s13 + $0x58] sm:$0xff] %vm3775, %v10405
  %10470 = vst.msk [vmem:[%s13 + $0x60] sm:$0xff] %vm3775, %v10406
  %10471 = vst.msk [vmem:[%s13 + $0x68] sm:$0xff] %vm3775, %v10407
  %10472 = vst.msk [vmem:[%s13 + $0x70] sm:$0xff] %vm3775, %v10408
  %10473 = vst.msk [vmem:[%s13 + $0x78] sm:$0xff] %vm3775, %v10409
  %10474 = vst.msk [vmem:[%s13 + $0x80] sm:$0xff] %vm3775, %v10410
  %10475 = vst.msk [vmem:[%s13 + $0x88] sm:$0xff] %vm3775, %v10411
  %10476 = vst.msk [vmem:[%s13 + $0x90] sm:$0xff] %vm3775, %v10412
  %10477 = vst.msk [vmem:[%s13 + $0x98] sm:$0xff] %vm3775, %v10413
  %10478 = vst.msk [vmem:[%s13 + $0xa0] sm:$0xff] %vm3775, %v10414
  %10479 = vst.msk [vmem:[%s13 + $0xa8] sm:$0xff] %vm3775, %v10415
  %10480 = vst.msk [vmem:[%s13 + $0xb0] sm:$0xff] %vm3775, %v10416
  %10481 = vst.msk [vmem:[%s13 + $0xb8] sm:$0xff] %vm3775, %v10417
  %10482 = vst.msk [vmem:[%s13 + $0xc0] sm:$0xff] %vm3775, %v10418
  %10483 = vst.msk [vmem:[%s13 + $0xc8] sm:$0xff] %vm3775, %v10419
  %10484 = vst.msk [vmem:[%s13 + $0xd0] sm:$0xff] %vm3775, %v10420
  %10485 = vst.msk [vmem:[%s13 + $0xd8] sm:$0xff] %vm3775, %v10421
  %10486 = vst.msk [vmem:[%s13 + $0xe0] sm:$0xff] %vm3775, %v10422
  %10487 = vst.msk [vmem:[%s13 + $0xe8] sm:$0xff] %vm3775, %v10423
  %10488 = vst.msk [vmem:[%s13 + $0xf0] sm:$0xff] %vm3775, %v10424
  %10489 = vst.msk [vmem:[%s13 + $0xf8] sm:$0xff] %vm3775, %v10425
  %10490 = vst.msk [vmem:[%s13 + $0x100] sm:$0xff] %vm3775, %v10426
  %10491 = vst.msk [vmem:[%s13 + $0x108] sm:$0xff] %vm3775, %v10427
  %10492 = vst.msk [vmem:[%s13 + $0x110] sm:$0xff] %vm3775, %v10428
  %10493 = vst.msk [vmem:[%s13 + $0x118] sm:$0xff] %vm3775, %v10429
  %10494 = vst.msk [vmem:[%s13 + $0x120] sm:$0xff] %vm3775, %v10430
  %10495 = vst.msk [vmem:[%s13 + $0x128] sm:$0xff] %vm3775, %v10431
  %10496 = vst.msk [vmem:[%s13 + $0x130] sm:$0xff] %vm3775, %v10432
  %10497 = vst.msk [vmem:[%s13 + $0x138] sm:$0xff] %vm3775, %v10433
  %10498 = vst.msk [vmem:[%s13 + $0x140] sm:$0xff] %vm3775, %v10434
  %10499 = vst.msk [vmem:[%s13 + $0x148] sm:$0xff] %vm3775, %v10435
  %10500 = vst.msk [vmem:[%s13 + $0x150] sm:$0xff] %vm3775, %v10436
  %10501 = vst.msk [vmem:[%s13 + $0x158] sm:$0xff] %vm3775, %v10437
  %10502 = vst.msk [vmem:[%s13 + $0x160] sm:$0xff] %vm3775, %v10438
  %10503 = vst.msk [vmem:[%s13 + $0x168] sm:$0xff] %vm3775, %v10439
  %10504 = vst.msk [vmem:[%s13 + $0x170] sm:$0xff] %vm3775, %v10440
  %10505 = vst.msk [vmem:[%s13 + $0x178] sm:$0xff] %vm3775, %v10441
  %10506 = vst.msk [vmem:[%s13 + $0x180] sm:$0xff] %vm3775, %v10442
  %10507 = vst.msk [vmem:[%s13 + $0x188] sm:$0xff] %vm3775, %v10443
  %10508 = vst.msk [vmem:[%s13 + $0x190] sm:$0xff] %vm3775, %v10444
  %10509 = vst.msk [vmem:[%s13 + $0x198] sm:$0xff] %vm3775, %v10445
  %10510 = vst.msk [vmem:[%s13 + $0x1a0] sm:$0xff] %vm3775, %v10446
  %10511 = vst.msk [vmem:[%s13 + $0x1a8] sm:$0xff] %vm3775, %v10447
  %10512 = vst.msk [vmem:[%s13 + $0x1b0] sm:$0xff] %vm3775, %v10448
  %10513 = vst.msk [vmem:[%s13 + $0x1b8] sm:$0xff] %vm3775, %v10449
  %10514 = vst.msk [vmem:[%s13 + $0x1c0] sm:$0xff] %vm3775, %v10450
  %10515 = vst.msk [vmem:[%s13 + $0x1c8] sm:$0xff] %vm3775, %v10451
  %10516 = vst.msk [vmem:[%s13 + $0x1d0] sm:$0xff] %vm3775, %v10452
  %10517 = vst.msk [vmem:[%s13 + $0x1d8] sm:$0xff] %vm3775, %v10453
  %10518 = vst.msk [vmem:[%s13 + $0x1e0] sm:$0xff] %vm3775, %v10454
  %10519 = vst.msk [vmem:[%s13 + $0x1e8] sm:$0xff] %vm3775, %v10455
  %10520 = vst.msk [vmem:[%s13 + $0x1f0] sm:$0xff] %vm3775, %v10456
  %10521 = vst.msk [vmem:[%s13 + $0x1f8] sm:$0xff] %vm3775, %v10457
  // Predicated region
  $region54: #{residual_block_forward.1} parent=0 // pred_check
    _
  $region55: #{residual_block_forward.1} parent=0 // pred_check_branch
    %10523 = sbr.rel (0) target = $region57
  $region56: #{residual_block_forward.1} parent=0 // pred_region
    _
  $region57: #{residual_block_forward.1} parent=0 // pred_fallthru
    _
  // Predicated region
  $region58: #{residual_block_forward.1} parent=0 // pred_check
    _
  $region59: #{residual_block_forward.1} parent=0 // pred_check_branch
    %10525 = sbr.rel (0) target = $region61
  $region60: #{residual_block_forward.1} parent=0 // pred_region
    _
  $region61: #{residual_block_forward.1} parent=0 // pred_fallthru
    _

</llo_original>
